<compile_context>
chip_gen: v7x
topology: tpu7x:2x2x1
jax: 0.10.0
libtpu: 0.0.40
codegen_flags: <defaults>
</compile_context>

<pallas_src>
import functools

import jax
import jax.numpy as jnp
import numpy as np
from jax import lax
from jax.experimental import pallas as pl
from jax.experimental.pallas import tpu as pltpu


def _pick_tile(total, target, multiple):
    """Largest tile <= target that is a multiple of `multiple` and divides total."""
    if total <= target:
        return total
    t = (target // multiple) * multiple
    while t >= multiple:
        if total % t == 0:
            return t
        t -= multiple
    return total  # fall back to the full extent


# ---------------------------------------------------------------------------
# Pallas LSTM kernel: grid iterates over time CHUNKS (sequential/"arbitrary"),
# h/c state for all layers lives in VMEM scratch across grid iterations.
# Weights arrive pre-fused/pre-transposed: w_cat (L, E+H, 4H), b (L, 1, 4H).
# ---------------------------------------------------------------------------
def _lstm_kernel(emb_ref, wcat_ref, bias_ref, h0_ref, c0_ref,
                 out_ref, hn_ref, cn_ref,
                 h_scr, c_scr, *, nlayers, hidden, tchunk):
    tci = pl.program_id(0)

    @pl.when(tci == 0)
    def _init():
        h_scr[...] = h0_ref[...]
        c_scr[...] = c0_ref[...]

    H = hidden

    def step(s, carry):
        x = emb_ref[s]                                   # (B, E) timestep input
        for l in range(nlayers):                         # static layer loop
            h_prev = h_scr[l]                            # (B, H)
            c_prev = c_scr[l]                            # (B, H)
            xh = jnp.concatenate([x, h_prev], axis=-1)   # (B, E+H)
            # single fused MXU dot per layer (K = E+H), PyTorch gate order i,f,g,o
            gates = (jnp.dot(xh, wcat_ref[l],
                             preferred_element_type=jnp.float32)
                     + bias_ref[l])                      # (B, 4H)
            i_g = jax.nn.sigmoid(gates[:, 0 * H:1 * H])
            f_g = jax.nn.sigmoid(gates[:, 1 * H:2 * H])
            g_g = jnp.tanh(gates[:, 2 * H:3 * H])
            o_g = jax.nn.sigmoid(gates[:, 3 * H:4 * H])
            c_new = f_g * c_prev + i_g * g_g
            h_new = o_g * jnp.tanh(c_new)
            h_scr[l] = h_new
            c_scr[l] = c_new
            x = h_new
        out_ref[s] = x.astype(out_ref.dtype)
        return carry

    lax.fori_loop(0, tchunk, step, 0, unroll=True)

    @pl.when(tci == pl.num_programs(0) - 1)
    def _finalize():
        hn_ref[...] = h_scr[...]
        cn_ref[...] = c_scr[...]


def lstm_forward(emb, w_cat, b_fused, h0, c0, *, time_chunk=8):
    """emb: (T, B, E); w_cat: (L, E+H, 4H); b_fused: (L, 1, 4H)."""
    T, B, E = emb.shape
    L, EH, fourH = w_cat.shape
    H = fourH // 4
    assert EH == E + H and E == H, "stacked fused weights require E == H"

    Tc = _pick_tile(T, time_chunk, 1)
    kernel = functools.partial(_lstm_kernel, nlayers=L, hidden=H, tchunk=Tc)

    out_shapes = (
        jax.ShapeDtypeStruct((T, B, H), jnp.float32),   # rnn output
        jax.ShapeDtypeStruct((L, B, H), jnp.float32),   # h_n
        jax.ShapeDtypeStruct((L, B, H), jnp.float32),   # c_n
    )

    grid_spec = pltpu.PrefetchScalarGridSpec(
        num_scalar_prefetch=0,
        grid=(T // Tc,),
        in_specs=[
            pl.BlockSpec((Tc, B, E), lambda t: (t, 0, 0)),      # emb chunk t
            pl.BlockSpec((L, EH, fourH), lambda t: (0, 0, 0)),  # fused weights
            pl.BlockSpec((L, 1, fourH), lambda t: (0, 0, 0)),   # fused bias
            pl.BlockSpec((L, B, H), lambda t: (0, 0, 0)),       # h0
            pl.BlockSpec((L, B, H), lambda t: (0, 0, 0)),       # c0
        ],
        out_specs=[
            pl.BlockSpec((Tc, B, H), lambda t: (t, 0, 0)),      # output chunk
            pl.BlockSpec((L, B, H), lambda t: (0, 0, 0)),       # h_n
            pl.BlockSpec((L, B, H), lambda t: (0, 0, 0)),       # c_n
        ],
        scratch_shapes=[
            pltpu.VMEM((L, B, H), jnp.float32),   # h state
            pltpu.VMEM((L, B, H), jnp.float32),   # c state
        ],
    )

    return pl.pallas_call(
        kernel,
        out_shape=out_shapes,
        grid_spec=grid_spec,
        compiler_params=pltpu.CompilerParams(
            dimension_semantics=("arbitrary",)),    # time is sequential
    )(emb, w_cat, b_fused, h0, c0)


# ---------------------------------------------------------------------------
# Pallas decoder kernel: tiled (N, H) @ (H, V) + bias -> (N, V)
# Weight pre-transposed to (H, V) so there is no in-kernel transpose.
# ---------------------------------------------------------------------------
def _decoder_kernel(x_ref, w_ref, b_ref, o_ref):
    o_ref[...] = (
        jnp.dot(x_ref[...], w_ref[...], preferred_element_type=jnp.float32)
        + b_ref[...]
    ).astype(o_ref.dtype)


def decoder_forward(x2d, w_dec_t, b_dec, *, tn_target=256, tv_target=512):
    """x2d: (N, H); w_dec_t: (H, V); b_dec: (1, V) -> (N, V)."""
    N, H = x2d.shape
    V = w_dec_t.shape[1]
    tn = _pick_tile(N, tn_target, 8)      # sublane-aligned row tile
    tv = _pick_tile(V, tv_target, 128)    # lane-dense vocab tile

    cost = pl.CostEstimate(
        flops=2 * N * H * V,
        transcendentals=0,
        bytes_accessed=4 * (N * H + H * V + V + N * V),
    )

    return pl.pallas_call(
        _decoder_kernel,
        out_shape=jax.ShapeDtypeStruct((N, V), jnp.float32),
        grid_spec=pltpu.PrefetchScalarGridSpec(
            num_scalar_prefetch=0,
            grid=(N // tn, V // tv),          # x tile resident across V (inner) axis
            in_specs=[
                pl.BlockSpec((tn, H), lambda i, j: (i, 0)),
                pl.BlockSpec((H, tv), lambda i, j: (0, j)),
                pl.BlockSpec((1, tv), lambda i, j: (0, j)),
            ],
            out_specs=pl.BlockSpec((tn, tv), lambda i, j: (i, j)),
        ),
        compiler_params=pltpu.CompilerParams(
            dimension_semantics=("parallel", "parallel")),
        cost_estimate=cost,
    )(x2d, w_dec_t, b_dec)


# ---------------------------------------------------------------------------
# Host-side glue: one-off weight fusion / transposition (not per-timestep).
# ---------------------------------------------------------------------------
def prepare_params(params, compute_dtype=jnp.float32):
    w_ih = params["w_ih"]            # (L, 4H, E)
    w_hh = params["w_hh"]            # (L, 4H, H)
    w_cat = jnp.concatenate([w_ih, w_hh], axis=2)          # (L, 4H, E+H)
    w_cat = jnp.transpose(w_cat, (0, 2, 1)).astype(compute_dtype)  # (L, E+H, 4H)
    b_fused = (params["b_ih"] + params["b_hh"]).astype(jnp.float32)  # (L, 1, 4H)
    dec_w_t = jnp.transpose(params["decoder_weight"], (1, 0)).astype(compute_dtype)  # (H, V)
    return {
        "encoder_weight": params["encoder_weight"],
        "w_cat": w_cat,
        "b_fused": b_fused,
        "decoder_weight_t": dec_w_t,
        "decoder_bias": params["decoder_bias"],
    }


# ---------------------------------------------------------------------------
# Full LanguageModel.forward (nout=None branch: no proj layer)
# ---------------------------------------------------------------------------
def language_model_forward(prep, token_ids, hidden, *, time_chunk=8):
    """token_ids: (T, B) int32;  hidden: (h0, c0) each (nlayers, B, H).

    Returns (decoded, output, (h_n, c_n)) matching the PyTorch module:
      decoded: (T, B, vocab)
      output : (T, B, H)   (rnn output after dropout == identity in eval)
      hidden : final (h_n, c_n)
    """
    h0, c0 = hidden
    # Embedding lookup (gather) in plain JAX glue; drop(emb) == identity (eval).
    emb = jnp.take(prep["encoder_weight"], token_ids, axis=0)  # (T, B, E)
    output, h_n, c_n = lstm_forward(
        emb, prep["w_cat"], prep["b_fused"], h0, c0, time_chunk=time_chunk)
    # proj is None (nout=None); drop(output) == identity in eval mode.
    T, B, H = output.shape
    decoded2d = decoder_forward(
        output.reshape(T * B, H), prep["decoder_weight_t"], prep["decoder_bias"])
    decoded = decoded2d.reshape(T, B, -1)
    return decoded, output, (h_n, c_n)


# ---------------------------------------------------------------------------
# Pure-JAX reference (for correctness check) — uses the raw PyTorch-layout
# parameters (two matmuls per layer, weights (4H, in)).
# ---------------------------------------------------------------------------
def reference_forward(params, token_ids, hidden):
    h0, c0 = hidden
    emb = jnp.take(params["encoder_weight"], token_ids, axis=0)
    T, B, E = emb.shape
    nlayers, fourH, _ = params["w_ih"].shape
    H = fourH // 4

    def step(carry, x_t):
        h, c = carry  # (L, B, H)
        new_h, new_c = [], []
        layer_in = x_t
        for l in range(nlayers):
            gates = (layer_in @ params["w_ih"][l].T
                     + h[l] @ params["w_hh"][l].T
                     + params["b_ih"][l] + params["b_hh"][l])
            i_g = jax.nn.sigmoid(gates[:, 0 * H:1 * H])
            f_g = jax.nn.sigmoid(gates[:, 1 * H:2 * H])
            g_g = jnp.tanh(gates[:, 2 * H:3 * H])
            o_g = jax.nn.sigmoid(gates[:, 3 * H:4 * H])
            c_l = f_g * c[l] + i_g * g_g
            h_l = o_g * jnp.tanh(c_l)
            new_h.append(h_l)
            new_c.append(c_l)
            layer_in = h_l
        return (jnp.stack(new_h), jnp.stack(new_c)), layer_in

    (h_n, c_n), out = lax.scan(step, (h0, c0), emb)
    decoded = out.reshape(T * B, H) @ params["decoder_weight"].T + \
        params["decoder_bias"]
    return decoded.reshape(T, B, -1), out, (h_n, c_n)


# ---------------------------------------------------------------------------
# Deterministic parameter init (mirrors the module's __init__ shapes)
# ---------------------------------------------------------------------------
def init_params(key, vocab, embedding_size, hidden_size, nlayers):
    assert embedding_size == hidden_size, "stacked LSTM weights require E == H"
    H, E = hidden_size, embedding_size
    ks = jax.random.split(key, 8)
    stdv = 1.0 / np.sqrt(H)  # PyTorch LSTM default init range
    params = {
        # nn.Embedding(vocab, E), init_weights: uniform(-0.1, 0.1)
        "encoder_weight": jax.random.uniform(ks[0], (vocab, E), jnp.float32,
                                             -0.1, 0.1),
        # nn.LSTM(E, H, nlayers): weight_ih_l{k} (4H, E or H), weight_hh (4H, H)
        "w_ih": jax.random.uniform(ks[1], (nlayers, 4 * H, E), jnp.float32,
                                   -stdv, stdv),
        "w_hh": jax.random.uniform(ks[2], (nlayers, 4 * H, H), jnp.float32,
                                   -stdv, stdv),
        "b_ih": jax.random.uniform(ks[3], (nlayers, 1, 4 * H), jnp.float32,
                                   -stdv, stdv),
        "b_hh": jax.random.uniform(ks[4], (nlayers, 1, 4 * H), jnp.float32,
                                   -stdv, stdv),
        # nn.Linear(H, vocab): weight uniform(-0.1, 0.1), bias zero
        "decoder_weight": jax.random.uniform(ks[5], (vocab, H), jnp.float32,
                                             -0.1, 0.1),
        "decoder_bias": jnp.zeros((1, vocab), jnp.float32),
    }
    return params
    # TODO(synk): nout-projection branch (self.proj) not exercised (nout=None).


if __name__ == "__main__":
    # Small, module-consistent shapes (H multiple of 128 -> lane-aligned gates).
    VOCAB = 1024         # len(dictionary)
    HIDDEN = 128         # hidden_size
    EMB = 128            # embedding_size (== hidden for stacked weights)
    NLAYERS = 2
    T, B = 16, 8         # sequence length, batch

    key = jax.random.PRNGKey(0)
    pkey, ikey = jax.random.split(key)
    params = init_params(pkey, VOCAB, EMB, HIDDEN, NLAYERS)
    prep = prepare_params(params)          # one-off fuse/transpose (host glue)

    token_ids = jax.random.randint(ikey, (T, B), 0, VOCAB, dtype=jnp.int32)
    # init_hidden(bsz): zeros (nlayers, B, H)
    h0 = jnp.zeros((NLAYERS, B, HIDDEN), jnp.float32)
    c0 = jnp.zeros((NLAYERS, B, HIDDEN), jnp.float32)

    decoded, output, (h_n, c_n) = language_model_forward(
        prep, token_ids, (h0, c0), time_chunk=8)
    jax.block_until_ready((decoded, output, h_n, c_n))

    # Correctness check against a pure-JAX reference (raw PyTorch layout).
    r_dec, r_out, (r_hn, r_cn) = reference_forward(params, token_ids, (h0, c0))
    np.testing.assert_allclose(np.asarray(output), np.asarray(r_out),
                               rtol=1e-4, atol=1e-4)
    np.testing.assert_allclose(np.asarray(decoded), np.asarray(r_dec),
                               rtol=1e-4, atol=1e-4)
    np.testing.assert_allclose(np.asarray(h_n), np.asarray(r_hn),
                               rtol=1e-4, atol=1e-4)
    np.testing.assert_allclose(np.asarray(c_n), np.asarray(r_cn),
                               rtol=1e-4, atol=1e-4)

    print("KERNEL_OK")
</pallas_src>

<mosaic_0001>
module attributes {stable_mosaic.version = 11 : i64} {
  func.func @_lstm_kernel(%arg0: i32, %arg1: memref<8x8x128xf32, #tpu.memory_space<vmem>>, %arg2: memref<2x256x512xf32, #tpu.memory_space<vmem>>, %arg3: memref<2x1x512xf32, #tpu.memory_space<vmem>>, %arg4: memref<2x8x128xf32, #tpu.memory_space<vmem>>, %arg5: memref<2x8x128xf32, #tpu.memory_space<vmem>>, %arg6: memref<8x8x128xf32, #tpu.memory_space<vmem>>, %arg7: memref<2x8x128xf32, #tpu.memory_space<vmem>>, %arg8: memref<2x8x128xf32, #tpu.memory_space<vmem>>, %arg9: memref<2x8x128xf32, #tpu.memory_space<vmem>>, %arg10: memref<2x8x128xf32, #tpu.memory_space<vmem>>) attributes {dimension_semantics = [#tpu.dimension_semantics<arbitrary>], iteration_bounds = array<i64: 2>, scalar_prefetch = 0 : i64, scratch_operands = 2 : i64, tpu.core_type = #tpu.core_type<tc>, window_params = [{transform_indices = @transform_0, window_bounds = array<i64: 8, 8, 128>}, {pipeline_mode = #tpu.pipeline_mode<synchronous>, transform_indices = @transform_1, window_bounds = array<i64: 2, 256, 512>}, {pipeline_mode = #tpu.pipeline_mode<synchronous>, transform_indices = @transform_2, window_bounds = array<i64: 2, 1, 512>}, {pipeline_mode = #tpu.pipeline_mode<synchronous>, transform_indices = @transform_3, window_bounds = array<i64: 2, 8, 128>}, {pipeline_mode = #tpu.pipeline_mode<synchronous>, transform_indices = @transform_4, window_bounds = array<i64: 2, 8, 128>}, {transform_indices = @transform_5, window_bounds = array<i64: 8, 8, 128>}, {pipeline_mode = #tpu.pipeline_mode<synchronous>, transform_indices = @transform_6, window_bounds = array<i64: 2, 8, 128>}, {pipeline_mode = #tpu.pipeline_mode<synchronous>, transform_indices = @transform_7, window_bounds = array<i64: 2, 8, 128>}]} {
    %c0_i32 = arith.constant 0 : i32
    %0 = arith.cmpi eq, %arg0, %c0_i32 : i32
    %1 = arith.extui %0 : i1 to i32
    %c0_i32_0 = arith.constant 0 : i32
    %2 = arith.cmpi ne, %1, %c0_i32_0 : i32
    scf.if %2 {
      %c0_385 = arith.constant 0 : index
      %c0_386 = arith.constant 0 : index
      %c0_387 = arith.constant 0 : index
      %750 = vector.load %arg4[%c0_385, %c0_386, %c0_387] : memref<2x8x128xf32, #tpu.memory_space<vmem>>, vector<2x8x128xf32>
      %c0_388 = arith.constant 0 : index
      %c0_389 = arith.constant 0 : index
      %c0_390 = arith.constant 0 : index
      %751 = vector.load %arg9[%c0_388, %c0_389, %c0_390] : memref<2x8x128xf32, #tpu.memory_space<vmem>>, vector<2x8x128xf32>
      tpu.vector_store %arg9[%c0_388, %c0_389, %c0_390], %750 {strides = array<i32>} : memref<2x8x128xf32, #tpu.memory_space<vmem>>, vector<2x8x128xf32>,
      %c0_391 = arith.constant 0 : index
      %c0_392 = arith.constant 0 : index
      %c0_393 = arith.constant 0 : index
      %752 = vector.load %arg5[%c0_391, %c0_392, %c0_393] : memref<2x8x128xf32, #tpu.memory_space<vmem>>, vector<2x8x128xf32>
      %c0_394 = arith.constant 0 : index
      %c0_395 = arith.constant 0 : index
      %c0_396 = arith.constant 0 : index
      %753 = vector.load %arg10[%c0_394, %c0_395, %c0_396] : memref<2x8x128xf32, #tpu.memory_space<vmem>>, vector<2x8x128xf32>
      tpu.vector_store %arg10[%c0_394, %c0_395, %c0_396], %752 {strides = array<i32>} : memref<2x8x128xf32, #tpu.memory_space<vmem>>, vector<2x8x128xf32>,
    } else {
    }
    %c0_i32_1 = arith.constant 0 : i32
    %3 = arith.index_cast %c0_i32_1 : i32 to index
    %c0 = arith.constant 0 : index
    %c0_2 = arith.constant 0 : index
    %4 = vector.load %arg1[%3, %c0, %c0_2] : memref<8x8x128xf32, #tpu.memory_space<vmem>>, vector<1x8x128xf32>
    %5 = vector.shape_cast %4 : vector<1x8x128xf32> to vector<8x128xf32>
    %c0_3 = arith.constant 0 : index
    %c0_4 = arith.constant 0 : index
    %c0_5 = arith.constant 0 : index
    %6 = vector.load %arg9[%c0_3, %c0_4, %c0_5] : memref<2x8x128xf32, #tpu.memory_space<vmem>>, vector<1x8x128xf32>
    %7 = vector.shape_cast %6 : vector<1x8x128xf32> to vector<8x128xf32>
    %c0_6 = arith.constant 0 : index
    %c0_7 = arith.constant 0 : index
    %c0_8 = arith.constant 0 : index
    %8 = vector.load %arg10[%c0_6, %c0_7, %c0_8] : memref<2x8x128xf32, #tpu.memory_space<vmem>>, vector<1x8x128xf32>
    %9 = vector.shape_cast %8 : vector<1x8x128xf32> to vector<8x128xf32>
    %10 = tpu.concatenate %5, %7 in 1 : vector<8x128xf32>, vector<8x128xf32> -> vector<8x256xf32>
    %c0_9 = arith.constant 0 : index
    %c0_10 = arith.constant 0 : index
    %c0_11 = arith.constant 0 : index
    %11 = vector.load %arg2[%c0_9, %c0_10, %c0_11] : memref<2x256x512xf32, #tpu.memory_space<vmem>>, vector<1x256x512xf32>
    %12 = vector.shape_cast %11 : vector<1x256x512xf32> to vector<256x512xf32>
    %cst = arith.constant dense<0.000000e+00> : vector<8x512xf32>
    %13 = tpu.matmul %10, %12, %cst {dimension_numbers = #tpu.dot_dimension_numbers<[1], [0], [0], [1], [0, 0, 1, 1], [], []>} : vector<8x256xf32>, vector<256x512xf32>, vector<8x512xf32> -> vector<8x512xf32>
    %c0_12 = arith.constant 0 : index
    %c0_13 = arith.constant 0 : index
    %c0_14 = arith.constant 0 : index
    %14 = vector.load %arg3[%c0_12, %c0_13, %c0_14] : memref<2x1x512xf32, #tpu.memory_space<vmem>>, vector<1x1x512xf32>
    %15 = vector.shape_cast %14 : vector<1x1x512xf32> to vector<1x512xf32>
    %16 = vector.broadcast %15 : vector<1x512xf32> to vector<8x512xf32>
    %17 = arith.addf %13, %16 : vector<8x512xf32>
    %18 = vector.extract_strided_slice %17 {offsets = [0, 0], sizes = [8, 128], strides = [1, 1]} : vector<8x512xf32> to vector<8x128xf32>
    %19 = arith.negf %18 : vector<8x128xf32>
    %20 = math.exp %19 : vector<8x128xf32>
    %cst_15 = arith.constant 1.000000e+00 : f32
    %21 = vector.broadcast %cst_15 : f32 to vector<8x128xf32>
    %22 = arith.addf %21, %20 : vector<8x128xf32>
    %23 = arith.divf %21, %22 : vector<8x128xf32>
    %24 = vector.extract_strided_slice %17 {offsets = [0, 128], sizes = [8, 128], strides = [1, 1]} : vector<8x512xf32> to vector<8x128xf32>
    %25 = arith.negf %24 : vector<8x128xf32>
    %26 = math.exp %25 : vector<8x128xf32>
    %cst_16 = arith.constant 1.000000e+00 : f32
    %27 = vector.broadcast %cst_16 : f32 to vector<8x128xf32>
    %28 = arith.addf %27, %26 : vector<8x128xf32>
    %29 = arith.divf %27, %28 : vector<8x128xf32>
    %30 = vector.extract_strided_slice %17 {offsets = [0, 256], sizes = [8, 128], strides = [1, 1]} : vector<8x512xf32> to vector<8x128xf32>
    %31 = math.tanh %30 : vector<8x128xf32>
    %32 = vector.extract_strided_slice %17 {offsets = [0, 384], sizes = [8, 128], strides = [1, 1]} : vector<8x512xf32> to vector<8x128xf32>
    %33 = arith.negf %32 : vector<8x128xf32>
    %34 = math.exp %33 : vector<8x128xf32>
    %cst_17 = arith.constant 1.000000e+00 : f32
    %35 = vector.broadcast %cst_17 : f32 to vector<8x128xf32>
    %36 = arith.addf %35, %34 : vector<8x128xf32>
    %37 = arith.divf %35, %36 : vector<8x128xf32>
    %38 = arith.mulf %29, %9 : vector<8x128xf32>
    %39 = arith.mulf %23, %31 : vector<8x128xf32>
    %40 = arith.addf %38, %39 : vector<8x128xf32>
    %41 = math.tanh %40 : vector<8x128xf32>
    %42 = arith.mulf %37, %41 : vector<8x128xf32>
    %c0_18 = arith.constant 0 : index
    %c0_19 = arith.constant 0 : index
    %c0_20 = arith.constant 0 : index
    %43 = vector.load %arg9[%c0_18, %c0_19, %c0_20] : memref<2x8x128xf32, #tpu.memory_space<vmem>>, vector<1x8x128xf32>
    %44 = vector.shape_cast %43 : vector<1x8x128xf32> to vector<8x128xf32>
    %45 = vector.shape_cast %42 : vector<8x128xf32> to vector<1x8x128xf32>
    tpu.vector_store %arg9[%c0_18, %c0_19, %c0_20], %45 {strides = array<i32>} : memref<2x8x128xf32, #tpu.memory_space<vmem>>, vector<1x8x128xf32>,
    %c0_21 = arith.constant 0 : index
    %c0_22 = arith.constant 0 : index
    %c0_23 = arith.constant 0 : index
    %46 = vector.load %arg10[%c0_21, %c0_22, %c0_23] : memref<2x8x128xf32, #tpu.memory_space<vmem>>, vector<1x8x128xf32>
    %47 = vector.shape_cast %46 : vector<1x8x128xf32> to vector<8x128xf32>
    %48 = vector.shape_cast %40 : vector<8x128xf32> to vector<1x8x128xf32>
    tpu.vector_store %arg10[%c0_21, %c0_22, %c0_23], %48 {strides = array<i32>} : memref<2x8x128xf32, #tpu.memory_space<vmem>>, vector<1x8x128xf32>,
    %c1 = arith.constant 1 : index
    %c0_24 = arith.constant 0 : index
    %c0_25 = arith.constant 0 : index
    %49 = vector.load %arg9[%c1, %c0_24, %c0_25] : memref<2x8x128xf32, #tpu.memory_space<vmem>>, vector<1x8x128xf32>
    %50 = vector.shape_cast %49 : vector<1x8x128xf32> to vector<8x128xf32>
    %c1_26 = arith.constant 1 : index
    %c0_27 = arith.constant 0 : index
    %c0_28 = arith.constant 0 : index
    %51 = vector.load %arg10[%c1_26, %c0_27, %c0_28] : memref<2x8x128xf32, #tpu.memory_space<vmem>>, vector<1x8x128xf32>
    %52 = vector.shape_cast %51 : vector<1x8x128xf32> to vector<8x128xf32>
    %53 = tpu.concatenate %42, %50 in 1 : vector<8x128xf32>, vector<8x128xf32> -> vector<8x256xf32>
    %c1_29 = arith.constant 1 : index
    %c0_30 = arith.constant 0 : index
    %c0_31 = arith.constant 0 : index
    %54 = vector.load %arg2[%c1_29, %c0_30, %c0_31] : memref<2x256x512xf32, #tpu.memory_space<vmem>>, vector<1x256x512xf32>
    %55 = vector.shape_cast %54 : vector<1x256x512xf32> to vector<256x512xf32>
    %cst_32 = arith.constant dense<0.000000e+00> : vector<8x512xf32>
    %56 = tpu.matmul %53, %55, %cst_32 {dimension_numbers = #tpu.dot_dimension_numbers<[1], [0], [0], [1], [0, 0, 1, 1], [], []>} : vector<8x256xf32>, vector<256x512xf32>, vector<8x512xf32> -> vector<8x512xf32>
    %c1_33 = arith.constant 1 : index
    %c0_34 = arith.constant 0 : index
    %c0_35 = arith.constant 0 : index
    %57 = vector.load %arg3[%c1_33, %c0_34, %c0_35] : memref<2x1x512xf32, #tpu.memory_space<vmem>>, vector<1x1x512xf32>
    %58 = vector.shape_cast %57 : vector<1x1x512xf32> to vector<1x512xf32>
    %59 = vector.broadcast %58 : vector<1x512xf32> to vector<8x512xf32>
    %60 = arith.addf %56, %59 : vector<8x512xf32>
    %61 = vector.extract_strided_slice %60 {offsets = [0, 0], sizes = [8, 128], strides = [1, 1]} : vector<8x512xf32> to vector<8x128xf32>
    %62 = arith.negf %61 : vector<8x128xf32>
    %63 = math.exp %62 : vector<8x128xf32>
    %cst_36 = arith.constant 1.000000e+00 : f32
    %64 = vector.broadcast %cst_36 : f32 to vector<8x128xf32>
    %65 = arith.addf %64, %63 : vector<8x128xf32>
    %66 = arith.divf %64, %65 : vector<8x128xf32>
    %67 = vector.extract_strided_slice %60 {offsets = [0, 128], sizes = [8, 128], strides = [1, 1]} : vector<8x512xf32> to vector<8x128xf32>
    %68 = arith.negf %67 : vector<8x128xf32>
    %69 = math.exp %68 : vector<8x128xf32>
    %cst_37 = arith.constant 1.000000e+00 : f32
    %70 = vector.broadcast %cst_37 : f32 to vector<8x128xf32>
    %71 = arith.addf %70, %69 : vector<8x128xf32>
    %72 = arith.divf %70, %71 : vector<8x128xf32>
    %73 = vector.extract_strided_slice %60 {offsets = [0, 256], sizes = [8, 128], strides = [1, 1]} : vector<8x512xf32> to vector<8x128xf32>
    %74 = math.tanh %73 : vector<8x128xf32>
    %75 = vector.extract_strided_slice %60 {offsets = [0, 384], sizes = [8, 128], strides = [1, 1]} : vector<8x512xf32> to vector<8x128xf32>
    %76 = arith.negf %75 : vector<8x128xf32>
    %77 = math.exp %76 : vector<8x128xf32>
    %cst_38 = arith.constant 1.000000e+00 : f32
    %78 = vector.broadcast %cst_38 : f32 to vector<8x128xf32>
    %79 = arith.addf %78, %77 : vector<8x128xf32>
    %80 = arith.divf %78, %79 : vector<8x128xf32>
    %81 = arith.mulf %72, %52 : vector<8x128xf32>
    %82 = arith.mulf %66, %74 : vector<8x128xf32>
    %83 = arith.addf %81, %82 : vector<8x128xf32>
    %84 = math.tanh %83 : vector<8x128xf32>
    %85 = arith.mulf %80, %84 : vector<8x128xf32>
    %c1_39 = arith.constant 1 : index
    %c0_40 = arith.constant 0 : index
    %c0_41 = arith.constant 0 : index
    %86 = vector.load %arg9[%c1_39, %c0_40, %c0_41] : memref<2x8x128xf32, #tpu.memory_space<vmem>>, vector<1x8x128xf32>
    %87 = vector.shape_cast %86 : vector<1x8x128xf32> to vector<8x128xf32>
    %88 = vector.shape_cast %85 : vector<8x128xf32> to vector<1x8x128xf32>
    tpu.vector_store %arg9[%c1_39, %c0_40, %c0_41], %88 {strides = array<i32>} : memref<2x8x128xf32, #tpu.memory_space<vmem>>, vector<1x8x128xf32>,
    %c1_42 = arith.constant 1 : index
    %c0_43 = arith.constant 0 : index
    %c0_44 = arith.constant 0 : index
    %89 = vector.load %arg10[%c1_42, %c0_43, %c0_44] : memref<2x8x128xf32, #tpu.memory_space<vmem>>, vector<1x8x128xf32>
    %90 = vector.shape_cast %89 : vector<1x8x128xf32> to vector<8x128xf32>
    %91 = vector.shape_cast %83 : vector<8x128xf32> to vector<1x8x128xf32>
    tpu.vector_store %arg10[%c1_42, %c0_43, %c0_44], %91 {strides = array<i32>} : memref<2x8x128xf32, #tpu.memory_space<vmem>>, vector<1x8x128xf32>,
    %92 = arith.index_cast %c0_i32_1 : i32 to index
    %c0_45 = arith.constant 0 : index
    %c0_46 = arith.constant 0 : index
    %93 = vector.load %arg6[%92, %c0_45, %c0_46] : memref<8x8x128xf32, #tpu.memory_space<vmem>>, vector<1x8x128xf32>
    %94 = vector.shape_cast %93 : vector<1x8x128xf32> to vector<8x128xf32>
    %95 = vector.shape_cast %85 : vector<8x128xf32> to vector<1x8x128xf32>
    tpu.vector_store %arg6[%92, %c0_45, %c0_46], %95 {strides = array<i32>} : memref<8x8x128xf32, #tpu.memory_space<vmem>>, vector<1x8x128xf32>,
    %c1_i32 = arith.constant 1 : i32
    %96 = arith.index_cast %c1_i32 : i32 to index
    %c0_47 = arith.constant 0 : index
    %c0_48 = arith.constant 0 : index
    %97 = vector.load %arg1[%96, %c0_47, %c0_48] : memref<8x8x128xf32, #tpu.memory_space<vmem>>, vector<1x8x128xf32>
    %98 = vector.shape_cast %97 : vector<1x8x128xf32> to vector<8x128xf32>
    %c0_49 = arith.constant 0 : index
    %c0_50 = arith.constant 0 : index
    %c0_51 = arith.constant 0 : index
    %99 = vector.load %arg9[%c0_49, %c0_50, %c0_51] : memref<2x8x128xf32, #tpu.memory_space<vmem>>, vector<1x8x128xf32>
    %100 = vector.shape_cast %99 : vector<1x8x128xf32> to vector<8x128xf32>
    %c0_52 = arith.constant 0 : index
    %c0_53 = arith.constant 0 : index
    %c0_54 = arith.constant 0 : index
    %101 = vector.load %arg10[%c0_52, %c0_53, %c0_54] : memref<2x8x128xf32, #tpu.memory_space<vmem>>, vector<1x8x128xf32>
    %102 = vector.shape_cast %101 : vector<1x8x128xf32> to vector<8x128xf32>
    %103 = tpu.concatenate %98, %100 in 1 : vector<8x128xf32>, vector<8x128xf32> -> vector<8x256xf32>
    %c0_55 = arith.constant 0 : index
    %c0_56 = arith.constant 0 : index
    %c0_57 = arith.constant 0 : index
    %104 = vector.load %arg2[%c0_55, %c0_56, %c0_57] : memref<2x256x512xf32, #tpu.memory_space<vmem>>, vector<1x256x512xf32>
    %105 = vector.shape_cast %104 : vector<1x256x512xf32> to vector<256x512xf32>
    %cst_58 = arith.constant dense<0.000000e+00> : vector<8x512xf32>
    %106 = tpu.matmul %103, %105, %cst_58 {dimension_numbers = #tpu.dot_dimension_numbers<[1], [0], [0], [1], [0, 0, 1, 1], [], []>} : vector<8x256xf32>, vector<256x512xf32>, vector<8x512xf32> -> vector<8x512xf32>
    %c0_59 = arith.constant 0 : index
    %c0_60 = arith.constant 0 : index
    %c0_61 = arith.constant 0 : index
    %107 = vector.load %arg3[%c0_59, %c0_60, %c0_61] : memref<2x1x512xf32, #tpu.memory_space<vmem>>, vector<1x1x512xf32>
    %108 = vector.shape_cast %107 : vector<1x1x512xf32> to vector<1x512xf32>
    %109 = vector.broadcast %108 : vector<1x512xf32> to vector<8x512xf32>
    %110 = arith.addf %106, %109 : vector<8x512xf32>
    %111 = vector.extract_strided_slice %110 {offsets = [0, 0], sizes = [8, 128], strides = [1, 1]} : vector<8x512xf32> to vector<8x128xf32>
    %112 = arith.negf %111 : vector<8x128xf32>
    %113 = math.exp %112 : vector<8x128xf32>
    %cst_62 = arith.constant 1.000000e+00 : f32
    %114 = vector.broadcast %cst_62 : f32 to vector<8x128xf32>
    %115 = arith.addf %114, %113 : vector<8x128xf32>
    %116 = arith.divf %114, %115 : vector<8x128xf32>
    %117 = vector.extract_strided_slice %110 {offsets = [0, 128], sizes = [8, 128], strides = [1, 1]} : vector<8x512xf32> to vector<8x128xf32>
    %118 = arith.negf %117 : vector<8x128xf32>
    %119 = math.exp %118 : vector<8x128xf32>
    %cst_63 = arith.constant 1.000000e+00 : f32
    %120 = vector.broadcast %cst_63 : f32 to vector<8x128xf32>
    %121 = arith.addf %120, %119 : vector<8x128xf32>
    %122 = arith.divf %120, %121 : vector<8x128xf32>
    %123 = vector.extract_strided_slice %110 {offsets = [0, 256], sizes = [8, 128], strides = [1, 1]} : vector<8x512xf32> to vector<8x128xf32>
    %124 = math.tanh %123 : vector<8x128xf32>
    %125 = vector.extract_strided_slice %110 {offsets = [0, 384], sizes = [8, 128], strides = [1, 1]} : vector<8x512xf32> to vector<8x128xf32>
    %126 = arith.negf %125 : vector<8x128xf32>
    %127 = math.exp %126 : vector<8x128xf32>
    %cst_64 = arith.constant 1.000000e+00 : f32
    %128 = vector.broadcast %cst_64 : f32 to vector<8x128xf32>
    %129 = arith.addf %128, %127 : vector<8x128xf32>
    %130 = arith.divf %128, %129 : vector<8x128xf32>
    %131 = arith.mulf %122, %102 : vector<8x128xf32>
    %132 = arith.mulf %116, %124 : vector<8x128xf32>
    %133 = arith.addf %131, %132 : vector<8x128xf32>
    %134 = math.tanh %133 : vector<8x128xf32>
    %135 = arith.mulf %130, %134 : vector<8x128xf32>
    %c0_65 = arith.constant 0 : index
    %c0_66 = arith.constant 0 : index
    %c0_67 = arith.constant 0 : index
    %136 = vector.load %arg9[%c0_65, %c0_66, %c0_67] : memref<2x8x128xf32, #tpu.memory_space<vmem>>, vector<1x8x128xf32>
    %137 = vector.shape_cast %136 : vector<1x8x128xf32> to vector<8x128xf32>
    %138 = vector.shape_cast %135 : vector<8x128xf32> to vector<1x8x128xf32>
    tpu.vector_store %arg9[%c0_65, %c0_66, %c0_67], %138 {strides = array<i32>} : memref<2x8x128xf32, #tpu.memory_space<vmem>>, vector<1x8x128xf32>,
    %c0_68 = arith.constant 0 : index
    %c0_69 = arith.constant 0 : index
    %c0_70 = arith.constant 0 : index
    %139 = vector.load %arg10[%c0_68, %c0_69, %c0_70] : memref<2x8x128xf32, #tpu.memory_space<vmem>>, vector<1x8x128xf32>
    %140 = vector.shape_cast %139 : vector<1x8x128xf32> to vector<8x128xf32>
    %141 = vector.shape_cast %133 : vector<8x128xf32> to vector<1x8x128xf32>
    tpu.vector_store %arg10[%c0_68, %c0_69, %c0_70], %141 {strides = array<i32>} : memref<2x8x128xf32, #tpu.memory_space<vmem>>, vector<1x8x128xf32>,
    %c1_71 = arith.constant 1 : index
    %c0_72 = arith.constant 0 : index
    %c0_73 = arith.constant 0 : index
    %142 = vector.load %arg9[%c1_71, %c0_72, %c0_73] : memref<2x8x128xf32, #tpu.memory_space<vmem>>, vector<1x8x128xf32>
    %143 = vector.shape_cast %142 : vector<1x8x128xf32> to vector<8x128xf32>
    %c1_74 = arith.constant 1 : index
    %c0_75 = arith.constant 0 : index
    %c0_76 = arith.constant 0 : index
    %144 = vector.load %arg10[%c1_74, %c0_75, %c0_76] : memref<2x8x128xf32, #tpu.memory_space<vmem>>, vector<1x8x128xf32>
    %145 = vector.shape_cast %144 : vector<1x8x128xf32> to vector<8x128xf32>
    %146 = tpu.concatenate %135, %143 in 1 : vector<8x128xf32>, vector<8x128xf32> -> vector<8x256xf32>
    %c1_77 = arith.constant 1 : index
    %c0_78 = arith.constant 0 : index
    %c0_79 = arith.constant 0 : index
    %147 = vector.load %arg2[%c1_77, %c0_78, %c0_79] : memref<2x256x512xf32, #tpu.memory_space<vmem>>, vector<1x256x512xf32>
    %148 = vector.shape_cast %147 : vector<1x256x512xf32> to vector<256x512xf32>
    %cst_80 = arith.constant dense<0.000000e+00> : vector<8x512xf32>
    %149 = tpu.matmul %146, %148, %cst_80 {dimension_numbers = #tpu.dot_dimension_numbers<[1], [0], [0], [1], [0, 0, 1, 1], [], []>} : vector<8x256xf32>, vector<256x512xf32>, vector<8x512xf32> -> vector<8x512xf32>
    %c1_81 = arith.constant 1 : index
    %c0_82 = arith.constant 0 : index
    %c0_83 = arith.constant 0 : index
    %150 = vector.load %arg3[%c1_81, %c0_82, %c0_83] : memref<2x1x512xf32, #tpu.memory_space<vmem>>, vector<1x1x512xf32>
    %151 = vector.shape_cast %150 : vector<1x1x512xf32> to vector<1x512xf32>
    %152 = vector.broadcast %151 : vector<1x512xf32> to vector<8x512xf32>
    %153 = arith.addf %149, %152 : vector<8x512xf32>
    %154 = vector.extract_strided_slice %153 {offsets = [0, 0], sizes = [8, 128], strides = [1, 1]} : vector<8x512xf32> to vector<8x128xf32>
    %155 = arith.negf %154 : vector<8x128xf32>
    %156 = math.exp %155 : vector<8x128xf32>
    %cst_84 = arith.constant 1.000000e+00 : f32
    %157 = vector.broadcast %cst_84 : f32 to vector<8x128xf32>
    %158 = arith.addf %157, %156 : vector<8x128xf32>
    %159 = arith.divf %157, %158 : vector<8x128xf32>
    %160 = vector.extract_strided_slice %153 {offsets = [0, 128], sizes = [8, 128], strides = [1, 1]} : vector<8x512xf32> to vector<8x128xf32>
    %161 = arith.negf %160 : vector<8x128xf32>
    %162 = math.exp %161 : vector<8x128xf32>
    %cst_85 = arith.constant 1.000000e+00 : f32
    %163 = vector.broadcast %cst_85 : f32 to vector<8x128xf32>
    %164 = arith.addf %163, %162 : vector<8x128xf32>
    %165 = arith.divf %163, %164 : vector<8x128xf32>
    %166 = vector.extract_strided_slice %153 {offsets = [0, 256], sizes = [8, 128], strides = [1, 1]} : vector<8x512xf32> to vector<8x128xf32>
    %167 = math.tanh %166 : vector<8x128xf32>
    %168 = vector.extract_strided_slice %153 {offsets = [0, 384], sizes = [8, 128], strides = [1, 1]} : vector<8x512xf32> to vector<8x128xf32>
    %169 = arith.negf %168 : vector<8x128xf32>
    %170 = math.exp %169 : vector<8x128xf32>
    %cst_86 = arith.constant 1.000000e+00 : f32
    %171 = vector.broadcast %cst_86 : f32 to vector<8x128xf32>
    %172 = arith.addf %171, %170 : vector<8x128xf32>
    %173 = arith.divf %171, %172 : vector<8x128xf32>
    %174 = arith.mulf %165, %145 : vector<8x128xf32>
    %175 = arith.mulf %159, %167 : vector<8x128xf32>
    %176 = arith.addf %174, %175 : vector<8x128xf32>
    %177 = math.tanh %176 : vector<8x128xf32>
    %178 = arith.mulf %173, %177 : vector<8x128xf32>
    %c1_87 = arith.constant 1 : index
    %c0_88 = arith.constant 0 : index
    %c0_89 = arith.constant 0 : index
    %179 = vector.load %arg9[%c1_87, %c0_88, %c0_89] : memref<2x8x128xf32, #tpu.memory_space<vmem>>, vector<1x8x128xf32>
    %180 = vector.shape_cast %179 : vector<1x8x128xf32> to vector<8x128xf32>
    %181 = vector.shape_cast %178 : vector<8x128xf32> to vector<1x8x128xf32>
    tpu.vector_store %arg9[%c1_87, %c0_88, %c0_89], %181 {strides = array<i32>} : memref<2x8x128xf32, #tpu.memory_space<vmem>>, vector<1x8x128xf32>,
    %c1_90 = arith.constant 1 : index
    %c0_91 = arith.constant 0 : index
    %c0_92 = arith.constant 0 : index
    %182 = vector.load %arg10[%c1_90, %c0_91, %c0_92] : memref<2x8x128xf32, #tpu.memory_space<vmem>>, vector<1x8x128xf32>
    %183 = vector.shape_cast %182 : vector<1x8x128xf32> to vector<8x128xf32>
    %184 = vector.shape_cast %176 : vector<8x128xf32> to vector<1x8x128xf32>
    tpu.vector_store %arg10[%c1_90, %c0_91, %c0_92], %184 {strides = array<i32>} : memref<2x8x128xf32, #tpu.memory_space<vmem>>, vector<1x8x128xf32>,
    %185 = arith.index_cast %c1_i32 : i32 to index
    %c0_93 = arith.constant 0 : index
    %c0_94 = arith.constant 0 : index
    %186 = vector.load %arg6[%185, %c0_93, %c0_94] : memref<8x8x128xf32, #tpu.memory_space<vmem>>, vector<1x8x128xf32>
    %187 = vector.shape_cast %186 : vector<1x8x128xf32> to vector<8x128xf32>
    %188 = vector.shape_cast %178 : vector<8x128xf32> to vector<1x8x128xf32>
    tpu.vector_store %arg6[%185, %c0_93, %c0_94], %188 {strides = array<i32>} : memref<8x8x128xf32, #tpu.memory_space<vmem>>, vector<1x8x128xf32>,
    %c2_i32 = arith.constant 2 : i32
    %189 = arith.index_cast %c2_i32 : i32 to index
    %c0_95 = arith.constant 0 : index
    %c0_96 = arith.constant 0 : index
    %190 = vector.load %arg1[%189, %c0_95, %c0_96] : memref<8x8x128xf32, #tpu.memory_space<vmem>>, vector<1x8x128xf32>
    %191 = vector.shape_cast %190 : vector<1x8x128xf32> to vector<8x128xf32>
    %c0_97 = arith.constant 0 : index
    %c0_98 = arith.constant 0 : index
    %c0_99 = arith.constant 0 : index
    %192 = vector.load %arg9[%c0_97, %c0_98, %c0_99] : memref<2x8x128xf32, #tpu.memory_space<vmem>>, vector<1x8x128xf32>
    %193 = vector.shape_cast %192 : vector<1x8x128xf32> to vector<8x128xf32>
    %c0_100 = arith.constant 0 : index
    %c0_101 = arith.constant 0 : index
    %c0_102 = arith.constant 0 : index
    %194 = vector.load %arg10[%c0_100, %c0_101, %c0_102] : memref<2x8x128xf32, #tpu.memory_space<vmem>>, vector<1x8x128xf32>
    %195 = vector.shape_cast %194 : vector<1x8x128xf32> to vector<8x128xf32>
    %196 = tpu.concatenate %191, %193 in 1 : vector<8x128xf32>, vector<8x128xf32> -> vector<8x256xf32>
    %c0_103 = arith.constant 0 : index
    %c0_104 = arith.constant 0 : index
    %c0_105 = arith.constant 0 : index
    %197 = vector.load %arg2[%c0_103, %c0_104, %c0_105] : memref<2x256x512xf32, #tpu.memory_space<vmem>>, vector<1x256x512xf32>
    %198 = vector.shape_cast %197 : vector<1x256x512xf32> to vector<256x512xf32>
    %cst_106 = arith.constant dense<0.000000e+00> : vector<8x512xf32>
    %199 = tpu.matmul %196, %198, %cst_106 {dimension_numbers = #tpu.dot_dimension_numbers<[1], [0], [0], [1], [0, 0, 1, 1], [], []>} : vector<8x256xf32>, vector<256x512xf32>, vector<8x512xf32> -> vector<8x512xf32>
    %c0_107 = arith.constant 0 : index
    %c0_108 = arith.constant 0 : index
    %c0_109 = arith.constant 0 : index
    %200 = vector.load %arg3[%c0_107, %c0_108, %c0_109] : memref<2x1x512xf32, #tpu.memory_space<vmem>>, vector<1x1x512xf32>
    %201 = vector.shape_cast %200 : vector<1x1x512xf32> to vector<1x512xf32>
    %202 = vector.broadcast %201 : vector<1x512xf32> to vector<8x512xf32>
    %203 = arith.addf %199, %202 : vector<8x512xf32>
    %204 = vector.extract_strided_slice %203 {offsets = [0, 0], sizes = [8, 128], strides = [1, 1]} : vector<8x512xf32> to vector<8x128xf32>
    %205 = arith.negf %204 : vector<8x128xf32>
    %206 = math.exp %205 : vector<8x128xf32>
    %cst_110 = arith.constant 1.000000e+00 : f32
    %207 = vector.broadcast %cst_110 : f32 to vector<8x128xf32>
    %208 = arith.addf %207, %206 : vector<8x128xf32>
    %209 = arith.divf %207, %208 : vector<8x128xf32>
    %210 = vector.extract_strided_slice %203 {offsets = [0, 128], sizes = [8, 128], strides = [1, 1]} : vector<8x512xf32> to vector<8x128xf32>
    %211 = arith.negf %210 : vector<8x128xf32>
    %212 = math.exp %211 : vector<8x128xf32>
    %cst_111 = arith.constant 1.000000e+00 : f32
    %213 = vector.broadcast %cst_111 : f32 to vector<8x128xf32>
    %214 = arith.addf %213, %212 : vector<8x128xf32>
    %215 = arith.divf %213, %214 : vector<8x128xf32>
    %216 = vector.extract_strided_slice %203 {offsets = [0, 256], sizes = [8, 128], strides = [1, 1]} : vector<8x512xf32> to vector<8x128xf32>
    %217 = math.tanh %216 : vector<8x128xf32>
    %218 = vector.extract_strided_slice %203 {offsets = [0, 384], sizes = [8, 128], strides = [1, 1]} : vector<8x512xf32> to vector<8x128xf32>
    %219 = arith.negf %218 : vector<8x128xf32>
    %220 = math.exp %219 : vector<8x128xf32>
    %cst_112 = arith.constant 1.000000e+00 : f32
    %221 = vector.broadcast %cst_112 : f32 to vector<8x128xf32>
    %222 = arith.addf %221, %220 : vector<8x128xf32>
    %223 = arith.divf %221, %222 : vector<8x128xf32>
    %224 = arith.mulf %215, %195 : vector<8x128xf32>
    %225 = arith.mulf %209, %217 : vector<8x128xf32>
    %226 = arith.addf %224, %225 : vector<8x128xf32>
    %227 = math.tanh %226 : vector<8x128xf32>
    %228 = arith.mulf %223, %227 : vector<8x128xf32>
    %c0_113 = arith.constant 0 : index
    %c0_114 = arith.constant 0 : index
    %c0_115 = arith.constant 0 : index
    %229 = vector.load %arg9[%c0_113, %c0_114, %c0_115] : memref<2x8x128xf32, #tpu.memory_space<vmem>>, vector<1x8x128xf32>
    %230 = vector.shape_cast %229 : vector<1x8x128xf32> to vector<8x128xf32>
    %231 = vector.shape_cast %228 : vector<8x128xf32> to vector<1x8x128xf32>
    tpu.vector_store %arg9[%c0_113, %c0_114, %c0_115], %231 {strides = array<i32>} : memref<2x8x128xf32, #tpu.memory_space<vmem>>, vector<1x8x128xf32>,
    %c0_116 = arith.constant 0 : index
    %c0_117 = arith.constant 0 : index
    %c0_118 = arith.constant 0 : index
    %232 = vector.load %arg10[%c0_116, %c0_117, %c0_118] : memref<2x8x128xf32, #tpu.memory_space<vmem>>, vector<1x8x128xf32>
    %233 = vector.shape_cast %232 : vector<1x8x128xf32> to vector<8x128xf32>
    %234 = vector.shape_cast %226 : vector<8x128xf32> to vector<1x8x128xf32>
    tpu.vector_store %arg10[%c0_116, %c0_117, %c0_118], %234 {strides = array<i32>} : memref<2x8x128xf32, #tpu.memory_space<vmem>>, vector<1x8x128xf32>,
    %c1_119 = arith.constant 1 : index
    %c0_120 = arith.constant 0 : index
    %c0_121 = arith.constant 0 : index
    %235 = vector.load %arg9[%c1_119, %c0_120, %c0_121] : memref<2x8x128xf32, #tpu.memory_space<vmem>>, vector<1x8x128xf32>
    %236 = vector.shape_cast %235 : vector<1x8x128xf32> to vector<8x128xf32>
    %c1_122 = arith.constant 1 : index
    %c0_123 = arith.constant 0 : index
    %c0_124 = arith.constant 0 : index
    %237 = vector.load %arg10[%c1_122, %c0_123, %c0_124] : memref<2x8x128xf32, #tpu.memory_space<vmem>>, vector<1x8x128xf32>
    %238 = vector.shape_cast %237 : vector<1x8x128xf32> to vector<8x128xf32>
    %239 = tpu.concatenate %228, %236 in 1 : vector<8x128xf32>, vector<8x128xf32> -> vector<8x256xf32>
    %c1_125 = arith.constant 1 : index
    %c0_126 = arith.constant 0 : index
    %c0_127 = arith.constant 0 : index
    %240 = vector.load %arg2[%c1_125, %c0_126, %c0_127] : memref<2x256x512xf32, #tpu.memory_space<vmem>>, vector<1x256x512xf32>
    %241 = vector.shape_cast %240 : vector<1x256x512xf32> to vector<256x512xf32>
    %cst_128 = arith.constant dense<0.000000e+00> : vector<8x512xf32>
    %242 = tpu.matmul %239, %241, %cst_128 {dimension_numbers = #tpu.dot_dimension_numbers<[1], [0], [0], [1], [0, 0, 1, 1], [], []>} : vector<8x256xf32>, vector<256x512xf32>, vector<8x512xf32> -> vector<8x512xf32>
    %c1_129 = arith.constant 1 : index
    %c0_130 = arith.constant 0 : index
    %c0_131 = arith.constant 0 : index
    %243 = vector.load %arg3[%c1_129, %c0_130, %c0_131] : memref<2x1x512xf32, #tpu.memory_space<vmem>>, vector<1x1x512xf32>
    %244 = vector.shape_cast %243 : vector<1x1x512xf32> to vector<1x512xf32>
    %245 = vector.broadcast %244 : vector<1x512xf32> to vector<8x512xf32>
    %246 = arith.addf %242, %245 : vector<8x512xf32>
    %247 = vector.extract_strided_slice %246 {offsets = [0, 0], sizes = [8, 128], strides = [1, 1]} : vector<8x512xf32> to vector<8x128xf32>
    %248 = arith.negf %247 : vector<8x128xf32>
    %249 = math.exp %248 : vector<8x128xf32>
    %cst_132 = arith.constant 1.000000e+00 : f32
    %250 = vector.broadcast %cst_132 : f32 to vector<8x128xf32>
    %251 = arith.addf %250, %249 : vector<8x128xf32>
    %252 = arith.divf %250, %251 : vector<8x128xf32>
    %253 = vector.extract_strided_slice %246 {offsets = [0, 128], sizes = [8, 128], strides = [1, 1]} : vector<8x512xf32> to vector<8x128xf32>
    %254 = arith.negf %253 : vector<8x128xf32>
    %255 = math.exp %254 : vector<8x128xf32>
    %cst_133 = arith.constant 1.000000e+00 : f32
    %256 = vector.broadcast %cst_133 : f32 to vector<8x128xf32>
    %257 = arith.addf %256, %255 : vector<8x128xf32>
    %258 = arith.divf %256, %257 : vector<8x128xf32>
    %259 = vector.extract_strided_slice %246 {offsets = [0, 256], sizes = [8, 128], strides = [1, 1]} : vector<8x512xf32> to vector<8x128xf32>
    %260 = math.tanh %259 : vector<8x128xf32>
    %261 = vector.extract_strided_slice %246 {offsets = [0, 384], sizes = [8, 128], strides = [1, 1]} : vector<8x512xf32> to vector<8x128xf32>
    %262 = arith.negf %261 : vector<8x128xf32>
    %263 = math.exp %262 : vector<8x128xf32>
    %cst_134 = arith.constant 1.000000e+00 : f32
    %264 = vector.broadcast %cst_134 : f32 to vector<8x128xf32>
    %265 = arith.addf %264, %263 : vector<8x128xf32>
    %266 = arith.divf %264, %265 : vector<8x128xf32>
    %267 = arith.mulf %258, %238 : vector<8x128xf32>
    %268 = arith.mulf %252, %260 : vector<8x128xf32>
    %269 = arith.addf %267, %268 : vector<8x128xf32>
    %270 = math.tanh %269 : vector<8x128xf32>
    %271 = arith.mulf %266, %270 : vector<8x128xf32>
    %c1_135 = arith.constant 1 : index
    %c0_136 = arith.constant 0 : index
    %c0_137 = arith.constant 0 : index
    %272 = vector.load %arg9[%c1_135, %c0_136, %c0_137] : memref<2x8x128xf32, #tpu.memory_space<vmem>>, vector<1x8x128xf32>
    %273 = vector.shape_cast %272 : vector<1x8x128xf32> to vector<8x128xf32>
    %274 = vector.shape_cast %271 : vector<8x128xf32> to vector<1x8x128xf32>
    tpu.vector_store %arg9[%c1_135, %c0_136, %c0_137], %274 {strides = array<i32>} : memref<2x8x128xf32, #tpu.memory_space<vmem>>, vector<1x8x128xf32>,
    %c1_138 = arith.constant 1 : index
    %c0_139 = arith.constant 0 : index
    %c0_140 = arith.constant 0 : index
    %275 = vector.load %arg10[%c1_138, %c0_139, %c0_140] : memref<2x8x128xf32, #tpu.memory_space<vmem>>, vector<1x8x128xf32>
    %276 = vector.shape_cast %275 : vector<1x8x128xf32> to vector<8x128xf32>
    %277 = vector.shape_cast %269 : vector<8x128xf32> to vector<1x8x128xf32>
    tpu.vector_store %arg10[%c1_138, %c0_139, %c0_140], %277 {strides = array<i32>} : memref<2x8x128xf32, #tpu.memory_space<vmem>>, vector<1x8x128xf32>,
    %278 = arith.index_cast %c2_i32 : i32 to index
    %c0_141 = arith.constant 0 : index
    %c0_142 = arith.constant 0 : index
    %279 = vector.load %arg6[%278, %c0_141, %c0_142] : memref<8x8x128xf32, #tpu.memory_space<vmem>>, vector<1x8x128xf32>
    %280 = vector.shape_cast %279 : vector<1x8x128xf32> to vector<8x128xf32>
    %281 = vector.shape_cast %271 : vector<8x128xf32> to vector<1x8x128xf32>
    tpu.vector_store %arg6[%278, %c0_141, %c0_142], %281 {strides = array<i32>} : memref<8x8x128xf32, #tpu.memory_space<vmem>>, vector<1x8x128xf32>,
    %c3_i32 = arith.constant 3 : i32
    %282 = arith.index_cast %c3_i32 : i32 to index
    %c0_143 = arith.constant 0 : index
    %c0_144 = arith.constant 0 : index
    %283 = vector.load %arg1[%282, %c0_143, %c0_144] : memref<8x8x128xf32, #tpu.memory_space<vmem>>, vector<1x8x128xf32>
    %284 = vector.shape_cast %283 : vector<1x8x128xf32> to vector<8x128xf32>
    %c0_145 = arith.constant 0 : index
    %c0_146 = arith.constant 0 : index
    %c0_147 = arith.constant 0 : index
    %285 = vector.load %arg9[%c0_145, %c0_146, %c0_147] : memref<2x8x128xf32, #tpu.memory_space<vmem>>, vector<1x8x128xf32>
    %286 = vector.shape_cast %285 : vector<1x8x128xf32> to vector<8x128xf32>
    %c0_148 = arith.constant 0 : index
    %c0_149 = arith.constant 0 : index
    %c0_150 = arith.constant 0 : index
    %287 = vector.load %arg10[%c0_148, %c0_149, %c0_150] : memref<2x8x128xf32, #tpu.memory_space<vmem>>, vector<1x8x128xf32>
    %288 = vector.shape_cast %287 : vector<1x8x128xf32> to vector<8x128xf32>
    %289 = tpu.concatenate %284, %286 in 1 : vector<8x128xf32>, vector<8x128xf32> -> vector<8x256xf32>
    %c0_151 = arith.constant 0 : index
    %c0_152 = arith.constant 0 : index
    %c0_153 = arith.constant 0 : index
    %290 = vector.load %arg2[%c0_151, %c0_152, %c0_153] : memref<2x256x512xf32, #tpu.memory_space<vmem>>, vector<1x256x512xf32>
    %291 = vector.shape_cast %290 : vector<1x256x512xf32> to vector<256x512xf32>
    %cst_154 = arith.constant dense<0.000000e+00> : vector<8x512xf32>
    %292 = tpu.matmul %289, %291, %cst_154 {dimension_numbers = #tpu.dot_dimension_numbers<[1], [0], [0], [1], [0, 0, 1, 1], [], []>} : vector<8x256xf32>, vector<256x512xf32>, vector<8x512xf32> -> vector<8x512xf32>
    %c0_155 = arith.constant 0 : index
    %c0_156 = arith.constant 0 : index
    %c0_157 = arith.constant 0 : index
    %293 = vector.load %arg3[%c0_155, %c0_156, %c0_157] : memref<2x1x512xf32, #tpu.memory_space<vmem>>, vector<1x1x512xf32>
    %294 = vector.shape_cast %293 : vector<1x1x512xf32> to vector<1x512xf32>
    %295 = vector.broadcast %294 : vector<1x512xf32> to vector<8x512xf32>
    %296 = arith.addf %292, %295 : vector<8x512xf32>
    %297 = vector.extract_strided_slice %296 {offsets = [0, 0], sizes = [8, 128], strides = [1, 1]} : vector<8x512xf32> to vector<8x128xf32>
    %298 = arith.negf %297 : vector<8x128xf32>
    %299 = math.exp %298 : vector<8x128xf32>
    %cst_158 = arith.constant 1.000000e+00 : f32
    %300 = vector.broadcast %cst_158 : f32 to vector<8x128xf32>
    %301 = arith.addf %300, %299 : vector<8x128xf32>
    %302 = arith.divf %300, %301 : vector<8x128xf32>
    %303 = vector.extract_strided_slice %296 {offsets = [0, 128], sizes = [8, 128], strides = [1, 1]} : vector<8x512xf32> to vector<8x128xf32>
    %304 = arith.negf %303 : vector<8x128xf32>
    %305 = math.exp %304 : vector<8x128xf32>
    %cst_159 = arith.constant 1.000000e+00 : f32
    %306 = vector.broadcast %cst_159 : f32 to vector<8x128xf32>
    %307 = arith.addf %306, %305 : vector<8x128xf32>
    %308 = arith.divf %306, %307 : vector<8x128xf32>
    %309 = vector.extract_strided_slice %296 {offsets = [0, 256], sizes = [8, 128], strides = [1, 1]} : vector<8x512xf32> to vector<8x128xf32>
    %310 = math.tanh %309 : vector<8x128xf32>
    %311 = vector.extract_strided_slice %296 {offsets = [0, 384], sizes = [8, 128], strides = [1, 1]} : vector<8x512xf32> to vector<8x128xf32>
    %312 = arith.negf %311 : vector<8x128xf32>
    %313 = math.exp %312 : vector<8x128xf32>
    %cst_160 = arith.constant 1.000000e+00 : f32
    %314 = vector.broadcast %cst_160 : f32 to vector<8x128xf32>
    %315 = arith.addf %314, %313 : vector<8x128xf32>
    %316 = arith.divf %314, %315 : vector<8x128xf32>
    %317 = arith.mulf %308, %288 : vector<8x128xf32>
    %318 = arith.mulf %302, %310 : vector<8x128xf32>
    %319 = arith.addf %317, %318 : vector<8x128xf32>
    %320 = math.tanh %319 : vector<8x128xf32>
    %321 = arith.mulf %316, %320 : vector<8x128xf32>
    %c0_161 = arith.constant 0 : index
    %c0_162 = arith.constant 0 : index
    %c0_163 = arith.constant 0 : index
    %322 = vector.load %arg9[%c0_161, %c0_162, %c0_163] : memref<2x8x128xf32, #tpu.memory_space<vmem>>, vector<1x8x128xf32>
    %323 = vector.shape_cast %322 : vector<1x8x128xf32> to vector<8x128xf32>
    %324 = vector.shape_cast %321 : vector<8x128xf32> to vector<1x8x128xf32>
    tpu.vector_store %arg9[%c0_161, %c0_162, %c0_163], %324 {strides = array<i32>} : memref<2x8x128xf32, #tpu.memory_space<vmem>>, vector<1x8x128xf32>,
    %c0_164 = arith.constant 0 : index
    %c0_165 = arith.constant 0 : index
    %c0_166 = arith.constant 0 : index
    %325 = vector.load %arg10[%c0_164, %c0_165, %c0_166] : memref<2x8x128xf32, #tpu.memory_space<vmem>>, vector<1x8x128xf32>
    %326 = vector.shape_cast %325 : vector<1x8x128xf32> to vector<8x128xf32>
    %327 = vector.shape_cast %319 : vector<8x128xf32> to vector<1x8x128xf32>
    tpu.vector_store %arg10[%c0_164, %c0_165, %c0_166], %327 {strides = array<i32>} : memref<2x8x128xf32, #tpu.memory_space<vmem>>, vector<1x8x128xf32>,
    %c1_167 = arith.constant 1 : index
    %c0_168 = arith.constant 0 : index
    %c0_169 = arith.constant 0 : index
    %328 = vector.load %arg9[%c1_167, %c0_168, %c0_169] : memref<2x8x128xf32, #tpu.memory_space<vmem>>, vector<1x8x128xf32>
    %329 = vector.shape_cast %328 : vector<1x8x128xf32> to vector<8x128xf32>
    %c1_170 = arith.constant 1 : index
    %c0_171 = arith.constant 0 : index
    %c0_172 = arith.constant 0 : index
    %330 = vector.load %arg10[%c1_170, %c0_171, %c0_172] : memref<2x8x128xf32, #tpu.memory_space<vmem>>, vector<1x8x128xf32>
    %331 = vector.shape_cast %330 : vector<1x8x128xf32> to vector<8x128xf32>
    %332 = tpu.concatenate %321, %329 in 1 : vector<8x128xf32>, vector<8x128xf32> -> vector<8x256xf32>
    %c1_173 = arith.constant 1 : index
    %c0_174 = arith.constant 0 : index
    %c0_175 = arith.constant 0 : index
    %333 = vector.load %arg2[%c1_173, %c0_174, %c0_175] : memref<2x256x512xf32, #tpu.memory_space<vmem>>, vector<1x256x512xf32>
    %334 = vector.shape_cast %333 : vector<1x256x512xf32> to vector<256x512xf32>
    %cst_176 = arith.constant dense<0.000000e+00> : vector<8x512xf32>
    %335 = tpu.matmul %332, %334, %cst_176 {dimension_numbers = #tpu.dot_dimension_numbers<[1], [0], [0], [1], [0, 0, 1, 1], [], []>} : vector<8x256xf32>, vector<256x512xf32>, vector<8x512xf32> -> vector<8x512xf32>
    %c1_177 = arith.constant 1 : index
    %c0_178 = arith.constant 0 : index
    %c0_179 = arith.constant 0 : index
    %336 = vector.load %arg3[%c1_177, %c0_178, %c0_179] : memref<2x1x512xf32, #tpu.memory_space<vmem>>, vector<1x1x512xf32>
    %337 = vector.shape_cast %336 : vector<1x1x512xf32> to vector<1x512xf32>
    %338 = vector.broadcast %337 : vector<1x512xf32> to vector<8x512xf32>
    %339 = arith.addf %335, %338 : vector<8x512xf32>
    %340 = vector.extract_strided_slice %339 {offsets = [0, 0], sizes = [8, 128], strides = [1, 1]} : vector<8x512xf32> to vector<8x128xf32>
    %341 = arith.negf %340 : vector<8x128xf32>
    %342 = math.exp %341 : vector<8x128xf32>
    %cst_180 = arith.constant 1.000000e+00 : f32
    %343 = vector.broadcast %cst_180 : f32 to vector<8x128xf32>
    %344 = arith.addf %343, %342 : vector<8x128xf32>
    %345 = arith.divf %343, %344 : vector<8x128xf32>
    %346 = vector.extract_strided_slice %339 {offsets = [0, 128], sizes = [8, 128], strides = [1, 1]} : vector<8x512xf32> to vector<8x128xf32>
    %347 = arith.negf %346 : vector<8x128xf32>
    %348 = math.exp %347 : vector<8x128xf32>
    %cst_181 = arith.constant 1.000000e+00 : f32
    %349 = vector.broadcast %cst_181 : f32 to vector<8x128xf32>
    %350 = arith.addf %349, %348 : vector<8x128xf32>
    %351 = arith.divf %349, %350 : vector<8x128xf32>
    %352 = vector.extract_strided_slice %339 {offsets = [0, 256], sizes = [8, 128], strides = [1, 1]} : vector<8x512xf32> to vector<8x128xf32>
    %353 = math.tanh %352 : vector<8x128xf32>
    %354 = vector.extract_strided_slice %339 {offsets = [0, 384], sizes = [8, 128], strides = [1, 1]} : vector<8x512xf32> to vector<8x128xf32>
    %355 = arith.negf %354 : vector<8x128xf32>
    %356 = math.exp %355 : vector<8x128xf32>
    %cst_182 = arith.constant 1.000000e+00 : f32
    %357 = vector.broadcast %cst_182 : f32 to vector<8x128xf32>
    %358 = arith.addf %357, %356 : vector<8x128xf32>
    %359 = arith.divf %357, %358 : vector<8x128xf32>
    %360 = arith.mulf %351, %331 : vector<8x128xf32>
    %361 = arith.mulf %345, %353 : vector<8x128xf32>
    %362 = arith.addf %360, %361 : vector<8x128xf32>
    %363 = math.tanh %362 : vector<8x128xf32>
    %364 = arith.mulf %359, %363 : vector<8x128xf32>
    %c1_183 = arith.constant 1 : index
    %c0_184 = arith.constant 0 : index
    %c0_185 = arith.constant 0 : index
    %365 = vector.load %arg9[%c1_183, %c0_184, %c0_185] : memref<2x8x128xf32, #tpu.memory_space<vmem>>, vector<1x8x128xf32>
    %366 = vector.shape_cast %365 : vector<1x8x128xf32> to vector<8x128xf32>
    %367 = vector.shape_cast %364 : vector<8x128xf32> to vector<1x8x128xf32>
    tpu.vector_store %arg9[%c1_183, %c0_184, %c0_185], %367 {strides = array<i32>} : memref<2x8x128xf32, #tpu.memory_space<vmem>>, vector<1x8x128xf32>,
    %c1_186 = arith.constant 1 : index
    %c0_187 = arith.constant 0 : index
    %c0_188 = arith.constant 0 : index
    %368 = vector.load %arg10[%c1_186, %c0_187, %c0_188] : memref<2x8x128xf32, #tpu.memory_space<vmem>>, vector<1x8x128xf32>
    %369 = vector.shape_cast %368 : vector<1x8x128xf32> to vector<8x128xf32>
    %370 = vector.shape_cast %362 : vector<8x128xf32> to vector<1x8x128xf32>
    tpu.vector_store %arg10[%c1_186, %c0_187, %c0_188], %370 {strides = array<i32>} : memref<2x8x128xf32, #tpu.memory_space<vmem>>, vector<1x8x128xf32>,
    %371 = arith.index_cast %c3_i32 : i32 to index
    %c0_189 = arith.constant 0 : index
    %c0_190 = arith.constant 0 : index
    %372 = vector.load %arg6[%371, %c0_189, %c0_190] : memref<8x8x128xf32, #tpu.memory_space<vmem>>, vector<1x8x128xf32>
    %373 = vector.shape_cast %372 : vector<1x8x128xf32> to vector<8x128xf32>
    %374 = vector.shape_cast %364 : vector<8x128xf32> to vector<1x8x128xf32>
    tpu.vector_store %arg6[%371, %c0_189, %c0_190], %374 {strides = array<i32>} : memref<8x8x128xf32, #tpu.memory_space<vmem>>, vector<1x8x128xf32>,
    %c4_i32 = arith.constant 4 : i32
    %375 = arith.index_cast %c4_i32 : i32 to index
    %c0_191 = arith.constant 0 : index
    %c0_192 = arith.constant 0 : index
    %376 = vector.load %arg1[%375, %c0_191, %c0_192] : memref<8x8x128xf32, #tpu.memory_space<vmem>>, vector<1x8x128xf32>
    %377 = vector.shape_cast %376 : vector<1x8x128xf32> to vector<8x128xf32>
    %c0_193 = arith.constant 0 : index
    %c0_194 = arith.constant 0 : index
    %c0_195 = arith.constant 0 : index
    %378 = vector.load %arg9[%c0_193, %c0_194, %c0_195] : memref<2x8x128xf32, #tpu.memory_space<vmem>>, vector<1x8x128xf32>
    %379 = vector.shape_cast %378 : vector<1x8x128xf32> to vector<8x128xf32>
    %c0_196 = arith.constant 0 : index
    %c0_197 = arith.constant 0 : index
    %c0_198 = arith.constant 0 : index
    %380 = vector.load %arg10[%c0_196, %c0_197, %c0_198] : memref<2x8x128xf32, #tpu.memory_space<vmem>>, vector<1x8x128xf32>
    %381 = vector.shape_cast %380 : vector<1x8x128xf32> to vector<8x128xf32>
    %382 = tpu.concatenate %377, %379 in 1 : vector<8x128xf32>, vector<8x128xf32> -> vector<8x256xf32>
    %c0_199 = arith.constant 0 : index
    %c0_200 = arith.constant 0 : index
    %c0_201 = arith.constant 0 : index
    %383 = vector.load %arg2[%c0_199, %c0_200, %c0_201] : memref<2x256x512xf32, #tpu.memory_space<vmem>>, vector<1x256x512xf32>
    %384 = vector.shape_cast %383 : vector<1x256x512xf32> to vector<256x512xf32>
    %cst_202 = arith.constant dense<0.000000e+00> : vector<8x512xf32>
    %385 = tpu.matmul %382, %384, %cst_202 {dimension_numbers = #tpu.dot_dimension_numbers<[1], [0], [0], [1], [0, 0, 1, 1], [], []>} : vector<8x256xf32>, vector<256x512xf32>, vector<8x512xf32> -> vector<8x512xf32>
    %c0_203 = arith.constant 0 : index
    %c0_204 = arith.constant 0 : index
    %c0_205 = arith.constant 0 : index
    %386 = vector.load %arg3[%c0_203, %c0_204, %c0_205] : memref<2x1x512xf32, #tpu.memory_space<vmem>>, vector<1x1x512xf32>
    %387 = vector.shape_cast %386 : vector<1x1x512xf32> to vector<1x512xf32>
    %388 = vector.broadcast %387 : vector<1x512xf32> to vector<8x512xf32>
    %389 = arith.addf %385, %388 : vector<8x512xf32>
    %390 = vector.extract_strided_slice %389 {offsets = [0, 0], sizes = [8, 128], strides = [1, 1]} : vector<8x512xf32> to vector<8x128xf32>
    %391 = arith.negf %390 : vector<8x128xf32>
    %392 = math.exp %391 : vector<8x128xf32>
    %cst_206 = arith.constant 1.000000e+00 : f32
    %393 = vector.broadcast %cst_206 : f32 to vector<8x128xf32>
    %394 = arith.addf %393, %392 : vector<8x128xf32>
    %395 = arith.divf %393, %394 : vector<8x128xf32>
    %396 = vector.extract_strided_slice %389 {offsets = [0, 128], sizes = [8, 128], strides = [1, 1]} : vector<8x512xf32> to vector<8x128xf32>
    %397 = arith.negf %396 : vector<8x128xf32>
    %398 = math.exp %397 : vector<8x128xf32>
    %cst_207 = arith.constant 1.000000e+00 : f32
    %399 = vector.broadcast %cst_207 : f32 to vector<8x128xf32>
    %400 = arith.addf %399, %398 : vector<8x128xf32>
    %401 = arith.divf %399, %400 : vector<8x128xf32>
    %402 = vector.extract_strided_slice %389 {offsets = [0, 256], sizes = [8, 128], strides = [1, 1]} : vector<8x512xf32> to vector<8x128xf32>
    %403 = math.tanh %402 : vector<8x128xf32>
    %404 = vector.extract_strided_slice %389 {offsets = [0, 384], sizes = [8, 128], strides = [1, 1]} : vector<8x512xf32> to vector<8x128xf32>
    %405 = arith.negf %404 : vector<8x128xf32>
    %406 = math.exp %405 : vector<8x128xf32>
    %cst_208 = arith.constant 1.000000e+00 : f32
    %407 = vector.broadcast %cst_208 : f32 to vector<8x128xf32>
    %408 = arith.addf %407, %406 : vector<8x128xf32>
    %409 = arith.divf %407, %408 : vector<8x128xf32>
    %410 = arith.mulf %401, %381 : vector<8x128xf32>
    %411 = arith.mulf %395, %403 : vector<8x128xf32>
    %412 = arith.addf %410, %411 : vector<8x128xf32>
    %413 = math.tanh %412 : vector<8x128xf32>
    %414 = arith.mulf %409, %413 : vector<8x128xf32>
    %c0_209 = arith.constant 0 : index
    %c0_210 = arith.constant 0 : index
    %c0_211 = arith.constant 0 : index
    %415 = vector.load %arg9[%c0_209, %c0_210, %c0_211] : memref<2x8x128xf32, #tpu.memory_space<vmem>>, vector<1x8x128xf32>
    %416 = vector.shape_cast %415 : vector<1x8x128xf32> to vector<8x128xf32>
    %417 = vector.shape_cast %414 : vector<8x128xf32> to vector<1x8x128xf32>
    tpu.vector_store %arg9[%c0_209, %c0_210, %c0_211], %417 {strides = array<i32>} : memref<2x8x128xf32, #tpu.memory_space<vmem>>, vector<1x8x128xf32>,
    %c0_212 = arith.constant 0 : index
    %c0_213 = arith.constant 0 : index
    %c0_214 = arith.constant 0 : index
    %418 = vector.load %arg10[%c0_212, %c0_213, %c0_214] : memref<2x8x128xf32, #tpu.memory_space<vmem>>, vector<1x8x128xf32>
    %419 = vector.shape_cast %418 : vector<1x8x128xf32> to vector<8x128xf32>
    %420 = vector.shape_cast %412 : vector<8x128xf32> to vector<1x8x128xf32>
    tpu.vector_store %arg10[%c0_212, %c0_213, %c0_214], %420 {strides = array<i32>} : memref<2x8x128xf32, #tpu.memory_space<vmem>>, vector<1x8x128xf32>,
    %c1_215 = arith.constant 1 : index
    %c0_216 = arith.constant 0 : index
    %c0_217 = arith.constant 0 : index
    %421 = vector.load %arg9[%c1_215, %c0_216, %c0_217] : memref<2x8x128xf32, #tpu.memory_space<vmem>>, vector<1x8x128xf32>
    %422 = vector.shape_cast %421 : vector<1x8x128xf32> to vector<8x128xf32>
    %c1_218 = arith.constant 1 : index
    %c0_219 = arith.constant 0 : index
    %c0_220 = arith.constant 0 : index
    %423 = vector.load %arg10[%c1_218, %c0_219, %c0_220] : memref<2x8x128xf32, #tpu.memory_space<vmem>>, vector<1x8x128xf32>
    %424 = vector.shape_cast %423 : vector<1x8x128xf32> to vector<8x128xf32>
    %425 = tpu.concatenate %414, %422 in 1 : vector<8x128xf32>, vector<8x128xf32> -> vector<8x256xf32>
    %c1_221 = arith.constant 1 : index
    %c0_222 = arith.constant 0 : index
    %c0_223 = arith.constant 0 : index
    %426 = vector.load %arg2[%c1_221, %c0_222, %c0_223] : memref<2x256x512xf32, #tpu.memory_space<vmem>>, vector<1x256x512xf32>
    %427 = vector.shape_cast %426 : vector<1x256x512xf32> to vector<256x512xf32>
    %cst_224 = arith.constant dense<0.000000e+00> : vector<8x512xf32>
    %428 = tpu.matmul %425, %427, %cst_224 {dimension_numbers = #tpu.dot_dimension_numbers<[1], [0], [0], [1], [0, 0, 1, 1], [], []>} : vector<8x256xf32>, vector<256x512xf32>, vector<8x512xf32> -> vector<8x512xf32>
    %c1_225 = arith.constant 1 : index
    %c0_226 = arith.constant 0 : index
    %c0_227 = arith.constant 0 : index
    %429 = vector.load %arg3[%c1_225, %c0_226, %c0_227] : memref<2x1x512xf32, #tpu.memory_space<vmem>>, vector<1x1x512xf32>
    %430 = vector.shape_cast %429 : vector<1x1x512xf32> to vector<1x512xf32>
    %431 = vector.broadcast %430 : vector<1x512xf32> to vector<8x512xf32>
    %432 = arith.addf %428, %431 : vector<8x512xf32>
    %433 = vector.extract_strided_slice %432 {offsets = [0, 0], sizes = [8, 128], strides = [1, 1]} : vector<8x512xf32> to vector<8x128xf32>
    %434 = arith.negf %433 : vector<8x128xf32>
    %435 = math.exp %434 : vector<8x128xf32>
    %cst_228 = arith.constant 1.000000e+00 : f32
    %436 = vector.broadcast %cst_228 : f32 to vector<8x128xf32>
    %437 = arith.addf %436, %435 : vector<8x128xf32>
    %438 = arith.divf %436, %437 : vector<8x128xf32>
    %439 = vector.extract_strided_slice %432 {offsets = [0, 128], sizes = [8, 128], strides = [1, 1]} : vector<8x512xf32> to vector<8x128xf32>
    %440 = arith.negf %439 : vector<8x128xf32>
    %441 = math.exp %440 : vector<8x128xf32>
    %cst_229 = arith.constant 1.000000e+00 : f32
    %442 = vector.broadcast %cst_229 : f32 to vector<8x128xf32>
    %443 = arith.addf %442, %441 : vector<8x128xf32>
    %444 = arith.divf %442, %443 : vector<8x128xf32>
    %445 = vector.extract_strided_slice %432 {offsets = [0, 256], sizes = [8, 128], strides = [1, 1]} : vector<8x512xf32> to vector<8x128xf32>
    %446 = math.tanh %445 : vector<8x128xf32>
    %447 = vector.extract_strided_slice %432 {offsets = [0, 384], sizes = [8, 128], strides = [1, 1]} : vector<8x512xf32> to vector<8x128xf32>
    %448 = arith.negf %447 : vector<8x128xf32>
    %449 = math.exp %448 : vector<8x128xf32>
    %cst_230 = arith.constant 1.000000e+00 : f32
    %450 = vector.broadcast %cst_230 : f32 to vector<8x128xf32>
    %451 = arith.addf %450, %449 : vector<8x128xf32>
    %452 = arith.divf %450, %451 : vector<8x128xf32>
    %453 = arith.mulf %444, %424 : vector<8x128xf32>
    %454 = arith.mulf %438, %446 : vector<8x128xf32>
    %455 = arith.addf %453, %454 : vector<8x128xf32>
    %456 = math.tanh %455 : vector<8x128xf32>
    %457 = arith.mulf %452, %456 : vector<8x128xf32>
    %c1_231 = arith.constant 1 : index
    %c0_232 = arith.constant 0 : index
    %c0_233 = arith.constant 0 : index
    %458 = vector.load %arg9[%c1_231, %c0_232, %c0_233] : memref<2x8x128xf32, #tpu.memory_space<vmem>>, vector<1x8x128xf32>
    %459 = vector.shape_cast %458 : vector<1x8x128xf32> to vector<8x128xf32>
    %460 = vector.shape_cast %457 : vector<8x128xf32> to vector<1x8x128xf32>
    tpu.vector_store %arg9[%c1_231, %c0_232, %c0_233], %460 {strides = array<i32>} : memref<2x8x128xf32, #tpu.memory_space<vmem>>, vector<1x8x128xf32>,
    %c1_234 = arith.constant 1 : index
    %c0_235 = arith.constant 0 : index
    %c0_236 = arith.constant 0 : index
    %461 = vector.load %arg10[%c1_234, %c0_235, %c0_236] : memref<2x8x128xf32, #tpu.memory_space<vmem>>, vector<1x8x128xf32>
    %462 = vector.shape_cast %461 : vector<1x8x128xf32> to vector<8x128xf32>
    %463 = vector.shape_cast %455 : vector<8x128xf32> to vector<1x8x128xf32>
    tpu.vector_store %arg10[%c1_234, %c0_235, %c0_236], %463 {strides = array<i32>} : memref<2x8x128xf32, #tpu.memory_space<vmem>>, vector<1x8x128xf32>,
    %464 = arith.index_cast %c4_i32 : i32 to index
    %c0_237 = arith.constant 0 : index
    %c0_238 = arith.constant 0 : index
    %465 = vector.load %arg6[%464, %c0_237, %c0_238] : memref<8x8x128xf32, #tpu.memory_space<vmem>>, vector<1x8x128xf32>
    %466 = vector.shape_cast %465 : vector<1x8x128xf32> to vector<8x128xf32>
    %467 = vector.shape_cast %457 : vector<8x128xf32> to vector<1x8x128xf32>
    tpu.vector_store %arg6[%464, %c0_237, %c0_238], %467 {strides = array<i32>} : memref<8x8x128xf32, #tpu.memory_space<vmem>>, vector<1x8x128xf32>,
    %c5_i32 = arith.constant 5 : i32
    %468 = arith.index_cast %c5_i32 : i32 to index
    %c0_239 = arith.constant 0 : index
    %c0_240 = arith.constant 0 : index
    %469 = vector.load %arg1[%468, %c0_239, %c0_240] : memref<8x8x128xf32, #tpu.memory_space<vmem>>, vector<1x8x128xf32>
    %470 = vector.shape_cast %469 : vector<1x8x128xf32> to vector<8x128xf32>
    %c0_241 = arith.constant 0 : index
    %c0_242 = arith.constant 0 : index
    %c0_243 = arith.constant 0 : index
    %471 = vector.load %arg9[%c0_241, %c0_242, %c0_243] : memref<2x8x128xf32, #tpu.memory_space<vmem>>, vector<1x8x128xf32>
    %472 = vector.shape_cast %471 : vector<1x8x128xf32> to vector<8x128xf32>
    %c0_244 = arith.constant 0 : index
    %c0_245 = arith.constant 0 : index
    %c0_246 = arith.constant 0 : index
    %473 = vector.load %arg10[%c0_244, %c0_245, %c0_246] : memref<2x8x128xf32, #tpu.memory_space<vmem>>, vector<1x8x128xf32>
    %474 = vector.shape_cast %473 : vector<1x8x128xf32> to vector<8x128xf32>
    %475 = tpu.concatenate %470, %472 in 1 : vector<8x128xf32>, vector<8x128xf32> -> vector<8x256xf32>
    %c0_247 = arith.constant 0 : index
    %c0_248 = arith.constant 0 : index
    %c0_249 = arith.constant 0 : index
    %476 = vector.load %arg2[%c0_247, %c0_248, %c0_249] : memref<2x256x512xf32, #tpu.memory_space<vmem>>, vector<1x256x512xf32>
    %477 = vector.shape_cast %476 : vector<1x256x512xf32> to vector<256x512xf32>
    %cst_250 = arith.constant dense<0.000000e+00> : vector<8x512xf32>
    %478 = tpu.matmul %475, %477, %cst_250 {dimension_numbers = #tpu.dot_dimension_numbers<[1], [0], [0], [1], [0, 0, 1, 1], [], []>} : vector<8x256xf32>, vector<256x512xf32>, vector<8x512xf32> -> vector<8x512xf32>
    %c0_251 = arith.constant 0 : index
    %c0_252 = arith.constant 0 : index
    %c0_253 = arith.constant 0 : index
    %479 = vector.load %arg3[%c0_251, %c0_252, %c0_253] : memref<2x1x512xf32, #tpu.memory_space<vmem>>, vector<1x1x512xf32>
    %480 = vector.shape_cast %479 : vector<1x1x512xf32> to vector<1x512xf32>
    %481 = vector.broadcast %480 : vector<1x512xf32> to vector<8x512xf32>
    %482 = arith.addf %478, %481 : vector<8x512xf32>
    %483 = vector.extract_strided_slice %482 {offsets = [0, 0], sizes = [8, 128], strides = [1, 1]} : vector<8x512xf32> to vector<8x128xf32>
    %484 = arith.negf %483 : vector<8x128xf32>
    %485 = math.exp %484 : vector<8x128xf32>
    %cst_254 = arith.constant 1.000000e+00 : f32
    %486 = vector.broadcast %cst_254 : f32 to vector<8x128xf32>
    %487 = arith.addf %486, %485 : vector<8x128xf32>
    %488 = arith.divf %486, %487 : vector<8x128xf32>
    %489 = vector.extract_strided_slice %482 {offsets = [0, 128], sizes = [8, 128], strides = [1, 1]} : vector<8x512xf32> to vector<8x128xf32>
    %490 = arith.negf %489 : vector<8x128xf32>
    %491 = math.exp %490 : vector<8x128xf32>
    %cst_255 = arith.constant 1.000000e+00 : f32
    %492 = vector.broadcast %cst_255 : f32 to vector<8x128xf32>
    %493 = arith.addf %492, %491 : vector<8x128xf32>
    %494 = arith.divf %492, %493 : vector<8x128xf32>
    %495 = vector.extract_strided_slice %482 {offsets = [0, 256], sizes = [8, 128], strides = [1, 1]} : vector<8x512xf32> to vector<8x128xf32>
    %496 = math.tanh %495 : vector<8x128xf32>
    %497 = vector.extract_strided_slice %482 {offsets = [0, 384], sizes = [8, 128], strides = [1, 1]} : vector<8x512xf32> to vector<8x128xf32>
    %498 = arith.negf %497 : vector<8x128xf32>
    %499 = math.exp %498 : vector<8x128xf32>
    %cst_256 = arith.constant 1.000000e+00 : f32
    %500 = vector.broadcast %cst_256 : f32 to vector<8x128xf32>
    %501 = arith.addf %500, %499 : vector<8x128xf32>
    %502 = arith.divf %500, %501 : vector<8x128xf32>
    %503 = arith.mulf %494, %474 : vector<8x128xf32>
    %504 = arith.mulf %488, %496 : vector<8x128xf32>
    %505 = arith.addf %503, %504 : vector<8x128xf32>
    %506 = math.tanh %505 : vector<8x128xf32>
    %507 = arith.mulf %502, %506 : vector<8x128xf32>
    %c0_257 = arith.constant 0 : index
    %c0_258 = arith.constant 0 : index
    %c0_259 = arith.constant 0 : index
    %508 = vector.load %arg9[%c0_257, %c0_258, %c0_259] : memref<2x8x128xf32, #tpu.memory_space<vmem>>, vector<1x8x128xf32>
    %509 = vector.shape_cast %508 : vector<1x8x128xf32> to vector<8x128xf32>
    %510 = vector.shape_cast %507 : vector<8x128xf32> to vector<1x8x128xf32>
    tpu.vector_store %arg9[%c0_257, %c0_258, %c0_259], %510 {strides = array<i32>} : memref<2x8x128xf32, #tpu.memory_space<vmem>>, vector<1x8x128xf32>,
    %c0_260 = arith.constant 0 : index
    %c0_261 = arith.constant 0 : index
    %c0_262 = arith.constant 0 : index
    %511 = vector.load %arg10[%c0_260, %c0_261, %c0_262] : memref<2x8x128xf32, #tpu.memory_space<vmem>>, vector<1x8x128xf32>
    %512 = vector.shape_cast %511 : vector<1x8x128xf32> to vector<8x128xf32>
    %513 = vector.shape_cast %505 : vector<8x128xf32> to vector<1x8x128xf32>
    tpu.vector_store %arg10[%c0_260, %c0_261, %c0_262], %513 {strides = array<i32>} : memref<2x8x128xf32, #tpu.memory_space<vmem>>, vector<1x8x128xf32>,
    %c1_263 = arith.constant 1 : index
    %c0_264 = arith.constant 0 : index
    %c0_265 = arith.constant 0 : index
    %514 = vector.load %arg9[%c1_263, %c0_264, %c0_265] : memref<2x8x128xf32, #tpu.memory_space<vmem>>, vector<1x8x128xf32>
    %515 = vector.shape_cast %514 : vector<1x8x128xf32> to vector<8x128xf32>
    %c1_266 = arith.constant 1 : index
    %c0_267 = arith.constant 0 : index
    %c0_268 = arith.constant 0 : index
    %516 = vector.load %arg10[%c1_266, %c0_267, %c0_268] : memref<2x8x128xf32, #tpu.memory_space<vmem>>, vector<1x8x128xf32>
    %517 = vector.shape_cast %516 : vector<1x8x128xf32> to vector<8x128xf32>
    %518 = tpu.concatenate %507, %515 in 1 : vector<8x128xf32>, vector<8x128xf32> -> vector<8x256xf32>
    %c1_269 = arith.constant 1 : index
    %c0_270 = arith.constant 0 : index
    %c0_271 = arith.constant 0 : index
    %519 = vector.load %arg2[%c1_269, %c0_270, %c0_271] : memref<2x256x512xf32, #tpu.memory_space<vmem>>, vector<1x256x512xf32>
    %520 = vector.shape_cast %519 : vector<1x256x512xf32> to vector<256x512xf32>
    %cst_272 = arith.constant dense<0.000000e+00> : vector<8x512xf32>
    %521 = tpu.matmul %518, %520, %cst_272 {dimension_numbers = #tpu.dot_dimension_numbers<[1], [0], [0], [1], [0, 0, 1, 1], [], []>} : vector<8x256xf32>, vector<256x512xf32>, vector<8x512xf32> -> vector<8x512xf32>
    %c1_273 = arith.constant 1 : index
    %c0_274 = arith.constant 0 : index
    %c0_275 = arith.constant 0 : index
    %522 = vector.load %arg3[%c1_273, %c0_274, %c0_275] : memref<2x1x512xf32, #tpu.memory_space<vmem>>, vector<1x1x512xf32>
    %523 = vector.shape_cast %522 : vector<1x1x512xf32> to vector<1x512xf32>
    %524 = vector.broadcast %523 : vector<1x512xf32> to vector<8x512xf32>
    %525 = arith.addf %521, %524 : vector<8x512xf32>
    %526 = vector.extract_strided_slice %525 {offsets = [0, 0], sizes = [8, 128], strides = [1, 1]} : vector<8x512xf32> to vector<8x128xf32>
    %527 = arith.negf %526 : vector<8x128xf32>
    %528 = math.exp %527 : vector<8x128xf32>
    %cst_276 = arith.constant 1.000000e+00 : f32
    %529 = vector.broadcast %cst_276 : f32 to vector<8x128xf32>
    %530 = arith.addf %529, %528 : vector<8x128xf32>
    %531 = arith.divf %529, %530 : vector<8x128xf32>
    %532 = vector.extract_strided_slice %525 {offsets = [0, 128], sizes = [8, 128], strides = [1, 1]} : vector<8x512xf32> to vector<8x128xf32>
    %533 = arith.negf %532 : vector<8x128xf32>
    %534 = math.exp %533 : vector<8x128xf32>
    %cst_277 = arith.constant 1.000000e+00 : f32
    %535 = vector.broadcast %cst_277 : f32 to vector<8x128xf32>
    %536 = arith.addf %535, %534 : vector<8x128xf32>
    %537 = arith.divf %535, %536 : vector<8x128xf32>
    %538 = vector.extract_strided_slice %525 {offsets = [0, 256], sizes = [8, 128], strides = [1, 1]} : vector<8x512xf32> to vector<8x128xf32>
    %539 = math.tanh %538 : vector<8x128xf32>
    %540 = vector.extract_strided_slice %525 {offsets = [0, 384], sizes = [8, 128], strides = [1, 1]} : vector<8x512xf32> to vector<8x128xf32>
    %541 = arith.negf %540 : vector<8x128xf32>
    %542 = math.exp %541 : vector<8x128xf32>
    %cst_278 = arith.constant 1.000000e+00 : f32
    %543 = vector.broadcast %cst_278 : f32 to vector<8x128xf32>
    %544 = arith.addf %543, %542 : vector<8x128xf32>
    %545 = arith.divf %543, %544 : vector<8x128xf32>
    %546 = arith.mulf %537, %517 : vector<8x128xf32>
    %547 = arith.mulf %531, %539 : vector<8x128xf32>
    %548 = arith.addf %546, %547 : vector<8x128xf32>
    %549 = math.tanh %548 : vector<8x128xf32>
    %550 = arith.mulf %545, %549 : vector<8x128xf32>
    %c1_279 = arith.constant 1 : index
    %c0_280 = arith.constant 0 : index
    %c0_281 = arith.constant 0 : index
    %551 = vector.load %arg9[%c1_279, %c0_280, %c0_281] : memref<2x8x128xf32, #tpu.memory_space<vmem>>, vector<1x8x128xf32>
    %552 = vector.shape_cast %551 : vector<1x8x128xf32> to vector<8x128xf32>
    %553 = vector.shape_cast %550 : vector<8x128xf32> to vector<1x8x128xf32>
    tpu.vector_store %arg9[%c1_279, %c0_280, %c0_281], %553 {strides = array<i32>} : memref<2x8x128xf32, #tpu.memory_space<vmem>>, vector<1x8x128xf32>,
    %c1_282 = arith.constant 1 : index
    %c0_283 = arith.constant 0 : index
    %c0_284 = arith.constant 0 : index
    %554 = vector.load %arg10[%c1_282, %c0_283, %c0_284] : memref<2x8x128xf32, #tpu.memory_space<vmem>>, vector<1x8x128xf32>
    %555 = vector.shape_cast %554 : vector<1x8x128xf32> to vector<8x128xf32>
    %556 = vector.shape_cast %548 : vector<8x128xf32> to vector<1x8x128xf32>
    tpu.vector_store %arg10[%c1_282, %c0_283, %c0_284], %556 {strides = array<i32>} : memref<2x8x128xf32, #tpu.memory_space<vmem>>, vector<1x8x128xf32>,
    %557 = arith.index_cast %c5_i32 : i32 to index
    %c0_285 = arith.constant 0 : index
    %c0_286 = arith.constant 0 : index
    %558 = vector.load %arg6[%557, %c0_285, %c0_286] : memref<8x8x128xf32, #tpu.memory_space<vmem>>, vector<1x8x128xf32>
    %559 = vector.shape_cast %558 : vector<1x8x128xf32> to vector<8x128xf32>
    %560 = vector.shape_cast %550 : vector<8x128xf32> to vector<1x8x128xf32>
    tpu.vector_store %arg6[%557, %c0_285, %c0_286], %560 {strides = array<i32>} : memref<8x8x128xf32, #tpu.memory_space<vmem>>, vector<1x8x128xf32>,
    %c6_i32 = arith.constant 6 : i32
    %561 = arith.index_cast %c6_i32 : i32 to index
    %c0_287 = arith.constant 0 : index
    %c0_288 = arith.constant 0 : index
    %562 = vector.load %arg1[%561, %c0_287, %c0_288] : memref<8x8x128xf32, #tpu.memory_space<vmem>>, vector<1x8x128xf32>
    %563 = vector.shape_cast %562 : vector<1x8x128xf32> to vector<8x128xf32>
    %c0_289 = arith.constant 0 : index
    %c0_290 = arith.constant 0 : index
    %c0_291 = arith.constant 0 : index
    %564 = vector.load %arg9[%c0_289, %c0_290, %c0_291] : memref<2x8x128xf32, #tpu.memory_space<vmem>>, vector<1x8x128xf32>
    %565 = vector.shape_cast %564 : vector<1x8x128xf32> to vector<8x128xf32>
    %c0_292 = arith.constant 0 : index
    %c0_293 = arith.constant 0 : index
    %c0_294 = arith.constant 0 : index
    %566 = vector.load %arg10[%c0_292, %c0_293, %c0_294] : memref<2x8x128xf32, #tpu.memory_space<vmem>>, vector<1x8x128xf32>
    %567 = vector.shape_cast %566 : vector<1x8x128xf32> to vector<8x128xf32>
    %568 = tpu.concatenate %563, %565 in 1 : vector<8x128xf32>, vector<8x128xf32> -> vector<8x256xf32>
    %c0_295 = arith.constant 0 : index
    %c0_296 = arith.constant 0 : index
    %c0_297 = arith.constant 0 : index
    %569 = vector.load %arg2[%c0_295, %c0_296, %c0_297] : memref<2x256x512xf32, #tpu.memory_space<vmem>>, vector<1x256x512xf32>
    %570 = vector.shape_cast %569 : vector<1x256x512xf32> to vector<256x512xf32>
    %cst_298 = arith.constant dense<0.000000e+00> : vector<8x512xf32>
    %571 = tpu.matmul %568, %570, %cst_298 {dimension_numbers = #tpu.dot_dimension_numbers<[1], [0], [0], [1], [0, 0, 1, 1], [], []>} : vector<8x256xf32>, vector<256x512xf32>, vector<8x512xf32> -> vector<8x512xf32>
    %c0_299 = arith.constant 0 : index
    %c0_300 = arith.constant 0 : index
    %c0_301 = arith.constant 0 : index
    %572 = vector.load %arg3[%c0_299, %c0_300, %c0_301] : memref<2x1x512xf32, #tpu.memory_space<vmem>>, vector<1x1x512xf32>
    %573 = vector.shape_cast %572 : vector<1x1x512xf32> to vector<1x512xf32>
    %574 = vector.broadcast %573 : vector<1x512xf32> to vector<8x512xf32>
    %575 = arith.addf %571, %574 : vector<8x512xf32>
    %576 = vector.extract_strided_slice %575 {offsets = [0, 0], sizes = [8, 128], strides = [1, 1]} : vector<8x512xf32> to vector<8x128xf32>
    %577 = arith.negf %576 : vector<8x128xf32>
    %578 = math.exp %577 : vector<8x128xf32>
    %cst_302 = arith.constant 1.000000e+00 : f32
    %579 = vector.broadcast %cst_302 : f32 to vector<8x128xf32>
    %580 = arith.addf %579, %578 : vector<8x128xf32>
    %581 = arith.divf %579, %580 : vector<8x128xf32>
    %582 = vector.extract_strided_slice %575 {offsets = [0, 128], sizes = [8, 128], strides = [1, 1]} : vector<8x512xf32> to vector<8x128xf32>
    %583 = arith.negf %582 : vector<8x128xf32>
    %584 = math.exp %583 : vector<8x128xf32>
    %cst_303 = arith.constant 1.000000e+00 : f32
    %585 = vector.broadcast %cst_303 : f32 to vector<8x128xf32>
    %586 = arith.addf %585, %584 : vector<8x128xf32>
    %587 = arith.divf %585, %586 : vector<8x128xf32>
    %588 = vector.extract_strided_slice %575 {offsets = [0, 256], sizes = [8, 128], strides = [1, 1]} : vector<8x512xf32> to vector<8x128xf32>
    %589 = math.tanh %588 : vector<8x128xf32>
    %590 = vector.extract_strided_slice %575 {offsets = [0, 384], sizes = [8, 128], strides = [1, 1]} : vector<8x512xf32> to vector<8x128xf32>
    %591 = arith.negf %590 : vector<8x128xf32>
    %592 = math.exp %591 : vector<8x128xf32>
    %cst_304 = arith.constant 1.000000e+00 : f32
    %593 = vector.broadcast %cst_304 : f32 to vector<8x128xf32>
    %594 = arith.addf %593, %592 : vector<8x128xf32>
    %595 = arith.divf %593, %594 : vector<8x128xf32>
    %596 = arith.mulf %587, %567 : vector<8x128xf32>
    %597 = arith.mulf %581, %589 : vector<8x128xf32>
    %598 = arith.addf %596, %597 : vector<8x128xf32>
    %599 = math.tanh %598 : vector<8x128xf32>
    %600 = arith.mulf %595, %599 : vector<8x128xf32>
    %c0_305 = arith.constant 0 : index
    %c0_306 = arith.constant 0 : index
    %c0_307 = arith.constant 0 : index
    %601 = vector.load %arg9[%c0_305, %c0_306, %c0_307] : memref<2x8x128xf32, #tpu.memory_space<vmem>>, vector<1x8x128xf32>
    %602 = vector.shape_cast %601 : vector<1x8x128xf32> to vector<8x128xf32>
    %603 = vector.shape_cast %600 : vector<8x128xf32> to vector<1x8x128xf32>
    tpu.vector_store %arg9[%c0_305, %c0_306, %c0_307], %603 {strides = array<i32>} : memref<2x8x128xf32, #tpu.memory_space<vmem>>, vector<1x8x128xf32>,
    %c0_308 = arith.constant 0 : index
    %c0_309 = arith.constant 0 : index
    %c0_310 = arith.constant 0 : index
    %604 = vector.load %arg10[%c0_308, %c0_309, %c0_310] : memref<2x8x128xf32, #tpu.memory_space<vmem>>, vector<1x8x128xf32>
    %605 = vector.shape_cast %604 : vector<1x8x128xf32> to vector<8x128xf32>
    %606 = vector.shape_cast %598 : vector<8x128xf32> to vector<1x8x128xf32>
    tpu.vector_store %arg10[%c0_308, %c0_309, %c0_310], %606 {strides = array<i32>} : memref<2x8x128xf32, #tpu.memory_space<vmem>>, vector<1x8x128xf32>,
    %c1_311 = arith.constant 1 : index
    %c0_312 = arith.constant 0 : index
    %c0_313 = arith.constant 0 : index
    %607 = vector.load %arg9[%c1_311, %c0_312, %c0_313] : memref<2x8x128xf32, #tpu.memory_space<vmem>>, vector<1x8x128xf32>
    %608 = vector.shape_cast %607 : vector<1x8x128xf32> to vector<8x128xf32>
    %c1_314 = arith.constant 1 : index
    %c0_315 = arith.constant 0 : index
    %c0_316 = arith.constant 0 : index
    %609 = vector.load %arg10[%c1_314, %c0_315, %c0_316] : memref<2x8x128xf32, #tpu.memory_space<vmem>>, vector<1x8x128xf32>
    %610 = vector.shape_cast %609 : vector<1x8x128xf32> to vector<8x128xf32>
    %611 = tpu.concatenate %600, %608 in 1 : vector<8x128xf32>, vector<8x128xf32> -> vector<8x256xf32>
    %c1_317 = arith.constant 1 : index
    %c0_318 = arith.constant 0 : index
    %c0_319 = arith.constant 0 : index
    %612 = vector.load %arg2[%c1_317, %c0_318, %c0_319] : memref<2x256x512xf32, #tpu.memory_space<vmem>>, vector<1x256x512xf32>
    %613 = vector.shape_cast %612 : vector<1x256x512xf32> to vector<256x512xf32>
    %cst_320 = arith.constant dense<0.000000e+00> : vector<8x512xf32>
    %614 = tpu.matmul %611, %613, %cst_320 {dimension_numbers = #tpu.dot_dimension_numbers<[1], [0], [0], [1], [0, 0, 1, 1], [], []>} : vector<8x256xf32>, vector<256x512xf32>, vector<8x512xf32> -> vector<8x512xf32>
    %c1_321 = arith.constant 1 : index
    %c0_322 = arith.constant 0 : index
    %c0_323 = arith.constant 0 : index
    %615 = vector.load %arg3[%c1_321, %c0_322, %c0_323] : memref<2x1x512xf32, #tpu.memory_space<vmem>>, vector<1x1x512xf32>
    %616 = vector.shape_cast %615 : vector<1x1x512xf32> to vector<1x512xf32>
    %617 = vector.broadcast %616 : vector<1x512xf32> to vector<8x512xf32>
    %618 = arith.addf %614, %617 : vector<8x512xf32>
    %619 = vector.extract_strided_slice %618 {offsets = [0, 0], sizes = [8, 128], strides = [1, 1]} : vector<8x512xf32> to vector<8x128xf32>
    %620 = arith.negf %619 : vector<8x128xf32>
    %621 = math.exp %620 : vector<8x128xf32>
    %cst_324 = arith.constant 1.000000e+00 : f32
    %622 = vector.broadcast %cst_324 : f32 to vector<8x128xf32>
    %623 = arith.addf %622, %621 : vector<8x128xf32>
    %624 = arith.divf %622, %623 : vector<8x128xf32>
    %625 = vector.extract_strided_slice %618 {offsets = [0, 128], sizes = [8, 128], strides = [1, 1]} : vector<8x512xf32> to vector<8x128xf32>
    %626 = arith.negf %625 : vector<8x128xf32>
    %627 = math.exp %626 : vector<8x128xf32>
    %cst_325 = arith.constant 1.000000e+00 : f32
    %628 = vector.broadcast %cst_325 : f32 to vector<8x128xf32>
    %629 = arith.addf %628, %627 : vector<8x128xf32>
    %630 = arith.divf %628, %629 : vector<8x128xf32>
    %631 = vector.extract_strided_slice %618 {offsets = [0, 256], sizes = [8, 128], strides = [1, 1]} : vector<8x512xf32> to vector<8x128xf32>
    %632 = math.tanh %631 : vector<8x128xf32>
    %633 = vector.extract_strided_slice %618 {offsets = [0, 384], sizes = [8, 128], strides = [1, 1]} : vector<8x512xf32> to vector<8x128xf32>
    %634 = arith.negf %633 : vector<8x128xf32>
    %635 = math.exp %634 : vector<8x128xf32>
    %cst_326 = arith.constant 1.000000e+00 : f32
    %636 = vector.broadcast %cst_326 : f32 to vector<8x128xf32>
    %637 = arith.addf %636, %635 : vector<8x128xf32>
    %638 = arith.divf %636, %637 : vector<8x128xf32>
    %639 = arith.mulf %630, %610 : vector<8x128xf32>
    %640 = arith.mulf %624, %632 : vector<8x128xf32>
    %641 = arith.addf %639, %640 : vector<8x128xf32>
    %642 = math.tanh %641 : vector<8x128xf32>
    %643 = arith.mulf %638, %642 : vector<8x128xf32>
    %c1_327 = arith.constant 1 : index
    %c0_328 = arith.constant 0 : index
    %c0_329 = arith.constant 0 : index
    %644 = vector.load %arg9[%c1_327, %c0_328, %c0_329] : memref<2x8x128xf32, #tpu.memory_space<vmem>>, vector<1x8x128xf32>
    %645 = vector.shape_cast %644 : vector<1x8x128xf32> to vector<8x128xf32>
    %646 = vector.shape_cast %643 : vector<8x128xf32> to vector<1x8x128xf32>
    tpu.vector_store %arg9[%c1_327, %c0_328, %c0_329], %646 {strides = array<i32>} : memref<2x8x128xf32, #tpu.memory_space<vmem>>, vector<1x8x128xf32>,
    %c1_330 = arith.constant 1 : index
    %c0_331 = arith.constant 0 : index
    %c0_332 = arith.constant 0 : index
    %647 = vector.load %arg10[%c1_330, %c0_331, %c0_332] : memref<2x8x128xf32, #tpu.memory_space<vmem>>, vector<1x8x128xf32>
    %648 = vector.shape_cast %647 : vector<1x8x128xf32> to vector<8x128xf32>
    %649 = vector.shape_cast %641 : vector<8x128xf32> to vector<1x8x128xf32>
    tpu.vector_store %arg10[%c1_330, %c0_331, %c0_332], %649 {strides = array<i32>} : memref<2x8x128xf32, #tpu.memory_space<vmem>>, vector<1x8x128xf32>,
    %650 = arith.index_cast %c6_i32 : i32 to index
    %c0_333 = arith.constant 0 : index
    %c0_334 = arith.constant 0 : index
    %651 = vector.load %arg6[%650, %c0_333, %c0_334] : memref<8x8x128xf32, #tpu.memory_space<vmem>>, vector<1x8x128xf32>
    %652 = vector.shape_cast %651 : vector<1x8x128xf32> to vector<8x128xf32>
    %653 = vector.shape_cast %643 : vector<8x128xf32> to vector<1x8x128xf32>
    tpu.vector_store %arg6[%650, %c0_333, %c0_334], %653 {strides = array<i32>} : memref<8x8x128xf32, #tpu.memory_space<vmem>>, vector<1x8x128xf32>,
    %c7_i32 = arith.constant 7 : i32
    %654 = arith.index_cast %c7_i32 : i32 to index
    %c0_335 = arith.constant 0 : index
    %c0_336 = arith.constant 0 : index
    %655 = vector.load %arg1[%654, %c0_335, %c0_336] : memref<8x8x128xf32, #tpu.memory_space<vmem>>, vector<1x8x128xf32>
    %656 = vector.shape_cast %655 : vector<1x8x128xf32> to vector<8x128xf32>
    %c0_337 = arith.constant 0 : index
    %c0_338 = arith.constant 0 : index
    %c0_339 = arith.constant 0 : index
    %657 = vector.load %arg9[%c0_337, %c0_338, %c0_339] : memref<2x8x128xf32, #tpu.memory_space<vmem>>, vector<1x8x128xf32>
    %658 = vector.shape_cast %657 : vector<1x8x128xf32> to vector<8x128xf32>
    %c0_340 = arith.constant 0 : index
    %c0_341 = arith.constant 0 : index
    %c0_342 = arith.constant 0 : index
    %659 = vector.load %arg10[%c0_340, %c0_341, %c0_342] : memref<2x8x128xf32, #tpu.memory_space<vmem>>, vector<1x8x128xf32>
    %660 = vector.shape_cast %659 : vector<1x8x128xf32> to vector<8x128xf32>
    %661 = tpu.concatenate %656, %658 in 1 : vector<8x128xf32>, vector<8x128xf32> -> vector<8x256xf32>
    %c0_343 = arith.constant 0 : index
    %c0_344 = arith.constant 0 : index
    %c0_345 = arith.constant 0 : index
    %662 = vector.load %arg2[%c0_343, %c0_344, %c0_345] : memref<2x256x512xf32, #tpu.memory_space<vmem>>, vector<1x256x512xf32>
    %663 = vector.shape_cast %662 : vector<1x256x512xf32> to vector<256x512xf32>
    %cst_346 = arith.constant dense<0.000000e+00> : vector<8x512xf32>
    %664 = tpu.matmul %661, %663, %cst_346 {dimension_numbers = #tpu.dot_dimension_numbers<[1], [0], [0], [1], [0, 0, 1, 1], [], []>} : vector<8x256xf32>, vector<256x512xf32>, vector<8x512xf32> -> vector<8x512xf32>
    %c0_347 = arith.constant 0 : index
    %c0_348 = arith.constant 0 : index
    %c0_349 = arith.constant 0 : index
    %665 = vector.load %arg3[%c0_347, %c0_348, %c0_349] : memref<2x1x512xf32, #tpu.memory_space<vmem>>, vector<1x1x512xf32>
    %666 = vector.shape_cast %665 : vector<1x1x512xf32> to vector<1x512xf32>
    %667 = vector.broadcast %666 : vector<1x512xf32> to vector<8x512xf32>
    %668 = arith.addf %664, %667 : vector<8x512xf32>
    %669 = vector.extract_strided_slice %668 {offsets = [0, 0], sizes = [8, 128], strides = [1, 1]} : vector<8x512xf32> to vector<8x128xf32>
    %670 = arith.negf %669 : vector<8x128xf32>
    %671 = math.exp %670 : vector<8x128xf32>
    %cst_350 = arith.constant 1.000000e+00 : f32
    %672 = vector.broadcast %cst_350 : f32 to vector<8x128xf32>
    %673 = arith.addf %672, %671 : vector<8x128xf32>
    %674 = arith.divf %672, %673 : vector<8x128xf32>
    %675 = vector.extract_strided_slice %668 {offsets = [0, 128], sizes = [8, 128], strides = [1, 1]} : vector<8x512xf32> to vector<8x128xf32>
    %676 = arith.negf %675 : vector<8x128xf32>
    %677 = math.exp %676 : vector<8x128xf32>
    %cst_351 = arith.constant 1.000000e+00 : f32
    %678 = vector.broadcast %cst_351 : f32 to vector<8x128xf32>
    %679 = arith.addf %678, %677 : vector<8x128xf32>
    %680 = arith.divf %678, %679 : vector<8x128xf32>
    %681 = vector.extract_strided_slice %668 {offsets = [0, 256], sizes = [8, 128], strides = [1, 1]} : vector<8x512xf32> to vector<8x128xf32>
    %682 = math.tanh %681 : vector<8x128xf32>
    %683 = vector.extract_strided_slice %668 {offsets = [0, 384], sizes = [8, 128], strides = [1, 1]} : vector<8x512xf32> to vector<8x128xf32>
    %684 = arith.negf %683 : vector<8x128xf32>
    %685 = math.exp %684 : vector<8x128xf32>
    %cst_352 = arith.constant 1.000000e+00 : f32
    %686 = vector.broadcast %cst_352 : f32 to vector<8x128xf32>
    %687 = arith.addf %686, %685 : vector<8x128xf32>
    %688 = arith.divf %686, %687 : vector<8x128xf32>
    %689 = arith.mulf %680, %660 : vector<8x128xf32>
    %690 = arith.mulf %674, %682 : vector<8x128xf32>
    %691 = arith.addf %689, %690 : vector<8x128xf32>
    %692 = math.tanh %691 : vector<8x128xf32>
    %693 = arith.mulf %688, %692 : vector<8x128xf32>
    %c0_353 = arith.constant 0 : index
    %c0_354 = arith.constant 0 : index
    %c0_355 = arith.constant 0 : index
    %694 = vector.load %arg9[%c0_353, %c0_354, %c0_355] : memref<2x8x128xf32, #tpu.memory_space<vmem>>, vector<1x8x128xf32>
    %695 = vector.shape_cast %694 : vector<1x8x128xf32> to vector<8x128xf32>
    %696 = vector.shape_cast %693 : vector<8x128xf32> to vector<1x8x128xf32>
    tpu.vector_store %arg9[%c0_353, %c0_354, %c0_355], %696 {strides = array<i32>} : memref<2x8x128xf32, #tpu.memory_space<vmem>>, vector<1x8x128xf32>,
    %c0_356 = arith.constant 0 : index
    %c0_357 = arith.constant 0 : index
    %c0_358 = arith.constant 0 : index
    %697 = vector.load %arg10[%c0_356, %c0_357, %c0_358] : memref<2x8x128xf32, #tpu.memory_space<vmem>>, vector<1x8x128xf32>
    %698 = vector.shape_cast %697 : vector<1x8x128xf32> to vector<8x128xf32>
    %699 = vector.shape_cast %691 : vector<8x128xf32> to vector<1x8x128xf32>
    tpu.vector_store %arg10[%c0_356, %c0_357, %c0_358], %699 {strides = array<i32>} : memref<2x8x128xf32, #tpu.memory_space<vmem>>, vector<1x8x128xf32>,
    %c1_359 = arith.constant 1 : index
    %c0_360 = arith.constant 0 : index
    %c0_361 = arith.constant 0 : index
    %700 = vector.load %arg9[%c1_359, %c0_360, %c0_361] : memref<2x8x128xf32, #tpu.memory_space<vmem>>, vector<1x8x128xf32>
    %701 = vector.shape_cast %700 : vector<1x8x128xf32> to vector<8x128xf32>
    %c1_362 = arith.constant 1 : index
    %c0_363 = arith.constant 0 : index
    %c0_364 = arith.constant 0 : index
    %702 = vector.load %arg10[%c1_362, %c0_363, %c0_364] : memref<2x8x128xf32, #tpu.memory_space<vmem>>, vector<1x8x128xf32>
    %703 = vector.shape_cast %702 : vector<1x8x128xf32> to vector<8x128xf32>
    %704 = tpu.concatenate %693, %701 in 1 : vector<8x128xf32>, vector<8x128xf32> -> vector<8x256xf32>
    %c1_365 = arith.constant 1 : index
    %c0_366 = arith.constant 0 : index
    %c0_367 = arith.constant 0 : index
    %705 = vector.load %arg2[%c1_365, %c0_366, %c0_367] : memref<2x256x512xf32, #tpu.memory_space<vmem>>, vector<1x256x512xf32>
    %706 = vector.shape_cast %705 : vector<1x256x512xf32> to vector<256x512xf32>
    %cst_368 = arith.constant dense<0.000000e+00> : vector<8x512xf32>
    %707 = tpu.matmul %704, %706, %cst_368 {dimension_numbers = #tpu.dot_dimension_numbers<[1], [0], [0], [1], [0, 0, 1, 1], [], []>} : vector<8x256xf32>, vector<256x512xf32>, vector<8x512xf32> -> vector<8x512xf32>
    %c1_369 = arith.constant 1 : index
    %c0_370 = arith.constant 0 : index
    %c0_371 = arith.constant 0 : index
    %708 = vector.load %arg3[%c1_369, %c0_370, %c0_371] : memref<2x1x512xf32, #tpu.memory_space<vmem>>, vector<1x1x512xf32>
    %709 = vector.shape_cast %708 : vector<1x1x512xf32> to vector<1x512xf32>
    %710 = vector.broadcast %709 : vector<1x512xf32> to vector<8x512xf32>
    %711 = arith.addf %707, %710 : vector<8x512xf32>
    %712 = vector.extract_strided_slice %711 {offsets = [0, 0], sizes = [8, 128], strides = [1, 1]} : vector<8x512xf32> to vector<8x128xf32>
    %713 = arith.negf %712 : vector<8x128xf32>
    %714 = math.exp %713 : vector<8x128xf32>
    %cst_372 = arith.constant 1.000000e+00 : f32
    %715 = vector.broadcast %cst_372 : f32 to vector<8x128xf32>
    %716 = arith.addf %715, %714 : vector<8x128xf32>
    %717 = arith.divf %715, %716 : vector<8x128xf32>
    %718 = vector.extract_strided_slice %711 {offsets = [0, 128], sizes = [8, 128], strides = [1, 1]} : vector<8x512xf32> to vector<8x128xf32>
    %719 = arith.negf %718 : vector<8x128xf32>
    %720 = math.exp %719 : vector<8x128xf32>
    %cst_373 = arith.constant 1.000000e+00 : f32
    %721 = vector.broadcast %cst_373 : f32 to vector<8x128xf32>
    %722 = arith.addf %721, %720 : vector<8x128xf32>
    %723 = arith.divf %721, %722 : vector<8x128xf32>
    %724 = vector.extract_strided_slice %711 {offsets = [0, 256], sizes = [8, 128], strides = [1, 1]} : vector<8x512xf32> to vector<8x128xf32>
    %725 = math.tanh %724 : vector<8x128xf32>
    %726 = vector.extract_strided_slice %711 {offsets = [0, 384], sizes = [8, 128], strides = [1, 1]} : vector<8x512xf32> to vector<8x128xf32>
    %727 = arith.negf %726 : vector<8x128xf32>
    %728 = math.exp %727 : vector<8x128xf32>
    %cst_374 = arith.constant 1.000000e+00 : f32
    %729 = vector.broadcast %cst_374 : f32 to vector<8x128xf32>
    %730 = arith.addf %729, %728 : vector<8x128xf32>
    %731 = arith.divf %729, %730 : vector<8x128xf32>
    %732 = arith.mulf %723, %703 : vector<8x128xf32>
    %733 = arith.mulf %717, %725 : vector<8x128xf32>
    %734 = arith.addf %732, %733 : vector<8x128xf32>
    %735 = math.tanh %734 : vector<8x128xf32>
    %736 = arith.mulf %731, %735 : vector<8x128xf32>
    %c1_375 = arith.constant 1 : index
    %c0_376 = arith.constant 0 : index
    %c0_377 = arith.constant 0 : index
    %737 = vector.load %arg9[%c1_375, %c0_376, %c0_377] : memref<2x8x128xf32, #tpu.memory_space<vmem>>, vector<1x8x128xf32>
    %738 = vector.shape_cast %737 : vector<1x8x128xf32> to vector<8x128xf32>
    %739 = vector.shape_cast %736 : vector<8x128xf32> to vector<1x8x128xf32>
    tpu.vector_store %arg9[%c1_375, %c0_376, %c0_377], %739 {strides = array<i32>} : memref<2x8x128xf32, #tpu.memory_space<vmem>>, vector<1x8x128xf32>,
    %c1_378 = arith.constant 1 : index
    %c0_379 = arith.constant 0 : index
    %c0_380 = arith.constant 0 : index
    %740 = vector.load %arg10[%c1_378, %c0_379, %c0_380] : memref<2x8x128xf32, #tpu.memory_space<vmem>>, vector<1x8x128xf32>
    %741 = vector.shape_cast %740 : vector<1x8x128xf32> to vector<8x128xf32>
    %742 = vector.shape_cast %734 : vector<8x128xf32> to vector<1x8x128xf32>
    tpu.vector_store %arg10[%c1_378, %c0_379, %c0_380], %742 {strides = array<i32>} : memref<2x8x128xf32, #tpu.memory_space<vmem>>, vector<1x8x128xf32>,
    %743 = arith.index_cast %c7_i32 : i32 to index
    %c0_381 = arith.constant 0 : index
    %c0_382 = arith.constant 0 : index
    %744 = vector.load %arg6[%743, %c0_381, %c0_382] : memref<8x8x128xf32, #tpu.memory_space<vmem>>, vector<1x8x128xf32>
    %745 = vector.shape_cast %744 : vector<1x8x128xf32> to vector<8x128xf32>
    %746 = vector.shape_cast %736 : vector<8x128xf32> to vector<1x8x128xf32>
    tpu.vector_store %arg6[%743, %c0_381, %c0_382], %746 {strides = array<i32>} : memref<8x8x128xf32, #tpu.memory_space<vmem>>, vector<1x8x128xf32>,
    %c8_i32 = arith.constant 8 : i32
    %c1_i32_383 = arith.constant 1 : i32
    %747 = arith.cmpi eq, %arg0, %c1_i32_383 : i32
    %748 = arith.extui %747 : i1 to i32
    %c0_i32_384 = arith.constant 0 : i32
    %749 = arith.cmpi ne, %748, %c0_i32_384 : i32
    scf.if %749 {
      %c0_385 = arith.constant 0 : index
      %c0_386 = arith.constant 0 : index
      %c0_387 = arith.constant 0 : index
      %750 = vector.load %arg9[%c0_385, %c0_386, %c0_387] : memref<2x8x128xf32, #tpu.memory_space<vmem>>, vector<2x8x128xf32>
      %c0_388 = arith.constant 0 : index
      %c0_389 = arith.constant 0 : index
      %c0_390 = arith.constant 0 : index
      %751 = vector.load %arg7[%c0_388, %c0_389, %c0_390] : memref<2x8x128xf32, #tpu.memory_space<vmem>>, vector<2x8x128xf32>
      tpu.vector_store %arg7[%c0_388, %c0_389, %c0_390], %750 {strides = array<i32>} : memref<2x8x128xf32, #tpu.memory_space<vmem>>, vector<2x8x128xf32>,
      %c0_391 = arith.constant 0 : index
      %c0_392 = arith.constant 0 : index
      %c0_393 = arith.constant 0 : index
      %752 = vector.load %arg10[%c0_391, %c0_392, %c0_393] : memref<2x8x128xf32, #tpu.memory_space<vmem>>, vector<2x8x128xf32>
      %c0_394 = arith.constant 0 : index
      %c0_395 = arith.constant 0 : index
      %c0_396 = arith.constant 0 : index
      %753 = vector.load %arg8[%c0_394, %c0_395, %c0_396] : memref<2x8x128xf32, #tpu.memory_space<vmem>>, vector<2x8x128xf32>
      tpu.vector_store %arg8[%c0_394, %c0_395, %c0_396], %752 {strides = array<i32>} : memref<2x8x128xf32, #tpu.memory_space<vmem>>, vector<2x8x128xf32>,
    } else {
    }
    return
  }
  func.func @transform_0(%arg0: i32) -> (i32, i32, i32) {
    %c0_i32 = arith.constant 0 : i32
    %c0_i32_0 = arith.constant 0 : i32
    %c0_i32_1 = arith.constant 0 : i32
    return %arg0, %c0_i32, %c0_i32_0 : i32, i32, i32
  }
  func.func @transform_1(%arg0: i32) -> (i32, i32, i32) {
    %c0_i32 = arith.constant 0 : i32
    %c0_i32_0 = arith.constant 0 : i32
    %c0_i32_1 = arith.constant 0 : i32
    %c0_i32_2 = arith.constant 0 : i32
    return %c0_i32, %c0_i32_0, %c0_i32_1 : i32, i32, i32
  }
  func.func @transform_2(%arg0: i32) -> (i32, i32, i32) {
    %c0_i32 = arith.constant 0 : i32
    %c0_i32_0 = arith.constant 0 : i32
    %c0_i32_1 = arith.constant 0 : i32
    %c0_i32_2 = arith.constant 0 : i32
    return %c0_i32, %c0_i32_0, %c0_i32_1 : i32, i32, i32
  }
  func.func @transform_3(%arg0: i32) -> (i32, i32, i32) {
    %c0_i32 = arith.constant 0 : i32
    %c0_i32_0 = arith.constant 0 : i32
    %c0_i32_1 = arith.constant 0 : i32
    %c0_i32_2 = arith.constant 0 : i32
    return %c0_i32, %c0_i32_0, %c0_i32_1 : i32, i32, i32
  }
  func.func @transform_4(%arg0: i32) -> (i32, i32, i32) {
    %c0_i32 = arith.constant 0 : i32
    %c0_i32_0 = arith.constant 0 : i32
    %c0_i32_1 = arith.constant 0 : i32
    %c0_i32_2 = arith.constant 0 : i32
    return %c0_i32, %c0_i32_0, %c0_i32_1 : i32, i32, i32
  }
  func.func @transform_5(%arg0: i32) -> (i32, i32, i32) {
    %c0_i32 = arith.constant 0 : i32
    %c0_i32_0 = arith.constant 0 : i32
    %c0_i32_1 = arith.constant 0 : i32
    return %arg0, %c0_i32, %c0_i32_0 : i32, i32, i32
  }
  func.func @transform_6(%arg0: i32) -> (i32, i32, i32) {
    %c0_i32 = arith.constant 0 : i32
    %c0_i32_0 = arith.constant 0 : i32
    %c0_i32_1 = arith.constant 0 : i32
    %c0_i32_2 = arith.constant 0 : i32
    return %c0_i32, %c0_i32_0, %c0_i32_1 : i32, i32, i32
  }
  func.func @transform_7(%arg0: i32) -> (i32, i32, i32) {
    %c0_i32 = arith.constant 0 : i32
    %c0_i32_0 = arith.constant 0 : i32
    %c0_i32_1 = arith.constant 0 : i32
    %c0_i32_2 = arith.constant 0 : i32
    return %c0_i32, %c0_i32_0, %c0_i32_1 : i32, i32, i32
  }
}

</mosaic_0001>

<llo_original>
// kernel: tpu_custom_call.1
$region0: #{tpu_custom_call.1}
  #allocation0 [shape = 'u32[]', space=smem, size = 0x4, offset = 0x4, fixed_abs, tag = 'smem constant byte address 0x4 - core index']
  #allocation1 [shape = 'u32[144,128]{1,0:T(1,128)}', space=vmem, size = 0x12000, scoped, tag = 'internal scratch']
  #allocation2 [shape = 'f32[2,8,128]{2,1,0:T(8,128)}', space=vmem, size = 0x2000, scoped, tag = 'scratch operand']
  #allocation3 [shape = 'f32[2,8,128]{2,1,0:T(8,128)}', space=vmem, size = 0x2000, scoped, tag = 'scratch operand']
  %s0 = inlined_call_operand.hbm [shape: f32[16,8,128], index: 0, kind: input, shape index: {}]
  %s1 = inlined_call_operand.hbm [shape: f32[2,256,512], index: 1, kind: input, shape index: {}]
  %s2 = inlined_call_operand.hbm [shape: f32[2,1,512], index: 2, kind: input, shape index: {}]
  %s3 = inlined_call_operand.hbm [shape: f32[2,8,128], index: 3, kind: input, shape index: {}]
  %s4 = inlined_call_operand.hbm [shape: f32[2,8,128], index: 4, kind: input, shape index: {}]
  %s5 = inlined_call_operand.hbm [shape: f32[16,8,128], index: 5, kind: output, shape index: {0}]
  %s6 = inlined_call_operand.hbm [shape: f32[2,8,128], index: 6, kind: output, shape index: {1}]
  %s7 = inlined_call_operand.hbm [shape: f32[2,8,128], index: 7, kind: output, shape index: {2}]
  %8 = xla_tuple %s5, %s6, %s7
  %s9 = sld [smem:[#allocation0]]
  $region97: #{tpu_custom_call.1} parent=0
    _
  %s11 = ssub.s32 1, %s9
  %s12 = scalar_select 0, %s11, %s9
  $region1: #{tpu_custom_call.1} parent=0
    #allocation4 [shape = 'u8[65536]{0}', space=vmem, size = 0x10000, scoped, tag = 'input window, operand 0']
    #allocation5 [shape = 's32[2]{0}', space=sflag, size = 0x8, scoped, tag = 'scoped memory for tpu_custom_call.1']
    #allocation6 [shape = 's32[2]{0}', space=sflag, size = 0x8, scoped, tag = 'scoped memory for tpu_custom_call.1']
    #allocation7 [shape = 'u8[1048576]{0}', space=vmem, size = 0x100000, scoped, tag = 'input window, operand 1, single buffered']
    #allocation8 [shape = 's32[1]{0}', space=sflag, size = 0x4, scoped, tag = 'scoped memory for tpu_custom_call.1']
    #allocation9 [shape = 'u8[4096]{0}', space=vmem, size = 0x1000, scoped, tag = 'input window, operand 2, single buffered']
    #allocation10 [shape = 'u8[8192]{0}', space=vmem, size = 0x2000, scoped, tag = 'input window, operand 3, single buffered']
    #allocation11 [shape = 's32[1]{0}', space=sflag, size = 0x4, scoped, tag = 'scoped memory for tpu_custom_call.1']
    #allocation12 [shape = 'u8[8192]{0}', space=vmem, size = 0x2000, scoped, tag = 'input window, operand 4, single buffered']
    #allocation13 [shape = 'u8[65536]{0}', space=vmem, size = 0x10000, scoped, tag = 'output window, operand 0']
    #allocation14 [shape = 'u8[8192]{0}', space=vmem, size = 0x2000, scoped, tag = 'output window, operand 1, single buffered']
    #allocation15 [shape = 's32[1]{0}', space=sflag, size = 0x4, scoped, tag = 'scoped memory for tpu_custom_call.1']
    #allocation16 [shape = 'u8[8192]{0}', space=vmem, size = 0x2000, scoped, tag = 'output window, operand 2, single buffered']
    %13 = vsyncpa [#allocation5], 0
    %s14 = scalar_lea.sflag [#allocation5], 1
    %15 = vsyncpa %s14, 0
    %16 = vsyncpa [#allocation8], 0
    %17 = vsyncpa [#allocation11], 0
    %18 = vsyncpa [#allocation6], 0
    %s19 = scalar_lea.sflag [#allocation6], 1
    %20 = vsyncpa %s19, 0
    %21 = vsyncpa [#allocation15], 0
    loop: start=0, step=1, limit=4
    $region2: #{tpu_custom_call.1} parent=1 // loop_pre_header
      _
    $region3: #{tpu_custom_call.1} parent=1 // loop_header
      %s23 = sphi 0, %s27
      %p24 = scmp.ge.s32.totalorder %s23, 4
      %s33 = sphi 0, %s35
      %s36 = sphi 0, %s33
      %s37 = sphi 0, %s36
      %s53 = sphi 0, %s37
      %s57 = sphi 0, %s57
      %s59 = sphi 0, %s57
      %s60 = sphi 0, %s59
      %s74 = sphi 0, %s60
      %s78 = sphi 0, %s78
      %s80 = sphi 0, %s78
      %s81 = sphi 0, %s80
      %s95 = sphi 0, %s81
      %s99 = sphi 0, %s99
      %s101 = sphi 0, %s99
      %s102 = sphi 0, %s101
      %s116 = sphi 0, %s102
      %s120 = sphi 0, %s120
      %s122 = sphi 0, %s120
      %s123 = sphi 0, %s122
      %s137 = sphi 0, %s123
      %s143 = sphi 0, %s145
      %s146 = sphi 0, %s143
      %s147 = sphi 0, %s146
      %s163 = sphi 0, %s147
      %s167 = sphi 0, %s167
      %s169 = sphi 0, %s167
      %s170 = sphi 0, %s169
      %s184 = sphi 0, %s170
      %s188 = sphi 0, %s188
      %s190 = sphi 0, %s188
      %s191 = sphi 0, %s190
      %s205 = sphi 0, %s191
    $region4: #{tpu_custom_call.1} parent=1 // loop_header_branch
      %26 = sbr.rel (%p24) target = $region8
    $region5: #{tpu_custom_call.1} parent=1 // loop_body
      %s28 = ssub.s32 %s23, 1
      %s29 = ssub.s32 %s23, 2
      %s30 = sadd.s32 %s23, 1
      %s31 = ssub.s32 %s23, %s30
      %p32 = scmp.eq.s32.totalorder %s31, 0
      %s34 = sadd.s32 %s33, 1
      %s35 = scalar_select %p32, %s33, %s34
      %p38 = pneg %p32
      %p39 = scmp.eq.s32.totalorder %s23, 1
      %p40 = por %p38, %p39
      %p41 = scmp.ne.s32.totalorder %s33, %s36
      %p42 = scmp.eq.s32.totalorder %s23, 0
      %p43 = por %p41, %p42
      %p44 = scmp.ne.s32.totalorder %s33, %s36
      %p45 = scmp.eq.s32.totalorder %s28, 1
      %p46 = por %p44, %p45
      %p47 = scmp.ne.s32.totalorder %s36, %s37
      %p48 = scmp.eq.s32.totalorder %s28, 0
      %p49 = por %p47, %p48
      %p50 = scmp.ne.s32.totalorder %s36, %s37
      %p51 = scmp.eq.s32.totalorder %s29, 1
      %p52 = por %p50, %p51
      %p54 = scmp.ne.s32.totalorder %s37, %s53
      %p55 = scmp.eq.s32.totalorder %s29, 0
      %p56 = por %p54, %p55
      %s58 = sadd.s32 %s57, 1
      %p61 = scmp.eq.s32.totalorder %s23, 1
      %p62 = scmp.ne.s32.totalorder %s57, %s59
      %p63 = scmp.eq.s32.totalorder %s23, 0
      %p64 = por %p62, %p63
      %p65 = scmp.ne.s32.totalorder %s57, %s59
      %p66 = scmp.eq.s32.totalorder %s28, 1
      %p67 = por %p65, %p66
      %p68 = scmp.ne.s32.totalorder %s59, %s60
      %p69 = scmp.eq.s32.totalorder %s28, 0
      %p70 = por %p68, %p69
      %p71 = scmp.ne.s32.totalorder %s59, %s60
      %p72 = scmp.eq.s32.totalorder %s29, 1
      %p73 = por %p71, %p72
      %p75 = scmp.ne.s32.totalorder %s60, %s74
      %p76 = scmp.eq.s32.totalorder %s29, 0
      %p77 = por %p75, %p76
      %s79 = sadd.s32 %s78, 1
      %p82 = scmp.eq.s32.totalorder %s23, 1
      %p83 = scmp.ne.s32.totalorder %s78, %s80
      %p84 = scmp.eq.s32.totalorder %s23, 0
      %p85 = por %p83, %p84
      %p86 = scmp.ne.s32.totalorder %s78, %s80
      %p87 = scmp.eq.s32.totalorder %s28, 1
      %p88 = por %p86, %p87
      %p89 = scmp.ne.s32.totalorder %s80, %s81
      %p90 = scmp.eq.s32.totalorder %s28, 0
      %p91 = por %p89, %p90
      %p92 = scmp.ne.s32.totalorder %s80, %s81
      %p93 = scmp.eq.s32.totalorder %s29, 1
      %p94 = por %p92, %p93
      %p96 = scmp.ne.s32.totalorder %s81, %s95
      %p97 = scmp.eq.s32.totalorder %s29, 0
      %p98 = por %p96, %p97
      %s100 = sadd.s32 %s99, 1
      %p103 = scmp.eq.s32.totalorder %s23, 1
      %p104 = scmp.ne.s32.totalorder %s99, %s101
      %p105 = scmp.eq.s32.totalorder %s23, 0
      %p106 = por %p104, %p105
      %p107 = scmp.ne.s32.totalorder %s99, %s101
      %p108 = scmp.eq.s32.totalorder %s28, 1
      %p109 = por %p107, %p108
      %p110 = scmp.ne.s32.totalorder %s101, %s102
      %p111 = scmp.eq.s32.totalorder %s28, 0
      %p112 = por %p110, %p111
      %p113 = scmp.ne.s32.totalorder %s101, %s102
      %p114 = scmp.eq.s32.totalorder %s29, 1
      %p115 = por %p113, %p114
      %p117 = scmp.ne.s32.totalorder %s102, %s116
      %p118 = scmp.eq.s32.totalorder %s29, 0
      %p119 = por %p117, %p118
      %s121 = sadd.s32 %s120, 1
      %p124 = scmp.eq.s32.totalorder %s23, 1
      %p125 = scmp.ne.s32.totalorder %s120, %s122
      %p126 = scmp.eq.s32.totalorder %s23, 0
      %p127 = por %p125, %p126
      %p128 = scmp.ne.s32.totalorder %s120, %s122
      %p129 = scmp.eq.s32.totalorder %s28, 1
      %p130 = por %p128, %p129
      %p131 = scmp.ne.s32.totalorder %s122, %s123
      %p132 = scmp.eq.s32.totalorder %s28, 0
      %p133 = por %p131, %p132
      %p134 = scmp.ne.s32.totalorder %s122, %s123
      %p135 = scmp.eq.s32.totalorder %s29, 1
      %p136 = por %p134, %p135
      %p138 = scmp.ne.s32.totalorder %s123, %s137
      %p139 = scmp.eq.s32.totalorder %s29, 0
      %p140 = por %p138, %p139
      %s141 = ssub.s32 %s23, %s30
      %p142 = scmp.eq.s32.totalorder %s141, 0
      %s144 = sadd.s32 %s143, 1
      %s145 = scalar_select %p142, %s143, %s144
      %p148 = pneg %p142
      %p149 = scmp.eq.s32.totalorder %s23, 1
      %p150 = por %p148, %p149
      %p151 = scmp.ne.s32.totalorder %s143, %s146
      %p152 = scmp.eq.s32.totalorder %s23, 0
      %p153 = por %p151, %p152
      %p154 = scmp.ne.s32.totalorder %s143, %s146
      %p155 = scmp.eq.s32.totalorder %s28, 1
      %p156 = por %p154, %p155
      %p157 = scmp.ne.s32.totalorder %s146, %s147
      %p158 = scmp.eq.s32.totalorder %s28, 0
      %p159 = por %p157, %p158
      %p160 = scmp.ne.s32.totalorder %s146, %s147
      %p161 = scmp.eq.s32.totalorder %s29, 1
      %p162 = por %p160, %p161
      %p164 = scmp.ne.s32.totalorder %s147, %s163
      %p165 = scmp.eq.s32.totalorder %s29, 0
      %p166 = por %p164, %p165
      %s168 = sadd.s32 %s167, 1
      %p171 = scmp.eq.s32.totalorder %s23, 1
      %p172 = scmp.ne.s32.totalorder %s167, %s169
      %p173 = scmp.eq.s32.totalorder %s23, 0
      %p174 = por %p172, %p173
      %p175 = scmp.ne.s32.totalorder %s167, %s169
      %p176 = scmp.eq.s32.totalorder %s28, 1
      %p177 = por %p175, %p176
      %p178 = scmp.ne.s32.totalorder %s169, %s170
      %p179 = scmp.eq.s32.totalorder %s28, 0
      %p180 = por %p178, %p179
      %p181 = scmp.ne.s32.totalorder %s169, %s170
      %p182 = scmp.eq.s32.totalorder %s29, 1
      %p183 = por %p181, %p182
      %p185 = scmp.ne.s32.totalorder %s170, %s184
      %p186 = scmp.eq.s32.totalorder %s29, 0
      %p187 = por %p185, %p186
      %s189 = sadd.s32 %s188, 1
      %p192 = scmp.eq.s32.totalorder %s23, 1
      %p193 = scmp.ne.s32.totalorder %s188, %s190
      %p194 = scmp.eq.s32.totalorder %s23, 0
      %p195 = por %p193, %p194
      %p196 = scmp.ne.s32.totalorder %s188, %s190
      %p197 = scmp.eq.s32.totalorder %s28, 1
      %p198 = por %p196, %p197
      %p199 = scmp.ne.s32.totalorder %s190, %s191
      %p200 = scmp.eq.s32.totalorder %s28, 0
      %p201 = por %p199, %p200
      %p202 = scmp.ne.s32.totalorder %s190, %s191
      %p203 = scmp.eq.s32.totalorder %s29, 1
      %p204 = por %p202, %p203
      %p206 = scmp.ne.s32.totalorder %s191, %s205
      %p207 = scmp.eq.s32.totalorder %s29, 0
      %p208 = por %p206, %p207
      %p209 = scmp.le.s32.totalorder 1, %s23
      %p210 = scmp.lt.s32.totalorder %s23, 3
      %p211 = pnand %p209, %p210
      %p212 = pneg %p211
      // Predicated region
      $region9: #{tpu_custom_call.1} parent=5 // pred_check
        _
      $region10: #{tpu_custom_call.1} parent=5 // pred_check_branch
        %214 = sbr.rel (%p211) target = $region12
      $region11: #{tpu_custom_call.1} parent=5 // pred_region
        %s215 = ssub.s32 %s23, 1
        // Predicated region
        $region13: #{tpu_custom_call.1} parent=11 // pred_check
          %p216 = pneg %p70
        $region14: #{tpu_custom_call.1} parent=11 // pred_check_branch
          %218 = sbr.rel (%p216) target = $region16
        $region15: #{tpu_custom_call.1} parent=11 // pred_region
          %s220 = ssub.s32 32768, 32768
          %221 = vsyncadd [#allocation8], %s220
          %s222 = sshll.u32 [#allocation7], 4
          %s223 = int_to_ptr.vmem [resolvable:$true] %s222
          %228 = dma.hbm_to_vmem [thread:$0]  %s1, 32768, %s223, [#allocation8], 512, 512, 32
        $region16: #{tpu_custom_call.1} parent=11 // pred_fallthru
          _
        // Predicated region
        $region17: #{tpu_custom_call.1} parent=11 // pred_check
          %p229 = pneg %p91
        $region18: #{tpu_custom_call.1} parent=11 // pred_check_branch
          %231 = sbr.rel (%p229) target = $region20
        $region19: #{tpu_custom_call.1} parent=11 // pred_region
          %s233 = ssub.s32 128, 128
          %234 = vsyncadd [#allocation8], %s233
          %s235 = sshll.u32 [#allocation9], 4
          %s236 = int_to_ptr.vmem [resolvable:$true] %s235
          %241 = dma.hbm_to_vmem [thread:$0]  %s2, 128, %s236, [#allocation8], 64, 64, 4
        $region20: #{tpu_custom_call.1} parent=11 // pred_fallthru
          _
        // Predicated region
        $region21: #{tpu_custom_call.1} parent=11 // pred_check
          %p242 = pneg %p112
        $region22: #{tpu_custom_call.1} parent=11 // pred_check_branch
          %244 = sbr.rel (%p242) target = $region24
        $region23: #{tpu_custom_call.1} parent=11 // pred_region
          %s246 = ssub.s32 256, 256
          %247 = vsyncadd [#allocation11], %s246
          %s248 = sshll.u32 [#allocation10], 4
          %s249 = int_to_ptr.vmem [resolvable:$true] %s248
          %254 = dma.hbm_to_vmem [thread:$0]  %s3, 256, %s249, [#allocation11], 128, 128, 8
        $region24: #{tpu_custom_call.1} parent=11 // pred_fallthru
          _
        // Predicated region
        $region25: #{tpu_custom_call.1} parent=11 // pred_check
          %p255 = pneg %p133
        $region26: #{tpu_custom_call.1} parent=11 // pred_check_branch
          %257 = sbr.rel (%p255) target = $region28
        $region27: #{tpu_custom_call.1} parent=11 // pred_region
          %s259 = ssub.s32 256, 256
          %260 = vsyncadd [#allocation11], %s259
          %s261 = sshll.u32 [#allocation12], 4
          %s262 = int_to_ptr.vmem [resolvable:$true] %s261
          %267 = dma.hbm_to_vmem [thread:$0]  %s4, 256, %s262, [#allocation11], 128, 128, 8
        $region28: #{tpu_custom_call.1} parent=11 // pred_fallthru
          _
      $region12: #{tpu_custom_call.1} parent=5 // pred_fallthru
        _
      %p268 = scmp.lt.s32.totalorder %s23, 2
      // Predicated region
      $region29: #{tpu_custom_call.1} parent=5 // pred_check
        %p269 = pneg %p268
      $region30: #{tpu_custom_call.1} parent=5 // pred_check_branch
        %271 = sbr.rel (%p269) target = $region32
      $region31: #{tpu_custom_call.1} parent=5 // pred_region
        // Predicated region
        $region33: #{tpu_custom_call.1} parent=31 // pred_check
          %p272 = pneg %p43
        $region34: #{tpu_custom_call.1} parent=31 // pred_check_branch
          %274 = sbr.rel (%p272) target = $region36
        $region35: #{tpu_custom_call.1} parent=31 // pred_region
          %s275 = sand.u32 %s33, 1
          %s276 = scalar_lea.sflag [#allocation5], %s275
          %s277 = sand.u32 %s33, 1
          %s278 = smul.addr %s277, 64
          %s279 = scalar_lea.vmem [#allocation4], %s278
          %s280 = smul.u32 8, %s23
          %s282 = ssub.s32 1024, 1024
          %283 = vsyncadd %s276, %s282
          %s284 = smul.addr %s280, 128
          %s285 = scalar_lea.hbm %s0, %s284
          %s286 = sshll.u32 %s279, 4
          %s287 = int_to_ptr.vmem [resolvable:$true] %s286
          %292 = dma.hbm_to_vmem [thread:$0]  %s285, 1024, %s287, %s276, 128, 128, 8
        $region36: #{tpu_custom_call.1} parent=31 // pred_fallthru
          _
      $region32: #{tpu_custom_call.1} parent=5 // pred_fallthru
        _
      %p293 = scmp.le.s32.totalorder 1, %s23
      %p294 = scmp.lt.s32.totalorder %s23, 3
      %p295 = pnand %p293, %p294
      %p296 = pneg %p295
      // Predicated region
      $region37: #{tpu_custom_call.1} parent=5 // pred_check
        _
      $region38: #{tpu_custom_call.1} parent=5 // pred_check_branch
        %298 = sbr.rel (%p295) target = $region40
      $region39: #{tpu_custom_call.1} parent=5 // pred_region
        %s299 = ssub.s32 %s23, 1
        %s300 = sand.u32 %s36, 1
        %s301 = scalar_lea.sflag [#allocation5], %s300
        %s302 = sand.u32 %s36, 1
        %s303 = smul.addr %s302, 64
        %s304 = scalar_lea.vmem [#allocation4], %s303
        // Predicated region
        $region41: #{tpu_custom_call.1} parent=39 // pred_check
          %p305 = pneg %p49
        $region42: #{tpu_custom_call.1} parent=39 // pred_check_branch
          %307 = sbr.rel (%p305) target = $region44
        $region43: #{tpu_custom_call.1} parent=39 // pred_region
          %308 = dma.done %s301, 1024
        $region44: #{tpu_custom_call.1} parent=39 // pred_fallthru
          _
        // Predicated region
        $region45: #{tpu_custom_call.1} parent=39 // pred_check
          %p309 = pneg %p70
        $region46: #{tpu_custom_call.1} parent=39 // pred_check_branch
          %311 = sbr.rel (%p309) target = $region48
        $region47: #{tpu_custom_call.1} parent=39 // pred_region
          %312 = dma.done [#allocation8], 32768
        $region48: #{tpu_custom_call.1} parent=39 // pred_fallthru
          _
        // Predicated region
        $region49: #{tpu_custom_call.1} parent=39 // pred_check
          %p313 = pneg %p91
        $region50: #{tpu_custom_call.1} parent=39 // pred_check_branch
          %315 = sbr.rel (%p313) target = $region52
        $region51: #{tpu_custom_call.1} parent=39 // pred_region
          %316 = dma.done [#allocation8], 128
        $region52: #{tpu_custom_call.1} parent=39 // pred_fallthru
          _
        // Predicated region
        $region53: #{tpu_custom_call.1} parent=39 // pred_check
          %p317 = pneg %p112
        $region54: #{tpu_custom_call.1} parent=39 // pred_check_branch
          %319 = sbr.rel (%p317) target = $region56
        $region55: #{tpu_custom_call.1} parent=39 // pred_region
          %320 = dma.done [#allocation11], 256
        $region56: #{tpu_custom_call.1} parent=39 // pred_fallthru
          _
        // Predicated region
        $region57: #{tpu_custom_call.1} parent=39 // pred_check
          %p321 = pneg %p133
        $region58: #{tpu_custom_call.1} parent=39 // pred_check_branch
          %323 = sbr.rel (%p321) target = $region60
        $region59: #{tpu_custom_call.1} parent=39 // pred_region
          %324 = dma.done [#allocation11], 256
        $region60: #{tpu_custom_call.1} parent=39 // pred_fallthru
          _
        %s325 = sand.u32 %s36, 1
        %s326 = scalar_lea.sflag [#allocation5], %s325
        %s327 = sand.u32 %s36, 1
        %s328 = smul.addr %s327, 64
        %s329 = scalar_lea.vmem [#allocation4], %s328
        %p330 = pneg %p49
        %p331 = pneg %p46
        %p332 = pneg %p70
        %p333 = pneg %p67
        %p334 = pneg %p91
        %p335 = pneg %p88
        %p336 = pneg %p112
        %p337 = pneg %p109
        %p338 = pneg %p133
        %p339 = pneg %p130
        %p340 = pneg %p159
        %p341 = pneg %p156
        %s342 = sand.u32 %s146, 1
        %s343 = scalar_lea.sflag [#allocation6], %s342
        %s344 = sand.u32 %s146, 1
        %s345 = smul.addr %s344, 64
        %s346 = scalar_lea.vmem [#allocation13], %s345
        %p347 = pneg %p180
        %p348 = pneg %p177
        %p349 = pneg %p201
        %p350 = pneg %p198
        %s351 = smul.u32 8, %s28
        %s352 = smul.u32 8, %s28
        %p353 = scmp.eq.s32.totalorder %s28, 0
        // Predicated region
        $region61: #{tpu_custom_call.1} parent=39 // pred_check
          %p354 = pneg %p353
        $region62: #{tpu_custom_call.1} parent=39 // pred_check_branch
          %356 = sbr.rel (%p354) target = $region64
        $region63: #{tpu_custom_call.1} parent=39 // pred_region
          %v357 = vld [vmem:[#allocation10] sm:$0xff]
          %v358 = vld [vmem:[#allocation10 + $0x8] sm:$0xff]
          %359 = vst [vmem:[#allocation2] sm:$0xff] %v357
          %360 = vst [vmem:[#allocation2 + $0x8] sm:$0xff] %v358
          %v361 = vld [vmem:[#allocation12] sm:$0xff]
          %v362 = vld [vmem:[#allocation12 + $0x8] sm:$0xff]
          %363 = vst [vmem:[#allocation3] sm:$0xff] %v361
          %364 = vst [vmem:[#allocation3 + $0x8] sm:$0xff] %v362
        $region64: #{tpu_custom_call.1} parent=39 // pred_fallthru
          _
        %v365 = vld [vmem:[%s304] sm:$0xff]
        %v366 = vld [vmem:[#allocation2] sm:$0xff]
        %v367 = vld [vmem:[#allocation3] sm:$0xff]
        %v368 = vld [vmem:[#allocation7] sm:$0xff]
        %v369 = vld [vmem:[#allocation7 + $0x8] sm:$0xff]
        %v370 = vld [vmem:[#allocation7 + $0x10] sm:$0xff]
        %v371 = vld [vmem:[#allocation7 + $0x18] sm:$0xff]
        %v372 = vld [vmem:[#allocation7 + $0x20] sm:$0xff]
        %v373 = vld [vmem:[#allocation7 + $0x28] sm:$0xff]
        %v374 = vld [vmem:[#allocation7 + $0x30] sm:$0xff]
        %v375 = vld [vmem:[#allocation7 + $0x38] sm:$0xff]
        %v376 = vld [vmem:[#allocation7 + $0x40] sm:$0xff]
        %v377 = vld [vmem:[#allocation7 + $0x48] sm:$0xff]
        %v378 = vld [vmem:[#allocation7 + $0x50] sm:$0xff]
        %v379 = vld [vmem:[#allocation7 + $0x58] sm:$0xff]
        %v380 = vld [vmem:[#allocation7 + $0x60] sm:$0xff]
        %v381 = vld [vmem:[#allocation7 + $0x68] sm:$0xff]
        %v382 = vld [vmem:[#allocation7 + $0x70] sm:$0xff]
        %v383 = vld [vmem:[#allocation7 + $0x78] sm:$0xff]
        %v384 = vld [vmem:[#allocation7 + $0x80] sm:$0xff]
        %v385 = vld [vmem:[#allocation7 + $0x88] sm:$0xff]
        %v386 = vld [vmem:[#allocation7 + $0x90] sm:$0xff]
        %v387 = vld [vmem:[#allocation7 + $0x98] sm:$0xff]
        %v388 = vld [vmem:[#allocation7 + $0xa0] sm:$0xff]
        %v389 = vld [vmem:[#allocation7 + $0xa8] sm:$0xff]
        %v390 = vld [vmem:[#allocation7 + $0xb0] sm:$0xff]
        %v391 = vld [vmem:[#allocation7 + $0xb8] sm:$0xff]
        %v392 = vld [vmem:[#allocation7 + $0xc0] sm:$0xff]
        %v393 = vld [vmem:[#allocation7 + $0xc8] sm:$0xff]
        %v394 = vld [vmem:[#allocation7 + $0xd0] sm:$0xff]
        %v395 = vld [vmem:[#allocation7 + $0xd8] sm:$0xff]
        %v396 = vld [vmem:[#allocation7 + $0xe0] sm:$0xff]
        %v397 = vld [vmem:[#allocation7 + $0xe8] sm:$0xff]
        %v398 = vld [vmem:[#allocation7 + $0xf0] sm:$0xff]
        %v399 = vld [vmem:[#allocation7 + $0xf8] sm:$0xff]
        %v400 = vld [vmem:[#allocation7 + $0x100] sm:$0xff]
        %v401 = vld [vmem:[#allocation7 + $0x108] sm:$0xff]
        %v402 = vld [vmem:[#allocation7 + $0x110] sm:$0xff]
        %v403 = vld [vmem:[#allocation7 + $0x118] sm:$0xff]
        %v404 = vld [vmem:[#allocation7 + $0x120] sm:$0xff]
        %v405 = vld [vmem:[#allocation7 + $0x128] sm:$0xff]
        %v406 = vld [vmem:[#allocation7 + $0x130] sm:$0xff]
        %v407 = vld [vmem:[#allocation7 + $0x138] sm:$0xff]
        %v408 = vld [vmem:[#allocation7 + $0x140] sm:$0xff]
        %v409 = vld [vmem:[#allocation7 + $0x148] sm:$0xff]
        %v410 = vld [vmem:[#allocation7 + $0x150] sm:$0xff]
        %v411 = vld [vmem:[#allocation7 + $0x158] sm:$0xff]
        %v412 = vld [vmem:[#allocation7 + $0x160] sm:$0xff]
        %v413 = vld [vmem:[#allocation7 + $0x168] sm:$0xff]
        %v414 = vld [vmem:[#allocation7 + $0x170] sm:$0xff]
        %v415 = vld [vmem:[#allocation7 + $0x178] sm:$0xff]
        %v416 = vld [vmem:[#allocation7 + $0x180] sm:$0xff]
        %v417 = vld [vmem:[#allocation7 + $0x188] sm:$0xff]
        %v418 = vld [vmem:[#allocation7 + $0x190] sm:$0xff]
        %v419 = vld [vmem:[#allocation7 + $0x198] sm:$0xff]
        %v420 = vld [vmem:[#allocation7 + $0x1a0] sm:$0xff]
        %v421 = vld [vmem:[#allocation7 + $0x1a8] sm:$0xff]
        %v422 = vld [vmem:[#allocation7 + $0x1b0] sm:$0xff]
        %v423 = vld [vmem:[#allocation7 + $0x1b8] sm:$0xff]
        %v424 = vld [vmem:[#allocation7 + $0x1c0] sm:$0xff]
        %v425 = vld [vmem:[#allocation7 + $0x1c8] sm:$0xff]
        %v426 = vld [vmem:[#allocation7 + $0x1d0] sm:$0xff]
        %v427 = vld [vmem:[#allocation7 + $0x1d8] sm:$0xff]
        %v428 = vld [vmem:[#allocation7 + $0x1e0] sm:$0xff]
        %v429 = vld [vmem:[#allocation7 + $0x1e8] sm:$0xff]
        %v430 = vld [vmem:[#allocation7 + $0x1f0] sm:$0xff]
        %v431 = vld [vmem:[#allocation7 + $0x1f8] sm:$0xff]
        %v432 = vld [vmem:[#allocation7 + $0x200] sm:$0xff]
        %v433 = vld [vmem:[#allocation7 + $0x208] sm:$0xff]
        %v434 = vld [vmem:[#allocation7 + $0x210] sm:$0xff]
        %v435 = vld [vmem:[#allocation7 + $0x218] sm:$0xff]
        %v436 = vld [vmem:[#allocation7 + $0x220] sm:$0xff]
        %v437 = vld [vmem:[#allocation7 + $0x228] sm:$0xff]
        %v438 = vld [vmem:[#allocation7 + $0x230] sm:$0xff]
        %v439 = vld [vmem:[#allocation7 + $0x238] sm:$0xff]
        %v440 = vld [vmem:[#allocation7 + $0x240] sm:$0xff]
        %v441 = vld [vmem:[#allocation7 + $0x248] sm:$0xff]
        %v442 = vld [vmem:[#allocation7 + $0x250] sm:$0xff]
        %v443 = vld [vmem:[#allocation7 + $0x258] sm:$0xff]
        %v444 = vld [vmem:[#allocation7 + $0x260] sm:$0xff]
        %v445 = vld [vmem:[#allocation7 + $0x268] sm:$0xff]
        %v446 = vld [vmem:[#allocation7 + $0x270] sm:$0xff]
        %v447 = vld [vmem:[#allocation7 + $0x278] sm:$0xff]
        %v448 = vld [vmem:[#allocation7 + $0x280] sm:$0xff]
        %v449 = vld [vmem:[#allocation7 + $0x288] sm:$0xff]
        %v450 = vld [vmem:[#allocation7 + $0x290] sm:$0xff]
        %v451 = vld [vmem:[#allocation7 + $0x298] sm:$0xff]
        %v452 = vld [vmem:[#allocation7 + $0x2a0] sm:$0xff]
        %v453 = vld [vmem:[#allocation7 + $0x2a8] sm:$0xff]
        %v454 = vld [vmem:[#allocation7 + $0x2b0] sm:$0xff]
        %v455 = vld [vmem:[#allocation7 + $0x2b8] sm:$0xff]
        %v456 = vld [vmem:[#allocation7 + $0x2c0] sm:$0xff]
        %v457 = vld [vmem:[#allocation7 + $0x2c8] sm:$0xff]
        %v458 = vld [vmem:[#allocation7 + $0x2d0] sm:$0xff]
        %v459 = vld [vmem:[#allocation7 + $0x2d8] sm:$0xff]
        %v460 = vld [vmem:[#allocation7 + $0x2e0] sm:$0xff]
        %v461 = vld [vmem:[#allocation7 + $0x2e8] sm:$0xff]
        %v462 = vld [vmem:[#allocation7 + $0x2f0] sm:$0xff]
        %v463 = vld [vmem:[#allocation7 + $0x2f8] sm:$0xff]
        %v464 = vld [vmem:[#allocation7 + $0x300] sm:$0xff]
        %v465 = vld [vmem:[#allocation7 + $0x308] sm:$0xff]
        %v466 = vld [vmem:[#allocation7 + $0x310] sm:$0xff]
        %v467 = vld [vmem:[#allocation7 + $0x318] sm:$0xff]
        %v468 = vld [vmem:[#allocation7 + $0x320] sm:$0xff]
        %v469 = vld [vmem:[#allocation7 + $0x328] sm:$0xff]
        %v470 = vld [vmem:[#allocation7 + $0x330] sm:$0xff]
        %v471 = vld [vmem:[#allocation7 + $0x338] sm:$0xff]
        %v472 = vld [vmem:[#allocation7 + $0x340] sm:$0xff]
        %v473 = vld [vmem:[#allocation7 + $0x348] sm:$0xff]
        %v474 = vld [vmem:[#allocation7 + $0x350] sm:$0xff]
        %v475 = vld [vmem:[#allocation7 + $0x358] sm:$0xff]
        %v476 = vld [vmem:[#allocation7 + $0x360] sm:$0xff]
        %v477 = vld [vmem:[#allocation7 + $0x368] sm:$0xff]
        %v478 = vld [vmem:[#allocation7 + $0x370] sm:$0xff]
        %v479 = vld [vmem:[#allocation7 + $0x378] sm:$0xff]
        %v480 = vld [vmem:[#allocation7 + $0x380] sm:$0xff]
        %v481 = vld [vmem:[#allocation7 + $0x388] sm:$0xff]
        %v482 = vld [vmem:[#allocation7 + $0x390] sm:$0xff]
        %v483 = vld [vmem:[#allocation7 + $0x398] sm:$0xff]
        %v484 = vld [vmem:[#allocation7 + $0x3a0] sm:$0xff]
        %v485 = vld [vmem:[#allocation7 + $0x3a8] sm:$0xff]
        %v486 = vld [vmem:[#allocation7 + $0x3b0] sm:$0xff]
        %v487 = vld [vmem:[#allocation7 + $0x3b8] sm:$0xff]
        %v488 = vld [vmem:[#allocation7 + $0x3c0] sm:$0xff]
        %v489 = vld [vmem:[#allocation7 + $0x3c8] sm:$0xff]
        %v490 = vld [vmem:[#allocation7 + $0x3d0] sm:$0xff]
        %v491 = vld [vmem:[#allocation7 + $0x3d8] sm:$0xff]
        %v492 = vld [vmem:[#allocation7 + $0x3e0] sm:$0xff]
        %v493 = vld [vmem:[#allocation7 + $0x3e8] sm:$0xff]
        %v494 = vld [vmem:[#allocation7 + $0x3f0] sm:$0xff]
        %v495 = vld [vmem:[#allocation7 + $0x3f8] sm:$0xff]
        %v496 = vld [vmem:[#allocation9] sm:$0xf]
        %v498 = vlaneseq
        %v499 = vshrl.u32 %v498, 7
        %v500 = vsub.s32 0, %v499
        %v501 = vrot.slane %v496, %v500
        %v502 = vlaneseq
        %v503 = vshrl.u32 %v502, 7
        %v504 = vsub.s32 1, %v503
        %v505 = vrot.slane %v496, %v504
        %v506 = vlaneseq
        %v507 = vshrl.u32 %v506, 7
        %v508 = vsub.s32 2, %v507
        %v509 = vrot.slane %v496, %v508
        %v510 = vlaneseq
        %v511 = vshrl.u32 %v510, 7
        %v512 = vsub.s32 3, %v511
        %v513 = vrot.slane %v496, %v512
        %518 = vmatprep.subr.mxu0 %v369
        %519 = vmatpush1.msra.mxu0 %v368
        %520 = vmatprep.subr.mxu0 %v373
        %521 = vmatpush1.msra.mxu0 %v372
        %522 = vmatprep.subr.mxu0 %v377
        %523 = vmatpush1.msra.mxu0 %v376
        %524 = vmatprep.subr.mxu0 %v381
        %525 = vmatpush1.msra.mxu0 %v380
        %526 = vmatprep.subr.mxu0 %v385
        %527 = vmatpush1.msra.mxu0 %v384
        %528 = vmatprep.subr.mxu0 %v389
        %529 = vmatpush1.msra.mxu0 %v388
        %530 = vmatprep.subr.mxu0 %v393
        %531 = vmatpush1.msra.mxu0 %v392
        %532 = vmatprep.subr.mxu0 %v397
        %533 = vmatpush1.msra.mxu0 %v396
        %534 = vmatprep.subr.mxu0 %v401
        %535 = vmatpush1.msra.mxu0 %v400
        %536 = vmatprep.subr.mxu0 %v405
        %537 = vmatpush1.msra.mxu0 %v404
        %538 = vmatprep.subr.mxu0 %v409
        %539 = vmatpush1.msra.mxu0 %v408
        %540 = vmatprep.subr.mxu0 %v413
        %541 = vmatpush1.msra.mxu0 %v412
        %542 = vmatprep.subr.mxu0 %v417
        %543 = vmatpush1.msra.mxu0 %v416
        %544 = vmatprep.subr.mxu0 %v421
        %545 = vmatpush1.msra.mxu0 %v420
        %546 = vmatprep.subr.mxu0 %v425
        %547 = vmatpush1.msra.mxu0 %v424
        %548 = vmatprep.subr.mxu0 %v429
        %549 = vmatpush1.msra.mxu0 %v428
        %550 = vmatprep.subr.mxu0 %v433
        %551 = vmatpush1.msra.mxu0 %v432
        %552 = vmatprep.subr.mxu0 %v437
        %553 = vmatpush1.msra.mxu0 %v436
        %554 = vmatprep.subr.mxu0 %v441
        %555 = vmatpush1.msra.mxu0 %v440
        %556 = vmatprep.subr.mxu0 %v445
        %557 = vmatpush1.msra.mxu0 %v444
        %558 = vmatprep.subr.mxu0 %v449
        %559 = vmatpush1.msra.mxu0 %v448
        %560 = vmatprep.subr.mxu0 %v453
        %561 = vmatpush1.msra.mxu0 %v452
        %562 = vmatprep.subr.mxu0 %v457
        %563 = vmatpush1.msra.mxu0 %v456
        %564 = vmatprep.subr.mxu0 %v461
        %565 = vmatpush1.msra.mxu0 %v460
        %566 = vmatprep.subr.mxu0 %v465
        %567 = vmatpush1.msra.mxu0 %v464
        %568 = vmatprep.subr.mxu0 %v469
        %569 = vmatpush1.msra.mxu0 %v468
        %570 = vmatprep.subr.mxu0 %v473
        %571 = vmatpush1.msra.mxu0 %v472
        %572 = vmatprep.subr.mxu0 %v477
        %573 = vmatpush1.msra.mxu0 %v476
        %574 = vmatprep.subr.mxu0 %v481
        %575 = vmatpush1.msra.mxu0 %v480
        %576 = vmatprep.subr.mxu0 %v485
        %577 = vmatpush1.msra.mxu0 %v484
        %578 = vmatprep.subr.mxu0 %v489
        %579 = vmatpush1.msra.mxu0 %v488
        %580 = vmatprep.subr.mxu0 %v493
        %581 = vmatpush1.msra.mxu0 %v492
        %582 = vmatprep.mubr.f32.mxu0 %v366
        %583 = vmatmul.mubr.f32.gmra.mrb[0].mxu0 %v365
        %v584 = vpop.f32.mrb[0].mxu0
        %v585 = vadd.f32 %v501, %v584
        %v586 = vpop.f32.mrb[0].mxu0
        %v587 = vadd.f32 %v505, %v586
        %588 = vdwg.mxu0
        %589 = vmatprep.subr.mxu0 %v371
        %590 = vmatpush1.msra.mxu0 %v370
        %591 = vmatprep.subr.mxu0 %v375
        %592 = vmatpush1.msra.mxu0 %v374
        %593 = vmatprep.subr.mxu0 %v379
        %594 = vmatpush1.msra.mxu0 %v378
        %595 = vmatprep.subr.mxu0 %v383
        %596 = vmatpush1.msra.mxu0 %v382
        %597 = vmatprep.subr.mxu0 %v387
        %598 = vmatpush1.msra.mxu0 %v386
        %599 = vmatprep.subr.mxu0 %v391
        %600 = vmatpush1.msra.mxu0 %v390
        %601 = vmatprep.subr.mxu0 %v395
        %602 = vmatpush1.msra.mxu0 %v394
        %603 = vmatprep.subr.mxu0 %v399
        %604 = vmatpush1.msra.mxu0 %v398
        %605 = vmatprep.subr.mxu0 %v403
        %606 = vmatpush1.msra.mxu0 %v402
        %607 = vmatprep.subr.mxu0 %v407
        %608 = vmatpush1.msra.mxu0 %v406
        %609 = vmatprep.subr.mxu0 %v411
        %610 = vmatpush1.msra.mxu0 %v410
        %611 = vmatprep.subr.mxu0 %v415
        %612 = vmatpush1.msra.mxu0 %v414
        %613 = vmatprep.subr.mxu0 %v419
        %614 = vmatpush1.msra.mxu0 %v418
        %615 = vmatprep.subr.mxu0 %v423
        %616 = vmatpush1.msra.mxu0 %v422
        %617 = vmatprep.subr.mxu0 %v427
        %618 = vmatpush1.msra.mxu0 %v426
        %619 = vmatprep.subr.mxu0 %v431
        %620 = vmatpush1.msra.mxu0 %v430
        %621 = vmatprep.subr.mxu0 %v435
        %622 = vmatpush1.msra.mxu0 %v434
        %623 = vmatprep.subr.mxu0 %v439
        %624 = vmatpush1.msra.mxu0 %v438
        %625 = vmatprep.subr.mxu0 %v443
        %626 = vmatpush1.msra.mxu0 %v442
        %627 = vmatprep.subr.mxu0 %v447
        %628 = vmatpush1.msra.mxu0 %v446
        %629 = vmatprep.subr.mxu0 %v451
        %630 = vmatpush1.msra.mxu0 %v450
        %631 = vmatprep.subr.mxu0 %v455
        %632 = vmatpush1.msra.mxu0 %v454
        %633 = vmatprep.subr.mxu0 %v459
        %634 = vmatpush1.msra.mxu0 %v458
        %635 = vmatprep.subr.mxu0 %v463
        %636 = vmatpush1.msra.mxu0 %v462
        %637 = vmatprep.subr.mxu0 %v467
        %638 = vmatpush1.msra.mxu0 %v466
        %639 = vmatprep.subr.mxu0 %v471
        %640 = vmatpush1.msra.mxu0 %v470
        %641 = vmatprep.subr.mxu0 %v475
        %642 = vmatpush1.msra.mxu0 %v474
        %643 = vmatprep.subr.mxu0 %v479
        %644 = vmatpush1.msra.mxu0 %v478
        %645 = vmatprep.subr.mxu0 %v483
        %646 = vmatpush1.msra.mxu0 %v482
        %647 = vmatprep.subr.mxu0 %v487
        %648 = vmatpush1.msra.mxu0 %v486
        %649 = vmatprep.subr.mxu0 %v491
        %650 = vmatpush1.msra.mxu0 %v490
        %651 = vmatprep.subr.mxu0 %v495
        %652 = vmatpush1.msra.mxu0 %v494
        %653 = vmatprep.mubr.f32.mxu0 %v366
        %654 = vmatmul.mubr.f32.gmra.mrb[0].mxu0 %v365
        %v655 = vpop.f32.mrb[0].mxu0
        %v656 = vadd.f32 %v509, %v655
        %v657 = vpop.f32.mrb[0].mxu0
        %v658 = vadd.f32 %v513, %v657
        %659 = vdwg.mxu0
        %v660 = vxor.u32 %v585, 2147483648
        %v661 = vmul.f32 %v660, 1.442695
        %v662 = vpow.pop %v661
        %v663 = vadd.f32 %v662, 1.0
        %v664 = vrcp.pop %v663
        %v665 = vmul.f32 1.0, %v664
        %v666 = vxor.u32 %v587, 2147483648
        %v667 = vmul.f32 %v666, 1.442695
        %v668 = vpow.pop %v667
        %v669 = vadd.f32 %v668, 1.0
        %v670 = vrcp.pop %v669
        %v671 = vmul.f32 1.0, %v670
        %v672 = vtanh.pop %v656
        %v673 = vxor.u32 %v658, 2147483648
        %v674 = vmul.f32 %v673, 1.442695
        %v675 = vpow.pop %v674
        %v676 = vadd.f32 %v675, 1.0
        %v677 = vrcp.pop %v676
        %v678 = vmul.f32 1.0, %v677
        %v679 = vmul.f32 %v671, %v367
        %v680 = vmul.f32 %v665, %v672
        %v681 = vadd.f32 %v679, %v680
        %v682 = vtanh.pop %v681
        %v683 = vmul.f32 %v678, %v682
        %684 = vst [vmem:[#allocation2] sm:$0xff] %v683
        %685 = vst [vmem:[#allocation3] sm:$0xff] %v681
        %s686 = scalar_lea.vmem [#allocation2], 8
        %v687 = vld [vmem:[%s686] sm:$0xff]
        %s688 = scalar_lea.vmem [#allocation3], 8
        %v689 = vld [vmem:[%s688] sm:$0xff]
        %s690 = scalar_lea.vmem [#allocation7], 1024
        %v691 = vld [vmem:[%s690] sm:$0xff]
        %v692 = vld [vmem:[%s690 + $0x8] sm:$0xff]
        %v693 = vld [vmem:[%s690 + $0x10] sm:$0xff]
        %v694 = vld [vmem:[%s690 + $0x18] sm:$0xff]
        %v695 = vld [vmem:[%s690 + $0x20] sm:$0xff]
        %v696 = vld [vmem:[%s690 + $0x28] sm:$0xff]
        %v697 = vld [vmem:[%s690 + $0x30] sm:$0xff]
        %v698 = vld [vmem:[%s690 + $0x38] sm:$0xff]
        %v699 = vld [vmem:[%s690 + $0x40] sm:$0xff]
        %v700 = vld [vmem:[%s690 + $0x48] sm:$0xff]
        %v701 = vld [vmem:[%s690 + $0x50] sm:$0xff]
        %v702 = vld [vmem:[%s690 + $0x58] sm:$0xff]
        %v703 = vld [vmem:[%s690 + $0x60] sm:$0xff]
        %v704 = vld [vmem:[%s690 + $0x68] sm:$0xff]
        %v705 = vld [vmem:[%s690 + $0x70] sm:$0xff]
        %v706 = vld [vmem:[%s690 + $0x78] sm:$0xff]
        %v707 = vld [vmem:[%s690 + $0x80] sm:$0xff]
        %v708 = vld [vmem:[%s690 + $0x88] sm:$0xff]
        %v709 = vld [vmem:[%s690 + $0x90] sm:$0xff]
        %v710 = vld [vmem:[%s690 + $0x98] sm:$0xff]
        %v711 = vld [vmem:[%s690 + $0xa0] sm:$0xff]
        %v712 = vld [vmem:[%s690 + $0xa8] sm:$0xff]
        %v713 = vld [vmem:[%s690 + $0xb0] sm:$0xff]
        %v714 = vld [vmem:[%s690 + $0xb8] sm:$0xff]
        %v715 = vld [vmem:[%s690 + $0xc0] sm:$0xff]
        %v716 = vld [vmem:[%s690 + $0xc8] sm:$0xff]
        %v717 = vld [vmem:[%s690 + $0xd0] sm:$0xff]
        %v718 = vld [vmem:[%s690 + $0xd8] sm:$0xff]
        %v719 = vld [vmem:[%s690 + $0xe0] sm:$0xff]
        %v720 = vld [vmem:[%s690 + $0xe8] sm:$0xff]
        %v721 = vld [vmem:[%s690 + $0xf0] sm:$0xff]
        %v722 = vld [vmem:[%s690 + $0xf8] sm:$0xff]
        %v723 = vld [vmem:[%s690 + $0x100] sm:$0xff]
        %v724 = vld [vmem:[%s690 + $0x108] sm:$0xff]
        %v725 = vld [vmem:[%s690 + $0x110] sm:$0xff]
        %v726 = vld [vmem:[%s690 + $0x118] sm:$0xff]
        %v727 = vld [vmem:[%s690 + $0x120] sm:$0xff]
        %v728 = vld [vmem:[%s690 + $0x128] sm:$0xff]
        %v729 = vld [vmem:[%s690 + $0x130] sm:$0xff]
        %v730 = vld [vmem:[%s690 + $0x138] sm:$0xff]
        %v731 = vld [vmem:[%s690 + $0x140] sm:$0xff]
        %v732 = vld [vmem:[%s690 + $0x148] sm:$0xff]
        %v733 = vld [vmem:[%s690 + $0x150] sm:$0xff]
        %v734 = vld [vmem:[%s690 + $0x158] sm:$0xff]
        %v735 = vld [vmem:[%s690 + $0x160] sm:$0xff]
        %v736 = vld [vmem:[%s690 + $0x168] sm:$0xff]
        %v737 = vld [vmem:[%s690 + $0x170] sm:$0xff]
        %v738 = vld [vmem:[%s690 + $0x178] sm:$0xff]
        %v739 = vld [vmem:[%s690 + $0x180] sm:$0xff]
        %v740 = vld [vmem:[%s690 + $0x188] sm:$0xff]
        %v741 = vld [vmem:[%s690 + $0x190] sm:$0xff]
        %v742 = vld [vmem:[%s690 + $0x198] sm:$0xff]
        %v743 = vld [vmem:[%s690 + $0x1a0] sm:$0xff]
        %v744 = vld [vmem:[%s690 + $0x1a8] sm:$0xff]
        %v745 = vld [vmem:[%s690 + $0x1b0] sm:$0xff]
        %v746 = vld [vmem:[%s690 + $0x1b8] sm:$0xff]
        %v747 = vld [vmem:[%s690 + $0x1c0] sm:$0xff]
        %v748 = vld [vmem:[%s690 + $0x1c8] sm:$0xff]
        %v749 = vld [vmem:[%s690 + $0x1d0] sm:$0xff]
        %v750 = vld [vmem:[%s690 + $0x1d8] sm:$0xff]
        %v751 = vld [vmem:[%s690 + $0x1e0] sm:$0xff]
        %v752 = vld [vmem:[%s690 + $0x1e8] sm:$0xff]
        %v753 = vld [vmem:[%s690 + $0x1f0] sm:$0xff]
        %v754 = vld [vmem:[%s690 + $0x1f8] sm:$0xff]
        %v755 = vld [vmem:[%s690 + $0x200] sm:$0xff]
        %v756 = vld [vmem:[%s690 + $0x208] sm:$0xff]
        %v757 = vld [vmem:[%s690 + $0x210] sm:$0xff]
        %v758 = vld [vmem:[%s690 + $0x218] sm:$0xff]
        %v759 = vld [vmem:[%s690 + $0x220] sm:$0xff]
        %v760 = vld [vmem:[%s690 + $0x228] sm:$0xff]
        %v761 = vld [vmem:[%s690 + $0x230] sm:$0xff]
        %v762 = vld [vmem:[%s690 + $0x238] sm:$0xff]
        %v763 = vld [vmem:[%s690 + $0x240] sm:$0xff]
        %v764 = vld [vmem:[%s690 + $0x248] sm:$0xff]
        %v765 = vld [vmem:[%s690 + $0x250] sm:$0xff]
        %v766 = vld [vmem:[%s690 + $0x258] sm:$0xff]
        %v767 = vld [vmem:[%s690 + $0x260] sm:$0xff]
        %v768 = vld [vmem:[%s690 + $0x268] sm:$0xff]
        %v769 = vld [vmem:[%s690 + $0x270] sm:$0xff]
        %v770 = vld [vmem:[%s690 + $0x278] sm:$0xff]
        %v771 = vld [vmem:[%s690 + $0x280] sm:$0xff]
        %v772 = vld [vmem:[%s690 + $0x288] sm:$0xff]
        %v773 = vld [vmem:[%s690 + $0x290] sm:$0xff]
        %v774 = vld [vmem:[%s690 + $0x298] sm:$0xff]
        %v775 = vld [vmem:[%s690 + $0x2a0] sm:$0xff]
        %v776 = vld [vmem:[%s690 + $0x2a8] sm:$0xff]
        %v777 = vld [vmem:[%s690 + $0x2b0] sm:$0xff]
        %v778 = vld [vmem:[%s690 + $0x2b8] sm:$0xff]
        %v779 = vld [vmem:[%s690 + $0x2c0] sm:$0xff]
        %v780 = vld [vmem:[%s690 + $0x2c8] sm:$0xff]
        %v781 = vld [vmem:[%s690 + $0x2d0] sm:$0xff]
        %v782 = vld [vmem:[%s690 + $0x2d8] sm:$0xff]
        %v783 = vld [vmem:[%s690 + $0x2e0] sm:$0xff]
        %v784 = vld [vmem:[%s690 + $0x2e8] sm:$0xff]
        %v785 = vld [vmem:[%s690 + $0x2f0] sm:$0xff]
        %v786 = vld [vmem:[%s690 + $0x2f8] sm:$0xff]
        %v787 = vld [vmem:[%s690 + $0x300] sm:$0xff]
        %v788 = vld [vmem:[%s690 + $0x308] sm:$0xff]
        %v789 = vld [vmem:[%s690 + $0x310] sm:$0xff]
        %v790 = vld [vmem:[%s690 + $0x318] sm:$0xff]
        %v791 = vld [vmem:[%s690 + $0x320] sm:$0xff]
        %v792 = vld [vmem:[%s690 + $0x328] sm:$0xff]
        %v793 = vld [vmem:[%s690 + $0x330] sm:$0xff]
        %v794 = vld [vmem:[%s690 + $0x338] sm:$0xff]
        %v795 = vld [vmem:[%s690 + $0x340] sm:$0xff]
        %v796 = vld [vmem:[%s690 + $0x348] sm:$0xff]
        %v797 = vld [vmem:[%s690 + $0x350] sm:$0xff]
        %v798 = vld [vmem:[%s690 + $0x358] sm:$0xff]
        %v799 = vld [vmem:[%s690 + $0x360] sm:$0xff]
        %v800 = vld [vmem:[%s690 + $0x368] sm:$0xff]
        %v801 = vld [vmem:[%s690 + $0x370] sm:$0xff]
        %v802 = vld [vmem:[%s690 + $0x378] sm:$0xff]
        %v803 = vld [vmem:[%s690 + $0x380] sm:$0xff]
        %v804 = vld [vmem:[%s690 + $0x388] sm:$0xff]
        %v805 = vld [vmem:[%s690 + $0x390] sm:$0xff]
        %v806 = vld [vmem:[%s690 + $0x398] sm:$0xff]
        %v807 = vld [vmem:[%s690 + $0x3a0] sm:$0xff]
        %v808 = vld [vmem:[%s690 + $0x3a8] sm:$0xff]
        %v809 = vld [vmem:[%s690 + $0x3b0] sm:$0xff]
        %v810 = vld [vmem:[%s690 + $0x3b8] sm:$0xff]
        %v811 = vld [vmem:[%s690 + $0x3c0] sm:$0xff]
        %v812 = vld [vmem:[%s690 + $0x3c8] sm:$0xff]
        %v813 = vld [vmem:[%s690 + $0x3d0] sm:$0xff]
        %v814 = vld [vmem:[%s690 + $0x3d8] sm:$0xff]
        %v815 = vld [vmem:[%s690 + $0x3e0] sm:$0xff]
        %v816 = vld [vmem:[%s690 + $0x3e8] sm:$0xff]
        %v817 = vld [vmem:[%s690 + $0x3f0] sm:$0xff]
        %v818 = vld [vmem:[%s690 + $0x3f8] sm:$0xff]
        %s819 = scalar_lea.vmem [#allocation9], 4
        %v820 = vld [vmem:[%s819] sm:$0xf]
        %v822 = vlaneseq
        %v823 = vshrl.u32 %v822, 7
        %v824 = vsub.s32 0, %v823
        %v825 = vrot.slane %v820, %v824
        %v826 = vlaneseq
        %v827 = vshrl.u32 %v826, 7
        %v828 = vsub.s32 1, %v827
        %v829 = vrot.slane %v820, %v828
        %v830 = vlaneseq
        %v831 = vshrl.u32 %v830, 7
        %v832 = vsub.s32 2, %v831
        %v833 = vrot.slane %v820, %v832
        %v834 = vlaneseq
        %v835 = vshrl.u32 %v834, 7
        %v836 = vsub.s32 3, %v835
        %v837 = vrot.slane %v820, %v836
        %842 = vmatprep.subr.mxu0 %v692
        %843 = vmatpush1.msra.mxu0 %v691
        %844 = vmatprep.subr.mxu0 %v696
        %845 = vmatpush1.msra.mxu0 %v695
        %846 = vmatprep.subr.mxu0 %v700
        %847 = vmatpush1.msra.mxu0 %v699
        %848 = vmatprep.subr.mxu0 %v704
        %849 = vmatpush1.msra.mxu0 %v703
        %850 = vmatprep.subr.mxu0 %v708
        %851 = vmatpush1.msra.mxu0 %v707
        %852 = vmatprep.subr.mxu0 %v712
        %853 = vmatpush1.msra.mxu0 %v711
        %854 = vmatprep.subr.mxu0 %v716
        %855 = vmatpush1.msra.mxu0 %v715
        %856 = vmatprep.subr.mxu0 %v720
        %857 = vmatpush1.msra.mxu0 %v719
        %858 = vmatprep.subr.mxu0 %v724
        %859 = vmatpush1.msra.mxu0 %v723
        %860 = vmatprep.subr.mxu0 %v728
        %861 = vmatpush1.msra.mxu0 %v727
        %862 = vmatprep.subr.mxu0 %v732
        %863 = vmatpush1.msra.mxu0 %v731
        %864 = vmatprep.subr.mxu0 %v736
        %865 = vmatpush1.msra.mxu0 %v735
        %866 = vmatprep.subr.mxu0 %v740
        %867 = vmatpush1.msra.mxu0 %v739
        %868 = vmatprep.subr.mxu0 %v744
        %869 = vmatpush1.msra.mxu0 %v743
        %870 = vmatprep.subr.mxu0 %v748
        %871 = vmatpush1.msra.mxu0 %v747
        %872 = vmatprep.subr.mxu0 %v752
        %873 = vmatpush1.msra.mxu0 %v751
        %874 = vmatprep.subr.mxu0 %v756
        %875 = vmatpush1.msra.mxu0 %v755
        %876 = vmatprep.subr.mxu0 %v760
        %877 = vmatpush1.msra.mxu0 %v759
        %878 = vmatprep.subr.mxu0 %v764
        %879 = vmatpush1.msra.mxu0 %v763
        %880 = vmatprep.subr.mxu0 %v768
        %881 = vmatpush1.msra.mxu0 %v767
        %882 = vmatprep.subr.mxu0 %v772
        %883 = vmatpush1.msra.mxu0 %v771
        %884 = vmatprep.subr.mxu0 %v776
        %885 = vmatpush1.msra.mxu0 %v775
        %886 = vmatprep.subr.mxu0 %v780
        %887 = vmatpush1.msra.mxu0 %v779
        %888 = vmatprep.subr.mxu0 %v784
        %889 = vmatpush1.msra.mxu0 %v783
        %890 = vmatprep.subr.mxu0 %v788
        %891 = vmatpush1.msra.mxu0 %v787
        %892 = vmatprep.subr.mxu0 %v792
        %893 = vmatpush1.msra.mxu0 %v791
        %894 = vmatprep.subr.mxu0 %v796
        %895 = vmatpush1.msra.mxu0 %v795
        %896 = vmatprep.subr.mxu0 %v800
        %897 = vmatpush1.msra.mxu0 %v799
        %898 = vmatprep.subr.mxu0 %v804
        %899 = vmatpush1.msra.mxu0 %v803
        %900 = vmatprep.subr.mxu0 %v808
        %901 = vmatpush1.msra.mxu0 %v807
        %902 = vmatprep.subr.mxu0 %v812
        %903 = vmatpush1.msra.mxu0 %v811
        %904 = vmatprep.subr.mxu0 %v816
        %905 = vmatpush1.msra.mxu0 %v815
        %906 = vmatprep.mubr.f32.mxu0 %v687
        %907 = vmatmul.mubr.f32.gmra.mrb[0].mxu0 %v683
        %v908 = vpop.f32.mrb[0].mxu0
        %v909 = vadd.f32 %v825, %v908
        %v910 = vpop.f32.mrb[0].mxu0
        %v911 = vadd.f32 %v829, %v910
        %912 = vdwg.mxu0
        %913 = vmatprep.subr.mxu0 %v694
        %914 = vmatpush1.msra.mxu0 %v693
        %915 = vmatprep.subr.mxu0 %v698
        %916 = vmatpush1.msra.mxu0 %v697
        %917 = vmatprep.subr.mxu0 %v702
        %918 = vmatpush1.msra.mxu0 %v701
        %919 = vmatprep.subr.mxu0 %v706
        %920 = vmatpush1.msra.mxu0 %v705
        %921 = vmatprep.subr.mxu0 %v710
        %922 = vmatpush1.msra.mxu0 %v709
        %923 = vmatprep.subr.mxu0 %v714
        %924 = vmatpush1.msra.mxu0 %v713
        %925 = vmatprep.subr.mxu0 %v718
        %926 = vmatpush1.msra.mxu0 %v717
        %927 = vmatprep.subr.mxu0 %v722
        %928 = vmatpush1.msra.mxu0 %v721
        %929 = vmatprep.subr.mxu0 %v726
        %930 = vmatpush1.msra.mxu0 %v725
        %931 = vmatprep.subr.mxu0 %v730
        %932 = vmatpush1.msra.mxu0 %v729
        %933 = vmatprep.subr.mxu0 %v734
        %934 = vmatpush1.msra.mxu0 %v733
        %935 = vmatprep.subr.mxu0 %v738
        %936 = vmatpush1.msra.mxu0 %v737
        %937 = vmatprep.subr.mxu0 %v742
        %938 = vmatpush1.msra.mxu0 %v741
        %939 = vmatprep.subr.mxu0 %v746
        %940 = vmatpush1.msra.mxu0 %v745
        %941 = vmatprep.subr.mxu0 %v750
        %942 = vmatpush1.msra.mxu0 %v749
        %943 = vmatprep.subr.mxu0 %v754
        %944 = vmatpush1.msra.mxu0 %v753
        %945 = vmatprep.subr.mxu0 %v758
        %946 = vmatpush1.msra.mxu0 %v757
        %947 = vmatprep.subr.mxu0 %v762
        %948 = vmatpush1.msra.mxu0 %v761
        %949 = vmatprep.subr.mxu0 %v766
        %950 = vmatpush1.msra.mxu0 %v765
        %951 = vmatprep.subr.mxu0 %v770
        %952 = vmatpush1.msra.mxu0 %v769
        %953 = vmatprep.subr.mxu0 %v774
        %954 = vmatpush1.msra.mxu0 %v773
        %955 = vmatprep.subr.mxu0 %v778
        %956 = vmatpush1.msra.mxu0 %v777
        %957 = vmatprep.subr.mxu0 %v782
        %958 = vmatpush1.msra.mxu0 %v781
        %959 = vmatprep.subr.mxu0 %v786
        %960 = vmatpush1.msra.mxu0 %v785
        %961 = vmatprep.subr.mxu0 %v790
        %962 = vmatpush1.msra.mxu0 %v789
        %963 = vmatprep.subr.mxu0 %v794
        %964 = vmatpush1.msra.mxu0 %v793
        %965 = vmatprep.subr.mxu0 %v798
        %966 = vmatpush1.msra.mxu0 %v797
        %967 = vmatprep.subr.mxu0 %v802
        %968 = vmatpush1.msra.mxu0 %v801
        %969 = vmatprep.subr.mxu0 %v806
        %970 = vmatpush1.msra.mxu0 %v805
        %971 = vmatprep.subr.mxu0 %v810
        %972 = vmatpush1.msra.mxu0 %v809
        %973 = vmatprep.subr.mxu0 %v814
        %974 = vmatpush1.msra.mxu0 %v813
        %975 = vmatprep.subr.mxu0 %v818
        %976 = vmatpush1.msra.mxu0 %v817
        %977 = vmatprep.mubr.f32.mxu0 %v687
        %978 = vmatmul.mubr.f32.gmra.mrb[0].mxu0 %v683
        %v979 = vpop.f32.mrb[0].mxu0
        %v980 = vadd.f32 %v833, %v979
        %v981 = vpop.f32.mrb[0].mxu0
        %v982 = vadd.f32 %v837, %v981
        %983 = vdwg.mxu0
        %v984 = vxor.u32 %v909, 2147483648
        %v985 = vmul.f32 %v984, 1.442695
        %v986 = vpow.pop %v985
        %v987 = vadd.f32 %v986, 1.0
        %v988 = vrcp.pop %v987
        %v989 = vmul.f32 1.0, %v988
        %v990 = vxor.u32 %v911, 2147483648
        %v991 = vmul.f32 %v990, 1.442695
        %v992 = vpow.pop %v991
        %v993 = vadd.f32 %v992, 1.0
        %v994 = vrcp.pop %v993
        %v995 = vmul.f32 1.0, %v994
        %v996 = vtanh.pop %v980
        %v997 = vxor.u32 %v982, 2147483648
        %v998 = vmul.f32 %v997, 1.442695
        %v999 = vpow.pop %v998
        %v1000 = vadd.f32 %v999, 1.0
        %v1001 = vrcp.pop %v1000
        %v1002 = vmul.f32 1.0, %v1001
        %v1003 = vmul.f32 %v995, %v689
        %v1004 = vmul.f32 %v989, %v996
        %v1005 = vadd.f32 %v1003, %v1004
        %v1006 = vtanh.pop %v1005
        %v1007 = vmul.f32 %v1002, %v1006
        %1008 = vst [vmem:[%s686] sm:$0xff] %v1007
        %1009 = vst [vmem:[%s688] sm:$0xff] %v1005
        %1010 = vst [vmem:[%s346] sm:$0xff] %v1007
        %s1011 = scalar_lea.vmem %s304, 8 [#allocation4]
        %v1012 = vld [vmem:[%s1011] sm:$0xff]
        %v1013 = vld [vmem:[#allocation2] sm:$0xff]
        %v1014 = vld [vmem:[#allocation3] sm:$0xff]
        %v1015 = vld [vmem:[#allocation7] sm:$0xff]
        %v1016 = vld [vmem:[#allocation7 + $0x8] sm:$0xff]
        %v1017 = vld [vmem:[#allocation7 + $0x10] sm:$0xff]
        %v1018 = vld [vmem:[#allocation7 + $0x18] sm:$0xff]
        %v1019 = vld [vmem:[#allocation7 + $0x20] sm:$0xff]
        %v1020 = vld [vmem:[#allocation7 + $0x28] sm:$0xff]
        %v1021 = vld [vmem:[#allocation7 + $0x30] sm:$0xff]
        %v1022 = vld [vmem:[#allocation7 + $0x38] sm:$0xff]
        %v1023 = vld [vmem:[#allocation7 + $0x40] sm:$0xff]
        %v1024 = vld [vmem:[#allocation7 + $0x48] sm:$0xff]
        %v1025 = vld [vmem:[#allocation7 + $0x50] sm:$0xff]
        %v1026 = vld [vmem:[#allocation7 + $0x58] sm:$0xff]
        %v1027 = vld [vmem:[#allocation7 + $0x60] sm:$0xff]
        %v1028 = vld [vmem:[#allocation7 + $0x68] sm:$0xff]
        %v1029 = vld [vmem:[#allocation7 + $0x70] sm:$0xff]
        %v1030 = vld [vmem:[#allocation7 + $0x78] sm:$0xff]
        %v1031 = vld [vmem:[#allocation7 + $0x80] sm:$0xff]
        %v1032 = vld [vmem:[#allocation7 + $0x88] sm:$0xff]
        %v1033 = vld [vmem:[#allocation7 + $0x90] sm:$0xff]
        %v1034 = vld [vmem:[#allocation7 + $0x98] sm:$0xff]
        %v1035 = vld [vmem:[#allocation7 + $0xa0] sm:$0xff]
        %v1036 = vld [vmem:[#allocation7 + $0xa8] sm:$0xff]
        %v1037 = vld [vmem:[#allocation7 + $0xb0] sm:$0xff]
        %v1038 = vld [vmem:[#allocation7 + $0xb8] sm:$0xff]
        %v1039 = vld [vmem:[#allocation7 + $0xc0] sm:$0xff]
        %v1040 = vld [vmem:[#allocation7 + $0xc8] sm:$0xff]
        %v1041 = vld [vmem:[#allocation7 + $0xd0] sm:$0xff]
        %v1042 = vld [vmem:[#allocation7 + $0xd8] sm:$0xff]
        %v1043 = vld [vmem:[#allocation7 + $0xe0] sm:$0xff]
        %v1044 = vld [vmem:[#allocation7 + $0xe8] sm:$0xff]
        %v1045 = vld [vmem:[#allocation7 + $0xf0] sm:$0xff]
        %v1046 = vld [vmem:[#allocation7 + $0xf8] sm:$0xff]
        %v1047 = vld [vmem:[#allocation7 + $0x100] sm:$0xff]
        %v1048 = vld [vmem:[#allocation7 + $0x108] sm:$0xff]
        %v1049 = vld [vmem:[#allocation7 + $0x110] sm:$0xff]
        %v1050 = vld [vmem:[#allocation7 + $0x118] sm:$0xff]
        %v1051 = vld [vmem:[#allocation7 + $0x120] sm:$0xff]
        %v1052 = vld [vmem:[#allocation7 + $0x128] sm:$0xff]
        %v1053 = vld [vmem:[#allocation7 + $0x130] sm:$0xff]
        %v1054 = vld [vmem:[#allocation7 + $0x138] sm:$0xff]
        %v1055 = vld [vmem:[#allocation7 + $0x140] sm:$0xff]
        %v1056 = vld [vmem:[#allocation7 + $0x148] sm:$0xff]
        %v1057 = vld [vmem:[#allocation7 + $0x150] sm:$0xff]
        %v1058 = vld [vmem:[#allocation7 + $0x158] sm:$0xff]
        %v1059 = vld [vmem:[#allocation7 + $0x160] sm:$0xff]
        %v1060 = vld [vmem:[#allocation7 + $0x168] sm:$0xff]
        %v1061 = vld [vmem:[#allocation7 + $0x170] sm:$0xff]
        %v1062 = vld [vmem:[#allocation7 + $0x178] sm:$0xff]
        %v1063 = vld [vmem:[#allocation7 + $0x180] sm:$0xff]
        %v1064 = vld [vmem:[#allocation7 + $0x188] sm:$0xff]
        %v1065 = vld [vmem:[#allocation7 + $0x190] sm:$0xff]
        %v1066 = vld [vmem:[#allocation7 + $0x198] sm:$0xff]
        %v1067 = vld [vmem:[#allocation7 + $0x1a0] sm:$0xff]
        %v1068 = vld [vmem:[#allocation7 + $0x1a8] sm:$0xff]
        %v1069 = vld [vmem:[#allocation7 + $0x1b0] sm:$0xff]
        %v1070 = vld [vmem:[#allocation7 + $0x1b8] sm:$0xff]
        %v1071 = vld [vmem:[#allocation7 + $0x1c0] sm:$0xff]
        %v1072 = vld [vmem:[#allocation7 + $0x1c8] sm:$0xff]
        %v1073 = vld [vmem:[#allocation7 + $0x1d0] sm:$0xff]
        %v1074 = vld [vmem:[#allocation7 + $0x1d8] sm:$0xff]
        %v1075 = vld [vmem:[#allocation7 + $0x1e0] sm:$0xff]
        %v1076 = vld [vmem:[#allocation7 + $0x1e8] sm:$0xff]
        %v1077 = vld [vmem:[#allocation7 + $0x1f0] sm:$0xff]
        %v1078 = vld [vmem:[#allocation7 + $0x1f8] sm:$0xff]
        %v1079 = vld [vmem:[#allocation7 + $0x200] sm:$0xff]
        %v1080 = vld [vmem:[#allocation7 + $0x208] sm:$0xff]
        %v1081 = vld [vmem:[#allocation7 + $0x210] sm:$0xff]
        %v1082 = vld [vmem:[#allocation7 + $0x218] sm:$0xff]
        %v1083 = vld [vmem:[#allocation7 + $0x220] sm:$0xff]
        %v1084 = vld [vmem:[#allocation7 + $0x228] sm:$0xff]
        %v1085 = vld [vmem:[#allocation7 + $0x230] sm:$0xff]
        %v1086 = vld [vmem:[#allocation7 + $0x238] sm:$0xff]
        %v1087 = vld [vmem:[#allocation7 + $0x240] sm:$0xff]
        %v1088 = vld [vmem:[#allocation7 + $0x248] sm:$0xff]
        %v1089 = vld [vmem:[#allocation7 + $0x250] sm:$0xff]
        %v1090 = vld [vmem:[#allocation7 + $0x258] sm:$0xff]
        %v1091 = vld [vmem:[#allocation7 + $0x260] sm:$0xff]
        %v1092 = vld [vmem:[#allocation7 + $0x268] sm:$0xff]
        %v1093 = vld [vmem:[#allocation7 + $0x270] sm:$0xff]
        %v1094 = vld [vmem:[#allocation7 + $0x278] sm:$0xff]
        %v1095 = vld [vmem:[#allocation7 + $0x280] sm:$0xff]
        %v1096 = vld [vmem:[#allocation7 + $0x288] sm:$0xff]
        %v1097 = vld [vmem:[#allocation7 + $0x290] sm:$0xff]
        %v1098 = vld [vmem:[#allocation7 + $0x298] sm:$0xff]
        %v1099 = vld [vmem:[#allocation7 + $0x2a0] sm:$0xff]
        %v1100 = vld [vmem:[#allocation7 + $0x2a8] sm:$0xff]
        %v1101 = vld [vmem:[#allocation7 + $0x2b0] sm:$0xff]
        %v1102 = vld [vmem:[#allocation7 + $0x2b8] sm:$0xff]
        %v1103 = vld [vmem:[#allocation7 + $0x2c0] sm:$0xff]
        %v1104 = vld [vmem:[#allocation7 + $0x2c8] sm:$0xff]
        %v1105 = vld [vmem:[#allocation7 + $0x2d0] sm:$0xff]
        %v1106 = vld [vmem:[#allocation7 + $0x2d8] sm:$0xff]
        %v1107 = vld [vmem:[#allocation7 + $0x2e0] sm:$0xff]
        %v1108 = vld [vmem:[#allocation7 + $0x2e8] sm:$0xff]
        %v1109 = vld [vmem:[#allocation7 + $0x2f0] sm:$0xff]
        %v1110 = vld [vmem:[#allocation7 + $0x2f8] sm:$0xff]
        %v1111 = vld [vmem:[#allocation7 + $0x300] sm:$0xff]
        %v1112 = vld [vmem:[#allocation7 + $0x308] sm:$0xff]
        %v1113 = vld [vmem:[#allocation7 + $0x310] sm:$0xff]
        %v1114 = vld [vmem:[#allocation7 + $0x318] sm:$0xff]
        %v1115 = vld [vmem:[#allocation7 + $0x320] sm:$0xff]
        %v1116 = vld [vmem:[#allocation7 + $0x328] sm:$0xff]
        %v1117 = vld [vmem:[#allocation7 + $0x330] sm:$0xff]
        %v1118 = vld [vmem:[#allocation7 + $0x338] sm:$0xff]
        %v1119 = vld [vmem:[#allocation7 + $0x340] sm:$0xff]
        %v1120 = vld [vmem:[#allocation7 + $0x348] sm:$0xff]
        %v1121 = vld [vmem:[#allocation7 + $0x350] sm:$0xff]
        %v1122 = vld [vmem:[#allocation7 + $0x358] sm:$0xff]
        %v1123 = vld [vmem:[#allocation7 + $0x360] sm:$0xff]
        %v1124 = vld [vmem:[#allocation7 + $0x368] sm:$0xff]
        %v1125 = vld [vmem:[#allocation7 + $0x370] sm:$0xff]
        %v1126 = vld [vmem:[#allocation7 + $0x378] sm:$0xff]
        %v1127 = vld [vmem:[#allocation7 + $0x380] sm:$0xff]
        %v1128 = vld [vmem:[#allocation7 + $0x388] sm:$0xff]
        %v1129 = vld [vmem:[#allocation7 + $0x390] sm:$0xff]
        %v1130 = vld [vmem:[#allocation7 + $0x398] sm:$0xff]
        %v1131 = vld [vmem:[#allocation7 + $0x3a0] sm:$0xff]
        %v1132 = vld [vmem:[#allocation7 + $0x3a8] sm:$0xff]
        %v1133 = vld [vmem:[#allocation7 + $0x3b0] sm:$0xff]
        %v1134 = vld [vmem:[#allocation7 + $0x3b8] sm:$0xff]
        %v1135 = vld [vmem:[#allocation7 + $0x3c0] sm:$0xff]
        %v1136 = vld [vmem:[#allocation7 + $0x3c8] sm:$0xff]
        %v1137 = vld [vmem:[#allocation7 + $0x3d0] sm:$0xff]
        %v1138 = vld [vmem:[#allocation7 + $0x3d8] sm:$0xff]
        %v1139 = vld [vmem:[#allocation7 + $0x3e0] sm:$0xff]
        %v1140 = vld [vmem:[#allocation7 + $0x3e8] sm:$0xff]
        %v1141 = vld [vmem:[#allocation7 + $0x3f0] sm:$0xff]
        %v1142 = vld [vmem:[#allocation7 + $0x3f8] sm:$0xff]
        %v1143 = vld [vmem:[#allocation9] sm:$0xf]
        %v1145 = vlaneseq
        %v1146 = vshrl.u32 %v1145, 7
        %v1147 = vsub.s32 0, %v1146
        %v1148 = vrot.slane %v1143, %v1147
        %v1149 = vlaneseq
        %v1150 = vshrl.u32 %v1149, 7
        %v1151 = vsub.s32 1, %v1150
        %v1152 = vrot.slane %v1143, %v1151
        %v1153 = vlaneseq
        %v1154 = vshrl.u32 %v1153, 7
        %v1155 = vsub.s32 2, %v1154
        %v1156 = vrot.slane %v1143, %v1155
        %v1157 = vlaneseq
        %v1158 = vshrl.u32 %v1157, 7
        %v1159 = vsub.s32 3, %v1158
        %v1160 = vrot.slane %v1143, %v1159
        %1165 = vmatprep.subr.mxu0 %v1016
        %1166 = vmatpush1.msra.mxu0 %v1015
        %1167 = vmatprep.subr.mxu0 %v1020
        %1168 = vmatpush1.msra.mxu0 %v1019
        %1169 = vmatprep.subr.mxu0 %v1024
        %1170 = vmatpush1.msra.mxu0 %v1023
        %1171 = vmatprep.subr.mxu0 %v1028
        %1172 = vmatpush1.msra.mxu0 %v1027
        %1173 = vmatprep.subr.mxu0 %v1032
        %1174 = vmatpush1.msra.mxu0 %v1031
        %1175 = vmatprep.subr.mxu0 %v1036
        %1176 = vmatpush1.msra.mxu0 %v1035
        %1177 = vmatprep.subr.mxu0 %v1040
        %1178 = vmatpush1.msra.mxu0 %v1039
        %1179 = vmatprep.subr.mxu0 %v1044
        %1180 = vmatpush1.msra.mxu0 %v1043
        %1181 = vmatprep.subr.mxu0 %v1048
        %1182 = vmatpush1.msra.mxu0 %v1047
        %1183 = vmatprep.subr.mxu0 %v1052
        %1184 = vmatpush1.msra.mxu0 %v1051
        %1185 = vmatprep.subr.mxu0 %v1056
        %1186 = vmatpush1.msra.mxu0 %v1055
        %1187 = vmatprep.subr.mxu0 %v1060
        %1188 = vmatpush1.msra.mxu0 %v1059
        %1189 = vmatprep.subr.mxu0 %v1064
        %1190 = vmatpush1.msra.mxu0 %v1063
        %1191 = vmatprep.subr.mxu0 %v1068
        %1192 = vmatpush1.msra.mxu0 %v1067
        %1193 = vmatprep.subr.mxu0 %v1072
        %1194 = vmatpush1.msra.mxu0 %v1071
        %1195 = vmatprep.subr.mxu0 %v1076
        %1196 = vmatpush1.msra.mxu0 %v1075
        %1197 = vmatprep.subr.mxu0 %v1080
        %1198 = vmatpush1.msra.mxu0 %v1079
        %1199 = vmatprep.subr.mxu0 %v1084
        %1200 = vmatpush1.msra.mxu0 %v1083
        %1201 = vmatprep.subr.mxu0 %v1088
        %1202 = vmatpush1.msra.mxu0 %v1087
        %1203 = vmatprep.subr.mxu0 %v1092
        %1204 = vmatpush1.msra.mxu0 %v1091
        %1205 = vmatprep.subr.mxu0 %v1096
        %1206 = vmatpush1.msra.mxu0 %v1095
        %1207 = vmatprep.subr.mxu0 %v1100
        %1208 = vmatpush1.msra.mxu0 %v1099
        %1209 = vmatprep.subr.mxu0 %v1104
        %1210 = vmatpush1.msra.mxu0 %v1103
        %1211 = vmatprep.subr.mxu0 %v1108
        %1212 = vmatpush1.msra.mxu0 %v1107
        %1213 = vmatprep.subr.mxu0 %v1112
        %1214 = vmatpush1.msra.mxu0 %v1111
        %1215 = vmatprep.subr.mxu0 %v1116
        %1216 = vmatpush1.msra.mxu0 %v1115
        %1217 = vmatprep.subr.mxu0 %v1120
        %1218 = vmatpush1.msra.mxu0 %v1119
        %1219 = vmatprep.subr.mxu0 %v1124
        %1220 = vmatpush1.msra.mxu0 %v1123
        %1221 = vmatprep.subr.mxu0 %v1128
        %1222 = vmatpush1.msra.mxu0 %v1127
        %1223 = vmatprep.subr.mxu0 %v1132
        %1224 = vmatpush1.msra.mxu0 %v1131
        %1225 = vmatprep.subr.mxu0 %v1136
        %1226 = vmatpush1.msra.mxu0 %v1135
        %1227 = vmatprep.subr.mxu0 %v1140
        %1228 = vmatpush1.msra.mxu0 %v1139
        %1229 = vmatprep.mubr.f32.mxu0 %v1013
        %1230 = vmatmul.mubr.f32.gmra.mrb[0].mxu0 %v1012
        %v1231 = vpop.f32.mrb[0].mxu0
        %v1232 = vadd.f32 %v1148, %v1231
        %v1233 = vpop.f32.mrb[0].mxu0
        %v1234 = vadd.f32 %v1152, %v1233
        %1235 = vdwg.mxu0
        %1236 = vmatprep.subr.mxu0 %v1018
        %1237 = vmatpush1.msra.mxu0 %v1017
        %1238 = vmatprep.subr.mxu0 %v1022
        %1239 = vmatpush1.msra.mxu0 %v1021
        %1240 = vmatprep.subr.mxu0 %v1026
        %1241 = vmatpush1.msra.mxu0 %v1025
        %1242 = vmatprep.subr.mxu0 %v1030
        %1243 = vmatpush1.msra.mxu0 %v1029
        %1244 = vmatprep.subr.mxu0 %v1034
        %1245 = vmatpush1.msra.mxu0 %v1033
        %1246 = vmatprep.subr.mxu0 %v1038
        %1247 = vmatpush1.msra.mxu0 %v1037
        %1248 = vmatprep.subr.mxu0 %v1042
        %1249 = vmatpush1.msra.mxu0 %v1041
        %1250 = vmatprep.subr.mxu0 %v1046
        %1251 = vmatpush1.msra.mxu0 %v1045
        %1252 = vmatprep.subr.mxu0 %v1050
        %1253 = vmatpush1.msra.mxu0 %v1049
        %1254 = vmatprep.subr.mxu0 %v1054
        %1255 = vmatpush1.msra.mxu0 %v1053
        %1256 = vmatprep.subr.mxu0 %v1058
        %1257 = vmatpush1.msra.mxu0 %v1057
        %1258 = vmatprep.subr.mxu0 %v1062
        %1259 = vmatpush1.msra.mxu0 %v1061
        %1260 = vmatprep.subr.mxu0 %v1066
        %1261 = vmatpush1.msra.mxu0 %v1065
        %1262 = vmatprep.subr.mxu0 %v1070
        %1263 = vmatpush1.msra.mxu0 %v1069
        %1264 = vmatprep.subr.mxu0 %v1074
        %1265 = vmatpush1.msra.mxu0 %v1073
        %1266 = vmatprep.subr.mxu0 %v1078
        %1267 = vmatpush1.msra.mxu0 %v1077
        %1268 = vmatprep.subr.mxu0 %v1082
        %1269 = vmatpush1.msra.mxu0 %v1081
        %1270 = vmatprep.subr.mxu0 %v1086
        %1271 = vmatpush1.msra.mxu0 %v1085
        %1272 = vmatprep.subr.mxu0 %v1090
        %1273 = vmatpush1.msra.mxu0 %v1089
        %1274 = vmatprep.subr.mxu0 %v1094
        %1275 = vmatpush1.msra.mxu0 %v1093
        %1276 = vmatprep.subr.mxu0 %v1098
        %1277 = vmatpush1.msra.mxu0 %v1097
        %1278 = vmatprep.subr.mxu0 %v1102
        %1279 = vmatpush1.msra.mxu0 %v1101
        %1280 = vmatprep.subr.mxu0 %v1106
        %1281 = vmatpush1.msra.mxu0 %v1105
        %1282 = vmatprep.subr.mxu0 %v1110
        %1283 = vmatpush1.msra.mxu0 %v1109
        %1284 = vmatprep.subr.mxu0 %v1114
        %1285 = vmatpush1.msra.mxu0 %v1113
        %1286 = vmatprep.subr.mxu0 %v1118
        %1287 = vmatpush1.msra.mxu0 %v1117
        %1288 = vmatprep.subr.mxu0 %v1122
        %1289 = vmatpush1.msra.mxu0 %v1121
        %1290 = vmatprep.subr.mxu0 %v1126
        %1291 = vmatpush1.msra.mxu0 %v1125
        %1292 = vmatprep.subr.mxu0 %v1130
        %1293 = vmatpush1.msra.mxu0 %v1129
        %1294 = vmatprep.subr.mxu0 %v1134
        %1295 = vmatpush1.msra.mxu0 %v1133
        %1296 = vmatprep.subr.mxu0 %v1138
        %1297 = vmatpush1.msra.mxu0 %v1137
        %1298 = vmatprep.subr.mxu0 %v1142
        %1299 = vmatpush1.msra.mxu0 %v1141
        %1300 = vmatprep.mubr.f32.mxu0 %v1013
        %1301 = vmatmul.mubr.f32.gmra.mrb[0].mxu0 %v1012
        %v1302 = vpop.f32.mrb[0].mxu0
        %v1303 = vadd.f32 %v1156, %v1302
        %v1304 = vpop.f32.mrb[0].mxu0
        %v1305 = vadd.f32 %v1160, %v1304
        %1306 = vdwg.mxu0
        %v1307 = vxor.u32 %v1232, 2147483648
        %v1308 = vmul.f32 %v1307, 1.442695
        %v1309 = vpow.pop %v1308
        %v1310 = vadd.f32 %v1309, 1.0
        %v1311 = vrcp.pop %v1310
        %v1312 = vmul.f32 1.0, %v1311
        %v1313 = vxor.u32 %v1234, 2147483648
        %v1314 = vmul.f32 %v1313, 1.442695
        %v1315 = vpow.pop %v1314
        %v1316 = vadd.f32 %v1315, 1.0
        %v1317 = vrcp.pop %v1316
        %v1318 = vmul.f32 1.0, %v1317
        %v1319 = vtanh.pop %v1303
        %v1320 = vxor.u32 %v1305, 2147483648
        %v1321 = vmul.f32 %v1320, 1.442695
        %v1322 = vpow.pop %v1321
        %v1323 = vadd.f32 %v1322, 1.0
        %v1324 = vrcp.pop %v1323
        %v1325 = vmul.f32 1.0, %v1324
        %v1326 = vmul.f32 %v1318, %v1014
        %v1327 = vmul.f32 %v1312, %v1319
        %v1328 = vadd.f32 %v1326, %v1327
        %v1329 = vtanh.pop %v1328
        %v1330 = vmul.f32 %v1325, %v1329
        %1331 = vst [vmem:[#allocation2] sm:$0xff] %v1330
        %1332 = vst [vmem:[#allocation3] sm:$0xff] %v1328
        %v1333 = vld [vmem:[%s686] sm:$0xff]
        %v1334 = vld [vmem:[%s688] sm:$0xff]
        %v1335 = vld [vmem:[%s690] sm:$0xff]
        %v1336 = vld [vmem:[%s690 + $0x8] sm:$0xff]
        %v1337 = vld [vmem:[%s690 + $0x10] sm:$0xff]
        %v1338 = vld [vmem:[%s690 + $0x18] sm:$0xff]
        %v1339 = vld [vmem:[%s690 + $0x20] sm:$0xff]
        %v1340 = vld [vmem:[%s690 + $0x28] sm:$0xff]
        %v1341 = vld [vmem:[%s690 + $0x30] sm:$0xff]
        %v1342 = vld [vmem:[%s690 + $0x38] sm:$0xff]
        %v1343 = vld [vmem:[%s690 + $0x40] sm:$0xff]
        %v1344 = vld [vmem:[%s690 + $0x48] sm:$0xff]
        %v1345 = vld [vmem:[%s690 + $0x50] sm:$0xff]
        %v1346 = vld [vmem:[%s690 + $0x58] sm:$0xff]
        %v1347 = vld [vmem:[%s690 + $0x60] sm:$0xff]
        %v1348 = vld [vmem:[%s690 + $0x68] sm:$0xff]
        %v1349 = vld [vmem:[%s690 + $0x70] sm:$0xff]
        %v1350 = vld [vmem:[%s690 + $0x78] sm:$0xff]
        %v1351 = vld [vmem:[%s690 + $0x80] sm:$0xff]
        %v1352 = vld [vmem:[%s690 + $0x88] sm:$0xff]
        %v1353 = vld [vmem:[%s690 + $0x90] sm:$0xff]
        %v1354 = vld [vmem:[%s690 + $0x98] sm:$0xff]
        %v1355 = vld [vmem:[%s690 + $0xa0] sm:$0xff]
        %v1356 = vld [vmem:[%s690 + $0xa8] sm:$0xff]
        %v1357 = vld [vmem:[%s690 + $0xb0] sm:$0xff]
        %v1358 = vld [vmem:[%s690 + $0xb8] sm:$0xff]
        %v1359 = vld [vmem:[%s690 + $0xc0] sm:$0xff]
        %v1360 = vld [vmem:[%s690 + $0xc8] sm:$0xff]
        %v1361 = vld [vmem:[%s690 + $0xd0] sm:$0xff]
        %v1362 = vld [vmem:[%s690 + $0xd8] sm:$0xff]
        %v1363 = vld [vmem:[%s690 + $0xe0] sm:$0xff]
        %v1364 = vld [vmem:[%s690 + $0xe8] sm:$0xff]
        %v1365 = vld [vmem:[%s690 + $0xf0] sm:$0xff]
        %v1366 = vld [vmem:[%s690 + $0xf8] sm:$0xff]
        %v1367 = vld [vmem:[%s690 + $0x100] sm:$0xff]
        %v1368 = vld [vmem:[%s690 + $0x108] sm:$0xff]
        %v1369 = vld [vmem:[%s690 + $0x110] sm:$0xff]
        %v1370 = vld [vmem:[%s690 + $0x118] sm:$0xff]
        %v1371 = vld [vmem:[%s690 + $0x120] sm:$0xff]
        %v1372 = vld [vmem:[%s690 + $0x128] sm:$0xff]
        %v1373 = vld [vmem:[%s690 + $0x130] sm:$0xff]
        %v1374 = vld [vmem:[%s690 + $0x138] sm:$0xff]
        %v1375 = vld [vmem:[%s690 + $0x140] sm:$0xff]
        %v1376 = vld [vmem:[%s690 + $0x148] sm:$0xff]
        %v1377 = vld [vmem:[%s690 + $0x150] sm:$0xff]
        %v1378 = vld [vmem:[%s690 + $0x158] sm:$0xff]
        %v1379 = vld [vmem:[%s690 + $0x160] sm:$0xff]
        %v1380 = vld [vmem:[%s690 + $0x168] sm:$0xff]
        %v1381 = vld [vmem:[%s690 + $0x170] sm:$0xff]
        %v1382 = vld [vmem:[%s690 + $0x178] sm:$0xff]
        %v1383 = vld [vmem:[%s690 + $0x180] sm:$0xff]
        %v1384 = vld [vmem:[%s690 + $0x188] sm:$0xff]
        %v1385 = vld [vmem:[%s690 + $0x190] sm:$0xff]
        %v1386 = vld [vmem:[%s690 + $0x198] sm:$0xff]
        %v1387 = vld [vmem:[%s690 + $0x1a0] sm:$0xff]
        %v1388 = vld [vmem:[%s690 + $0x1a8] sm:$0xff]
        %v1389 = vld [vmem:[%s690 + $0x1b0] sm:$0xff]
        %v1390 = vld [vmem:[%s690 + $0x1b8] sm:$0xff]
        %v1391 = vld [vmem:[%s690 + $0x1c0] sm:$0xff]
        %v1392 = vld [vmem:[%s690 + $0x1c8] sm:$0xff]
        %v1393 = vld [vmem:[%s690 + $0x1d0] sm:$0xff]
        %v1394 = vld [vmem:[%s690 + $0x1d8] sm:$0xff]
        %v1395 = vld [vmem:[%s690 + $0x1e0] sm:$0xff]
        %v1396 = vld [vmem:[%s690 + $0x1e8] sm:$0xff]
        %v1397 = vld [vmem:[%s690 + $0x1f0] sm:$0xff]
        %v1398 = vld [vmem:[%s690 + $0x1f8] sm:$0xff]
        %v1399 = vld [vmem:[%s690 + $0x200] sm:$0xff]
        %v1400 = vld [vmem:[%s690 + $0x208] sm:$0xff]
        %v1401 = vld [vmem:[%s690 + $0x210] sm:$0xff]
        %v1402 = vld [vmem:[%s690 + $0x218] sm:$0xff]
        %v1403 = vld [vmem:[%s690 + $0x220] sm:$0xff]
        %v1404 = vld [vmem:[%s690 + $0x228] sm:$0xff]
        %v1405 = vld [vmem:[%s690 + $0x230] sm:$0xff]
        %v1406 = vld [vmem:[%s690 + $0x238] sm:$0xff]
        %v1407 = vld [vmem:[%s690 + $0x240] sm:$0xff]
        %v1408 = vld [vmem:[%s690 + $0x248] sm:$0xff]
        %v1409 = vld [vmem:[%s690 + $0x250] sm:$0xff]
        %v1410 = vld [vmem:[%s690 + $0x258] sm:$0xff]
        %v1411 = vld [vmem:[%s690 + $0x260] sm:$0xff]
        %v1412 = vld [vmem:[%s690 + $0x268] sm:$0xff]
        %v1413 = vld [vmem:[%s690 + $0x270] sm:$0xff]
        %v1414 = vld [vmem:[%s690 + $0x278] sm:$0xff]
        %v1415 = vld [vmem:[%s690 + $0x280] sm:$0xff]
        %v1416 = vld [vmem:[%s690 + $0x288] sm:$0xff]
        %v1417 = vld [vmem:[%s690 + $0x290] sm:$0xff]
        %v1418 = vld [vmem:[%s690 + $0x298] sm:$0xff]
        %v1419 = vld [vmem:[%s690 + $0x2a0] sm:$0xff]
        %v1420 = vld [vmem:[%s690 + $0x2a8] sm:$0xff]
        %v1421 = vld [vmem:[%s690 + $0x2b0] sm:$0xff]
        %v1422 = vld [vmem:[%s690 + $0x2b8] sm:$0xff]
        %v1423 = vld [vmem:[%s690 + $0x2c0] sm:$0xff]
        %v1424 = vld [vmem:[%s690 + $0x2c8] sm:$0xff]
        %v1425 = vld [vmem:[%s690 + $0x2d0] sm:$0xff]
        %v1426 = vld [vmem:[%s690 + $0x2d8] sm:$0xff]
        %v1427 = vld [vmem:[%s690 + $0x2e0] sm:$0xff]
        %v1428 = vld [vmem:[%s690 + $0x2e8] sm:$0xff]
        %v1429 = vld [vmem:[%s690 + $0x2f0] sm:$0xff]
        %v1430 = vld [vmem:[%s690 + $0x2f8] sm:$0xff]
        %v1431 = vld [vmem:[%s690 + $0x300] sm:$0xff]
        %v1432 = vld [vmem:[%s690 + $0x308] sm:$0xff]
        %v1433 = vld [vmem:[%s690 + $0x310] sm:$0xff]
        %v1434 = vld [vmem:[%s690 + $0x318] sm:$0xff]
        %v1435 = vld [vmem:[%s690 + $0x320] sm:$0xff]
        %v1436 = vld [vmem:[%s690 + $0x328] sm:$0xff]
        %v1437 = vld [vmem:[%s690 + $0x330] sm:$0xff]
        %v1438 = vld [vmem:[%s690 + $0x338] sm:$0xff]
        %v1439 = vld [vmem:[%s690 + $0x340] sm:$0xff]
        %v1440 = vld [vmem:[%s690 + $0x348] sm:$0xff]
        %v1441 = vld [vmem:[%s690 + $0x350] sm:$0xff]
        %v1442 = vld [vmem:[%s690 + $0x358] sm:$0xff]
        %v1443 = vld [vmem:[%s690 + $0x360] sm:$0xff]
        %v1444 = vld [vmem:[%s690 + $0x368] sm:$0xff]
        %v1445 = vld [vmem:[%s690 + $0x370] sm:$0xff]
        %v1446 = vld [vmem:[%s690 + $0x378] sm:$0xff]
        %v1447 = vld [vmem:[%s690 + $0x380] sm:$0xff]
        %v1448 = vld [vmem:[%s690 + $0x388] sm:$0xff]
        %v1449 = vld [vmem:[%s690 + $0x390] sm:$0xff]
        %v1450 = vld [vmem:[%s690 + $0x398] sm:$0xff]
        %v1451 = vld [vmem:[%s690 + $0x3a0] sm:$0xff]
        %v1452 = vld [vmem:[%s690 + $0x3a8] sm:$0xff]
        %v1453 = vld [vmem:[%s690 + $0x3b0] sm:$0xff]
        %v1454 = vld [vmem:[%s690 + $0x3b8] sm:$0xff]
        %v1455 = vld [vmem:[%s690 + $0x3c0] sm:$0xff]
        %v1456 = vld [vmem:[%s690 + $0x3c8] sm:$0xff]
        %v1457 = vld [vmem:[%s690 + $0x3d0] sm:$0xff]
        %v1458 = vld [vmem:[%s690 + $0x3d8] sm:$0xff]
        %v1459 = vld [vmem:[%s690 + $0x3e0] sm:$0xff]
        %v1460 = vld [vmem:[%s690 + $0x3e8] sm:$0xff]
        %v1461 = vld [vmem:[%s690 + $0x3f0] sm:$0xff]
        %v1462 = vld [vmem:[%s690 + $0x3f8] sm:$0xff]
        %v1463 = vld [vmem:[%s819] sm:$0xf]
        %v1465 = vlaneseq
        %v1466 = vshrl.u32 %v1465, 7
        %v1467 = vsub.s32 0, %v1466
        %v1468 = vrot.slane %v1463, %v1467
        %v1469 = vlaneseq
        %v1470 = vshrl.u32 %v1469, 7
        %v1471 = vsub.s32 1, %v1470
        %v1472 = vrot.slane %v1463, %v1471
        %v1473 = vlaneseq
        %v1474 = vshrl.u32 %v1473, 7
        %v1475 = vsub.s32 2, %v1474
        %v1476 = vrot.slane %v1463, %v1475
        %v1477 = vlaneseq
        %v1478 = vshrl.u32 %v1477, 7
        %v1479 = vsub.s32 3, %v1478
        %v1480 = vrot.slane %v1463, %v1479
        %1485 = vmatprep.subr.mxu0 %v1336
        %1486 = vmatpush1.msra.mxu0 %v1335
        %1487 = vmatprep.subr.mxu0 %v1340
        %1488 = vmatpush1.msra.mxu0 %v1339
        %1489 = vmatprep.subr.mxu0 %v1344
        %1490 = vmatpush1.msra.mxu0 %v1343
        %1491 = vmatprep.subr.mxu0 %v1348
        %1492 = vmatpush1.msra.mxu0 %v1347
        %1493 = vmatprep.subr.mxu0 %v1352
        %1494 = vmatpush1.msra.mxu0 %v1351
        %1495 = vmatprep.subr.mxu0 %v1356
        %1496 = vmatpush1.msra.mxu0 %v1355
        %1497 = vmatprep.subr.mxu0 %v1360
        %1498 = vmatpush1.msra.mxu0 %v1359
        %1499 = vmatprep.subr.mxu0 %v1364
        %1500 = vmatpush1.msra.mxu0 %v1363
        %1501 = vmatprep.subr.mxu0 %v1368
        %1502 = vmatpush1.msra.mxu0 %v1367
        %1503 = vmatprep.subr.mxu0 %v1372
        %1504 = vmatpush1.msra.mxu0 %v1371
        %1505 = vmatprep.subr.mxu0 %v1376
        %1506 = vmatpush1.msra.mxu0 %v1375
        %1507 = vmatprep.subr.mxu0 %v1380
        %1508 = vmatpush1.msra.mxu0 %v1379
        %1509 = vmatprep.subr.mxu0 %v1384
        %1510 = vmatpush1.msra.mxu0 %v1383
        %1511 = vmatprep.subr.mxu0 %v1388
        %1512 = vmatpush1.msra.mxu0 %v1387
        %1513 = vmatprep.subr.mxu0 %v1392
        %1514 = vmatpush1.msra.mxu0 %v1391
        %1515 = vmatprep.subr.mxu0 %v1396
        %1516 = vmatpush1.msra.mxu0 %v1395
        %1517 = vmatprep.subr.mxu0 %v1400
        %1518 = vmatpush1.msra.mxu0 %v1399
        %1519 = vmatprep.subr.mxu0 %v1404
        %1520 = vmatpush1.msra.mxu0 %v1403
        %1521 = vmatprep.subr.mxu0 %v1408
        %1522 = vmatpush1.msra.mxu0 %v1407
        %1523 = vmatprep.subr.mxu0 %v1412
        %1524 = vmatpush1.msra.mxu0 %v1411
        %1525 = vmatprep.subr.mxu0 %v1416
        %1526 = vmatpush1.msra.mxu0 %v1415
        %1527 = vmatprep.subr.mxu0 %v1420
        %1528 = vmatpush1.msra.mxu0 %v1419
        %1529 = vmatprep.subr.mxu0 %v1424
        %1530 = vmatpush1.msra.mxu0 %v1423
        %1531 = vmatprep.subr.mxu0 %v1428
        %1532 = vmatpush1.msra.mxu0 %v1427
        %1533 = vmatprep.subr.mxu0 %v1432
        %1534 = vmatpush1.msra.mxu0 %v1431
        %1535 = vmatprep.subr.mxu0 %v1436
        %1536 = vmatpush1.msra.mxu0 %v1435
        %1537 = vmatprep.subr.mxu0 %v1440
        %1538 = vmatpush1.msra.mxu0 %v1439
        %1539 = vmatprep.subr.mxu0 %v1444
        %1540 = vmatpush1.msra.mxu0 %v1443
        %1541 = vmatprep.subr.mxu0 %v1448
        %1542 = vmatpush1.msra.mxu0 %v1447
        %1543 = vmatprep.subr.mxu0 %v1452
        %1544 = vmatpush1.msra.mxu0 %v1451
        %1545 = vmatprep.subr.mxu0 %v1456
        %1546 = vmatpush1.msra.mxu0 %v1455
        %1547 = vmatprep.subr.mxu0 %v1460
        %1548 = vmatpush1.msra.mxu0 %v1459
        %1549 = vmatprep.mubr.f32.mxu0 %v1333
        %1550 = vmatmul.mubr.f32.gmra.mrb[0].mxu0 %v1330
        %v1551 = vpop.f32.mrb[0].mxu0
        %v1552 = vadd.f32 %v1468, %v1551
        %v1553 = vpop.f32.mrb[0].mxu0
        %v1554 = vadd.f32 %v1472, %v1553
        %1555 = vdwg.mxu0
        %1556 = vmatprep.subr.mxu0 %v1338
        %1557 = vmatpush1.msra.mxu0 %v1337
        %1558 = vmatprep.subr.mxu0 %v1342
        %1559 = vmatpush1.msra.mxu0 %v1341
        %1560 = vmatprep.subr.mxu0 %v1346
        %1561 = vmatpush1.msra.mxu0 %v1345
        %1562 = vmatprep.subr.mxu0 %v1350
        %1563 = vmatpush1.msra.mxu0 %v1349
        %1564 = vmatprep.subr.mxu0 %v1354
        %1565 = vmatpush1.msra.mxu0 %v1353
        %1566 = vmatprep.subr.mxu0 %v1358
        %1567 = vmatpush1.msra.mxu0 %v1357
        %1568 = vmatprep.subr.mxu0 %v1362
        %1569 = vmatpush1.msra.mxu0 %v1361
        %1570 = vmatprep.subr.mxu0 %v1366
        %1571 = vmatpush1.msra.mxu0 %v1365
        %1572 = vmatprep.subr.mxu0 %v1370
        %1573 = vmatpush1.msra.mxu0 %v1369
        %1574 = vmatprep.subr.mxu0 %v1374
        %1575 = vmatpush1.msra.mxu0 %v1373
        %1576 = vmatprep.subr.mxu0 %v1378
        %1577 = vmatpush1.msra.mxu0 %v1377
        %1578 = vmatprep.subr.mxu0 %v1382
        %1579 = vmatpush1.msra.mxu0 %v1381
        %1580 = vmatprep.subr.mxu0 %v1386
        %1581 = vmatpush1.msra.mxu0 %v1385
        %1582 = vmatprep.subr.mxu0 %v1390
        %1583 = vmatpush1.msra.mxu0 %v1389
        %1584 = vmatprep.subr.mxu0 %v1394
        %1585 = vmatpush1.msra.mxu0 %v1393
        %1586 = vmatprep.subr.mxu0 %v1398
        %1587 = vmatpush1.msra.mxu0 %v1397
        %1588 = vmatprep.subr.mxu0 %v1402
        %1589 = vmatpush1.msra.mxu0 %v1401
        %1590 = vmatprep.subr.mxu0 %v1406
        %1591 = vmatpush1.msra.mxu0 %v1405
        %1592 = vmatprep.subr.mxu0 %v1410
        %1593 = vmatpush1.msra.mxu0 %v1409
        %1594 = vmatprep.subr.mxu0 %v1414
        %1595 = vmatpush1.msra.mxu0 %v1413
        %1596 = vmatprep.subr.mxu0 %v1418
        %1597 = vmatpush1.msra.mxu0 %v1417
        %1598 = vmatprep.subr.mxu0 %v1422
        %1599 = vmatpush1.msra.mxu0 %v1421
        %1600 = vmatprep.subr.mxu0 %v1426
        %1601 = vmatpush1.msra.mxu0 %v1425
        %1602 = vmatprep.subr.mxu0 %v1430
        %1603 = vmatpush1.msra.mxu0 %v1429
        %1604 = vmatprep.subr.mxu0 %v1434
        %1605 = vmatpush1.msra.mxu0 %v1433
        %1606 = vmatprep.subr.mxu0 %v1438
        %1607 = vmatpush1.msra.mxu0 %v1437
        %1608 = vmatprep.subr.mxu0 %v1442
        %1609 = vmatpush1.msra.mxu0 %v1441
        %1610 = vmatprep.subr.mxu0 %v1446
        %1611 = vmatpush1.msra.mxu0 %v1445
        %1612 = vmatprep.subr.mxu0 %v1450
        %1613 = vmatpush1.msra.mxu0 %v1449
        %1614 = vmatprep.subr.mxu0 %v1454
        %1615 = vmatpush1.msra.mxu0 %v1453
        %1616 = vmatprep.subr.mxu0 %v1458
        %1617 = vmatpush1.msra.mxu0 %v1457
        %1618 = vmatprep.subr.mxu0 %v1462
        %1619 = vmatpush1.msra.mxu0 %v1461
        %1620 = vmatprep.mubr.f32.mxu0 %v1333
        %1621 = vmatmul.mubr.f32.gmra.mrb[0].mxu0 %v1330
        %v1622 = vpop.f32.mrb[0].mxu0
        %v1623 = vadd.f32 %v1476, %v1622
        %v1624 = vpop.f32.mrb[0].mxu0
        %v1625 = vadd.f32 %v1480, %v1624
        %1626 = vdwg.mxu0
        %v1627 = vxor.u32 %v1552, 2147483648
        %v1628 = vmul.f32 %v1627, 1.442695
        %v1629 = vpow.pop %v1628
        %v1630 = vadd.f32 %v1629, 1.0
        %v1631 = vrcp.pop %v1630
        %v1632 = vmul.f32 1.0, %v1631
        %v1633 = vxor.u32 %v1554, 2147483648
        %v1634 = vmul.f32 %v1633, 1.442695
        %v1635 = vpow.pop %v1634
        %v1636 = vadd.f32 %v1635, 1.0
        %v1637 = vrcp.pop %v1636
        %v1638 = vmul.f32 1.0, %v1637
        %v1639 = vtanh.pop %v1623
        %v1640 = vxor.u32 %v1625, 2147483648
        %v1641 = vmul.f32 %v1640, 1.442695
        %v1642 = vpow.pop %v1641
        %v1643 = vadd.f32 %v1642, 1.0
        %v1644 = vrcp.pop %v1643
        %v1645 = vmul.f32 1.0, %v1644
        %v1646 = vmul.f32 %v1638, %v1334
        %v1647 = vmul.f32 %v1632, %v1639
        %v1648 = vadd.f32 %v1646, %v1647
        %v1649 = vtanh.pop %v1648
        %v1650 = vmul.f32 %v1645, %v1649
        %1651 = vst [vmem:[%s686] sm:$0xff] %v1650
        %1652 = vst [vmem:[%s688] sm:$0xff] %v1648
        %s1653 = scalar_lea.vmem %s346, 8 [#allocation13]
        %1654 = vst [vmem:[%s1653] sm:$0xff] %v1650
        %s1655 = scalar_lea.vmem %s304, 16 [#allocation4]
        %v1656 = vld [vmem:[%s1655] sm:$0xff]
        %v1657 = vld [vmem:[#allocation2] sm:$0xff]
        %v1658 = vld [vmem:[#allocation3] sm:$0xff]
        %v1659 = vld [vmem:[#allocation7] sm:$0xff]
        %v1660 = vld [vmem:[#allocation7 + $0x8] sm:$0xff]
        %v1661 = vld [vmem:[#allocation7 + $0x10] sm:$0xff]
        %v1662 = vld [vmem:[#allocation7 + $0x18] sm:$0xff]
        %v1663 = vld [vmem:[#allocation7 + $0x20] sm:$0xff]
        %v1664 = vld [vmem:[#allocation7 + $0x28] sm:$0xff]
        %v1665 = vld [vmem:[#allocation7 + $0x30] sm:$0xff]
        %v1666 = vld [vmem:[#allocation7 + $0x38] sm:$0xff]
        %v1667 = vld [vmem:[#allocation7 + $0x40] sm:$0xff]
        %v1668 = vld [vmem:[#allocation7 + $0x48] sm:$0xff]
        %v1669 = vld [vmem:[#allocation7 + $0x50] sm:$0xff]
        %v1670 = vld [vmem:[#allocation7 + $0x58] sm:$0xff]
        %v1671 = vld [vmem:[#allocation7 + $0x60] sm:$0xff]
        %v1672 = vld [vmem:[#allocation7 + $0x68] sm:$0xff]
        %v1673 = vld [vmem:[#allocation7 + $0x70] sm:$0xff]
        %v1674 = vld [vmem:[#allocation7 + $0x78] sm:$0xff]
        %v1675 = vld [vmem:[#allocation7 + $0x80] sm:$0xff]
        %v1676 = vld [vmem:[#allocation7 + $0x88] sm:$0xff]
        %v1677 = vld [vmem:[#allocation7 + $0x90] sm:$0xff]
        %v1678 = vld [vmem:[#allocation7 + $0x98] sm:$0xff]
        %v1679 = vld [vmem:[#allocation7 + $0xa0] sm:$0xff]
        %v1680 = vld [vmem:[#allocation7 + $0xa8] sm:$0xff]
        %v1681 = vld [vmem:[#allocation7 + $0xb0] sm:$0xff]
        %v1682 = vld [vmem:[#allocation7 + $0xb8] sm:$0xff]
        %v1683 = vld [vmem:[#allocation7 + $0xc0] sm:$0xff]
        %v1684 = vld [vmem:[#allocation7 + $0xc8] sm:$0xff]
        %v1685 = vld [vmem:[#allocation7 + $0xd0] sm:$0xff]
        %v1686 = vld [vmem:[#allocation7 + $0xd8] sm:$0xff]
        %v1687 = vld [vmem:[#allocation7 + $0xe0] sm:$0xff]
        %v1688 = vld [vmem:[#allocation7 + $0xe8] sm:$0xff]
        %v1689 = vld [vmem:[#allocation7 + $0xf0] sm:$0xff]
        %v1690 = vld [vmem:[#allocation7 + $0xf8] sm:$0xff]
        %v1691 = vld [vmem:[#allocation7 + $0x100] sm:$0xff]
        %v1692 = vld [vmem:[#allocation7 + $0x108] sm:$0xff]
        %v1693 = vld [vmem:[#allocation7 + $0x110] sm:$0xff]
        %v1694 = vld [vmem:[#allocation7 + $0x118] sm:$0xff]
        %v1695 = vld [vmem:[#allocation7 + $0x120] sm:$0xff]
        %v1696 = vld [vmem:[#allocation7 + $0x128] sm:$0xff]
        %v1697 = vld [vmem:[#allocation7 + $0x130] sm:$0xff]
        %v1698 = vld [vmem:[#allocation7 + $0x138] sm:$0xff]
        %v1699 = vld [vmem:[#allocation7 + $0x140] sm:$0xff]
        %v1700 = vld [vmem:[#allocation7 + $0x148] sm:$0xff]
        %v1701 = vld [vmem:[#allocation7 + $0x150] sm:$0xff]
        %v1702 = vld [vmem:[#allocation7 + $0x158] sm:$0xff]
        %v1703 = vld [vmem:[#allocation7 + $0x160] sm:$0xff]
        %v1704 = vld [vmem:[#allocation7 + $0x168] sm:$0xff]
        %v1705 = vld [vmem:[#allocation7 + $0x170] sm:$0xff]
        %v1706 = vld [vmem:[#allocation7 + $0x178] sm:$0xff]
        %v1707 = vld [vmem:[#allocation7 + $0x180] sm:$0xff]
        %v1708 = vld [vmem:[#allocation7 + $0x188] sm:$0xff]
        %v1709 = vld [vmem:[#allocation7 + $0x190] sm:$0xff]
        %v1710 = vld [vmem:[#allocation7 + $0x198] sm:$0xff]
        %v1711 = vld [vmem:[#allocation7 + $0x1a0] sm:$0xff]
        %v1712 = vld [vmem:[#allocation7 + $0x1a8] sm:$0xff]
        %v1713 = vld [vmem:[#allocation7 + $0x1b0] sm:$0xff]
        %v1714 = vld [vmem:[#allocation7 + $0x1b8] sm:$0xff]
        %v1715 = vld [vmem:[#allocation7 + $0x1c0] sm:$0xff]
        %v1716 = vld [vmem:[#allocation7 + $0x1c8] sm:$0xff]
        %v1717 = vld [vmem:[#allocation7 + $0x1d0] sm:$0xff]
        %v1718 = vld [vmem:[#allocation7 + $0x1d8] sm:$0xff]
        %v1719 = vld [vmem:[#allocation7 + $0x1e0] sm:$0xff]
        %v1720 = vld [vmem:[#allocation7 + $0x1e8] sm:$0xff]
        %v1721 = vld [vmem:[#allocation7 + $0x1f0] sm:$0xff]
        %v1722 = vld [vmem:[#allocation7 + $0x1f8] sm:$0xff]
        %v1723 = vld [vmem:[#allocation7 + $0x200] sm:$0xff]
        %v1724 = vld [vmem:[#allocation7 + $0x208] sm:$0xff]
        %v1725 = vld [vmem:[#allocation7 + $0x210] sm:$0xff]
        %v1726 = vld [vmem:[#allocation7 + $0x218] sm:$0xff]
        %v1727 = vld [vmem:[#allocation7 + $0x220] sm:$0xff]
        %v1728 = vld [vmem:[#allocation7 + $0x228] sm:$0xff]
        %v1729 = vld [vmem:[#allocation7 + $0x230] sm:$0xff]
        %v1730 = vld [vmem:[#allocation7 + $0x238] sm:$0xff]
        %v1731 = vld [vmem:[#allocation7 + $0x240] sm:$0xff]
        %v1732 = vld [vmem:[#allocation7 + $0x248] sm:$0xff]
        %v1733 = vld [vmem:[#allocation7 + $0x250] sm:$0xff]
        %v1734 = vld [vmem:[#allocation7 + $0x258] sm:$0xff]
        %v1735 = vld [vmem:[#allocation7 + $0x260] sm:$0xff]
        %v1736 = vld [vmem:[#allocation7 + $0x268] sm:$0xff]
        %v1737 = vld [vmem:[#allocation7 + $0x270] sm:$0xff]
        %v1738 = vld [vmem:[#allocation7 + $0x278] sm:$0xff]
        %v1739 = vld [vmem:[#allocation7 + $0x280] sm:$0xff]
        %v1740 = vld [vmem:[#allocation7 + $0x288] sm:$0xff]
        %v1741 = vld [vmem:[#allocation7 + $0x290] sm:$0xff]
        %v1742 = vld [vmem:[#allocation7 + $0x298] sm:$0xff]
        %v1743 = vld [vmem:[#allocation7 + $0x2a0] sm:$0xff]
        %v1744 = vld [vmem:[#allocation7 + $0x2a8] sm:$0xff]
        %v1745 = vld [vmem:[#allocation7 + $0x2b0] sm:$0xff]
        %v1746 = vld [vmem:[#allocation7 + $0x2b8] sm:$0xff]
        %v1747 = vld [vmem:[#allocation7 + $0x2c0] sm:$0xff]
        %v1748 = vld [vmem:[#allocation7 + $0x2c8] sm:$0xff]
        %v1749 = vld [vmem:[#allocation7 + $0x2d0] sm:$0xff]
        %v1750 = vld [vmem:[#allocation7 + $0x2d8] sm:$0xff]
        %v1751 = vld [vmem:[#allocation7 + $0x2e0] sm:$0xff]
        %v1752 = vld [vmem:[#allocation7 + $0x2e8] sm:$0xff]
        %v1753 = vld [vmem:[#allocation7 + $0x2f0] sm:$0xff]
        %v1754 = vld [vmem:[#allocation7 + $0x2f8] sm:$0xff]
        %v1755 = vld [vmem:[#allocation7 + $0x300] sm:$0xff]
        %v1756 = vld [vmem:[#allocation7 + $0x308] sm:$0xff]
        %v1757 = vld [vmem:[#allocation7 + $0x310] sm:$0xff]
        %v1758 = vld [vmem:[#allocation7 + $0x318] sm:$0xff]
        %v1759 = vld [vmem:[#allocation7 + $0x320] sm:$0xff]
        %v1760 = vld [vmem:[#allocation7 + $0x328] sm:$0xff]
        %v1761 = vld [vmem:[#allocation7 + $0x330] sm:$0xff]
        %v1762 = vld [vmem:[#allocation7 + $0x338] sm:$0xff]
        %v1763 = vld [vmem:[#allocation7 + $0x340] sm:$0xff]
        %v1764 = vld [vmem:[#allocation7 + $0x348] sm:$0xff]
        %v1765 = vld [vmem:[#allocation7 + $0x350] sm:$0xff]
        %v1766 = vld [vmem:[#allocation7 + $0x358] sm:$0xff]
        %v1767 = vld [vmem:[#allocation7 + $0x360] sm:$0xff]
        %v1768 = vld [vmem:[#allocation7 + $0x368] sm:$0xff]
        %v1769 = vld [vmem:[#allocation7 + $0x370] sm:$0xff]
        %v1770 = vld [vmem:[#allocation7 + $0x378] sm:$0xff]
        %v1771 = vld [vmem:[#allocation7 + $0x380] sm:$0xff]
        %v1772 = vld [vmem:[#allocation7 + $0x388] sm:$0xff]
        %v1773 = vld [vmem:[#allocation7 + $0x390] sm:$0xff]
        %v1774 = vld [vmem:[#allocation7 + $0x398] sm:$0xff]
        %v1775 = vld [vmem:[#allocation7 + $0x3a0] sm:$0xff]
        %v1776 = vld [vmem:[#allocation7 + $0x3a8] sm:$0xff]
        %v1777 = vld [vmem:[#allocation7 + $0x3b0] sm:$0xff]
        %v1778 = vld [vmem:[#allocation7 + $0x3b8] sm:$0xff]
        %v1779 = vld [vmem:[#allocation7 + $0x3c0] sm:$0xff]
        %v1780 = vld [vmem:[#allocation7 + $0x3c8] sm:$0xff]
        %v1781 = vld [vmem:[#allocation7 + $0x3d0] sm:$0xff]
        %v1782 = vld [vmem:[#allocation7 + $0x3d8] sm:$0xff]
        %v1783 = vld [vmem:[#allocation7 + $0x3e0] sm:$0xff]
        %v1784 = vld [vmem:[#allocation7 + $0x3e8] sm:$0xff]
        %v1785 = vld [vmem:[#allocation7 + $0x3f0] sm:$0xff]
        %v1786 = vld [vmem:[#allocation7 + $0x3f8] sm:$0xff]
        %v1787 = vld [vmem:[#allocation9] sm:$0xf]
        %v1789 = vlaneseq
        %v1790 = vshrl.u32 %v1789, 7
        %v1791 = vsub.s32 0, %v1790
        %v1792 = vrot.slane %v1787, %v1791
        %v1793 = vlaneseq
        %v1794 = vshrl.u32 %v1793, 7
        %v1795 = vsub.s32 1, %v1794
        %v1796 = vrot.slane %v1787, %v1795
        %v1797 = vlaneseq
        %v1798 = vshrl.u32 %v1797, 7
        %v1799 = vsub.s32 2, %v1798
        %v1800 = vrot.slane %v1787, %v1799
        %v1801 = vlaneseq
        %v1802 = vshrl.u32 %v1801, 7
        %v1803 = vsub.s32 3, %v1802
        %v1804 = vrot.slane %v1787, %v1803
        %1809 = vmatprep.subr.mxu0 %v1660
        %1810 = vmatpush1.msra.mxu0 %v1659
        %1811 = vmatprep.subr.mxu0 %v1664
        %1812 = vmatpush1.msra.mxu0 %v1663
        %1813 = vmatprep.subr.mxu0 %v1668
        %1814 = vmatpush1.msra.mxu0 %v1667
        %1815 = vmatprep.subr.mxu0 %v1672
        %1816 = vmatpush1.msra.mxu0 %v1671
        %1817 = vmatprep.subr.mxu0 %v1676
        %1818 = vmatpush1.msra.mxu0 %v1675
        %1819 = vmatprep.subr.mxu0 %v1680
        %1820 = vmatpush1.msra.mxu0 %v1679
        %1821 = vmatprep.subr.mxu0 %v1684
        %1822 = vmatpush1.msra.mxu0 %v1683
        %1823 = vmatprep.subr.mxu0 %v1688
        %1824 = vmatpush1.msra.mxu0 %v1687
        %1825 = vmatprep.subr.mxu0 %v1692
        %1826 = vmatpush1.msra.mxu0 %v1691
        %1827 = vmatprep.subr.mxu0 %v1696
        %1828 = vmatpush1.msra.mxu0 %v1695
        %1829 = vmatprep.subr.mxu0 %v1700
        %1830 = vmatpush1.msra.mxu0 %v1699
        %1831 = vmatprep.subr.mxu0 %v1704
        %1832 = vmatpush1.msra.mxu0 %v1703
        %1833 = vmatprep.subr.mxu0 %v1708
        %1834 = vmatpush1.msra.mxu0 %v1707
        %1835 = vmatprep.subr.mxu0 %v1712
        %1836 = vmatpush1.msra.mxu0 %v1711
        %1837 = vmatprep.subr.mxu0 %v1716
        %1838 = vmatpush1.msra.mxu0 %v1715
        %1839 = vmatprep.subr.mxu0 %v1720
        %1840 = vmatpush1.msra.mxu0 %v1719
        %1841 = vmatprep.subr.mxu0 %v1724
        %1842 = vmatpush1.msra.mxu0 %v1723
        %1843 = vmatprep.subr.mxu0 %v1728
        %1844 = vmatpush1.msra.mxu0 %v1727
        %1845 = vmatprep.subr.mxu0 %v1732
        %1846 = vmatpush1.msra.mxu0 %v1731
        %1847 = vmatprep.subr.mxu0 %v1736
        %1848 = vmatpush1.msra.mxu0 %v1735
        %1849 = vmatprep.subr.mxu0 %v1740
        %1850 = vmatpush1.msra.mxu0 %v1739
        %1851 = vmatprep.subr.mxu0 %v1744
        %1852 = vmatpush1.msra.mxu0 %v1743
        %1853 = vmatprep.subr.mxu0 %v1748
        %1854 = vmatpush1.msra.mxu0 %v1747
        %1855 = vmatprep.subr.mxu0 %v1752
        %1856 = vmatpush1.msra.mxu0 %v1751
        %1857 = vmatprep.subr.mxu0 %v1756
        %1858 = vmatpush1.msra.mxu0 %v1755
        %1859 = vmatprep.subr.mxu0 %v1760
        %1860 = vmatpush1.msra.mxu0 %v1759
        %1861 = vmatprep.subr.mxu0 %v1764
        %1862 = vmatpush1.msra.mxu0 %v1763
        %1863 = vmatprep.subr.mxu0 %v1768
        %1864 = vmatpush1.msra.mxu0 %v1767
        %1865 = vmatprep.subr.mxu0 %v1772
        %1866 = vmatpush1.msra.mxu0 %v1771
        %1867 = vmatprep.subr.mxu0 %v1776
        %1868 = vmatpush1.msra.mxu0 %v1775
        %1869 = vmatprep.subr.mxu0 %v1780
        %1870 = vmatpush1.msra.mxu0 %v1779
        %1871 = vmatprep.subr.mxu0 %v1784
        %1872 = vmatpush1.msra.mxu0 %v1783
        %1873 = vmatprep.mubr.f32.mxu0 %v1657
        %1874 = vmatmul.mubr.f32.gmra.mrb[0].mxu0 %v1656
        %v1875 = vpop.f32.mrb[0].mxu0
        %v1876 = vadd.f32 %v1792, %v1875
        %v1877 = vpop.f32.mrb[0].mxu0
        %v1878 = vadd.f32 %v1796, %v1877
        %1879 = vdwg.mxu0
        %1880 = vmatprep.subr.mxu0 %v1662
        %1881 = vmatpush1.msra.mxu0 %v1661
        %1882 = vmatprep.subr.mxu0 %v1666
        %1883 = vmatpush1.msra.mxu0 %v1665
        %1884 = vmatprep.subr.mxu0 %v1670
        %1885 = vmatpush1.msra.mxu0 %v1669
        %1886 = vmatprep.subr.mxu0 %v1674
        %1887 = vmatpush1.msra.mxu0 %v1673
        %1888 = vmatprep.subr.mxu0 %v1678
        %1889 = vmatpush1.msra.mxu0 %v1677
        %1890 = vmatprep.subr.mxu0 %v1682
        %1891 = vmatpush1.msra.mxu0 %v1681
        %1892 = vmatprep.subr.mxu0 %v1686
        %1893 = vmatpush1.msra.mxu0 %v1685
        %1894 = vmatprep.subr.mxu0 %v1690
        %1895 = vmatpush1.msra.mxu0 %v1689
        %1896 = vmatprep.subr.mxu0 %v1694
        %1897 = vmatpush1.msra.mxu0 %v1693
        %1898 = vmatprep.subr.mxu0 %v1698
        %1899 = vmatpush1.msra.mxu0 %v1697
        %1900 = vmatprep.subr.mxu0 %v1702
        %1901 = vmatpush1.msra.mxu0 %v1701
        %1902 = vmatprep.subr.mxu0 %v1706
        %1903 = vmatpush1.msra.mxu0 %v1705
        %1904 = vmatprep.subr.mxu0 %v1710
        %1905 = vmatpush1.msra.mxu0 %v1709
        %1906 = vmatprep.subr.mxu0 %v1714
        %1907 = vmatpush1.msra.mxu0 %v1713
        %1908 = vmatprep.subr.mxu0 %v1718
        %1909 = vmatpush1.msra.mxu0 %v1717
        %1910 = vmatprep.subr.mxu0 %v1722
        %1911 = vmatpush1.msra.mxu0 %v1721
        %1912 = vmatprep.subr.mxu0 %v1726
        %1913 = vmatpush1.msra.mxu0 %v1725
        %1914 = vmatprep.subr.mxu0 %v1730
        %1915 = vmatpush1.msra.mxu0 %v1729
        %1916 = vmatprep.subr.mxu0 %v1734
        %1917 = vmatpush1.msra.mxu0 %v1733
        %1918 = vmatprep.subr.mxu0 %v1738
        %1919 = vmatpush1.msra.mxu0 %v1737
        %1920 = vmatprep.subr.mxu0 %v1742
        %1921 = vmatpush1.msra.mxu0 %v1741
        %1922 = vmatprep.subr.mxu0 %v1746
        %1923 = vmatpush1.msra.mxu0 %v1745
        %1924 = vmatprep.subr.mxu0 %v1750
        %1925 = vmatpush1.msra.mxu0 %v1749
        %1926 = vmatprep.subr.mxu0 %v1754
        %1927 = vmatpush1.msra.mxu0 %v1753
        %1928 = vmatprep.subr.mxu0 %v1758
        %1929 = vmatpush1.msra.mxu0 %v1757
        %1930 = vmatprep.subr.mxu0 %v1762
        %1931 = vmatpush1.msra.mxu0 %v1761
        %1932 = vmatprep.subr.mxu0 %v1766
        %1933 = vmatpush1.msra.mxu0 %v1765
        %1934 = vmatprep.subr.mxu0 %v1770
        %1935 = vmatpush1.msra.mxu0 %v1769
        %1936 = vmatprep.subr.mxu0 %v1774
        %1937 = vmatpush1.msra.mxu0 %v1773
        %1938 = vmatprep.subr.mxu0 %v1778
        %1939 = vmatpush1.msra.mxu0 %v1777
        %1940 = vmatprep.subr.mxu0 %v1782
        %1941 = vmatpush1.msra.mxu0 %v1781
        %1942 = vmatprep.subr.mxu0 %v1786
        %1943 = vmatpush1.msra.mxu0 %v1785
        %1944 = vmatprep.mubr.f32.mxu0 %v1657
        %1945 = vmatmul.mubr.f32.gmra.mrb[0].mxu0 %v1656
        %v1946 = vpop.f32.mrb[0].mxu0
        %v1947 = vadd.f32 %v1800, %v1946
        %v1948 = vpop.f32.mrb[0].mxu0
        %v1949 = vadd.f32 %v1804, %v1948
        %1950 = vdwg.mxu0
        %v1951 = vxor.u32 %v1876, 2147483648
        %v1952 = vmul.f32 %v1951, 1.442695
        %v1953 = vpow.pop %v1952
        %v1954 = vadd.f32 %v1953, 1.0
        %v1955 = vrcp.pop %v1954
        %v1956 = vmul.f32 1.0, %v1955
        %v1957 = vxor.u32 %v1878, 2147483648
        %v1958 = vmul.f32 %v1957, 1.442695
        %v1959 = vpow.pop %v1958
        %v1960 = vadd.f32 %v1959, 1.0
        %v1961 = vrcp.pop %v1960
        %v1962 = vmul.f32 1.0, %v1961
        %v1963 = vtanh.pop %v1947
        %v1964 = vxor.u32 %v1949, 2147483648
        %v1965 = vmul.f32 %v1964, 1.442695
        %v1966 = vpow.pop %v1965
        %v1967 = vadd.f32 %v1966, 1.0
        %v1968 = vrcp.pop %v1967
        %v1969 = vmul.f32 1.0, %v1968
        %v1970 = vmul.f32 %v1962, %v1658
        %v1971 = vmul.f32 %v1956, %v1963
        %v1972 = vadd.f32 %v1970, %v1971
        %v1973 = vtanh.pop %v1972
        %v1974 = vmul.f32 %v1969, %v1973
        %1975 = vst [vmem:[#allocation2] sm:$0xff] %v1974
        %1976 = vst [vmem:[#allocation3] sm:$0xff] %v1972
        %v1977 = vld [vmem:[%s686] sm:$0xff]
        %v1978 = vld [vmem:[%s688] sm:$0xff]
        %v1979 = vld [vmem:[%s690] sm:$0xff]
        %v1980 = vld [vmem:[%s690 + $0x8] sm:$0xff]
        %v1981 = vld [vmem:[%s690 + $0x10] sm:$0xff]
        %v1982 = vld [vmem:[%s690 + $0x18] sm:$0xff]
        %v1983 = vld [vmem:[%s690 + $0x20] sm:$0xff]
        %v1984 = vld [vmem:[%s690 + $0x28] sm:$0xff]
        %v1985 = vld [vmem:[%s690 + $0x30] sm:$0xff]
        %v1986 = vld [vmem:[%s690 + $0x38] sm:$0xff]
        %v1987 = vld [vmem:[%s690 + $0x40] sm:$0xff]
        %v1988 = vld [vmem:[%s690 + $0x48] sm:$0xff]
        %v1989 = vld [vmem:[%s690 + $0x50] sm:$0xff]
        %v1990 = vld [vmem:[%s690 + $0x58] sm:$0xff]
        %v1991 = vld [vmem:[%s690 + $0x60] sm:$0xff]
        %v1992 = vld [vmem:[%s690 + $0x68] sm:$0xff]
        %v1993 = vld [vmem:[%s690 + $0x70] sm:$0xff]
        %v1994 = vld [vmem:[%s690 + $0x78] sm:$0xff]
        %v1995 = vld [vmem:[%s690 + $0x80] sm:$0xff]
        %v1996 = vld [vmem:[%s690 + $0x88] sm:$0xff]
        %v1997 = vld [vmem:[%s690 + $0x90] sm:$0xff]
        %v1998 = vld [vmem:[%s690 + $0x98] sm:$0xff]
        %v1999 = vld [vmem:[%s690 + $0xa0] sm:$0xff]
        %v2000 = vld [vmem:[%s690 + $0xa8] sm:$0xff]
        %v2001 = vld [vmem:[%s690 + $0xb0] sm:$0xff]
        %v2002 = vld [vmem:[%s690 + $0xb8] sm:$0xff]
        %v2003 = vld [vmem:[%s690 + $0xc0] sm:$0xff]
        %v2004 = vld [vmem:[%s690 + $0xc8] sm:$0xff]
        %v2005 = vld [vmem:[%s690 + $0xd0] sm:$0xff]
        %v2006 = vld [vmem:[%s690 + $0xd8] sm:$0xff]
        %v2007 = vld [vmem:[%s690 + $0xe0] sm:$0xff]
        %v2008 = vld [vmem:[%s690 + $0xe8] sm:$0xff]
        %v2009 = vld [vmem:[%s690 + $0xf0] sm:$0xff]
        %v2010 = vld [vmem:[%s690 + $0xf8] sm:$0xff]
        %v2011 = vld [vmem:[%s690 + $0x100] sm:$0xff]
        %v2012 = vld [vmem:[%s690 + $0x108] sm:$0xff]
        %v2013 = vld [vmem:[%s690 + $0x110] sm:$0xff]
        %v2014 = vld [vmem:[%s690 + $0x118] sm:$0xff]
        %v2015 = vld [vmem:[%s690 + $0x120] sm:$0xff]
        %v2016 = vld [vmem:[%s690 + $0x128] sm:$0xff]
        %v2017 = vld [vmem:[%s690 + $0x130] sm:$0xff]
        %v2018 = vld [vmem:[%s690 + $0x138] sm:$0xff]
        %v2019 = vld [vmem:[%s690 + $0x140] sm:$0xff]
        %v2020 = vld [vmem:[%s690 + $0x148] sm:$0xff]
        %v2021 = vld [vmem:[%s690 + $0x150] sm:$0xff]
        %v2022 = vld [vmem:[%s690 + $0x158] sm:$0xff]
        %v2023 = vld [vmem:[%s690 + $0x160] sm:$0xff]
        %v2024 = vld [vmem:[%s690 + $0x168] sm:$0xff]
        %v2025 = vld [vmem:[%s690 + $0x170] sm:$0xff]
        %v2026 = vld [vmem:[%s690 + $0x178] sm:$0xff]
        %v2027 = vld [vmem:[%s690 + $0x180] sm:$0xff]
        %v2028 = vld [vmem:[%s690 + $0x188] sm:$0xff]
        %v2029 = vld [vmem:[%s690 + $0x190] sm:$0xff]
        %v2030 = vld [vmem:[%s690 + $0x198] sm:$0xff]
        %v2031 = vld [vmem:[%s690 + $0x1a0] sm:$0xff]
        %v2032 = vld [vmem:[%s690 + $0x1a8] sm:$0xff]
        %v2033 = vld [vmem:[%s690 + $0x1b0] sm:$0xff]
        %v2034 = vld [vmem:[%s690 + $0x1b8] sm:$0xff]
        %v2035 = vld [vmem:[%s690 + $0x1c0] sm:$0xff]
        %v2036 = vld [vmem:[%s690 + $0x1c8] sm:$0xff]
        %v2037 = vld [vmem:[%s690 + $0x1d0] sm:$0xff]
        %v2038 = vld [vmem:[%s690 + $0x1d8] sm:$0xff]
        %v2039 = vld [vmem:[%s690 + $0x1e0] sm:$0xff]
        %v2040 = vld [vmem:[%s690 + $0x1e8] sm:$0xff]
        %v2041 = vld [vmem:[%s690 + $0x1f0] sm:$0xff]
        %v2042 = vld [vmem:[%s690 + $0x1f8] sm:$0xff]
        %v2043 = vld [vmem:[%s690 + $0x200] sm:$0xff]
        %v2044 = vld [vmem:[%s690 + $0x208] sm:$0xff]
        %v2045 = vld [vmem:[%s690 + $0x210] sm:$0xff]
        %v2046 = vld [vmem:[%s690 + $0x218] sm:$0xff]
        %v2047 = vld [vmem:[%s690 + $0x220] sm:$0xff]
        %v2048 = vld [vmem:[%s690 + $0x228] sm:$0xff]
        %v2049 = vld [vmem:[%s690 + $0x230] sm:$0xff]
        %v2050 = vld [vmem:[%s690 + $0x238] sm:$0xff]
        %v2051 = vld [vmem:[%s690 + $0x240] sm:$0xff]
        %v2052 = vld [vmem:[%s690 + $0x248] sm:$0xff]
        %v2053 = vld [vmem:[%s690 + $0x250] sm:$0xff]
        %v2054 = vld [vmem:[%s690 + $0x258] sm:$0xff]
        %v2055 = vld [vmem:[%s690 + $0x260] sm:$0xff]
        %v2056 = vld [vmem:[%s690 + $0x268] sm:$0xff]
        %v2057 = vld [vmem:[%s690 + $0x270] sm:$0xff]
        %v2058 = vld [vmem:[%s690 + $0x278] sm:$0xff]
        %v2059 = vld [vmem:[%s690 + $0x280] sm:$0xff]
        %v2060 = vld [vmem:[%s690 + $0x288] sm:$0xff]
        %v2061 = vld [vmem:[%s690 + $0x290] sm:$0xff]
        %v2062 = vld [vmem:[%s690 + $0x298] sm:$0xff]
        %v2063 = vld [vmem:[%s690 + $0x2a0] sm:$0xff]
        %v2064 = vld [vmem:[%s690 + $0x2a8] sm:$0xff]
        %v2065 = vld [vmem:[%s690 + $0x2b0] sm:$0xff]
        %v2066 = vld [vmem:[%s690 + $0x2b8] sm:$0xff]
        %v2067 = vld [vmem:[%s690 + $0x2c0] sm:$0xff]
        %v2068 = vld [vmem:[%s690 + $0x2c8] sm:$0xff]
        %v2069 = vld [vmem:[%s690 + $0x2d0] sm:$0xff]
        %v2070 = vld [vmem:[%s690 + $0x2d8] sm:$0xff]
        %v2071 = vld [vmem:[%s690 + $0x2e0] sm:$0xff]
        %v2072 = vld [vmem:[%s690 + $0x2e8] sm:$0xff]
        %v2073 = vld [vmem:[%s690 + $0x2f0] sm:$0xff]
        %v2074 = vld [vmem:[%s690 + $0x2f8] sm:$0xff]
        %v2075 = vld [vmem:[%s690 + $0x300] sm:$0xff]
        %v2076 = vld [vmem:[%s690 + $0x308] sm:$0xff]
        %v2077 = vld [vmem:[%s690 + $0x310] sm:$0xff]
        %v2078 = vld [vmem:[%s690 + $0x318] sm:$0xff]
        %v2079 = vld [vmem:[%s690 + $0x320] sm:$0xff]
        %v2080 = vld [vmem:[%s690 + $0x328] sm:$0xff]
        %v2081 = vld [vmem:[%s690 + $0x330] sm:$0xff]
        %v2082 = vld [vmem:[%s690 + $0x338] sm:$0xff]
        %v2083 = vld [vmem:[%s690 + $0x340] sm:$0xff]
        %v2084 = vld [vmem:[%s690 + $0x348] sm:$0xff]
        %v2085 = vld [vmem:[%s690 + $0x350] sm:$0xff]
        %v2086 = vld [vmem:[%s690 + $0x358] sm:$0xff]
        %v2087 = vld [vmem:[%s690 + $0x360] sm:$0xff]
        %v2088 = vld [vmem:[%s690 + $0x368] sm:$0xff]
        %v2089 = vld [vmem:[%s690 + $0x370] sm:$0xff]
        %v2090 = vld [vmem:[%s690 + $0x378] sm:$0xff]
        %v2091 = vld [vmem:[%s690 + $0x380] sm:$0xff]
        %v2092 = vld [vmem:[%s690 + $0x388] sm:$0xff]
        %v2093 = vld [vmem:[%s690 + $0x390] sm:$0xff]
        %v2094 = vld [vmem:[%s690 + $0x398] sm:$0xff]
        %v2095 = vld [vmem:[%s690 + $0x3a0] sm:$0xff]
        %v2096 = vld [vmem:[%s690 + $0x3a8] sm:$0xff]
        %v2097 = vld [vmem:[%s690 + $0x3b0] sm:$0xff]
        %v2098 = vld [vmem:[%s690 + $0x3b8] sm:$0xff]
        %v2099 = vld [vmem:[%s690 + $0x3c0] sm:$0xff]
        %v2100 = vld [vmem:[%s690 + $0x3c8] sm:$0xff]
        %v2101 = vld [vmem:[%s690 + $0x3d0] sm:$0xff]
        %v2102 = vld [vmem:[%s690 + $0x3d8] sm:$0xff]
        %v2103 = vld [vmem:[%s690 + $0x3e0] sm:$0xff]
        %v2104 = vld [vmem:[%s690 + $0x3e8] sm:$0xff]
        %v2105 = vld [vmem:[%s690 + $0x3f0] sm:$0xff]
        %v2106 = vld [vmem:[%s690 + $0x3f8] sm:$0xff]
        %v2107 = vld [vmem:[%s819] sm:$0xf]
        %v2109 = vlaneseq
        %v2110 = vshrl.u32 %v2109, 7
        %v2111 = vsub.s32 0, %v2110
        %v2112 = vrot.slane %v2107, %v2111
        %v2113 = vlaneseq
        %v2114 = vshrl.u32 %v2113, 7
        %v2115 = vsub.s32 1, %v2114
        %v2116 = vrot.slane %v2107, %v2115
        %v2117 = vlaneseq
        %v2118 = vshrl.u32 %v2117, 7
        %v2119 = vsub.s32 2, %v2118
        %v2120 = vrot.slane %v2107, %v2119
        %v2121 = vlaneseq
        %v2122 = vshrl.u32 %v2121, 7
        %v2123 = vsub.s32 3, %v2122
        %v2124 = vrot.slane %v2107, %v2123
        %2129 = vmatprep.subr.mxu0 %v1980
        %2130 = vmatpush1.msra.mxu0 %v1979
        %2131 = vmatprep.subr.mxu0 %v1984
        %2132 = vmatpush1.msra.mxu0 %v1983
        %2133 = vmatprep.subr.mxu0 %v1988
        %2134 = vmatpush1.msra.mxu0 %v1987
        %2135 = vmatprep.subr.mxu0 %v1992
        %2136 = vmatpush1.msra.mxu0 %v1991
        %2137 = vmatprep.subr.mxu0 %v1996
        %2138 = vmatpush1.msra.mxu0 %v1995
        %2139 = vmatprep.subr.mxu0 %v2000
        %2140 = vmatpush1.msra.mxu0 %v1999
        %2141 = vmatprep.subr.mxu0 %v2004
        %2142 = vmatpush1.msra.mxu0 %v2003
        %2143 = vmatprep.subr.mxu0 %v2008
        %2144 = vmatpush1.msra.mxu0 %v2007
        %2145 = vmatprep.subr.mxu0 %v2012
        %2146 = vmatpush1.msra.mxu0 %v2011
        %2147 = vmatprep.subr.mxu0 %v2016
        %2148 = vmatpush1.msra.mxu0 %v2015
        %2149 = vmatprep.subr.mxu0 %v2020
        %2150 = vmatpush1.msra.mxu0 %v2019
        %2151 = vmatprep.subr.mxu0 %v2024
        %2152 = vmatpush1.msra.mxu0 %v2023
        %2153 = vmatprep.subr.mxu0 %v2028
        %2154 = vmatpush1.msra.mxu0 %v2027
        %2155 = vmatprep.subr.mxu0 %v2032
        %2156 = vmatpush1.msra.mxu0 %v2031
        %2157 = vmatprep.subr.mxu0 %v2036
        %2158 = vmatpush1.msra.mxu0 %v2035
        %2159 = vmatprep.subr.mxu0 %v2040
        %2160 = vmatpush1.msra.mxu0 %v2039
        %2161 = vmatprep.subr.mxu0 %v2044
        %2162 = vmatpush1.msra.mxu0 %v2043
        %2163 = vmatprep.subr.mxu0 %v2048
        %2164 = vmatpush1.msra.mxu0 %v2047
        %2165 = vmatprep.subr.mxu0 %v2052
        %2166 = vmatpush1.msra.mxu0 %v2051
        %2167 = vmatprep.subr.mxu0 %v2056
        %2168 = vmatpush1.msra.mxu0 %v2055
        %2169 = vmatprep.subr.mxu0 %v2060
        %2170 = vmatpush1.msra.mxu0 %v2059
        %2171 = vmatprep.subr.mxu0 %v2064
        %2172 = vmatpush1.msra.mxu0 %v2063
        %2173 = vmatprep.subr.mxu0 %v2068
        %2174 = vmatpush1.msra.mxu0 %v2067
        %2175 = vmatprep.subr.mxu0 %v2072
        %2176 = vmatpush1.msra.mxu0 %v2071
        %2177 = vmatprep.subr.mxu0 %v2076
        %2178 = vmatpush1.msra.mxu0 %v2075
        %2179 = vmatprep.subr.mxu0 %v2080
        %2180 = vmatpush1.msra.mxu0 %v2079
        %2181 = vmatprep.subr.mxu0 %v2084
        %2182 = vmatpush1.msra.mxu0 %v2083
        %2183 = vmatprep.subr.mxu0 %v2088
        %2184 = vmatpush1.msra.mxu0 %v2087
        %2185 = vmatprep.subr.mxu0 %v2092
        %2186 = vmatpush1.msra.mxu0 %v2091
        %2187 = vmatprep.subr.mxu0 %v2096
        %2188 = vmatpush1.msra.mxu0 %v2095
        %2189 = vmatprep.subr.mxu0 %v2100
        %2190 = vmatpush1.msra.mxu0 %v2099
        %2191 = vmatprep.subr.mxu0 %v2104
        %2192 = vmatpush1.msra.mxu0 %v2103
        %2193 = vmatprep.mubr.f32.mxu0 %v1977
        %2194 = vmatmul.mubr.f32.gmra.mrb[0].mxu0 %v1974
        %v2195 = vpop.f32.mrb[0].mxu0
        %v2196 = vadd.f32 %v2112, %v2195
        %v2197 = vpop.f32.mrb[0].mxu0
        %v2198 = vadd.f32 %v2116, %v2197
        %2199 = vdwg.mxu0
        %2200 = vmatprep.subr.mxu0 %v1982
        %2201 = vmatpush1.msra.mxu0 %v1981
        %2202 = vmatprep.subr.mxu0 %v1986
        %2203 = vmatpush1.msra.mxu0 %v1985
        %2204 = vmatprep.subr.mxu0 %v1990
        %2205 = vmatpush1.msra.mxu0 %v1989
        %2206 = vmatprep.subr.mxu0 %v1994
        %2207 = vmatpush1.msra.mxu0 %v1993
        %2208 = vmatprep.subr.mxu0 %v1998
        %2209 = vmatpush1.msra.mxu0 %v1997
        %2210 = vmatprep.subr.mxu0 %v2002
        %2211 = vmatpush1.msra.mxu0 %v2001
        %2212 = vmatprep.subr.mxu0 %v2006
        %2213 = vmatpush1.msra.mxu0 %v2005
        %2214 = vmatprep.subr.mxu0 %v2010
        %2215 = vmatpush1.msra.mxu0 %v2009
        %2216 = vmatprep.subr.mxu0 %v2014
        %2217 = vmatpush1.msra.mxu0 %v2013
        %2218 = vmatprep.subr.mxu0 %v2018
        %2219 = vmatpush1.msra.mxu0 %v2017
        %2220 = vmatprep.subr.mxu0 %v2022
        %2221 = vmatpush1.msra.mxu0 %v2021
        %2222 = vmatprep.subr.mxu0 %v2026
        %2223 = vmatpush1.msra.mxu0 %v2025
        %2224 = vmatprep.subr.mxu0 %v2030
        %2225 = vmatpush1.msra.mxu0 %v2029
        %2226 = vmatprep.subr.mxu0 %v2034
        %2227 = vmatpush1.msra.mxu0 %v2033
        %2228 = vmatprep.subr.mxu0 %v2038
        %2229 = vmatpush1.msra.mxu0 %v2037
        %2230 = vmatprep.subr.mxu0 %v2042
        %2231 = vmatpush1.msra.mxu0 %v2041
        %2232 = vmatprep.subr.mxu0 %v2046
        %2233 = vmatpush1.msra.mxu0 %v2045
        %2234 = vmatprep.subr.mxu0 %v2050
        %2235 = vmatpush1.msra.mxu0 %v2049
        %2236 = vmatprep.subr.mxu0 %v2054
        %2237 = vmatpush1.msra.mxu0 %v2053
        %2238 = vmatprep.subr.mxu0 %v2058
        %2239 = vmatpush1.msra.mxu0 %v2057
        %2240 = vmatprep.subr.mxu0 %v2062
        %2241 = vmatpush1.msra.mxu0 %v2061
        %2242 = vmatprep.subr.mxu0 %v2066
        %2243 = vmatpush1.msra.mxu0 %v2065
        %2244 = vmatprep.subr.mxu0 %v2070
        %2245 = vmatpush1.msra.mxu0 %v2069
        %2246 = vmatprep.subr.mxu0 %v2074
        %2247 = vmatpush1.msra.mxu0 %v2073
        %2248 = vmatprep.subr.mxu0 %v2078
        %2249 = vmatpush1.msra.mxu0 %v2077
        %2250 = vmatprep.subr.mxu0 %v2082
        %2251 = vmatpush1.msra.mxu0 %v2081
        %2252 = vmatprep.subr.mxu0 %v2086
        %2253 = vmatpush1.msra.mxu0 %v2085
        %2254 = vmatprep.subr.mxu0 %v2090
        %2255 = vmatpush1.msra.mxu0 %v2089
        %2256 = vmatprep.subr.mxu0 %v2094
        %2257 = vmatpush1.msra.mxu0 %v2093
        %2258 = vmatprep.subr.mxu0 %v2098
        %2259 = vmatpush1.msra.mxu0 %v2097
        %2260 = vmatprep.subr.mxu0 %v2102
        %2261 = vmatpush1.msra.mxu0 %v2101
        %2262 = vmatprep.subr.mxu0 %v2106
        %2263 = vmatpush1.msra.mxu0 %v2105
        %2264 = vmatprep.mubr.f32.mxu0 %v1977
        %2265 = vmatmul.mubr.f32.gmra.mrb[0].mxu0 %v1974
        %v2266 = vpop.f32.mrb[0].mxu0
        %v2267 = vadd.f32 %v2120, %v2266
        %v2268 = vpop.f32.mrb[0].mxu0
        %v2269 = vadd.f32 %v2124, %v2268
        %2270 = vdwg.mxu0
        %v2271 = vxor.u32 %v2196, 2147483648
        %v2272 = vmul.f32 %v2271, 1.442695
        %v2273 = vpow.pop %v2272
        %v2274 = vadd.f32 %v2273, 1.0
        %v2275 = vrcp.pop %v2274
        %v2276 = vmul.f32 1.0, %v2275
        %v2277 = vxor.u32 %v2198, 2147483648
        %v2278 = vmul.f32 %v2277, 1.442695
        %v2279 = vpow.pop %v2278
        %v2280 = vadd.f32 %v2279, 1.0
        %v2281 = vrcp.pop %v2280
        %v2282 = vmul.f32 1.0, %v2281
        %v2283 = vtanh.pop %v2267
        %v2284 = vxor.u32 %v2269, 2147483648
        %v2285 = vmul.f32 %v2284, 1.442695
        %v2286 = vpow.pop %v2285
        %v2287 = vadd.f32 %v2286, 1.0
        %v2288 = vrcp.pop %v2287
        %v2289 = vmul.f32 1.0, %v2288
        %v2290 = vmul.f32 %v2282, %v1978
        %v2291 = vmul.f32 %v2276, %v2283
        %v2292 = vadd.f32 %v2290, %v2291
        %v2293 = vtanh.pop %v2292
        %v2294 = vmul.f32 %v2289, %v2293
        %2295 = vst [vmem:[%s686] sm:$0xff] %v2294
        %2296 = vst [vmem:[%s688] sm:$0xff] %v2292
        %s2297 = scalar_lea.vmem %s346, 16 [#allocation13]
        %2298 = vst [vmem:[%s2297] sm:$0xff] %v2294
        %s2299 = scalar_lea.vmem %s304, 24 [#allocation4]
        %v2300 = vld [vmem:[%s2299] sm:$0xff]
        %v2301 = vld [vmem:[#allocation2] sm:$0xff]
        %v2302 = vld [vmem:[#allocation3] sm:$0xff]
        %v2303 = vld [vmem:[#allocation7] sm:$0xff]
        %v2304 = vld [vmem:[#allocation7 + $0x8] sm:$0xff]
        %v2305 = vld [vmem:[#allocation7 + $0x10] sm:$0xff]
        %v2306 = vld [vmem:[#allocation7 + $0x18] sm:$0xff]
        %v2307 = vld [vmem:[#allocation7 + $0x20] sm:$0xff]
        %v2308 = vld [vmem:[#allocation7 + $0x28] sm:$0xff]
        %v2309 = vld [vmem:[#allocation7 + $0x30] sm:$0xff]
        %v2310 = vld [vmem:[#allocation7 + $0x38] sm:$0xff]
        %v2311 = vld [vmem:[#allocation7 + $0x40] sm:$0xff]
        %v2312 = vld [vmem:[#allocation7 + $0x48] sm:$0xff]
        %v2313 = vld [vmem:[#allocation7 + $0x50] sm:$0xff]
        %v2314 = vld [vmem:[#allocation7 + $0x58] sm:$0xff]
        %v2315 = vld [vmem:[#allocation7 + $0x60] sm:$0xff]
        %v2316 = vld [vmem:[#allocation7 + $0x68] sm:$0xff]
        %v2317 = vld [vmem:[#allocation7 + $0x70] sm:$0xff]
        %v2318 = vld [vmem:[#allocation7 + $0x78] sm:$0xff]
        %v2319 = vld [vmem:[#allocation7 + $0x80] sm:$0xff]
        %v2320 = vld [vmem:[#allocation7 + $0x88] sm:$0xff]
        %v2321 = vld [vmem:[#allocation7 + $0x90] sm:$0xff]
        %v2322 = vld [vmem:[#allocation7 + $0x98] sm:$0xff]
        %v2323 = vld [vmem:[#allocation7 + $0xa0] sm:$0xff]
        %v2324 = vld [vmem:[#allocation7 + $0xa8] sm:$0xff]
        %v2325 = vld [vmem:[#allocation7 + $0xb0] sm:$0xff]
        %v2326 = vld [vmem:[#allocation7 + $0xb8] sm:$0xff]
        %v2327 = vld [vmem:[#allocation7 + $0xc0] sm:$0xff]
        %v2328 = vld [vmem:[#allocation7 + $0xc8] sm:$0xff]
        %v2329 = vld [vmem:[#allocation7 + $0xd0] sm:$0xff]
        %v2330 = vld [vmem:[#allocation7 + $0xd8] sm:$0xff]
        %v2331 = vld [vmem:[#allocation7 + $0xe0] sm:$0xff]
        %v2332 = vld [vmem:[#allocation7 + $0xe8] sm:$0xff]
        %v2333 = vld [vmem:[#allocation7 + $0xf0] sm:$0xff]
        %v2334 = vld [vmem:[#allocation7 + $0xf8] sm:$0xff]
        %v2335 = vld [vmem:[#allocation7 + $0x100] sm:$0xff]
        %v2336 = vld [vmem:[#allocation7 + $0x108] sm:$0xff]
        %v2337 = vld [vmem:[#allocation7 + $0x110] sm:$0xff]
        %v2338 = vld [vmem:[#allocation7 + $0x118] sm:$0xff]
        %v2339 = vld [vmem:[#allocation7 + $0x120] sm:$0xff]
        %v2340 = vld [vmem:[#allocation7 + $0x128] sm:$0xff]
        %v2341 = vld [vmem:[#allocation7 + $0x130] sm:$0xff]
        %v2342 = vld [vmem:[#allocation7 + $0x138] sm:$0xff]
        %v2343 = vld [vmem:[#allocation7 + $0x140] sm:$0xff]
        %v2344 = vld [vmem:[#allocation7 + $0x148] sm:$0xff]
        %v2345 = vld [vmem:[#allocation7 + $0x150] sm:$0xff]
        %v2346 = vld [vmem:[#allocation7 + $0x158] sm:$0xff]
        %v2347 = vld [vmem:[#allocation7 + $0x160] sm:$0xff]
        %v2348 = vld [vmem:[#allocation7 + $0x168] sm:$0xff]
        %v2349 = vld [vmem:[#allocation7 + $0x170] sm:$0xff]
        %v2350 = vld [vmem:[#allocation7 + $0x178] sm:$0xff]
        %v2351 = vld [vmem:[#allocation7 + $0x180] sm:$0xff]
        %v2352 = vld [vmem:[#allocation7 + $0x188] sm:$0xff]
        %v2353 = vld [vmem:[#allocation7 + $0x190] sm:$0xff]
        %v2354 = vld [vmem:[#allocation7 + $0x198] sm:$0xff]
        %v2355 = vld [vmem:[#allocation7 + $0x1a0] sm:$0xff]
        %v2356 = vld [vmem:[#allocation7 + $0x1a8] sm:$0xff]
        %v2357 = vld [vmem:[#allocation7 + $0x1b0] sm:$0xff]
        %v2358 = vld [vmem:[#allocation7 + $0x1b8] sm:$0xff]
        %v2359 = vld [vmem:[#allocation7 + $0x1c0] sm:$0xff]
        %v2360 = vld [vmem:[#allocation7 + $0x1c8] sm:$0xff]
        %v2361 = vld [vmem:[#allocation7 + $0x1d0] sm:$0xff]
        %v2362 = vld [vmem:[#allocation7 + $0x1d8] sm:$0xff]
        %v2363 = vld [vmem:[#allocation7 + $0x1e0] sm:$0xff]
        %v2364 = vld [vmem:[#allocation7 + $0x1e8] sm:$0xff]
        %v2365 = vld [vmem:[#allocation7 + $0x1f0] sm:$0xff]
        %v2366 = vld [vmem:[#allocation7 + $0x1f8] sm:$0xff]
        %v2367 = vld [vmem:[#allocation7 + $0x200] sm:$0xff]
        %v2368 = vld [vmem:[#allocation7 + $0x208] sm:$0xff]
        %v2369 = vld [vmem:[#allocation7 + $0x210] sm:$0xff]
        %v2370 = vld [vmem:[#allocation7 + $0x218] sm:$0xff]
        %v2371 = vld [vmem:[#allocation7 + $0x220] sm:$0xff]
        %v2372 = vld [vmem:[#allocation7 + $0x228] sm:$0xff]
        %v2373 = vld [vmem:[#allocation7 + $0x230] sm:$0xff]
        %v2374 = vld [vmem:[#allocation7 + $0x238] sm:$0xff]
        %v2375 = vld [vmem:[#allocation7 + $0x240] sm:$0xff]
        %v2376 = vld [vmem:[#allocation7 + $0x248] sm:$0xff]
        %v2377 = vld [vmem:[#allocation7 + $0x250] sm:$0xff]
        %v2378 = vld [vmem:[#allocation7 + $0x258] sm:$0xff]
        %v2379 = vld [vmem:[#allocation7 + $0x260] sm:$0xff]
        %v2380 = vld [vmem:[#allocation7 + $0x268] sm:$0xff]
        %v2381 = vld [vmem:[#allocation7 + $0x270] sm:$0xff]
        %v2382 = vld [vmem:[#allocation7 + $0x278] sm:$0xff]
        %v2383 = vld [vmem:[#allocation7 + $0x280] sm:$0xff]
        %v2384 = vld [vmem:[#allocation7 + $0x288] sm:$0xff]
        %v2385 = vld [vmem:[#allocation7 + $0x290] sm:$0xff]
        %v2386 = vld [vmem:[#allocation7 + $0x298] sm:$0xff]
        %v2387 = vld [vmem:[#allocation7 + $0x2a0] sm:$0xff]
        %v2388 = vld [vmem:[#allocation7 + $0x2a8] sm:$0xff]
        %v2389 = vld [vmem:[#allocation7 + $0x2b0] sm:$0xff]
        %v2390 = vld [vmem:[#allocation7 + $0x2b8] sm:$0xff]
        %v2391 = vld [vmem:[#allocation7 + $0x2c0] sm:$0xff]
        %v2392 = vld [vmem:[#allocation7 + $0x2c8] sm:$0xff]
        %v2393 = vld [vmem:[#allocation7 + $0x2d0] sm:$0xff]
        %v2394 = vld [vmem:[#allocation7 + $0x2d8] sm:$0xff]
        %v2395 = vld [vmem:[#allocation7 + $0x2e0] sm:$0xff]
        %v2396 = vld [vmem:[#allocation7 + $0x2e8] sm:$0xff]
        %v2397 = vld [vmem:[#allocation7 + $0x2f0] sm:$0xff]
        %v2398 = vld [vmem:[#allocation7 + $0x2f8] sm:$0xff]
        %v2399 = vld [vmem:[#allocation7 + $0x300] sm:$0xff]
        %v2400 = vld [vmem:[#allocation7 + $0x308] sm:$0xff]
        %v2401 = vld [vmem:[#allocation7 + $0x310] sm:$0xff]
        %v2402 = vld [vmem:[#allocation7 + $0x318] sm:$0xff]
        %v2403 = vld [vmem:[#allocation7 + $0x320] sm:$0xff]
        %v2404 = vld [vmem:[#allocation7 + $0x328] sm:$0xff]
        %v2405 = vld [vmem:[#allocation7 + $0x330] sm:$0xff]
        %v2406 = vld [vmem:[#allocation7 + $0x338] sm:$0xff]
        %v2407 = vld [vmem:[#allocation7 + $0x340] sm:$0xff]
        %v2408 = vld [vmem:[#allocation7 + $0x348] sm:$0xff]
        %v2409 = vld [vmem:[#allocation7 + $0x350] sm:$0xff]
        %v2410 = vld [vmem:[#allocation7 + $0x358] sm:$0xff]
        %v2411 = vld [vmem:[#allocation7 + $0x360] sm:$0xff]
        %v2412 = vld [vmem:[#allocation7 + $0x368] sm:$0xff]
        %v2413 = vld [vmem:[#allocation7 + $0x370] sm:$0xff]
        %v2414 = vld [vmem:[#allocation7 + $0x378] sm:$0xff]
        %v2415 = vld [vmem:[#allocation7 + $0x380] sm:$0xff]
        %v2416 = vld [vmem:[#allocation7 + $0x388] sm:$0xff]
        %v2417 = vld [vmem:[#allocation7 + $0x390] sm:$0xff]
        %v2418 = vld [vmem:[#allocation7 + $0x398] sm:$0xff]
        %v2419 = vld [vmem:[#allocation7 + $0x3a0] sm:$0xff]
        %v2420 = vld [vmem:[#allocation7 + $0x3a8] sm:$0xff]
        %v2421 = vld [vmem:[#allocation7 + $0x3b0] sm:$0xff]
        %v2422 = vld [vmem:[#allocation7 + $0x3b8] sm:$0xff]
        %v2423 = vld [vmem:[#allocation7 + $0x3c0] sm:$0xff]
        %v2424 = vld [vmem:[#allocation7 + $0x3c8] sm:$0xff]
        %v2425 = vld [vmem:[#allocation7 + $0x3d0] sm:$0xff]
        %v2426 = vld [vmem:[#allocation7 + $0x3d8] sm:$0xff]
        %v2427 = vld [vmem:[#allocation7 + $0x3e0] sm:$0xff]
        %v2428 = vld [vmem:[#allocation7 + $0x3e8] sm:$0xff]
        %v2429 = vld [vmem:[#allocation7 + $0x3f0] sm:$0xff]
        %v2430 = vld [vmem:[#allocation7 + $0x3f8] sm:$0xff]
        %v2431 = vld [vmem:[#allocation9] sm:$0xf]
        %v2433 = vlaneseq
        %v2434 = vshrl.u32 %v2433, 7
        %v2435 = vsub.s32 0, %v2434
        %v2436 = vrot.slane %v2431, %v2435
        %v2437 = vlaneseq
        %v2438 = vshrl.u32 %v2437, 7
        %v2439 = vsub.s32 1, %v2438
        %v2440 = vrot.slane %v2431, %v2439
        %v2441 = vlaneseq
        %v2442 = vshrl.u32 %v2441, 7
        %v2443 = vsub.s32 2, %v2442
        %v2444 = vrot.slane %v2431, %v2443
        %v2445 = vlaneseq
        %v2446 = vshrl.u32 %v2445, 7
        %v2447 = vsub.s32 3, %v2446
        %v2448 = vrot.slane %v2431, %v2447
        %2453 = vmatprep.subr.mxu0 %v2304
        %2454 = vmatpush1.msra.mxu0 %v2303
        %2455 = vmatprep.subr.mxu0 %v2308
        %2456 = vmatpush1.msra.mxu0 %v2307
        %2457 = vmatprep.subr.mxu0 %v2312
        %2458 = vmatpush1.msra.mxu0 %v2311
        %2459 = vmatprep.subr.mxu0 %v2316
        %2460 = vmatpush1.msra.mxu0 %v2315
        %2461 = vmatprep.subr.mxu0 %v2320
        %2462 = vmatpush1.msra.mxu0 %v2319
        %2463 = vmatprep.subr.mxu0 %v2324
        %2464 = vmatpush1.msra.mxu0 %v2323
        %2465 = vmatprep.subr.mxu0 %v2328
        %2466 = vmatpush1.msra.mxu0 %v2327
        %2467 = vmatprep.subr.mxu0 %v2332
        %2468 = vmatpush1.msra.mxu0 %v2331
        %2469 = vmatprep.subr.mxu0 %v2336
        %2470 = vmatpush1.msra.mxu0 %v2335
        %2471 = vmatprep.subr.mxu0 %v2340
        %2472 = vmatpush1.msra.mxu0 %v2339
        %2473 = vmatprep.subr.mxu0 %v2344
        %2474 = vmatpush1.msra.mxu0 %v2343
        %2475 = vmatprep.subr.mxu0 %v2348
        %2476 = vmatpush1.msra.mxu0 %v2347
        %2477 = vmatprep.subr.mxu0 %v2352
        %2478 = vmatpush1.msra.mxu0 %v2351
        %2479 = vmatprep.subr.mxu0 %v2356
        %2480 = vmatpush1.msra.mxu0 %v2355
        %2481 = vmatprep.subr.mxu0 %v2360
        %2482 = vmatpush1.msra.mxu0 %v2359
        %2483 = vmatprep.subr.mxu0 %v2364
        %2484 = vmatpush1.msra.mxu0 %v2363
        %2485 = vmatprep.subr.mxu0 %v2368
        %2486 = vmatpush1.msra.mxu0 %v2367
        %2487 = vmatprep.subr.mxu0 %v2372
        %2488 = vmatpush1.msra.mxu0 %v2371
        %2489 = vmatprep.subr.mxu0 %v2376
        %2490 = vmatpush1.msra.mxu0 %v2375
        %2491 = vmatprep.subr.mxu0 %v2380
        %2492 = vmatpush1.msra.mxu0 %v2379
        %2493 = vmatprep.subr.mxu0 %v2384
        %2494 = vmatpush1.msra.mxu0 %v2383
        %2495 = vmatprep.subr.mxu0 %v2388
        %2496 = vmatpush1.msra.mxu0 %v2387
        %2497 = vmatprep.subr.mxu0 %v2392
        %2498 = vmatpush1.msra.mxu0 %v2391
        %2499 = vmatprep.subr.mxu0 %v2396
        %2500 = vmatpush1.msra.mxu0 %v2395
        %2501 = vmatprep.subr.mxu0 %v2400
        %2502 = vmatpush1.msra.mxu0 %v2399
        %2503 = vmatprep.subr.mxu0 %v2404
        %2504 = vmatpush1.msra.mxu0 %v2403
        %2505 = vmatprep.subr.mxu0 %v2408
        %2506 = vmatpush1.msra.mxu0 %v2407
        %2507 = vmatprep.subr.mxu0 %v2412
        %2508 = vmatpush1.msra.mxu0 %v2411
        %2509 = vmatprep.subr.mxu0 %v2416
        %2510 = vmatpush1.msra.mxu0 %v2415
        %2511 = vmatprep.subr.mxu0 %v2420
        %2512 = vmatpush1.msra.mxu0 %v2419
        %2513 = vmatprep.subr.mxu0 %v2424
        %2514 = vmatpush1.msra.mxu0 %v2423
        %2515 = vmatprep.subr.mxu0 %v2428
        %2516 = vmatpush1.msra.mxu0 %v2427
        %2517 = vmatprep.mubr.f32.mxu0 %v2301
        %2518 = vmatmul.mubr.f32.gmra.mrb[0].mxu0 %v2300
        %v2519 = vpop.f32.mrb[0].mxu0
        %v2520 = vadd.f32 %v2436, %v2519
        %v2521 = vpop.f32.mrb[0].mxu0
        %v2522 = vadd.f32 %v2440, %v2521
        %2523 = vdwg.mxu0
        %2524 = vmatprep.subr.mxu0 %v2306
        %2525 = vmatpush1.msra.mxu0 %v2305
        %2526 = vmatprep.subr.mxu0 %v2310
        %2527 = vmatpush1.msra.mxu0 %v2309
        %2528 = vmatprep.subr.mxu0 %v2314
        %2529 = vmatpush1.msra.mxu0 %v2313
        %2530 = vmatprep.subr.mxu0 %v2318
        %2531 = vmatpush1.msra.mxu0 %v2317
        %2532 = vmatprep.subr.mxu0 %v2322
        %2533 = vmatpush1.msra.mxu0 %v2321
        %2534 = vmatprep.subr.mxu0 %v2326
        %2535 = vmatpush1.msra.mxu0 %v2325
        %2536 = vmatprep.subr.mxu0 %v2330
        %2537 = vmatpush1.msra.mxu0 %v2329
        %2538 = vmatprep.subr.mxu0 %v2334
        %2539 = vmatpush1.msra.mxu0 %v2333
        %2540 = vmatprep.subr.mxu0 %v2338
        %2541 = vmatpush1.msra.mxu0 %v2337
        %2542 = vmatprep.subr.mxu0 %v2342
        %2543 = vmatpush1.msra.mxu0 %v2341
        %2544 = vmatprep.subr.mxu0 %v2346
        %2545 = vmatpush1.msra.mxu0 %v2345
        %2546 = vmatprep.subr.mxu0 %v2350
        %2547 = vmatpush1.msra.mxu0 %v2349
        %2548 = vmatprep.subr.mxu0 %v2354
        %2549 = vmatpush1.msra.mxu0 %v2353
        %2550 = vmatprep.subr.mxu0 %v2358
        %2551 = vmatpush1.msra.mxu0 %v2357
        %2552 = vmatprep.subr.mxu0 %v2362
        %2553 = vmatpush1.msra.mxu0 %v2361
        %2554 = vmatprep.subr.mxu0 %v2366
        %2555 = vmatpush1.msra.mxu0 %v2365
        %2556 = vmatprep.subr.mxu0 %v2370
        %2557 = vmatpush1.msra.mxu0 %v2369
        %2558 = vmatprep.subr.mxu0 %v2374
        %2559 = vmatpush1.msra.mxu0 %v2373
        %2560 = vmatprep.subr.mxu0 %v2378
        %2561 = vmatpush1.msra.mxu0 %v2377
        %2562 = vmatprep.subr.mxu0 %v2382
        %2563 = vmatpush1.msra.mxu0 %v2381
        %2564 = vmatprep.subr.mxu0 %v2386
        %2565 = vmatpush1.msra.mxu0 %v2385
        %2566 = vmatprep.subr.mxu0 %v2390
        %2567 = vmatpush1.msra.mxu0 %v2389
        %2568 = vmatprep.subr.mxu0 %v2394
        %2569 = vmatpush1.msra.mxu0 %v2393
        %2570 = vmatprep.subr.mxu0 %v2398
        %2571 = vmatpush1.msra.mxu0 %v2397
        %2572 = vmatprep.subr.mxu0 %v2402
        %2573 = vmatpush1.msra.mxu0 %v2401
        %2574 = vmatprep.subr.mxu0 %v2406
        %2575 = vmatpush1.msra.mxu0 %v2405
        %2576 = vmatprep.subr.mxu0 %v2410
        %2577 = vmatpush1.msra.mxu0 %v2409
        %2578 = vmatprep.subr.mxu0 %v2414
        %2579 = vmatpush1.msra.mxu0 %v2413
        %2580 = vmatprep.subr.mxu0 %v2418
        %2581 = vmatpush1.msra.mxu0 %v2417
        %2582 = vmatprep.subr.mxu0 %v2422
        %2583 = vmatpush1.msra.mxu0 %v2421
        %2584 = vmatprep.subr.mxu0 %v2426
        %2585 = vmatpush1.msra.mxu0 %v2425
        %2586 = vmatprep.subr.mxu0 %v2430
        %2587 = vmatpush1.msra.mxu0 %v2429
        %2588 = vmatprep.mubr.f32.mxu0 %v2301
        %2589 = vmatmul.mubr.f32.gmra.mrb[0].mxu0 %v2300
        %v2590 = vpop.f32.mrb[0].mxu0
        %v2591 = vadd.f32 %v2444, %v2590
        %v2592 = vpop.f32.mrb[0].mxu0
        %v2593 = vadd.f32 %v2448, %v2592
        %2594 = vdwg.mxu0
        %v2595 = vxor.u32 %v2520, 2147483648
        %v2596 = vmul.f32 %v2595, 1.442695
        %v2597 = vpow.pop %v2596
        %v2598 = vadd.f32 %v2597, 1.0
        %v2599 = vrcp.pop %v2598
        %v2600 = vmul.f32 1.0, %v2599
        %v2601 = vxor.u32 %v2522, 2147483648
        %v2602 = vmul.f32 %v2601, 1.442695
        %v2603 = vpow.pop %v2602
        %v2604 = vadd.f32 %v2603, 1.0
        %v2605 = vrcp.pop %v2604
        %v2606 = vmul.f32 1.0, %v2605
        %v2607 = vtanh.pop %v2591
        %v2608 = vxor.u32 %v2593, 2147483648
        %v2609 = vmul.f32 %v2608, 1.442695
        %v2610 = vpow.pop %v2609
        %v2611 = vadd.f32 %v2610, 1.0
        %v2612 = vrcp.pop %v2611
        %v2613 = vmul.f32 1.0, %v2612
        %v2614 = vmul.f32 %v2606, %v2302
        %v2615 = vmul.f32 %v2600, %v2607
        %v2616 = vadd.f32 %v2614, %v2615
        %v2617 = vtanh.pop %v2616
        %v2618 = vmul.f32 %v2613, %v2617
        %2619 = vst [vmem:[#allocation2] sm:$0xff] %v2618
        %2620 = vst [vmem:[#allocation3] sm:$0xff] %v2616
        %v2621 = vld [vmem:[%s686] sm:$0xff]
        %v2622 = vld [vmem:[%s688] sm:$0xff]
        %v2623 = vld [vmem:[%s690] sm:$0xff]
        %v2624 = vld [vmem:[%s690 + $0x8] sm:$0xff]
        %v2625 = vld [vmem:[%s690 + $0x10] sm:$0xff]
        %v2626 = vld [vmem:[%s690 + $0x18] sm:$0xff]
        %v2627 = vld [vmem:[%s690 + $0x20] sm:$0xff]
        %v2628 = vld [vmem:[%s690 + $0x28] sm:$0xff]
        %v2629 = vld [vmem:[%s690 + $0x30] sm:$0xff]
        %v2630 = vld [vmem:[%s690 + $0x38] sm:$0xff]
        %v2631 = vld [vmem:[%s690 + $0x40] sm:$0xff]
        %v2632 = vld [vmem:[%s690 + $0x48] sm:$0xff]
        %v2633 = vld [vmem:[%s690 + $0x50] sm:$0xff]
        %v2634 = vld [vmem:[%s690 + $0x58] sm:$0xff]
        %v2635 = vld [vmem:[%s690 + $0x60] sm:$0xff]
        %v2636 = vld [vmem:[%s690 + $0x68] sm:$0xff]
        %v2637 = vld [vmem:[%s690 + $0x70] sm:$0xff]
        %v2638 = vld [vmem:[%s690 + $0x78] sm:$0xff]
        %v2639 = vld [vmem:[%s690 + $0x80] sm:$0xff]
        %v2640 = vld [vmem:[%s690 + $0x88] sm:$0xff]
        %v2641 = vld [vmem:[%s690 + $0x90] sm:$0xff]
        %v2642 = vld [vmem:[%s690 + $0x98] sm:$0xff]
        %v2643 = vld [vmem:[%s690 + $0xa0] sm:$0xff]
        %v2644 = vld [vmem:[%s690 + $0xa8] sm:$0xff]
        %v2645 = vld [vmem:[%s690 + $0xb0] sm:$0xff]
        %v2646 = vld [vmem:[%s690 + $0xb8] sm:$0xff]
        %v2647 = vld [vmem:[%s690 + $0xc0] sm:$0xff]
        %v2648 = vld [vmem:[%s690 + $0xc8] sm:$0xff]
        %v2649 = vld [vmem:[%s690 + $0xd0] sm:$0xff]
        %v2650 = vld [vmem:[%s690 + $0xd8] sm:$0xff]
        %v2651 = vld [vmem:[%s690 + $0xe0] sm:$0xff]
        %v2652 = vld [vmem:[%s690 + $0xe8] sm:$0xff]
        %v2653 = vld [vmem:[%s690 + $0xf0] sm:$0xff]
        %v2654 = vld [vmem:[%s690 + $0xf8] sm:$0xff]
        %v2655 = vld [vmem:[%s690 + $0x100] sm:$0xff]
        %v2656 = vld [vmem:[%s690 + $0x108] sm:$0xff]
        %v2657 = vld [vmem:[%s690 + $0x110] sm:$0xff]
        %v2658 = vld [vmem:[%s690 + $0x118] sm:$0xff]
        %v2659 = vld [vmem:[%s690 + $0x120] sm:$0xff]
        %v2660 = vld [vmem:[%s690 + $0x128] sm:$0xff]
        %v2661 = vld [vmem:[%s690 + $0x130] sm:$0xff]
        %v2662 = vld [vmem:[%s690 + $0x138] sm:$0xff]
        %v2663 = vld [vmem:[%s690 + $0x140] sm:$0xff]
        %v2664 = vld [vmem:[%s690 + $0x148] sm:$0xff]
        %v2665 = vld [vmem:[%s690 + $0x150] sm:$0xff]
        %v2666 = vld [vmem:[%s690 + $0x158] sm:$0xff]
        %v2667 = vld [vmem:[%s690 + $0x160] sm:$0xff]
        %v2668 = vld [vmem:[%s690 + $0x168] sm:$0xff]
        %v2669 = vld [vmem:[%s690 + $0x170] sm:$0xff]
        %v2670 = vld [vmem:[%s690 + $0x178] sm:$0xff]
        %v2671 = vld [vmem:[%s690 + $0x180] sm:$0xff]
        %v2672 = vld [vmem:[%s690 + $0x188] sm:$0xff]
        %v2673 = vld [vmem:[%s690 + $0x190] sm:$0xff]
        %v2674 = vld [vmem:[%s690 + $0x198] sm:$0xff]
        %v2675 = vld [vmem:[%s690 + $0x1a0] sm:$0xff]
        %v2676 = vld [vmem:[%s690 + $0x1a8] sm:$0xff]
        %v2677 = vld [vmem:[%s690 + $0x1b0] sm:$0xff]
        %v2678 = vld [vmem:[%s690 + $0x1b8] sm:$0xff]
        %v2679 = vld [vmem:[%s690 + $0x1c0] sm:$0xff]
        %v2680 = vld [vmem:[%s690 + $0x1c8] sm:$0xff]
        %v2681 = vld [vmem:[%s690 + $0x1d0] sm:$0xff]
        %v2682 = vld [vmem:[%s690 + $0x1d8] sm:$0xff]
        %v2683 = vld [vmem:[%s690 + $0x1e0] sm:$0xff]
        %v2684 = vld [vmem:[%s690 + $0x1e8] sm:$0xff]
        %v2685 = vld [vmem:[%s690 + $0x1f0] sm:$0xff]
        %v2686 = vld [vmem:[%s690 + $0x1f8] sm:$0xff]
        %v2687 = vld [vmem:[%s690 + $0x200] sm:$0xff]
        %v2688 = vld [vmem:[%s690 + $0x208] sm:$0xff]
        %v2689 = vld [vmem:[%s690 + $0x210] sm:$0xff]
        %v2690 = vld [vmem:[%s690 + $0x218] sm:$0xff]
        %v2691 = vld [vmem:[%s690 + $0x220] sm:$0xff]
        %v2692 = vld [vmem:[%s690 + $0x228] sm:$0xff]
        %v2693 = vld [vmem:[%s690 + $0x230] sm:$0xff]
        %v2694 = vld [vmem:[%s690 + $0x238] sm:$0xff]
        %v2695 = vld [vmem:[%s690 + $0x240] sm:$0xff]
        %v2696 = vld [vmem:[%s690 + $0x248] sm:$0xff]
        %v2697 = vld [vmem:[%s690 + $0x250] sm:$0xff]
        %v2698 = vld [vmem:[%s690 + $0x258] sm:$0xff]
        %v2699 = vld [vmem:[%s690 + $0x260] sm:$0xff]
        %v2700 = vld [vmem:[%s690 + $0x268] sm:$0xff]
        %v2701 = vld [vmem:[%s690 + $0x270] sm:$0xff]
        %v2702 = vld [vmem:[%s690 + $0x278] sm:$0xff]
        %v2703 = vld [vmem:[%s690 + $0x280] sm:$0xff]
        %v2704 = vld [vmem:[%s690 + $0x288] sm:$0xff]
        %v2705 = vld [vmem:[%s690 + $0x290] sm:$0xff]
        %v2706 = vld [vmem:[%s690 + $0x298] sm:$0xff]
        %v2707 = vld [vmem:[%s690 + $0x2a0] sm:$0xff]
        %v2708 = vld [vmem:[%s690 + $0x2a8] sm:$0xff]
        %v2709 = vld [vmem:[%s690 + $0x2b0] sm:$0xff]
        %v2710 = vld [vmem:[%s690 + $0x2b8] sm:$0xff]
        %v2711 = vld [vmem:[%s690 + $0x2c0] sm:$0xff]
        %v2712 = vld [vmem:[%s690 + $0x2c8] sm:$0xff]
        %v2713 = vld [vmem:[%s690 + $0x2d0] sm:$0xff]
        %v2714 = vld [vmem:[%s690 + $0x2d8] sm:$0xff]
        %v2715 = vld [vmem:[%s690 + $0x2e0] sm:$0xff]
        %v2716 = vld [vmem:[%s690 + $0x2e8] sm:$0xff]
        %v2717 = vld [vmem:[%s690 + $0x2f0] sm:$0xff]
        %v2718 = vld [vmem:[%s690 + $0x2f8] sm:$0xff]
        %v2719 = vld [vmem:[%s690 + $0x300] sm:$0xff]
        %v2720 = vld [vmem:[%s690 + $0x308] sm:$0xff]
        %v2721 = vld [vmem:[%s690 + $0x310] sm:$0xff]
        %v2722 = vld [vmem:[%s690 + $0x318] sm:$0xff]
        %v2723 = vld [vmem:[%s690 + $0x320] sm:$0xff]
        %v2724 = vld [vmem:[%s690 + $0x328] sm:$0xff]
        %v2725 = vld [vmem:[%s690 + $0x330] sm:$0xff]
        %v2726 = vld [vmem:[%s690 + $0x338] sm:$0xff]
        %v2727 = vld [vmem:[%s690 + $0x340] sm:$0xff]
        %v2728 = vld [vmem:[%s690 + $0x348] sm:$0xff]
        %v2729 = vld [vmem:[%s690 + $0x350] sm:$0xff]
        %v2730 = vld [vmem:[%s690 + $0x358] sm:$0xff]
        %v2731 = vld [vmem:[%s690 + $0x360] sm:$0xff]
        %v2732 = vld [vmem:[%s690 + $0x368] sm:$0xff]
        %v2733 = vld [vmem:[%s690 + $0x370] sm:$0xff]
        %v2734 = vld [vmem:[%s690 + $0x378] sm:$0xff]
        %v2735 = vld [vmem:[%s690 + $0x380] sm:$0xff]
        %v2736 = vld [vmem:[%s690 + $0x388] sm:$0xff]
        %v2737 = vld [vmem:[%s690 + $0x390] sm:$0xff]
        %v2738 = vld [vmem:[%s690 + $0x398] sm:$0xff]
        %v2739 = vld [vmem:[%s690 + $0x3a0] sm:$0xff]
        %v2740 = vld [vmem:[%s690 + $0x3a8] sm:$0xff]
        %v2741 = vld [vmem:[%s690 + $0x3b0] sm:$0xff]
        %v2742 = vld [vmem:[%s690 + $0x3b8] sm:$0xff]
        %v2743 = vld [vmem:[%s690 + $0x3c0] sm:$0xff]
        %v2744 = vld [vmem:[%s690 + $0x3c8] sm:$0xff]
        %v2745 = vld [vmem:[%s690 + $0x3d0] sm:$0xff]
        %v2746 = vld [vmem:[%s690 + $0x3d8] sm:$0xff]
        %v2747 = vld [vmem:[%s690 + $0x3e0] sm:$0xff]
        %v2748 = vld [vmem:[%s690 + $0x3e8] sm:$0xff]
        %v2749 = vld [vmem:[%s690 + $0x3f0] sm:$0xff]
        %v2750 = vld [vmem:[%s690 + $0x3f8] sm:$0xff]
        %v2751 = vld [vmem:[%s819] sm:$0xf]
        %v2753 = vlaneseq
        %v2754 = vshrl.u32 %v2753, 7
        %v2755 = vsub.s32 0, %v2754
        %v2756 = vrot.slane %v2751, %v2755
        %v2757 = vlaneseq
        %v2758 = vshrl.u32 %v2757, 7
        %v2759 = vsub.s32 1, %v2758
        %v2760 = vrot.slane %v2751, %v2759
        %v2761 = vlaneseq
        %v2762 = vshrl.u32 %v2761, 7
        %v2763 = vsub.s32 2, %v2762
        %v2764 = vrot.slane %v2751, %v2763
        %v2765 = vlaneseq
        %v2766 = vshrl.u32 %v2765, 7
        %v2767 = vsub.s32 3, %v2766
        %v2768 = vrot.slane %v2751, %v2767
        %2773 = vmatprep.subr.mxu0 %v2624
        %2774 = vmatpush1.msra.mxu0 %v2623
        %2775 = vmatprep.subr.mxu0 %v2628
        %2776 = vmatpush1.msra.mxu0 %v2627
        %2777 = vmatprep.subr.mxu0 %v2632
        %2778 = vmatpush1.msra.mxu0 %v2631
        %2779 = vmatprep.subr.mxu0 %v2636
        %2780 = vmatpush1.msra.mxu0 %v2635
        %2781 = vmatprep.subr.mxu0 %v2640
        %2782 = vmatpush1.msra.mxu0 %v2639
        %2783 = vmatprep.subr.mxu0 %v2644
        %2784 = vmatpush1.msra.mxu0 %v2643
        %2785 = vmatprep.subr.mxu0 %v2648
        %2786 = vmatpush1.msra.mxu0 %v2647
        %2787 = vmatprep.subr.mxu0 %v2652
        %2788 = vmatpush1.msra.mxu0 %v2651
        %2789 = vmatprep.subr.mxu0 %v2656
        %2790 = vmatpush1.msra.mxu0 %v2655
        %2791 = vmatprep.subr.mxu0 %v2660
        %2792 = vmatpush1.msra.mxu0 %v2659
        %2793 = vmatprep.subr.mxu0 %v2664
        %2794 = vmatpush1.msra.mxu0 %v2663
        %2795 = vmatprep.subr.mxu0 %v2668
        %2796 = vmatpush1.msra.mxu0 %v2667
        %2797 = vmatprep.subr.mxu0 %v2672
        %2798 = vmatpush1.msra.mxu0 %v2671
        %2799 = vmatprep.subr.mxu0 %v2676
        %2800 = vmatpush1.msra.mxu0 %v2675
        %2801 = vmatprep.subr.mxu0 %v2680
        %2802 = vmatpush1.msra.mxu0 %v2679
        %2803 = vmatprep.subr.mxu0 %v2684
        %2804 = vmatpush1.msra.mxu0 %v2683
        %2805 = vmatprep.subr.mxu0 %v2688
        %2806 = vmatpush1.msra.mxu0 %v2687
        %2807 = vmatprep.subr.mxu0 %v2692
        %2808 = vmatpush1.msra.mxu0 %v2691
        %2809 = vmatprep.subr.mxu0 %v2696
        %2810 = vmatpush1.msra.mxu0 %v2695
        %2811 = vmatprep.subr.mxu0 %v2700
        %2812 = vmatpush1.msra.mxu0 %v2699
        %2813 = vmatprep.subr.mxu0 %v2704
        %2814 = vmatpush1.msra.mxu0 %v2703
        %2815 = vmatprep.subr.mxu0 %v2708
        %2816 = vmatpush1.msra.mxu0 %v2707
        %2817 = vmatprep.subr.mxu0 %v2712
        %2818 = vmatpush1.msra.mxu0 %v2711
        %2819 = vmatprep.subr.mxu0 %v2716
        %2820 = vmatpush1.msra.mxu0 %v2715
        %2821 = vmatprep.subr.mxu0 %v2720
        %2822 = vmatpush1.msra.mxu0 %v2719
        %2823 = vmatprep.subr.mxu0 %v2724
        %2824 = vmatpush1.msra.mxu0 %v2723
        %2825 = vmatprep.subr.mxu0 %v2728
        %2826 = vmatpush1.msra.mxu0 %v2727
        %2827 = vmatprep.subr.mxu0 %v2732
        %2828 = vmatpush1.msra.mxu0 %v2731
        %2829 = vmatprep.subr.mxu0 %v2736
        %2830 = vmatpush1.msra.mxu0 %v2735
        %2831 = vmatprep.subr.mxu0 %v2740
        %2832 = vmatpush1.msra.mxu0 %v2739
        %2833 = vmatprep.subr.mxu0 %v2744
        %2834 = vmatpush1.msra.mxu0 %v2743
        %2835 = vmatprep.subr.mxu0 %v2748
        %2836 = vmatpush1.msra.mxu0 %v2747
        %2837 = vmatprep.mubr.f32.mxu0 %v2621
        %2838 = vmatmul.mubr.f32.gmra.mrb[0].mxu0 %v2618
        %v2839 = vpop.f32.mrb[0].mxu0
        %v2840 = vadd.f32 %v2756, %v2839
        %v2841 = vpop.f32.mrb[0].mxu0
        %v2842 = vadd.f32 %v2760, %v2841
        %2843 = vdwg.mxu0
        %2844 = vmatprep.subr.mxu0 %v2626
        %2845 = vmatpush1.msra.mxu0 %v2625
        %2846 = vmatprep.subr.mxu0 %v2630
        %2847 = vmatpush1.msra.mxu0 %v2629
        %2848 = vmatprep.subr.mxu0 %v2634
        %2849 = vmatpush1.msra.mxu0 %v2633
        %2850 = vmatprep.subr.mxu0 %v2638
        %2851 = vmatpush1.msra.mxu0 %v2637
        %2852 = vmatprep.subr.mxu0 %v2642
        %2853 = vmatpush1.msra.mxu0 %v2641
        %2854 = vmatprep.subr.mxu0 %v2646
        %2855 = vmatpush1.msra.mxu0 %v2645
        %2856 = vmatprep.subr.mxu0 %v2650
        %2857 = vmatpush1.msra.mxu0 %v2649
        %2858 = vmatprep.subr.mxu0 %v2654
        %2859 = vmatpush1.msra.mxu0 %v2653
        %2860 = vmatprep.subr.mxu0 %v2658
        %2861 = vmatpush1.msra.mxu0 %v2657
        %2862 = vmatprep.subr.mxu0 %v2662
        %2863 = vmatpush1.msra.mxu0 %v2661
        %2864 = vmatprep.subr.mxu0 %v2666
        %2865 = vmatpush1.msra.mxu0 %v2665
        %2866 = vmatprep.subr.mxu0 %v2670
        %2867 = vmatpush1.msra.mxu0 %v2669
        %2868 = vmatprep.subr.mxu0 %v2674
        %2869 = vmatpush1.msra.mxu0 %v2673
        %2870 = vmatprep.subr.mxu0 %v2678
        %2871 = vmatpush1.msra.mxu0 %v2677
        %2872 = vmatprep.subr.mxu0 %v2682
        %2873 = vmatpush1.msra.mxu0 %v2681
        %2874 = vmatprep.subr.mxu0 %v2686
        %2875 = vmatpush1.msra.mxu0 %v2685
        %2876 = vmatprep.subr.mxu0 %v2690
        %2877 = vmatpush1.msra.mxu0 %v2689
        %2878 = vmatprep.subr.mxu0 %v2694
        %2879 = vmatpush1.msra.mxu0 %v2693
        %2880 = vmatprep.subr.mxu0 %v2698
        %2881 = vmatpush1.msra.mxu0 %v2697
        %2882 = vmatprep.subr.mxu0 %v2702
        %2883 = vmatpush1.msra.mxu0 %v2701
        %2884 = vmatprep.subr.mxu0 %v2706
        %2885 = vmatpush1.msra.mxu0 %v2705
        %2886 = vmatprep.subr.mxu0 %v2710
        %2887 = vmatpush1.msra.mxu0 %v2709
        %2888 = vmatprep.subr.mxu0 %v2714
        %2889 = vmatpush1.msra.mxu0 %v2713
        %2890 = vmatprep.subr.mxu0 %v2718
        %2891 = vmatpush1.msra.mxu0 %v2717
        %2892 = vmatprep.subr.mxu0 %v2722
        %2893 = vmatpush1.msra.mxu0 %v2721
        %2894 = vmatprep.subr.mxu0 %v2726
        %2895 = vmatpush1.msra.mxu0 %v2725
        %2896 = vmatprep.subr.mxu0 %v2730
        %2897 = vmatpush1.msra.mxu0 %v2729
        %2898 = vmatprep.subr.mxu0 %v2734
        %2899 = vmatpush1.msra.mxu0 %v2733
        %2900 = vmatprep.subr.mxu0 %v2738
        %2901 = vmatpush1.msra.mxu0 %v2737
        %2902 = vmatprep.subr.mxu0 %v2742
        %2903 = vmatpush1.msra.mxu0 %v2741
        %2904 = vmatprep.subr.mxu0 %v2746
        %2905 = vmatpush1.msra.mxu0 %v2745
        %2906 = vmatprep.subr.mxu0 %v2750
        %2907 = vmatpush1.msra.mxu0 %v2749
        %2908 = vmatprep.mubr.f32.mxu0 %v2621
        %2909 = vmatmul.mubr.f32.gmra.mrb[0].mxu0 %v2618
        %v2910 = vpop.f32.mrb[0].mxu0
        %v2911 = vadd.f32 %v2764, %v2910
        %v2912 = vpop.f32.mrb[0].mxu0
        %v2913 = vadd.f32 %v2768, %v2912
        %2914 = vdwg.mxu0
        %v2915 = vxor.u32 %v2840, 2147483648
        %v2916 = vmul.f32 %v2915, 1.442695
        %v2917 = vpow.pop %v2916
        %v2918 = vadd.f32 %v2917, 1.0
        %v2919 = vrcp.pop %v2918
        %v2920 = vmul.f32 1.0, %v2919
        %v2921 = vxor.u32 %v2842, 2147483648
        %v2922 = vmul.f32 %v2921, 1.442695
        %v2923 = vpow.pop %v2922
        %v2924 = vadd.f32 %v2923, 1.0
        %v2925 = vrcp.pop %v2924
        %v2926 = vmul.f32 1.0, %v2925
        %v2927 = vtanh.pop %v2911
        %v2928 = vxor.u32 %v2913, 2147483648
        %v2929 = vmul.f32 %v2928, 1.442695
        %v2930 = vpow.pop %v2929
        %v2931 = vadd.f32 %v2930, 1.0
        %v2932 = vrcp.pop %v2931
        %v2933 = vmul.f32 1.0, %v2932
        %v2934 = vmul.f32 %v2926, %v2622
        %v2935 = vmul.f32 %v2920, %v2927
        %v2936 = vadd.f32 %v2934, %v2935
        %v2937 = vtanh.pop %v2936
        %v2938 = vmul.f32 %v2933, %v2937
        %2939 = vst [vmem:[%s686] sm:$0xff] %v2938
        %2940 = vst [vmem:[%s688] sm:$0xff] %v2936
        %s2941 = scalar_lea.vmem %s346, 24 [#allocation13]
        %2942 = vst [vmem:[%s2941] sm:$0xff] %v2938
        %s2943 = scalar_lea.vmem %s304, 32 [#allocation4]
        %v2944 = vld [vmem:[%s2943] sm:$0xff]
        %v2945 = vld [vmem:[#allocation2] sm:$0xff]
        %v2946 = vld [vmem:[#allocation3] sm:$0xff]
        %v2947 = vld [vmem:[#allocation7] sm:$0xff]
        %v2948 = vld [vmem:[#allocation7 + $0x8] sm:$0xff]
        %v2949 = vld [vmem:[#allocation7 + $0x10] sm:$0xff]
        %v2950 = vld [vmem:[#allocation7 + $0x18] sm:$0xff]
        %v2951 = vld [vmem:[#allocation7 + $0x20] sm:$0xff]
        %v2952 = vld [vmem:[#allocation7 + $0x28] sm:$0xff]
        %v2953 = vld [vmem:[#allocation7 + $0x30] sm:$0xff]
        %v2954 = vld [vmem:[#allocation7 + $0x38] sm:$0xff]
        %v2955 = vld [vmem:[#allocation7 + $0x40] sm:$0xff]
        %v2956 = vld [vmem:[#allocation7 + $0x48] sm:$0xff]
        %v2957 = vld [vmem:[#allocation7 + $0x50] sm:$0xff]
        %v2958 = vld [vmem:[#allocation7 + $0x58] sm:$0xff]
        %v2959 = vld [vmem:[#allocation7 + $0x60] sm:$0xff]
        %v2960 = vld [vmem:[#allocation7 + $0x68] sm:$0xff]
        %v2961 = vld [vmem:[#allocation7 + $0x70] sm:$0xff]
        %v2962 = vld [vmem:[#allocation7 + $0x78] sm:$0xff]
        %v2963 = vld [vmem:[#allocation7 + $0x80] sm:$0xff]
        %v2964 = vld [vmem:[#allocation7 + $0x88] sm:$0xff]
        %v2965 = vld [vmem:[#allocation7 + $0x90] sm:$0xff]
        %v2966 = vld [vmem:[#allocation7 + $0x98] sm:$0xff]
        %v2967 = vld [vmem:[#allocation7 + $0xa0] sm:$0xff]
        %v2968 = vld [vmem:[#allocation7 + $0xa8] sm:$0xff]
        %v2969 = vld [vmem:[#allocation7 + $0xb0] sm:$0xff]
        %v2970 = vld [vmem:[#allocation7 + $0xb8] sm:$0xff]
        %v2971 = vld [vmem:[#allocation7 + $0xc0] sm:$0xff]
        %v2972 = vld [vmem:[#allocation7 + $0xc8] sm:$0xff]
        %v2973 = vld [vmem:[#allocation7 + $0xd0] sm:$0xff]
        %v2974 = vld [vmem:[#allocation7 + $0xd8] sm:$0xff]
        %v2975 = vld [vmem:[#allocation7 + $0xe0] sm:$0xff]
        %v2976 = vld [vmem:[#allocation7 + $0xe8] sm:$0xff]
        %v2977 = vld [vmem:[#allocation7 + $0xf0] sm:$0xff]
        %v2978 = vld [vmem:[#allocation7 + $0xf8] sm:$0xff]
        %v2979 = vld [vmem:[#allocation7 + $0x100] sm:$0xff]
        %v2980 = vld [vmem:[#allocation7 + $0x108] sm:$0xff]
        %v2981 = vld [vmem:[#allocation7 + $0x110] sm:$0xff]
        %v2982 = vld [vmem:[#allocation7 + $0x118] sm:$0xff]
        %v2983 = vld [vmem:[#allocation7 + $0x120] sm:$0xff]
        %v2984 = vld [vmem:[#allocation7 + $0x128] sm:$0xff]
        %v2985 = vld [vmem:[#allocation7 + $0x130] sm:$0xff]
        %v2986 = vld [vmem:[#allocation7 + $0x138] sm:$0xff]
        %v2987 = vld [vmem:[#allocation7 + $0x140] sm:$0xff]
        %v2988 = vld [vmem:[#allocation7 + $0x148] sm:$0xff]
        %v2989 = vld [vmem:[#allocation7 + $0x150] sm:$0xff]
        %v2990 = vld [vmem:[#allocation7 + $0x158] sm:$0xff]
        %v2991 = vld [vmem:[#allocation7 + $0x160] sm:$0xff]
        %v2992 = vld [vmem:[#allocation7 + $0x168] sm:$0xff]
        %v2993 = vld [vmem:[#allocation7 + $0x170] sm:$0xff]
        %v2994 = vld [vmem:[#allocation7 + $0x178] sm:$0xff]
        %v2995 = vld [vmem:[#allocation7 + $0x180] sm:$0xff]
        %v2996 = vld [vmem:[#allocation7 + $0x188] sm:$0xff]
        %v2997 = vld [vmem:[#allocation7 + $0x190] sm:$0xff]
        %v2998 = vld [vmem:[#allocation7 + $0x198] sm:$0xff]
        %v2999 = vld [vmem:[#allocation7 + $0x1a0] sm:$0xff]
        %v3000 = vld [vmem:[#allocation7 + $0x1a8] sm:$0xff]
        %v3001 = vld [vmem:[#allocation7 + $0x1b0] sm:$0xff]
        %v3002 = vld [vmem:[#allocation7 + $0x1b8] sm:$0xff]
        %v3003 = vld [vmem:[#allocation7 + $0x1c0] sm:$0xff]
        %v3004 = vld [vmem:[#allocation7 + $0x1c8] sm:$0xff]
        %v3005 = vld [vmem:[#allocation7 + $0x1d0] sm:$0xff]
        %v3006 = vld [vmem:[#allocation7 + $0x1d8] sm:$0xff]
        %v3007 = vld [vmem:[#allocation7 + $0x1e0] sm:$0xff]
        %v3008 = vld [vmem:[#allocation7 + $0x1e8] sm:$0xff]
        %v3009 = vld [vmem:[#allocation7 + $0x1f0] sm:$0xff]
        %v3010 = vld [vmem:[#allocation7 + $0x1f8] sm:$0xff]
        %v3011 = vld [vmem:[#allocation7 + $0x200] sm:$0xff]
        %v3012 = vld [vmem:[#allocation7 + $0x208] sm:$0xff]
        %v3013 = vld [vmem:[#allocation7 + $0x210] sm:$0xff]
        %v3014 = vld [vmem:[#allocation7 + $0x218] sm:$0xff]
        %v3015 = vld [vmem:[#allocation7 + $0x220] sm:$0xff]
        %v3016 = vld [vmem:[#allocation7 + $0x228] sm:$0xff]
        %v3017 = vld [vmem:[#allocation7 + $0x230] sm:$0xff]
        %v3018 = vld [vmem:[#allocation7 + $0x238] sm:$0xff]
        %v3019 = vld [vmem:[#allocation7 + $0x240] sm:$0xff]
        %v3020 = vld [vmem:[#allocation7 + $0x248] sm:$0xff]
        %v3021 = vld [vmem:[#allocation7 + $0x250] sm:$0xff]
        %v3022 = vld [vmem:[#allocation7 + $0x258] sm:$0xff]
        %v3023 = vld [vmem:[#allocation7 + $0x260] sm:$0xff]
        %v3024 = vld [vmem:[#allocation7 + $0x268] sm:$0xff]
        %v3025 = vld [vmem:[#allocation7 + $0x270] sm:$0xff]
        %v3026 = vld [vmem:[#allocation7 + $0x278] sm:$0xff]
        %v3027 = vld [vmem:[#allocation7 + $0x280] sm:$0xff]
        %v3028 = vld [vmem:[#allocation7 + $0x288] sm:$0xff]
        %v3029 = vld [vmem:[#allocation7 + $0x290] sm:$0xff]
        %v3030 = vld [vmem:[#allocation7 + $0x298] sm:$0xff]
        %v3031 = vld [vmem:[#allocation7 + $0x2a0] sm:$0xff]
        %v3032 = vld [vmem:[#allocation7 + $0x2a8] sm:$0xff]
        %v3033 = vld [vmem:[#allocation7 + $0x2b0] sm:$0xff]
        %v3034 = vld [vmem:[#allocation7 + $0x2b8] sm:$0xff]
        %v3035 = vld [vmem:[#allocation7 + $0x2c0] sm:$0xff]
        %v3036 = vld [vmem:[#allocation7 + $0x2c8] sm:$0xff]
        %v3037 = vld [vmem:[#allocation7 + $0x2d0] sm:$0xff]
        %v3038 = vld [vmem:[#allocation7 + $0x2d8] sm:$0xff]
        %v3039 = vld [vmem:[#allocation7 + $0x2e0] sm:$0xff]
        %v3040 = vld [vmem:[#allocation7 + $0x2e8] sm:$0xff]
        %v3041 = vld [vmem:[#allocation7 + $0x2f0] sm:$0xff]
        %v3042 = vld [vmem:[#allocation7 + $0x2f8] sm:$0xff]
        %v3043 = vld [vmem:[#allocation7 + $0x300] sm:$0xff]
        %v3044 = vld [vmem:[#allocation7 + $0x308] sm:$0xff]
        %v3045 = vld [vmem:[#allocation7 + $0x310] sm:$0xff]
        %v3046 = vld [vmem:[#allocation7 + $0x318] sm:$0xff]
        %v3047 = vld [vmem:[#allocation7 + $0x320] sm:$0xff]
        %v3048 = vld [vmem:[#allocation7 + $0x328] sm:$0xff]
        %v3049 = vld [vmem:[#allocation7 + $0x330] sm:$0xff]
        %v3050 = vld [vmem:[#allocation7 + $0x338] sm:$0xff]
        %v3051 = vld [vmem:[#allocation7 + $0x340] sm:$0xff]
        %v3052 = vld [vmem:[#allocation7 + $0x348] sm:$0xff]
        %v3053 = vld [vmem:[#allocation7 + $0x350] sm:$0xff]
        %v3054 = vld [vmem:[#allocation7 + $0x358] sm:$0xff]
        %v3055 = vld [vmem:[#allocation7 + $0x360] sm:$0xff]
        %v3056 = vld [vmem:[#allocation7 + $0x368] sm:$0xff]
        %v3057 = vld [vmem:[#allocation7 + $0x370] sm:$0xff]
        %v3058 = vld [vmem:[#allocation7 + $0x378] sm:$0xff]
        %v3059 = vld [vmem:[#allocation7 + $0x380] sm:$0xff]
        %v3060 = vld [vmem:[#allocation7 + $0x388] sm:$0xff]
        %v3061 = vld [vmem:[#allocation7 + $0x390] sm:$0xff]
        %v3062 = vld [vmem:[#allocation7 + $0x398] sm:$0xff]
        %v3063 = vld [vmem:[#allocation7 + $0x3a0] sm:$0xff]
        %v3064 = vld [vmem:[#allocation7 + $0x3a8] sm:$0xff]
        %v3065 = vld [vmem:[#allocation7 + $0x3b0] sm:$0xff]
        %v3066 = vld [vmem:[#allocation7 + $0x3b8] sm:$0xff]
        %v3067 = vld [vmem:[#allocation7 + $0x3c0] sm:$0xff]
        %v3068 = vld [vmem:[#allocation7 + $0x3c8] sm:$0xff]
        %v3069 = vld [vmem:[#allocation7 + $0x3d0] sm:$0xff]
        %v3070 = vld [vmem:[#allocation7 + $0x3d8] sm:$0xff]
        %v3071 = vld [vmem:[#allocation7 + $0x3e0] sm:$0xff]
        %v3072 = vld [vmem:[#allocation7 + $0x3e8] sm:$0xff]
        %v3073 = vld [vmem:[#allocation7 + $0x3f0] sm:$0xff]
        %v3074 = vld [vmem:[#allocation7 + $0x3f8] sm:$0xff]
        %v3075 = vld [vmem:[#allocation9] sm:$0xf]
        %v3077 = vlaneseq
        %v3078 = vshrl.u32 %v3077, 7
        %v3079 = vsub.s32 0, %v3078
        %v3080 = vrot.slane %v3075, %v3079
        %v3081 = vlaneseq
        %v3082 = vshrl.u32 %v3081, 7
        %v3083 = vsub.s32 1, %v3082
        %v3084 = vrot.slane %v3075, %v3083
        %v3085 = vlaneseq
        %v3086 = vshrl.u32 %v3085, 7
        %v3087 = vsub.s32 2, %v3086
        %v3088 = vrot.slane %v3075, %v3087
        %v3089 = vlaneseq
        %v3090 = vshrl.u32 %v3089, 7
        %v3091 = vsub.s32 3, %v3090
        %v3092 = vrot.slane %v3075, %v3091
        %3097 = vmatprep.subr.mxu0 %v2948
        %3098 = vmatpush1.msra.mxu0 %v2947
        %3099 = vmatprep.subr.mxu0 %v2952
        %3100 = vmatpush1.msra.mxu0 %v2951
        %3101 = vmatprep.subr.mxu0 %v2956
        %3102 = vmatpush1.msra.mxu0 %v2955
        %3103 = vmatprep.subr.mxu0 %v2960
        %3104 = vmatpush1.msra.mxu0 %v2959
        %3105 = vmatprep.subr.mxu0 %v2964
        %3106 = vmatpush1.msra.mxu0 %v2963
        %3107 = vmatprep.subr.mxu0 %v2968
        %3108 = vmatpush1.msra.mxu0 %v2967
        %3109 = vmatprep.subr.mxu0 %v2972
        %3110 = vmatpush1.msra.mxu0 %v2971
        %3111 = vmatprep.subr.mxu0 %v2976
        %3112 = vmatpush1.msra.mxu0 %v2975
        %3113 = vmatprep.subr.mxu0 %v2980
        %3114 = vmatpush1.msra.mxu0 %v2979
        %3115 = vmatprep.subr.mxu0 %v2984
        %3116 = vmatpush1.msra.mxu0 %v2983
        %3117 = vmatprep.subr.mxu0 %v2988
        %3118 = vmatpush1.msra.mxu0 %v2987
        %3119 = vmatprep.subr.mxu0 %v2992
        %3120 = vmatpush1.msra.mxu0 %v2991
        %3121 = vmatprep.subr.mxu0 %v2996
        %3122 = vmatpush1.msra.mxu0 %v2995
        %3123 = vmatprep.subr.mxu0 %v3000
        %3124 = vmatpush1.msra.mxu0 %v2999
        %3125 = vmatprep.subr.mxu0 %v3004
        %3126 = vmatpush1.msra.mxu0 %v3003
        %3127 = vmatprep.subr.mxu0 %v3008
        %3128 = vmatpush1.msra.mxu0 %v3007
        %3129 = vmatprep.subr.mxu0 %v3012
        %3130 = vmatpush1.msra.mxu0 %v3011
        %3131 = vmatprep.subr.mxu0 %v3016
        %3132 = vmatpush1.msra.mxu0 %v3015
        %3133 = vmatprep.subr.mxu0 %v3020
        %3134 = vmatpush1.msra.mxu0 %v3019
        %3135 = vmatprep.subr.mxu0 %v3024
        %3136 = vmatpush1.msra.mxu0 %v3023
        %3137 = vmatprep.subr.mxu0 %v3028
        %3138 = vmatpush1.msra.mxu0 %v3027
        %3139 = vmatprep.subr.mxu0 %v3032
        %3140 = vmatpush1.msra.mxu0 %v3031
        %3141 = vmatprep.subr.mxu0 %v3036
        %3142 = vmatpush1.msra.mxu0 %v3035
        %3143 = vmatprep.subr.mxu0 %v3040
        %3144 = vmatpush1.msra.mxu0 %v3039
        %3145 = vmatprep.subr.mxu0 %v3044
        %3146 = vmatpush1.msra.mxu0 %v3043
        %3147 = vmatprep.subr.mxu0 %v3048
        %3148 = vmatpush1.msra.mxu0 %v3047
        %3149 = vmatprep.subr.mxu0 %v3052
        %3150 = vmatpush1.msra.mxu0 %v3051
        %3151 = vmatprep.subr.mxu0 %v3056
        %3152 = vmatpush1.msra.mxu0 %v3055
        %3153 = vmatprep.subr.mxu0 %v3060
        %3154 = vmatpush1.msra.mxu0 %v3059
        %3155 = vmatprep.subr.mxu0 %v3064
        %3156 = vmatpush1.msra.mxu0 %v3063
        %3157 = vmatprep.subr.mxu0 %v3068
        %3158 = vmatpush1.msra.mxu0 %v3067
        %3159 = vmatprep.subr.mxu0 %v3072
        %3160 = vmatpush1.msra.mxu0 %v3071
        %3161 = vmatprep.mubr.f32.mxu0 %v2945
        %3162 = vmatmul.mubr.f32.gmra.mrb[0].mxu0 %v2944
        %v3163 = vpop.f32.mrb[0].mxu0
        %v3164 = vadd.f32 %v3080, %v3163
        %v3165 = vpop.f32.mrb[0].mxu0
        %v3166 = vadd.f32 %v3084, %v3165
        %3167 = vdwg.mxu0
        %3168 = vmatprep.subr.mxu0 %v2950
        %3169 = vmatpush1.msra.mxu0 %v2949
        %3170 = vmatprep.subr.mxu0 %v2954
        %3171 = vmatpush1.msra.mxu0 %v2953
        %3172 = vmatprep.subr.mxu0 %v2958
        %3173 = vmatpush1.msra.mxu0 %v2957
        %3174 = vmatprep.subr.mxu0 %v2962
        %3175 = vmatpush1.msra.mxu0 %v2961
        %3176 = vmatprep.subr.mxu0 %v2966
        %3177 = vmatpush1.msra.mxu0 %v2965
        %3178 = vmatprep.subr.mxu0 %v2970
        %3179 = vmatpush1.msra.mxu0 %v2969
        %3180 = vmatprep.subr.mxu0 %v2974
        %3181 = vmatpush1.msra.mxu0 %v2973
        %3182 = vmatprep.subr.mxu0 %v2978
        %3183 = vmatpush1.msra.mxu0 %v2977
        %3184 = vmatprep.subr.mxu0 %v2982
        %3185 = vmatpush1.msra.mxu0 %v2981
        %3186 = vmatprep.subr.mxu0 %v2986
        %3187 = vmatpush1.msra.mxu0 %v2985
        %3188 = vmatprep.subr.mxu0 %v2990
        %3189 = vmatpush1.msra.mxu0 %v2989
        %3190 = vmatprep.subr.mxu0 %v2994
        %3191 = vmatpush1.msra.mxu0 %v2993
        %3192 = vmatprep.subr.mxu0 %v2998
        %3193 = vmatpush1.msra.mxu0 %v2997
        %3194 = vmatprep.subr.mxu0 %v3002
        %3195 = vmatpush1.msra.mxu0 %v3001
        %3196 = vmatprep.subr.mxu0 %v3006
        %3197 = vmatpush1.msra.mxu0 %v3005
        %3198 = vmatprep.subr.mxu0 %v3010
        %3199 = vmatpush1.msra.mxu0 %v3009
        %3200 = vmatprep.subr.mxu0 %v3014
        %3201 = vmatpush1.msra.mxu0 %v3013
        %3202 = vmatprep.subr.mxu0 %v3018
        %3203 = vmatpush1.msra.mxu0 %v3017
        %3204 = vmatprep.subr.mxu0 %v3022
        %3205 = vmatpush1.msra.mxu0 %v3021
        %3206 = vmatprep.subr.mxu0 %v3026
        %3207 = vmatpush1.msra.mxu0 %v3025
        %3208 = vmatprep.subr.mxu0 %v3030
        %3209 = vmatpush1.msra.mxu0 %v3029
        %3210 = vmatprep.subr.mxu0 %v3034
        %3211 = vmatpush1.msra.mxu0 %v3033
        %3212 = vmatprep.subr.mxu0 %v3038
        %3213 = vmatpush1.msra.mxu0 %v3037
        %3214 = vmatprep.subr.mxu0 %v3042
        %3215 = vmatpush1.msra.mxu0 %v3041
        %3216 = vmatprep.subr.mxu0 %v3046
        %3217 = vmatpush1.msra.mxu0 %v3045
        %3218 = vmatprep.subr.mxu0 %v3050
        %3219 = vmatpush1.msra.mxu0 %v3049
        %3220 = vmatprep.subr.mxu0 %v3054
        %3221 = vmatpush1.msra.mxu0 %v3053
        %3222 = vmatprep.subr.mxu0 %v3058
        %3223 = vmatpush1.msra.mxu0 %v3057
        %3224 = vmatprep.subr.mxu0 %v3062
        %3225 = vmatpush1.msra.mxu0 %v3061
        %3226 = vmatprep.subr.mxu0 %v3066
        %3227 = vmatpush1.msra.mxu0 %v3065
        %3228 = vmatprep.subr.mxu0 %v3070
        %3229 = vmatpush1.msra.mxu0 %v3069
        %3230 = vmatprep.subr.mxu0 %v3074
        %3231 = vmatpush1.msra.mxu0 %v3073
        %3232 = vmatprep.mubr.f32.mxu0 %v2945
        %3233 = vmatmul.mubr.f32.gmra.mrb[0].mxu0 %v2944
        %v3234 = vpop.f32.mrb[0].mxu0
        %v3235 = vadd.f32 %v3088, %v3234
        %v3236 = vpop.f32.mrb[0].mxu0
        %v3237 = vadd.f32 %v3092, %v3236
        %3238 = vdwg.mxu0
        %v3239 = vxor.u32 %v3164, 2147483648
        %v3240 = vmul.f32 %v3239, 1.442695
        %v3241 = vpow.pop %v3240
        %v3242 = vadd.f32 %v3241, 1.0
        %v3243 = vrcp.pop %v3242
        %v3244 = vmul.f32 1.0, %v3243
        %v3245 = vxor.u32 %v3166, 2147483648
        %v3246 = vmul.f32 %v3245, 1.442695
        %v3247 = vpow.pop %v3246
        %v3248 = vadd.f32 %v3247, 1.0
        %v3249 = vrcp.pop %v3248
        %v3250 = vmul.f32 1.0, %v3249
        %v3251 = vtanh.pop %v3235
        %v3252 = vxor.u32 %v3237, 2147483648
        %v3253 = vmul.f32 %v3252, 1.442695
        %v3254 = vpow.pop %v3253
        %v3255 = vadd.f32 %v3254, 1.0
        %v3256 = vrcp.pop %v3255
        %v3257 = vmul.f32 1.0, %v3256
        %v3258 = vmul.f32 %v3250, %v2946
        %v3259 = vmul.f32 %v3244, %v3251
        %v3260 = vadd.f32 %v3258, %v3259
        %v3261 = vtanh.pop %v3260
        %v3262 = vmul.f32 %v3257, %v3261
        %3263 = vst [vmem:[#allocation2] sm:$0xff] %v3262
        %3264 = vst [vmem:[#allocation3] sm:$0xff] %v3260
        %v3265 = vld [vmem:[%s686] sm:$0xff]
        %v3266 = vld [vmem:[%s688] sm:$0xff]
        %v3267 = vld [vmem:[%s690] sm:$0xff]
        %v3268 = vld [vmem:[%s690 + $0x8] sm:$0xff]
        %v3269 = vld [vmem:[%s690 + $0x10] sm:$0xff]
        %v3270 = vld [vmem:[%s690 + $0x18] sm:$0xff]
        %v3271 = vld [vmem:[%s690 + $0x20] sm:$0xff]
        %v3272 = vld [vmem:[%s690 + $0x28] sm:$0xff]
        %v3273 = vld [vmem:[%s690 + $0x30] sm:$0xff]
        %v3274 = vld [vmem:[%s690 + $0x38] sm:$0xff]
        %v3275 = vld [vmem:[%s690 + $0x40] sm:$0xff]
        %v3276 = vld [vmem:[%s690 + $0x48] sm:$0xff]
        %v3277 = vld [vmem:[%s690 + $0x50] sm:$0xff]
        %v3278 = vld [vmem:[%s690 + $0x58] sm:$0xff]
        %v3279 = vld [vmem:[%s690 + $0x60] sm:$0xff]
        %v3280 = vld [vmem:[%s690 + $0x68] sm:$0xff]
        %v3281 = vld [vmem:[%s690 + $0x70] sm:$0xff]
        %v3282 = vld [vmem:[%s690 + $0x78] sm:$0xff]
        %v3283 = vld [vmem:[%s690 + $0x80] sm:$0xff]
        %v3284 = vld [vmem:[%s690 + $0x88] sm:$0xff]
        %v3285 = vld [vmem:[%s690 + $0x90] sm:$0xff]
        %v3286 = vld [vmem:[%s690 + $0x98] sm:$0xff]
        %v3287 = vld [vmem:[%s690 + $0xa0] sm:$0xff]
        %v3288 = vld [vmem:[%s690 + $0xa8] sm:$0xff]
        %v3289 = vld [vmem:[%s690 + $0xb0] sm:$0xff]
        %v3290 = vld [vmem:[%s690 + $0xb8] sm:$0xff]
        %v3291 = vld [vmem:[%s690 + $0xc0] sm:$0xff]
        %v3292 = vld [vmem:[%s690 + $0xc8] sm:$0xff]
        %v3293 = vld [vmem:[%s690 + $0xd0] sm:$0xff]
        %v3294 = vld [vmem:[%s690 + $0xd8] sm:$0xff]
        %v3295 = vld [vmem:[%s690 + $0xe0] sm:$0xff]
        %v3296 = vld [vmem:[%s690 + $0xe8] sm:$0xff]
        %v3297 = vld [vmem:[%s690 + $0xf0] sm:$0xff]
        %v3298 = vld [vmem:[%s690 + $0xf8] sm:$0xff]
        %v3299 = vld [vmem:[%s690 + $0x100] sm:$0xff]
        %v3300 = vld [vmem:[%s690 + $0x108] sm:$0xff]
        %v3301 = vld [vmem:[%s690 + $0x110] sm:$0xff]
        %v3302 = vld [vmem:[%s690 + $0x118] sm:$0xff]
        %v3303 = vld [vmem:[%s690 + $0x120] sm:$0xff]
        %v3304 = vld [vmem:[%s690 + $0x128] sm:$0xff]
        %v3305 = vld [vmem:[%s690 + $0x130] sm:$0xff]
        %v3306 = vld [vmem:[%s690 + $0x138] sm:$0xff]
        %v3307 = vld [vmem:[%s690 + $0x140] sm:$0xff]
        %v3308 = vld [vmem:[%s690 + $0x148] sm:$0xff]
        %v3309 = vld [vmem:[%s690 + $0x150] sm:$0xff]
        %v3310 = vld [vmem:[%s690 + $0x158] sm:$0xff]
        %v3311 = vld [vmem:[%s690 + $0x160] sm:$0xff]
        %v3312 = vld [vmem:[%s690 + $0x168] sm:$0xff]
        %v3313 = vld [vmem:[%s690 + $0x170] sm:$0xff]
        %v3314 = vld [vmem:[%s690 + $0x178] sm:$0xff]
        %v3315 = vld [vmem:[%s690 + $0x180] sm:$0xff]
        %v3316 = vld [vmem:[%s690 + $0x188] sm:$0xff]
        %v3317 = vld [vmem:[%s690 + $0x190] sm:$0xff]
        %v3318 = vld [vmem:[%s690 + $0x198] sm:$0xff]
        %v3319 = vld [vmem:[%s690 + $0x1a0] sm:$0xff]
        %v3320 = vld [vmem:[%s690 + $0x1a8] sm:$0xff]
        %v3321 = vld [vmem:[%s690 + $0x1b0] sm:$0xff]
        %v3322 = vld [vmem:[%s690 + $0x1b8] sm:$0xff]
        %v3323 = vld [vmem:[%s690 + $0x1c0] sm:$0xff]
        %v3324 = vld [vmem:[%s690 + $0x1c8] sm:$0xff]
        %v3325 = vld [vmem:[%s690 + $0x1d0] sm:$0xff]
        %v3326 = vld [vmem:[%s690 + $0x1d8] sm:$0xff]
        %v3327 = vld [vmem:[%s690 + $0x1e0] sm:$0xff]
        %v3328 = vld [vmem:[%s690 + $0x1e8] sm:$0xff]
        %v3329 = vld [vmem:[%s690 + $0x1f0] sm:$0xff]
        %v3330 = vld [vmem:[%s690 + $0x1f8] sm:$0xff]
        %v3331 = vld [vmem:[%s690 + $0x200] sm:$0xff]
        %v3332 = vld [vmem:[%s690 + $0x208] sm:$0xff]
        %v3333 = vld [vmem:[%s690 + $0x210] sm:$0xff]
        %v3334 = vld [vmem:[%s690 + $0x218] sm:$0xff]
        %v3335 = vld [vmem:[%s690 + $0x220] sm:$0xff]
        %v3336 = vld [vmem:[%s690 + $0x228] sm:$0xff]
        %v3337 = vld [vmem:[%s690 + $0x230] sm:$0xff]
        %v3338 = vld [vmem:[%s690 + $0x238] sm:$0xff]
        %v3339 = vld [vmem:[%s690 + $0x240] sm:$0xff]
        %v3340 = vld [vmem:[%s690 + $0x248] sm:$0xff]
        %v3341 = vld [vmem:[%s690 + $0x250] sm:$0xff]
        %v3342 = vld [vmem:[%s690 + $0x258] sm:$0xff]
        %v3343 = vld [vmem:[%s690 + $0x260] sm:$0xff]
        %v3344 = vld [vmem:[%s690 + $0x268] sm:$0xff]
        %v3345 = vld [vmem:[%s690 + $0x270] sm:$0xff]
        %v3346 = vld [vmem:[%s690 + $0x278] sm:$0xff]
        %v3347 = vld [vmem:[%s690 + $0x280] sm:$0xff]
        %v3348 = vld [vmem:[%s690 + $0x288] sm:$0xff]
        %v3349 = vld [vmem:[%s690 + $0x290] sm:$0xff]
        %v3350 = vld [vmem:[%s690 + $0x298] sm:$0xff]
        %v3351 = vld [vmem:[%s690 + $0x2a0] sm:$0xff]
        %v3352 = vld [vmem:[%s690 + $0x2a8] sm:$0xff]
        %v3353 = vld [vmem:[%s690 + $0x2b0] sm:$0xff]
        %v3354 = vld [vmem:[%s690 + $0x2b8] sm:$0xff]
        %v3355 = vld [vmem:[%s690 + $0x2c0] sm:$0xff]
        %v3356 = vld [vmem:[%s690 + $0x2c8] sm:$0xff]
        %v3357 = vld [vmem:[%s690 + $0x2d0] sm:$0xff]
        %v3358 = vld [vmem:[%s690 + $0x2d8] sm:$0xff]
        %v3359 = vld [vmem:[%s690 + $0x2e0] sm:$0xff]
        %v3360 = vld [vmem:[%s690 + $0x2e8] sm:$0xff]
        %v3361 = vld [vmem:[%s690 + $0x2f0] sm:$0xff]
        %v3362 = vld [vmem:[%s690 + $0x2f8] sm:$0xff]
        %v3363 = vld [vmem:[%s690 + $0x300] sm:$0xff]
        %v3364 = vld [vmem:[%s690 + $0x308] sm:$0xff]
        %v3365 = vld [vmem:[%s690 + $0x310] sm:$0xff]
        %v3366 = vld [vmem:[%s690 + $0x318] sm:$0xff]
        %v3367 = vld [vmem:[%s690 + $0x320] sm:$0xff]
        %v3368 = vld [vmem:[%s690 + $0x328] sm:$0xff]
        %v3369 = vld [vmem:[%s690 + $0x330] sm:$0xff]
        %v3370 = vld [vmem:[%s690 + $0x338] sm:$0xff]
        %v3371 = vld [vmem:[%s690 + $0x340] sm:$0xff]
        %v3372 = vld [vmem:[%s690 + $0x348] sm:$0xff]
        %v3373 = vld [vmem:[%s690 + $0x350] sm:$0xff]
        %v3374 = vld [vmem:[%s690 + $0x358] sm:$0xff]
        %v3375 = vld [vmem:[%s690 + $0x360] sm:$0xff]
        %v3376 = vld [vmem:[%s690 + $0x368] sm:$0xff]
        %v3377 = vld [vmem:[%s690 + $0x370] sm:$0xff]
        %v3378 = vld [vmem:[%s690 + $0x378] sm:$0xff]
        %v3379 = vld [vmem:[%s690 + $0x380] sm:$0xff]
        %v3380 = vld [vmem:[%s690 + $0x388] sm:$0xff]
        %v3381 = vld [vmem:[%s690 + $0x390] sm:$0xff]
        %v3382 = vld [vmem:[%s690 + $0x398] sm:$0xff]
        %v3383 = vld [vmem:[%s690 + $0x3a0] sm:$0xff]
        %v3384 = vld [vmem:[%s690 + $0x3a8] sm:$0xff]
        %v3385 = vld [vmem:[%s690 + $0x3b0] sm:$0xff]
        %v3386 = vld [vmem:[%s690 + $0x3b8] sm:$0xff]
        %v3387 = vld [vmem:[%s690 + $0x3c0] sm:$0xff]
        %v3388 = vld [vmem:[%s690 + $0x3c8] sm:$0xff]
        %v3389 = vld [vmem:[%s690 + $0x3d0] sm:$0xff]
        %v3390 = vld [vmem:[%s690 + $0x3d8] sm:$0xff]
        %v3391 = vld [vmem:[%s690 + $0x3e0] sm:$0xff]
        %v3392 = vld [vmem:[%s690 + $0x3e8] sm:$0xff]
        %v3393 = vld [vmem:[%s690 + $0x3f0] sm:$0xff]
        %v3394 = vld [vmem:[%s690 + $0x3f8] sm:$0xff]
        %v3395 = vld [vmem:[%s819] sm:$0xf]
        %v3397 = vlaneseq
        %v3398 = vshrl.u32 %v3397, 7
        %v3399 = vsub.s32 0, %v3398
        %v3400 = vrot.slane %v3395, %v3399
        %v3401 = vlaneseq
        %v3402 = vshrl.u32 %v3401, 7
        %v3403 = vsub.s32 1, %v3402
        %v3404 = vrot.slane %v3395, %v3403
        %v3405 = vlaneseq
        %v3406 = vshrl.u32 %v3405, 7
        %v3407 = vsub.s32 2, %v3406
        %v3408 = vrot.slane %v3395, %v3407
        %v3409 = vlaneseq
        %v3410 = vshrl.u32 %v3409, 7
        %v3411 = vsub.s32 3, %v3410
        %v3412 = vrot.slane %v3395, %v3411
        %3417 = vmatprep.subr.mxu0 %v3268
        %3418 = vmatpush1.msra.mxu0 %v3267
        %3419 = vmatprep.subr.mxu0 %v3272
        %3420 = vmatpush1.msra.mxu0 %v3271
        %3421 = vmatprep.subr.mxu0 %v3276
        %3422 = vmatpush1.msra.mxu0 %v3275
        %3423 = vmatprep.subr.mxu0 %v3280
        %3424 = vmatpush1.msra.mxu0 %v3279
        %3425 = vmatprep.subr.mxu0 %v3284
        %3426 = vmatpush1.msra.mxu0 %v3283
        %3427 = vmatprep.subr.mxu0 %v3288
        %3428 = vmatpush1.msra.mxu0 %v3287
        %3429 = vmatprep.subr.mxu0 %v3292
        %3430 = vmatpush1.msra.mxu0 %v3291
        %3431 = vmatprep.subr.mxu0 %v3296
        %3432 = vmatpush1.msra.mxu0 %v3295
        %3433 = vmatprep.subr.mxu0 %v3300
        %3434 = vmatpush1.msra.mxu0 %v3299
        %3435 = vmatprep.subr.mxu0 %v3304
        %3436 = vmatpush1.msra.mxu0 %v3303
        %3437 = vmatprep.subr.mxu0 %v3308
        %3438 = vmatpush1.msra.mxu0 %v3307
        %3439 = vmatprep.subr.mxu0 %v3312
        %3440 = vmatpush1.msra.mxu0 %v3311
        %3441 = vmatprep.subr.mxu0 %v3316
        %3442 = vmatpush1.msra.mxu0 %v3315
        %3443 = vmatprep.subr.mxu0 %v3320
        %3444 = vmatpush1.msra.mxu0 %v3319
        %3445 = vmatprep.subr.mxu0 %v3324
        %3446 = vmatpush1.msra.mxu0 %v3323
        %3447 = vmatprep.subr.mxu0 %v3328
        %3448 = vmatpush1.msra.mxu0 %v3327
        %3449 = vmatprep.subr.mxu0 %v3332
        %3450 = vmatpush1.msra.mxu0 %v3331
        %3451 = vmatprep.subr.mxu0 %v3336
        %3452 = vmatpush1.msra.mxu0 %v3335
        %3453 = vmatprep.subr.mxu0 %v3340
        %3454 = vmatpush1.msra.mxu0 %v3339
        %3455 = vmatprep.subr.mxu0 %v3344
        %3456 = vmatpush1.msra.mxu0 %v3343
        %3457 = vmatprep.subr.mxu0 %v3348
        %3458 = vmatpush1.msra.mxu0 %v3347
        %3459 = vmatprep.subr.mxu0 %v3352
        %3460 = vmatpush1.msra.mxu0 %v3351
        %3461 = vmatprep.subr.mxu0 %v3356
        %3462 = vmatpush1.msra.mxu0 %v3355
        %3463 = vmatprep.subr.mxu0 %v3360
        %3464 = vmatpush1.msra.mxu0 %v3359
        %3465 = vmatprep.subr.mxu0 %v3364
        %3466 = vmatpush1.msra.mxu0 %v3363
        %3467 = vmatprep.subr.mxu0 %v3368
        %3468 = vmatpush1.msra.mxu0 %v3367
        %3469 = vmatprep.subr.mxu0 %v3372
        %3470 = vmatpush1.msra.mxu0 %v3371
        %3471 = vmatprep.subr.mxu0 %v3376
        %3472 = vmatpush1.msra.mxu0 %v3375
        %3473 = vmatprep.subr.mxu0 %v3380
        %3474 = vmatpush1.msra.mxu0 %v3379
        %3475 = vmatprep.subr.mxu0 %v3384
        %3476 = vmatpush1.msra.mxu0 %v3383
        %3477 = vmatprep.subr.mxu0 %v3388
        %3478 = vmatpush1.msra.mxu0 %v3387
        %3479 = vmatprep.subr.mxu0 %v3392
        %3480 = vmatpush1.msra.mxu0 %v3391
        %3481 = vmatprep.mubr.f32.mxu0 %v3265
        %3482 = vmatmul.mubr.f32.gmra.mrb[0].mxu0 %v3262
        %v3483 = vpop.f32.mrb[0].mxu0
        %v3484 = vadd.f32 %v3400, %v3483
        %v3485 = vpop.f32.mrb[0].mxu0
        %v3486 = vadd.f32 %v3404, %v3485
        %3487 = vdwg.mxu0
        %3488 = vmatprep.subr.mxu0 %v3270
        %3489 = vmatpush1.msra.mxu0 %v3269
        %3490 = vmatprep.subr.mxu0 %v3274
        %3491 = vmatpush1.msra.mxu0 %v3273
        %3492 = vmatprep.subr.mxu0 %v3278
        %3493 = vmatpush1.msra.mxu0 %v3277
        %3494 = vmatprep.subr.mxu0 %v3282
        %3495 = vmatpush1.msra.mxu0 %v3281
        %3496 = vmatprep.subr.mxu0 %v3286
        %3497 = vmatpush1.msra.mxu0 %v3285
        %3498 = vmatprep.subr.mxu0 %v3290
        %3499 = vmatpush1.msra.mxu0 %v3289
        %3500 = vmatprep.subr.mxu0 %v3294
        %3501 = vmatpush1.msra.mxu0 %v3293
        %3502 = vmatprep.subr.mxu0 %v3298
        %3503 = vmatpush1.msra.mxu0 %v3297
        %3504 = vmatprep.subr.mxu0 %v3302
        %3505 = vmatpush1.msra.mxu0 %v3301
        %3506 = vmatprep.subr.mxu0 %v3306
        %3507 = vmatpush1.msra.mxu0 %v3305
        %3508 = vmatprep.subr.mxu0 %v3310
        %3509 = vmatpush1.msra.mxu0 %v3309
        %3510 = vmatprep.subr.mxu0 %v3314
        %3511 = vmatpush1.msra.mxu0 %v3313
        %3512 = vmatprep.subr.mxu0 %v3318
        %3513 = vmatpush1.msra.mxu0 %v3317
        %3514 = vmatprep.subr.mxu0 %v3322
        %3515 = vmatpush1.msra.mxu0 %v3321
        %3516 = vmatprep.subr.mxu0 %v3326
        %3517 = vmatpush1.msra.mxu0 %v3325
        %3518 = vmatprep.subr.mxu0 %v3330
        %3519 = vmatpush1.msra.mxu0 %v3329
        %3520 = vmatprep.subr.mxu0 %v3334
        %3521 = vmatpush1.msra.mxu0 %v3333
        %3522 = vmatprep.subr.mxu0 %v3338
        %3523 = vmatpush1.msra.mxu0 %v3337
        %3524 = vmatprep.subr.mxu0 %v3342
        %3525 = vmatpush1.msra.mxu0 %v3341
        %3526 = vmatprep.subr.mxu0 %v3346
        %3527 = vmatpush1.msra.mxu0 %v3345
        %3528 = vmatprep.subr.mxu0 %v3350
        %3529 = vmatpush1.msra.mxu0 %v3349
        %3530 = vmatprep.subr.mxu0 %v3354
        %3531 = vmatpush1.msra.mxu0 %v3353
        %3532 = vmatprep.subr.mxu0 %v3358
        %3533 = vmatpush1.msra.mxu0 %v3357
        %3534 = vmatprep.subr.mxu0 %v3362
        %3535 = vmatpush1.msra.mxu0 %v3361
        %3536 = vmatprep.subr.mxu0 %v3366
        %3537 = vmatpush1.msra.mxu0 %v3365
        %3538 = vmatprep.subr.mxu0 %v3370
        %3539 = vmatpush1.msra.mxu0 %v3369
        %3540 = vmatprep.subr.mxu0 %v3374
        %3541 = vmatpush1.msra.mxu0 %v3373
        %3542 = vmatprep.subr.mxu0 %v3378
        %3543 = vmatpush1.msra.mxu0 %v3377
        %3544 = vmatprep.subr.mxu0 %v3382
        %3545 = vmatpush1.msra.mxu0 %v3381
        %3546 = vmatprep.subr.mxu0 %v3386
        %3547 = vmatpush1.msra.mxu0 %v3385
        %3548 = vmatprep.subr.mxu0 %v3390
        %3549 = vmatpush1.msra.mxu0 %v3389
        %3550 = vmatprep.subr.mxu0 %v3394
        %3551 = vmatpush1.msra.mxu0 %v3393
        %3552 = vmatprep.mubr.f32.mxu0 %v3265
        %3553 = vmatmul.mubr.f32.gmra.mrb[0].mxu0 %v3262
        %v3554 = vpop.f32.mrb[0].mxu0
        %v3555 = vadd.f32 %v3408, %v3554
        %v3556 = vpop.f32.mrb[0].mxu0
        %v3557 = vadd.f32 %v3412, %v3556
        %3558 = vdwg.mxu0
        %v3559 = vxor.u32 %v3484, 2147483648
        %v3560 = vmul.f32 %v3559, 1.442695
        %v3561 = vpow.pop %v3560
        %v3562 = vadd.f32 %v3561, 1.0
        %v3563 = vrcp.pop %v3562
        %v3564 = vmul.f32 1.0, %v3563
        %v3565 = vxor.u32 %v3486, 2147483648
        %v3566 = vmul.f32 %v3565, 1.442695
        %v3567 = vpow.pop %v3566
        %v3568 = vadd.f32 %v3567, 1.0
        %v3569 = vrcp.pop %v3568
        %v3570 = vmul.f32 1.0, %v3569
        %v3571 = vtanh.pop %v3555
        %v3572 = vxor.u32 %v3557, 2147483648
        %v3573 = vmul.f32 %v3572, 1.442695
        %v3574 = vpow.pop %v3573
        %v3575 = vadd.f32 %v3574, 1.0
        %v3576 = vrcp.pop %v3575
        %v3577 = vmul.f32 1.0, %v3576
        %v3578 = vmul.f32 %v3570, %v3266
        %v3579 = vmul.f32 %v3564, %v3571
        %v3580 = vadd.f32 %v3578, %v3579
        %v3581 = vtanh.pop %v3580
        %v3582 = vmul.f32 %v3577, %v3581
        %3583 = vst [vmem:[%s686] sm:$0xff] %v3582
        %3584 = vst [vmem:[%s688] sm:$0xff] %v3580
        %s3585 = scalar_lea.vmem %s346, 32 [#allocation13]
        %3586 = vst [vmem:[%s3585] sm:$0xff] %v3582
        %s3587 = scalar_lea.vmem %s304, 40 [#allocation4]
        %v3588 = vld [vmem:[%s3587] sm:$0xff]
        %v3589 = vld [vmem:[#allocation2] sm:$0xff]
        %v3590 = vld [vmem:[#allocation3] sm:$0xff]
        %v3591 = vld [vmem:[#allocation7] sm:$0xff]
        %v3592 = vld [vmem:[#allocation7 + $0x8] sm:$0xff]
        %v3593 = vld [vmem:[#allocation7 + $0x10] sm:$0xff]
        %v3594 = vld [vmem:[#allocation7 + $0x18] sm:$0xff]
        %v3595 = vld [vmem:[#allocation7 + $0x20] sm:$0xff]
        %v3596 = vld [vmem:[#allocation7 + $0x28] sm:$0xff]
        %v3597 = vld [vmem:[#allocation7 + $0x30] sm:$0xff]
        %v3598 = vld [vmem:[#allocation7 + $0x38] sm:$0xff]
        %v3599 = vld [vmem:[#allocation7 + $0x40] sm:$0xff]
        %v3600 = vld [vmem:[#allocation7 + $0x48] sm:$0xff]
        %v3601 = vld [vmem:[#allocation7 + $0x50] sm:$0xff]
        %v3602 = vld [vmem:[#allocation7 + $0x58] sm:$0xff]
        %v3603 = vld [vmem:[#allocation7 + $0x60] sm:$0xff]
        %v3604 = vld [vmem:[#allocation7 + $0x68] sm:$0xff]
        %v3605 = vld [vmem:[#allocation7 + $0x70] sm:$0xff]
        %v3606 = vld [vmem:[#allocation7 + $0x78] sm:$0xff]
        %v3607 = vld [vmem:[#allocation7 + $0x80] sm:$0xff]
        %v3608 = vld [vmem:[#allocation7 + $0x88] sm:$0xff]
        %v3609 = vld [vmem:[#allocation7 + $0x90] sm:$0xff]
        %v3610 = vld [vmem:[#allocation7 + $0x98] sm:$0xff]
        %v3611 = vld [vmem:[#allocation7 + $0xa0] sm:$0xff]
        %v3612 = vld [vmem:[#allocation7 + $0xa8] sm:$0xff]
        %v3613 = vld [vmem:[#allocation7 + $0xb0] sm:$0xff]
        %v3614 = vld [vmem:[#allocation7 + $0xb8] sm:$0xff]
        %v3615 = vld [vmem:[#allocation7 + $0xc0] sm:$0xff]
        %v3616 = vld [vmem:[#allocation7 + $0xc8] sm:$0xff]
        %v3617 = vld [vmem:[#allocation7 + $0xd0] sm:$0xff]
        %v3618 = vld [vmem:[#allocation7 + $0xd8] sm:$0xff]
        %v3619 = vld [vmem:[#allocation7 + $0xe0] sm:$0xff]
        %v3620 = vld [vmem:[#allocation7 + $0xe8] sm:$0xff]
        %v3621 = vld [vmem:[#allocation7 + $0xf0] sm:$0xff]
        %v3622 = vld [vmem:[#allocation7 + $0xf8] sm:$0xff]
        %v3623 = vld [vmem:[#allocation7 + $0x100] sm:$0xff]
        %v3624 = vld [vmem:[#allocation7 + $0x108] sm:$0xff]
        %v3625 = vld [vmem:[#allocation7 + $0x110] sm:$0xff]
        %v3626 = vld [vmem:[#allocation7 + $0x118] sm:$0xff]
        %v3627 = vld [vmem:[#allocation7 + $0x120] sm:$0xff]
        %v3628 = vld [vmem:[#allocation7 + $0x128] sm:$0xff]
        %v3629 = vld [vmem:[#allocation7 + $0x130] sm:$0xff]
        %v3630 = vld [vmem:[#allocation7 + $0x138] sm:$0xff]
        %v3631 = vld [vmem:[#allocation7 + $0x140] sm:$0xff]
        %v3632 = vld [vmem:[#allocation7 + $0x148] sm:$0xff]
        %v3633 = vld [vmem:[#allocation7 + $0x150] sm:$0xff]
        %v3634 = vld [vmem:[#allocation7 + $0x158] sm:$0xff]
        %v3635 = vld [vmem:[#allocation7 + $0x160] sm:$0xff]
        %v3636 = vld [vmem:[#allocation7 + $0x168] sm:$0xff]
        %v3637 = vld [vmem:[#allocation7 + $0x170] sm:$0xff]
        %v3638 = vld [vmem:[#allocation7 + $0x178] sm:$0xff]
        %v3639 = vld [vmem:[#allocation7 + $0x180] sm:$0xff]
        %v3640 = vld [vmem:[#allocation7 + $0x188] sm:$0xff]
        %v3641 = vld [vmem:[#allocation7 + $0x190] sm:$0xff]
        %v3642 = vld [vmem:[#allocation7 + $0x198] sm:$0xff]
        %v3643 = vld [vmem:[#allocation7 + $0x1a0] sm:$0xff]
        %v3644 = vld [vmem:[#allocation7 + $0x1a8] sm:$0xff]
        %v3645 = vld [vmem:[#allocation7 + $0x1b0] sm:$0xff]
        %v3646 = vld [vmem:[#allocation7 + $0x1b8] sm:$0xff]
        %v3647 = vld [vmem:[#allocation7 + $0x1c0] sm:$0xff]
        %v3648 = vld [vmem:[#allocation7 + $0x1c8] sm:$0xff]
        %v3649 = vld [vmem:[#allocation7 + $0x1d0] sm:$0xff]
        %v3650 = vld [vmem:[#allocation7 + $0x1d8] sm:$0xff]
        %v3651 = vld [vmem:[#allocation7 + $0x1e0] sm:$0xff]
        %v3652 = vld [vmem:[#allocation7 + $0x1e8] sm:$0xff]
        %v3653 = vld [vmem:[#allocation7 + $0x1f0] sm:$0xff]
        %v3654 = vld [vmem:[#allocation7 + $0x1f8] sm:$0xff]
        %v3655 = vld [vmem:[#allocation7 + $0x200] sm:$0xff]
        %v3656 = vld [vmem:[#allocation7 + $0x208] sm:$0xff]
        %v3657 = vld [vmem:[#allocation7 + $0x210] sm:$0xff]
        %v3658 = vld [vmem:[#allocation7 + $0x218] sm:$0xff]
        %v3659 = vld [vmem:[#allocation7 + $0x220] sm:$0xff]
        %v3660 = vld [vmem:[#allocation7 + $0x228] sm:$0xff]
        %v3661 = vld [vmem:[#allocation7 + $0x230] sm:$0xff]
        %v3662 = vld [vmem:[#allocation7 + $0x238] sm:$0xff]
        %v3663 = vld [vmem:[#allocation7 + $0x240] sm:$0xff]
        %v3664 = vld [vmem:[#allocation7 + $0x248] sm:$0xff]
        %v3665 = vld [vmem:[#allocation7 + $0x250] sm:$0xff]
        %v3666 = vld [vmem:[#allocation7 + $0x258] sm:$0xff]
        %v3667 = vld [vmem:[#allocation7 + $0x260] sm:$0xff]
        %v3668 = vld [vmem:[#allocation7 + $0x268] sm:$0xff]
        %v3669 = vld [vmem:[#allocation7 + $0x270] sm:$0xff]
        %v3670 = vld [vmem:[#allocation7 + $0x278] sm:$0xff]
        %v3671 = vld [vmem:[#allocation7 + $0x280] sm:$0xff]
        %v3672 = vld [vmem:[#allocation7 + $0x288] sm:$0xff]
        %v3673 = vld [vmem:[#allocation7 + $0x290] sm:$0xff]
        %v3674 = vld [vmem:[#allocation7 + $0x298] sm:$0xff]
        %v3675 = vld [vmem:[#allocation7 + $0x2a0] sm:$0xff]
        %v3676 = vld [vmem:[#allocation7 + $0x2a8] sm:$0xff]
        %v3677 = vld [vmem:[#allocation7 + $0x2b0] sm:$0xff]
        %v3678 = vld [vmem:[#allocation7 + $0x2b8] sm:$0xff]
        %v3679 = vld [vmem:[#allocation7 + $0x2c0] sm:$0xff]
        %v3680 = vld [vmem:[#allocation7 + $0x2c8] sm:$0xff]
        %v3681 = vld [vmem:[#allocation7 + $0x2d0] sm:$0xff]
        %v3682 = vld [vmem:[#allocation7 + $0x2d8] sm:$0xff]
        %v3683 = vld [vmem:[#allocation7 + $0x2e0] sm:$0xff]
        %v3684 = vld [vmem:[#allocation7 + $0x2e8] sm:$0xff]
        %v3685 = vld [vmem:[#allocation7 + $0x2f0] sm:$0xff]
        %v3686 = vld [vmem:[#allocation7 + $0x2f8] sm:$0xff]
        %v3687 = vld [vmem:[#allocation7 + $0x300] sm:$0xff]
        %v3688 = vld [vmem:[#allocation7 + $0x308] sm:$0xff]
        %v3689 = vld [vmem:[#allocation7 + $0x310] sm:$0xff]
        %v3690 = vld [vmem:[#allocation7 + $0x318] sm:$0xff]
        %v3691 = vld [vmem:[#allocation7 + $0x320] sm:$0xff]
        %v3692 = vld [vmem:[#allocation7 + $0x328] sm:$0xff]
        %v3693 = vld [vmem:[#allocation7 + $0x330] sm:$0xff]
        %v3694 = vld [vmem:[#allocation7 + $0x338] sm:$0xff]
        %v3695 = vld [vmem:[#allocation7 + $0x340] sm:$0xff]
        %v3696 = vld [vmem:[#allocation7 + $0x348] sm:$0xff]
        %v3697 = vld [vmem:[#allocation7 + $0x350] sm:$0xff]
        %v3698 = vld [vmem:[#allocation7 + $0x358] sm:$0xff]
        %v3699 = vld [vmem:[#allocation7 + $0x360] sm:$0xff]
        %v3700 = vld [vmem:[#allocation7 + $0x368] sm:$0xff]
        %v3701 = vld [vmem:[#allocation7 + $0x370] sm:$0xff]
        %v3702 = vld [vmem:[#allocation7 + $0x378] sm:$0xff]
        %v3703 = vld [vmem:[#allocation7 + $0x380] sm:$0xff]
        %v3704 = vld [vmem:[#allocation7 + $0x388] sm:$0xff]
        %v3705 = vld [vmem:[#allocation7 + $0x390] sm:$0xff]
        %v3706 = vld [vmem:[#allocation7 + $0x398] sm:$0xff]
        %v3707 = vld [vmem:[#allocation7 + $0x3a0] sm:$0xff]
        %v3708 = vld [vmem:[#allocation7 + $0x3a8] sm:$0xff]
        %v3709 = vld [vmem:[#allocation7 + $0x3b0] sm:$0xff]
        %v3710 = vld [vmem:[#allocation7 + $0x3b8] sm:$0xff]
        %v3711 = vld [vmem:[#allocation7 + $0x3c0] sm:$0xff]
        %v3712 = vld [vmem:[#allocation7 + $0x3c8] sm:$0xff]
        %v3713 = vld [vmem:[#allocation7 + $0x3d0] sm:$0xff]
        %v3714 = vld [vmem:[#allocation7 + $0x3d8] sm:$0xff]
        %v3715 = vld [vmem:[#allocation7 + $0x3e0] sm:$0xff]
        %v3716 = vld [vmem:[#allocation7 + $0x3e8] sm:$0xff]
        %v3717 = vld [vmem:[#allocation7 + $0x3f0] sm:$0xff]
        %v3718 = vld [vmem:[#allocation7 + $0x3f8] sm:$0xff]
        %v3719 = vld [vmem:[#allocation9] sm:$0xf]
        %v3721 = vlaneseq
        %v3722 = vshrl.u32 %v3721, 7
        %v3723 = vsub.s32 0, %v3722
        %v3724 = vrot.slane %v3719, %v3723
        %v3725 = vlaneseq
        %v3726 = vshrl.u32 %v3725, 7
        %v3727 = vsub.s32 1, %v3726
        %v3728 = vrot.slane %v3719, %v3727
        %v3729 = vlaneseq
        %v3730 = vshrl.u32 %v3729, 7
        %v3731 = vsub.s32 2, %v3730
        %v3732 = vrot.slane %v3719, %v3731
        %v3733 = vlaneseq
        %v3734 = vshrl.u32 %v3733, 7
        %v3735 = vsub.s32 3, %v3734
        %v3736 = vrot.slane %v3719, %v3735
        %3741 = vmatprep.subr.mxu0 %v3592
        %3742 = vmatpush1.msra.mxu0 %v3591
        %3743 = vmatprep.subr.mxu0 %v3596
        %3744 = vmatpush1.msra.mxu0 %v3595
        %3745 = vmatprep.subr.mxu0 %v3600
        %3746 = vmatpush1.msra.mxu0 %v3599
        %3747 = vmatprep.subr.mxu0 %v3604
        %3748 = vmatpush1.msra.mxu0 %v3603
        %3749 = vmatprep.subr.mxu0 %v3608
        %3750 = vmatpush1.msra.mxu0 %v3607
        %3751 = vmatprep.subr.mxu0 %v3612
        %3752 = vmatpush1.msra.mxu0 %v3611
        %3753 = vmatprep.subr.mxu0 %v3616
        %3754 = vmatpush1.msra.mxu0 %v3615
        %3755 = vmatprep.subr.mxu0 %v3620
        %3756 = vmatpush1.msra.mxu0 %v3619
        %3757 = vmatprep.subr.mxu0 %v3624
        %3758 = vmatpush1.msra.mxu0 %v3623
        %3759 = vmatprep.subr.mxu0 %v3628
        %3760 = vmatpush1.msra.mxu0 %v3627
        %3761 = vmatprep.subr.mxu0 %v3632
        %3762 = vmatpush1.msra.mxu0 %v3631
        %3763 = vmatprep.subr.mxu0 %v3636
        %3764 = vmatpush1.msra.mxu0 %v3635
        %3765 = vmatprep.subr.mxu0 %v3640
        %3766 = vmatpush1.msra.mxu0 %v3639
        %3767 = vmatprep.subr.mxu0 %v3644
        %3768 = vmatpush1.msra.mxu0 %v3643
        %3769 = vmatprep.subr.mxu0 %v3648
        %3770 = vmatpush1.msra.mxu0 %v3647
        %3771 = vmatprep.subr.mxu0 %v3652
        %3772 = vmatpush1.msra.mxu0 %v3651
        %3773 = vmatprep.subr.mxu0 %v3656
        %3774 = vmatpush1.msra.mxu0 %v3655
        %3775 = vmatprep.subr.mxu0 %v3660
        %3776 = vmatpush1.msra.mxu0 %v3659
        %3777 = vmatprep.subr.mxu0 %v3664
        %3778 = vmatpush1.msra.mxu0 %v3663
        %3779 = vmatprep.subr.mxu0 %v3668
        %3780 = vmatpush1.msra.mxu0 %v3667
        %3781 = vmatprep.subr.mxu0 %v3672
        %3782 = vmatpush1.msra.mxu0 %v3671
        %3783 = vmatprep.subr.mxu0 %v3676
        %3784 = vmatpush1.msra.mxu0 %v3675
        %3785 = vmatprep.subr.mxu0 %v3680
        %3786 = vmatpush1.msra.mxu0 %v3679
        %3787 = vmatprep.subr.mxu0 %v3684
        %3788 = vmatpush1.msra.mxu0 %v3683
        %3789 = vmatprep.subr.mxu0 %v3688
        %3790 = vmatpush1.msra.mxu0 %v3687
        %3791 = vmatprep.subr.mxu0 %v3692
        %3792 = vmatpush1.msra.mxu0 %v3691
        %3793 = vmatprep.subr.mxu0 %v3696
        %3794 = vmatpush1.msra.mxu0 %v3695
        %3795 = vmatprep.subr.mxu0 %v3700
        %3796 = vmatpush1.msra.mxu0 %v3699
        %3797 = vmatprep.subr.mxu0 %v3704
        %3798 = vmatpush1.msra.mxu0 %v3703
        %3799 = vmatprep.subr.mxu0 %v3708
        %3800 = vmatpush1.msra.mxu0 %v3707
        %3801 = vmatprep.subr.mxu0 %v3712
        %3802 = vmatpush1.msra.mxu0 %v3711
        %3803 = vmatprep.subr.mxu0 %v3716
        %3804 = vmatpush1.msra.mxu0 %v3715
        %3805 = vmatprep.mubr.f32.mxu0 %v3589
        %3806 = vmatmul.mubr.f32.gmra.mrb[0].mxu0 %v3588
        %v3807 = vpop.f32.mrb[0].mxu0
        %v3808 = vadd.f32 %v3724, %v3807
        %v3809 = vpop.f32.mrb[0].mxu0
        %v3810 = vadd.f32 %v3728, %v3809
        %3811 = vdwg.mxu0
        %3812 = vmatprep.subr.mxu0 %v3594
        %3813 = vmatpush1.msra.mxu0 %v3593
        %3814 = vmatprep.subr.mxu0 %v3598
        %3815 = vmatpush1.msra.mxu0 %v3597
        %3816 = vmatprep.subr.mxu0 %v3602
        %3817 = vmatpush1.msra.mxu0 %v3601
        %3818 = vmatprep.subr.mxu0 %v3606
        %3819 = vmatpush1.msra.mxu0 %v3605
        %3820 = vmatprep.subr.mxu0 %v3610
        %3821 = vmatpush1.msra.mxu0 %v3609
        %3822 = vmatprep.subr.mxu0 %v3614
        %3823 = vmatpush1.msra.mxu0 %v3613
        %3824 = vmatprep.subr.mxu0 %v3618
        %3825 = vmatpush1.msra.mxu0 %v3617
        %3826 = vmatprep.subr.mxu0 %v3622
        %3827 = vmatpush1.msra.mxu0 %v3621
        %3828 = vmatprep.subr.mxu0 %v3626
        %3829 = vmatpush1.msra.mxu0 %v3625
        %3830 = vmatprep.subr.mxu0 %v3630
        %3831 = vmatpush1.msra.mxu0 %v3629
        %3832 = vmatprep.subr.mxu0 %v3634
        %3833 = vmatpush1.msra.mxu0 %v3633
        %3834 = vmatprep.subr.mxu0 %v3638
        %3835 = vmatpush1.msra.mxu0 %v3637
        %3836 = vmatprep.subr.mxu0 %v3642
        %3837 = vmatpush1.msra.mxu0 %v3641
        %3838 = vmatprep.subr.mxu0 %v3646
        %3839 = vmatpush1.msra.mxu0 %v3645
        %3840 = vmatprep.subr.mxu0 %v3650
        %3841 = vmatpush1.msra.mxu0 %v3649
        %3842 = vmatprep.subr.mxu0 %v3654
        %3843 = vmatpush1.msra.mxu0 %v3653
        %3844 = vmatprep.subr.mxu0 %v3658
        %3845 = vmatpush1.msra.mxu0 %v3657
        %3846 = vmatprep.subr.mxu0 %v3662
        %3847 = vmatpush1.msra.mxu0 %v3661
        %3848 = vmatprep.subr.mxu0 %v3666
        %3849 = vmatpush1.msra.mxu0 %v3665
        %3850 = vmatprep.subr.mxu0 %v3670
        %3851 = vmatpush1.msra.mxu0 %v3669
        %3852 = vmatprep.subr.mxu0 %v3674
        %3853 = vmatpush1.msra.mxu0 %v3673
        %3854 = vmatprep.subr.mxu0 %v3678
        %3855 = vmatpush1.msra.mxu0 %v3677
        %3856 = vmatprep.subr.mxu0 %v3682
        %3857 = vmatpush1.msra.mxu0 %v3681
        %3858 = vmatprep.subr.mxu0 %v3686
        %3859 = vmatpush1.msra.mxu0 %v3685
        %3860 = vmatprep.subr.mxu0 %v3690
        %3861 = vmatpush1.msra.mxu0 %v3689
        %3862 = vmatprep.subr.mxu0 %v3694
        %3863 = vmatpush1.msra.mxu0 %v3693
        %3864 = vmatprep.subr.mxu0 %v3698
        %3865 = vmatpush1.msra.mxu0 %v3697
        %3866 = vmatprep.subr.mxu0 %v3702
        %3867 = vmatpush1.msra.mxu0 %v3701
        %3868 = vmatprep.subr.mxu0 %v3706
        %3869 = vmatpush1.msra.mxu0 %v3705
        %3870 = vmatprep.subr.mxu0 %v3710
        %3871 = vmatpush1.msra.mxu0 %v3709
        %3872 = vmatprep.subr.mxu0 %v3714
        %3873 = vmatpush1.msra.mxu0 %v3713
        %3874 = vmatprep.subr.mxu0 %v3718
        %3875 = vmatpush1.msra.mxu0 %v3717
        %3876 = vmatprep.mubr.f32.mxu0 %v3589
        %3877 = vmatmul.mubr.f32.gmra.mrb[0].mxu0 %v3588
        %v3878 = vpop.f32.mrb[0].mxu0
        %v3879 = vadd.f32 %v3732, %v3878
        %v3880 = vpop.f32.mrb[0].mxu0
        %v3881 = vadd.f32 %v3736, %v3880
        %3882 = vdwg.mxu0
        %v3883 = vxor.u32 %v3808, 2147483648
        %v3884 = vmul.f32 %v3883, 1.442695
        %v3885 = vpow.pop %v3884
        %v3886 = vadd.f32 %v3885, 1.0
        %v3887 = vrcp.pop %v3886
        %v3888 = vmul.f32 1.0, %v3887
        %v3889 = vxor.u32 %v3810, 2147483648
        %v3890 = vmul.f32 %v3889, 1.442695
        %v3891 = vpow.pop %v3890
        %v3892 = vadd.f32 %v3891, 1.0
        %v3893 = vrcp.pop %v3892
        %v3894 = vmul.f32 1.0, %v3893
        %v3895 = vtanh.pop %v3879
        %v3896 = vxor.u32 %v3881, 2147483648
        %v3897 = vmul.f32 %v3896, 1.442695
        %v3898 = vpow.pop %v3897
        %v3899 = vadd.f32 %v3898, 1.0
        %v3900 = vrcp.pop %v3899
        %v3901 = vmul.f32 1.0, %v3900
        %v3902 = vmul.f32 %v3894, %v3590
        %v3903 = vmul.f32 %v3888, %v3895
        %v3904 = vadd.f32 %v3902, %v3903
        %v3905 = vtanh.pop %v3904
        %v3906 = vmul.f32 %v3901, %v3905
        %3907 = vst [vmem:[#allocation2] sm:$0xff] %v3906
        %3908 = vst [vmem:[#allocation3] sm:$0xff] %v3904
        %v3909 = vld [vmem:[%s686] sm:$0xff]
        %v3910 = vld [vmem:[%s688] sm:$0xff]
        %v3911 = vld [vmem:[%s690] sm:$0xff]
        %v3912 = vld [vmem:[%s690 + $0x8] sm:$0xff]
        %v3913 = vld [vmem:[%s690 + $0x10] sm:$0xff]
        %v3914 = vld [vmem:[%s690 + $0x18] sm:$0xff]
        %v3915 = vld [vmem:[%s690 + $0x20] sm:$0xff]
        %v3916 = vld [vmem:[%s690 + $0x28] sm:$0xff]
        %v3917 = vld [vmem:[%s690 + $0x30] sm:$0xff]
        %v3918 = vld [vmem:[%s690 + $0x38] sm:$0xff]
        %v3919 = vld [vmem:[%s690 + $0x40] sm:$0xff]
        %v3920 = vld [vmem:[%s690 + $0x48] sm:$0xff]
        %v3921 = vld [vmem:[%s690 + $0x50] sm:$0xff]
        %v3922 = vld [vmem:[%s690 + $0x58] sm:$0xff]
        %v3923 = vld [vmem:[%s690 + $0x60] sm:$0xff]
        %v3924 = vld [vmem:[%s690 + $0x68] sm:$0xff]
        %v3925 = vld [vmem:[%s690 + $0x70] sm:$0xff]
        %v3926 = vld [vmem:[%s690 + $0x78] sm:$0xff]
        %v3927 = vld [vmem:[%s690 + $0x80] sm:$0xff]
        %v3928 = vld [vmem:[%s690 + $0x88] sm:$0xff]
        %v3929 = vld [vmem:[%s690 + $0x90] sm:$0xff]
        %v3930 = vld [vmem:[%s690 + $0x98] sm:$0xff]
        %v3931 = vld [vmem:[%s690 + $0xa0] sm:$0xff]
        %v3932 = vld [vmem:[%s690 + $0xa8] sm:$0xff]
        %v3933 = vld [vmem:[%s690 + $0xb0] sm:$0xff]
        %v3934 = vld [vmem:[%s690 + $0xb8] sm:$0xff]
        %v3935 = vld [vmem:[%s690 + $0xc0] sm:$0xff]
        %v3936 = vld [vmem:[%s690 + $0xc8] sm:$0xff]
        %v3937 = vld [vmem:[%s690 + $0xd0] sm:$0xff]
        %v3938 = vld [vmem:[%s690 + $0xd8] sm:$0xff]
        %v3939 = vld [vmem:[%s690 + $0xe0] sm:$0xff]
        %v3940 = vld [vmem:[%s690 + $0xe8] sm:$0xff]
        %v3941 = vld [vmem:[%s690 + $0xf0] sm:$0xff]
        %v3942 = vld [vmem:[%s690 + $0xf8] sm:$0xff]
        %v3943 = vld [vmem:[%s690 + $0x100] sm:$0xff]
        %v3944 = vld [vmem:[%s690 + $0x108] sm:$0xff]
        %v3945 = vld [vmem:[%s690 + $0x110] sm:$0xff]
        %v3946 = vld [vmem:[%s690 + $0x118] sm:$0xff]
        %v3947 = vld [vmem:[%s690 + $0x120] sm:$0xff]
        %v3948 = vld [vmem:[%s690 + $0x128] sm:$0xff]
        %v3949 = vld [vmem:[%s690 + $0x130] sm:$0xff]
        %v3950 = vld [vmem:[%s690 + $0x138] sm:$0xff]
        %v3951 = vld [vmem:[%s690 + $0x140] sm:$0xff]
        %v3952 = vld [vmem:[%s690 + $0x148] sm:$0xff]
        %v3953 = vld [vmem:[%s690 + $0x150] sm:$0xff]
        %v3954 = vld [vmem:[%s690 + $0x158] sm:$0xff]
        %v3955 = vld [vmem:[%s690 + $0x160] sm:$0xff]
        %v3956 = vld [vmem:[%s690 + $0x168] sm:$0xff]
        %v3957 = vld [vmem:[%s690 + $0x170] sm:$0xff]
        %v3958 = vld [vmem:[%s690 + $0x178] sm:$0xff]
        %v3959 = vld [vmem:[%s690 + $0x180] sm:$0xff]
        %v3960 = vld [vmem:[%s690 + $0x188] sm:$0xff]
        %v3961 = vld [vmem:[%s690 + $0x190] sm:$0xff]
        %v3962 = vld [vmem:[%s690 + $0x198] sm:$0xff]
        %v3963 = vld [vmem:[%s690 + $0x1a0] sm:$0xff]
        %v3964 = vld [vmem:[%s690 + $0x1a8] sm:$0xff]
        %v3965 = vld [vmem:[%s690 + $0x1b0] sm:$0xff]
        %v3966 = vld [vmem:[%s690 + $0x1b8] sm:$0xff]
        %v3967 = vld [vmem:[%s690 + $0x1c0] sm:$0xff]
        %v3968 = vld [vmem:[%s690 + $0x1c8] sm:$0xff]
        %v3969 = vld [vmem:[%s690 + $0x1d0] sm:$0xff]
        %v3970 = vld [vmem:[%s690 + $0x1d8] sm:$0xff]
        %v3971 = vld [vmem:[%s690 + $0x1e0] sm:$0xff]
        %v3972 = vld [vmem:[%s690 + $0x1e8] sm:$0xff]
        %v3973 = vld [vmem:[%s690 + $0x1f0] sm:$0xff]
        %v3974 = vld [vmem:[%s690 + $0x1f8] sm:$0xff]
        %v3975 = vld [vmem:[%s690 + $0x200] sm:$0xff]
        %v3976 = vld [vmem:[%s690 + $0x208] sm:$0xff]
        %v3977 = vld [vmem:[%s690 + $0x210] sm:$0xff]
        %v3978 = vld [vmem:[%s690 + $0x218] sm:$0xff]
        %v3979 = vld [vmem:[%s690 + $0x220] sm:$0xff]
        %v3980 = vld [vmem:[%s690 + $0x228] sm:$0xff]
        %v3981 = vld [vmem:[%s690 + $0x230] sm:$0xff]
        %v3982 = vld [vmem:[%s690 + $0x238] sm:$0xff]
        %v3983 = vld [vmem:[%s690 + $0x240] sm:$0xff]
        %v3984 = vld [vmem:[%s690 + $0x248] sm:$0xff]
        %v3985 = vld [vmem:[%s690 + $0x250] sm:$0xff]
        %v3986 = vld [vmem:[%s690 + $0x258] sm:$0xff]
        %v3987 = vld [vmem:[%s690 + $0x260] sm:$0xff]
        %v3988 = vld [vmem:[%s690 + $0x268] sm:$0xff]
        %v3989 = vld [vmem:[%s690 + $0x270] sm:$0xff]
        %v3990 = vld [vmem:[%s690 + $0x278] sm:$0xff]
        %v3991 = vld [vmem:[%s690 + $0x280] sm:$0xff]
        %v3992 = vld [vmem:[%s690 + $0x288] sm:$0xff]
        %v3993 = vld [vmem:[%s690 + $0x290] sm:$0xff]
        %v3994 = vld [vmem:[%s690 + $0x298] sm:$0xff]
        %v3995 = vld [vmem:[%s690 + $0x2a0] sm:$0xff]
        %v3996 = vld [vmem:[%s690 + $0x2a8] sm:$0xff]
        %v3997 = vld [vmem:[%s690 + $0x2b0] sm:$0xff]
        %v3998 = vld [vmem:[%s690 + $0x2b8] sm:$0xff]
        %v3999 = vld [vmem:[%s690 + $0x2c0] sm:$0xff]
        %v4000 = vld [vmem:[%s690 + $0x2c8] sm:$0xff]
        %v4001 = vld [vmem:[%s690 + $0x2d0] sm:$0xff]
        %v4002 = vld [vmem:[%s690 + $0x2d8] sm:$0xff]
        %v4003 = vld [vmem:[%s690 + $0x2e0] sm:$0xff]
        %v4004 = vld [vmem:[%s690 + $0x2e8] sm:$0xff]
        %v4005 = vld [vmem:[%s690 + $0x2f0] sm:$0xff]
        %v4006 = vld [vmem:[%s690 + $0x2f8] sm:$0xff]
        %v4007 = vld [vmem:[%s690 + $0x300] sm:$0xff]
        %v4008 = vld [vmem:[%s690 + $0x308] sm:$0xff]
        %v4009 = vld [vmem:[%s690 + $0x310] sm:$0xff]
        %v4010 = vld [vmem:[%s690 + $0x318] sm:$0xff]
        %v4011 = vld [vmem:[%s690 + $0x320] sm:$0xff]
        %v4012 = vld [vmem:[%s690 + $0x328] sm:$0xff]
        %v4013 = vld [vmem:[%s690 + $0x330] sm:$0xff]
        %v4014 = vld [vmem:[%s690 + $0x338] sm:$0xff]
        %v4015 = vld [vmem:[%s690 + $0x340] sm:$0xff]
        %v4016 = vld [vmem:[%s690 + $0x348] sm:$0xff]
        %v4017 = vld [vmem:[%s690 + $0x350] sm:$0xff]
        %v4018 = vld [vmem:[%s690 + $0x358] sm:$0xff]
        %v4019 = vld [vmem:[%s690 + $0x360] sm:$0xff]
        %v4020 = vld [vmem:[%s690 + $0x368] sm:$0xff]
        %v4021 = vld [vmem:[%s690 + $0x370] sm:$0xff]
        %v4022 = vld [vmem:[%s690 + $0x378] sm:$0xff]
        %v4023 = vld [vmem:[%s690 + $0x380] sm:$0xff]
        %v4024 = vld [vmem:[%s690 + $0x388] sm:$0xff]
        %v4025 = vld [vmem:[%s690 + $0x390] sm:$0xff]
        %v4026 = vld [vmem:[%s690 + $0x398] sm:$0xff]
        %v4027 = vld [vmem:[%s690 + $0x3a0] sm:$0xff]
        %v4028 = vld [vmem:[%s690 + $0x3a8] sm:$0xff]
        %v4029 = vld [vmem:[%s690 + $0x3b0] sm:$0xff]
        %v4030 = vld [vmem:[%s690 + $0x3b8] sm:$0xff]
        %v4031 = vld [vmem:[%s690 + $0x3c0] sm:$0xff]
        %v4032 = vld [vmem:[%s690 + $0x3c8] sm:$0xff]
        %v4033 = vld [vmem:[%s690 + $0x3d0] sm:$0xff]
        %v4034 = vld [vmem:[%s690 + $0x3d8] sm:$0xff]
        %v4035 = vld [vmem:[%s690 + $0x3e0] sm:$0xff]
        %v4036 = vld [vmem:[%s690 + $0x3e8] sm:$0xff]
        %v4037 = vld [vmem:[%s690 + $0x3f0] sm:$0xff]
        %v4038 = vld [vmem:[%s690 + $0x3f8] sm:$0xff]
        %v4039 = vld [vmem:[%s819] sm:$0xf]
        %v4041 = vlaneseq
        %v4042 = vshrl.u32 %v4041, 7
        %v4043 = vsub.s32 0, %v4042
        %v4044 = vrot.slane %v4039, %v4043
        %v4045 = vlaneseq
        %v4046 = vshrl.u32 %v4045, 7
        %v4047 = vsub.s32 1, %v4046
        %v4048 = vrot.slane %v4039, %v4047
        %v4049 = vlaneseq
        %v4050 = vshrl.u32 %v4049, 7
        %v4051 = vsub.s32 2, %v4050
        %v4052 = vrot.slane %v4039, %v4051
        %v4053 = vlaneseq
        %v4054 = vshrl.u32 %v4053, 7
        %v4055 = vsub.s32 3, %v4054
        %v4056 = vrot.slane %v4039, %v4055
        %4061 = vmatprep.subr.mxu0 %v3912
        %4062 = vmatpush1.msra.mxu0 %v3911
        %4063 = vmatprep.subr.mxu0 %v3916
        %4064 = vmatpush1.msra.mxu0 %v3915
        %4065 = vmatprep.subr.mxu0 %v3920
        %4066 = vmatpush1.msra.mxu0 %v3919
        %4067 = vmatprep.subr.mxu0 %v3924
        %4068 = vmatpush1.msra.mxu0 %v3923
        %4069 = vmatprep.subr.mxu0 %v3928
        %4070 = vmatpush1.msra.mxu0 %v3927
        %4071 = vmatprep.subr.mxu0 %v3932
        %4072 = vmatpush1.msra.mxu0 %v3931
        %4073 = vmatprep.subr.mxu0 %v3936
        %4074 = vmatpush1.msra.mxu0 %v3935
        %4075 = vmatprep.subr.mxu0 %v3940
        %4076 = vmatpush1.msra.mxu0 %v3939
        %4077 = vmatprep.subr.mxu0 %v3944
        %4078 = vmatpush1.msra.mxu0 %v3943
        %4079 = vmatprep.subr.mxu0 %v3948
        %4080 = vmatpush1.msra.mxu0 %v3947
        %4081 = vmatprep.subr.mxu0 %v3952
        %4082 = vmatpush1.msra.mxu0 %v3951
        %4083 = vmatprep.subr.mxu0 %v3956
        %4084 = vmatpush1.msra.mxu0 %v3955
        %4085 = vmatprep.subr.mxu0 %v3960
        %4086 = vmatpush1.msra.mxu0 %v3959
        %4087 = vmatprep.subr.mxu0 %v3964
        %4088 = vmatpush1.msra.mxu0 %v3963
        %4089 = vmatprep.subr.mxu0 %v3968
        %4090 = vmatpush1.msra.mxu0 %v3967
        %4091 = vmatprep.subr.mxu0 %v3972
        %4092 = vmatpush1.msra.mxu0 %v3971
        %4093 = vmatprep.subr.mxu0 %v3976
        %4094 = vmatpush1.msra.mxu0 %v3975
        %4095 = vmatprep.subr.mxu0 %v3980
        %4096 = vmatpush1.msra.mxu0 %v3979
        %4097 = vmatprep.subr.mxu0 %v3984
        %4098 = vmatpush1.msra.mxu0 %v3983
        %4099 = vmatprep.subr.mxu0 %v3988
        %4100 = vmatpush1.msra.mxu0 %v3987
        %4101 = vmatprep.subr.mxu0 %v3992
        %4102 = vmatpush1.msra.mxu0 %v3991
        %4103 = vmatprep.subr.mxu0 %v3996
        %4104 = vmatpush1.msra.mxu0 %v3995
        %4105 = vmatprep.subr.mxu0 %v4000
        %4106 = vmatpush1.msra.mxu0 %v3999
        %4107 = vmatprep.subr.mxu0 %v4004
        %4108 = vmatpush1.msra.mxu0 %v4003
        %4109 = vmatprep.subr.mxu0 %v4008
        %4110 = vmatpush1.msra.mxu0 %v4007
        %4111 = vmatprep.subr.mxu0 %v4012
        %4112 = vmatpush1.msra.mxu0 %v4011
        %4113 = vmatprep.subr.mxu0 %v4016
        %4114 = vmatpush1.msra.mxu0 %v4015
        %4115 = vmatprep.subr.mxu0 %v4020
        %4116 = vmatpush1.msra.mxu0 %v4019
        %4117 = vmatprep.subr.mxu0 %v4024
        %4118 = vmatpush1.msra.mxu0 %v4023
        %4119 = vmatprep.subr.mxu0 %v4028
        %4120 = vmatpush1.msra.mxu0 %v4027
        %4121 = vmatprep.subr.mxu0 %v4032
        %4122 = vmatpush1.msra.mxu0 %v4031
        %4123 = vmatprep.subr.mxu0 %v4036
        %4124 = vmatpush1.msra.mxu0 %v4035
        %4125 = vmatprep.mubr.f32.mxu0 %v3909
        %4126 = vmatmul.mubr.f32.gmra.mrb[0].mxu0 %v3906
        %v4127 = vpop.f32.mrb[0].mxu0
        %v4128 = vadd.f32 %v4044, %v4127
        %v4129 = vpop.f32.mrb[0].mxu0
        %v4130 = vadd.f32 %v4048, %v4129
        %4131 = vdwg.mxu0
        %4132 = vmatprep.subr.mxu0 %v3914
        %4133 = vmatpush1.msra.mxu0 %v3913
        %4134 = vmatprep.subr.mxu0 %v3918
        %4135 = vmatpush1.msra.mxu0 %v3917
        %4136 = vmatprep.subr.mxu0 %v3922
        %4137 = vmatpush1.msra.mxu0 %v3921
        %4138 = vmatprep.subr.mxu0 %v3926
        %4139 = vmatpush1.msra.mxu0 %v3925
        %4140 = vmatprep.subr.mxu0 %v3930
        %4141 = vmatpush1.msra.mxu0 %v3929
        %4142 = vmatprep.subr.mxu0 %v3934
        %4143 = vmatpush1.msra.mxu0 %v3933
        %4144 = vmatprep.subr.mxu0 %v3938
        %4145 = vmatpush1.msra.mxu0 %v3937
        %4146 = vmatprep.subr.mxu0 %v3942
        %4147 = vmatpush1.msra.mxu0 %v3941
        %4148 = vmatprep.subr.mxu0 %v3946
        %4149 = vmatpush1.msra.mxu0 %v3945
        %4150 = vmatprep.subr.mxu0 %v3950
        %4151 = vmatpush1.msra.mxu0 %v3949
        %4152 = vmatprep.subr.mxu0 %v3954
        %4153 = vmatpush1.msra.mxu0 %v3953
        %4154 = vmatprep.subr.mxu0 %v3958
        %4155 = vmatpush1.msra.mxu0 %v3957
        %4156 = vmatprep.subr.mxu0 %v3962
        %4157 = vmatpush1.msra.mxu0 %v3961
        %4158 = vmatprep.subr.mxu0 %v3966
        %4159 = vmatpush1.msra.mxu0 %v3965
        %4160 = vmatprep.subr.mxu0 %v3970
        %4161 = vmatpush1.msra.mxu0 %v3969
        %4162 = vmatprep.subr.mxu0 %v3974
        %4163 = vmatpush1.msra.mxu0 %v3973
        %4164 = vmatprep.subr.mxu0 %v3978
        %4165 = vmatpush1.msra.mxu0 %v3977
        %4166 = vmatprep.subr.mxu0 %v3982
        %4167 = vmatpush1.msra.mxu0 %v3981
        %4168 = vmatprep.subr.mxu0 %v3986
        %4169 = vmatpush1.msra.mxu0 %v3985
        %4170 = vmatprep.subr.mxu0 %v3990
        %4171 = vmatpush1.msra.mxu0 %v3989
        %4172 = vmatprep.subr.mxu0 %v3994
        %4173 = vmatpush1.msra.mxu0 %v3993
        %4174 = vmatprep.subr.mxu0 %v3998
        %4175 = vmatpush1.msra.mxu0 %v3997
        %4176 = vmatprep.subr.mxu0 %v4002
        %4177 = vmatpush1.msra.mxu0 %v4001
        %4178 = vmatprep.subr.mxu0 %v4006
        %4179 = vmatpush1.msra.mxu0 %v4005
        %4180 = vmatprep.subr.mxu0 %v4010
        %4181 = vmatpush1.msra.mxu0 %v4009
        %4182 = vmatprep.subr.mxu0 %v4014
        %4183 = vmatpush1.msra.mxu0 %v4013
        %4184 = vmatprep.subr.mxu0 %v4018
        %4185 = vmatpush1.msra.mxu0 %v4017
        %4186 = vmatprep.subr.mxu0 %v4022
        %4187 = vmatpush1.msra.mxu0 %v4021
        %4188 = vmatprep.subr.mxu0 %v4026
        %4189 = vmatpush1.msra.mxu0 %v4025
        %4190 = vmatprep.subr.mxu0 %v4030
        %4191 = vmatpush1.msra.mxu0 %v4029
        %4192 = vmatprep.subr.mxu0 %v4034
        %4193 = vmatpush1.msra.mxu0 %v4033
        %4194 = vmatprep.subr.mxu0 %v4038
        %4195 = vmatpush1.msra.mxu0 %v4037
        %4196 = vmatprep.mubr.f32.mxu0 %v3909
        %4197 = vmatmul.mubr.f32.gmra.mrb[0].mxu0 %v3906
        %v4198 = vpop.f32.mrb[0].mxu0
        %v4199 = vadd.f32 %v4052, %v4198
        %v4200 = vpop.f32.mrb[0].mxu0
        %v4201 = vadd.f32 %v4056, %v4200
        %4202 = vdwg.mxu0
        %v4203 = vxor.u32 %v4128, 2147483648
        %v4204 = vmul.f32 %v4203, 1.442695
        %v4205 = vpow.pop %v4204
        %v4206 = vadd.f32 %v4205, 1.0
        %v4207 = vrcp.pop %v4206
        %v4208 = vmul.f32 1.0, %v4207
        %v4209 = vxor.u32 %v4130, 2147483648
        %v4210 = vmul.f32 %v4209, 1.442695
        %v4211 = vpow.pop %v4210
        %v4212 = vadd.f32 %v4211, 1.0
        %v4213 = vrcp.pop %v4212
        %v4214 = vmul.f32 1.0, %v4213
        %v4215 = vtanh.pop %v4199
        %v4216 = vxor.u32 %v4201, 2147483648
        %v4217 = vmul.f32 %v4216, 1.442695
        %v4218 = vpow.pop %v4217
        %v4219 = vadd.f32 %v4218, 1.0
        %v4220 = vrcp.pop %v4219
        %v4221 = vmul.f32 1.0, %v4220
        %v4222 = vmul.f32 %v4214, %v3910
        %v4223 = vmul.f32 %v4208, %v4215
        %v4224 = vadd.f32 %v4222, %v4223
        %v4225 = vtanh.pop %v4224
        %v4226 = vmul.f32 %v4221, %v4225
        %4227 = vst [vmem:[%s686] sm:$0xff] %v4226
        %4228 = vst [vmem:[%s688] sm:$0xff] %v4224
        %s4229 = scalar_lea.vmem %s346, 40 [#allocation13]
        %4230 = vst [vmem:[%s4229] sm:$0xff] %v4226
        %s4231 = scalar_lea.vmem %s304, 48 [#allocation4]
        %v4232 = vld [vmem:[%s4231] sm:$0xff]
        %v4233 = vld [vmem:[#allocation2] sm:$0xff]
        %v4234 = vld [vmem:[#allocation3] sm:$0xff]
        %v4235 = vld [vmem:[#allocation7] sm:$0xff]
        %v4236 = vld [vmem:[#allocation7 + $0x8] sm:$0xff]
        %v4237 = vld [vmem:[#allocation7 + $0x10] sm:$0xff]
        %v4238 = vld [vmem:[#allocation7 + $0x18] sm:$0xff]
        %v4239 = vld [vmem:[#allocation7 + $0x20] sm:$0xff]
        %v4240 = vld [vmem:[#allocation7 + $0x28] sm:$0xff]
        %v4241 = vld [vmem:[#allocation7 + $0x30] sm:$0xff]
        %v4242 = vld [vmem:[#allocation7 + $0x38] sm:$0xff]
        %v4243 = vld [vmem:[#allocation7 + $0x40] sm:$0xff]
        %v4244 = vld [vmem:[#allocation7 + $0x48] sm:$0xff]
        %v4245 = vld [vmem:[#allocation7 + $0x50] sm:$0xff]
        %v4246 = vld [vmem:[#allocation7 + $0x58] sm:$0xff]
        %v4247 = vld [vmem:[#allocation7 + $0x60] sm:$0xff]
        %v4248 = vld [vmem:[#allocation7 + $0x68] sm:$0xff]
        %v4249 = vld [vmem:[#allocation7 + $0x70] sm:$0xff]
        %v4250 = vld [vmem:[#allocation7 + $0x78] sm:$0xff]
        %v4251 = vld [vmem:[#allocation7 + $0x80] sm:$0xff]
        %v4252 = vld [vmem:[#allocation7 + $0x88] sm:$0xff]
        %v4253 = vld [vmem:[#allocation7 + $0x90] sm:$0xff]
        %v4254 = vld [vmem:[#allocation7 + $0x98] sm:$0xff]
        %v4255 = vld [vmem:[#allocation7 + $0xa0] sm:$0xff]
        %v4256 = vld [vmem:[#allocation7 + $0xa8] sm:$0xff]
        %v4257 = vld [vmem:[#allocation7 + $0xb0] sm:$0xff]
        %v4258 = vld [vmem:[#allocation7 + $0xb8] sm:$0xff]
        %v4259 = vld [vmem:[#allocation7 + $0xc0] sm:$0xff]
        %v4260 = vld [vmem:[#allocation7 + $0xc8] sm:$0xff]
        %v4261 = vld [vmem:[#allocation7 + $0xd0] sm:$0xff]
        %v4262 = vld [vmem:[#allocation7 + $0xd8] sm:$0xff]
        %v4263 = vld [vmem:[#allocation7 + $0xe0] sm:$0xff]
        %v4264 = vld [vmem:[#allocation7 + $0xe8] sm:$0xff]
        %v4265 = vld [vmem:[#allocation7 + $0xf0] sm:$0xff]
        %v4266 = vld [vmem:[#allocation7 + $0xf8] sm:$0xff]
        %v4267 = vld [vmem:[#allocation7 + $0x100] sm:$0xff]
        %v4268 = vld [vmem:[#allocation7 + $0x108] sm:$0xff]
        %v4269 = vld [vmem:[#allocation7 + $0x110] sm:$0xff]
        %v4270 = vld [vmem:[#allocation7 + $0x118] sm:$0xff]
        %v4271 = vld [vmem:[#allocation7 + $0x120] sm:$0xff]
        %v4272 = vld [vmem:[#allocation7 + $0x128] sm:$0xff]
        %v4273 = vld [vmem:[#allocation7 + $0x130] sm:$0xff]
        %v4274 = vld [vmem:[#allocation7 + $0x138] sm:$0xff]
        %v4275 = vld [vmem:[#allocation7 + $0x140] sm:$0xff]
        %v4276 = vld [vmem:[#allocation7 + $0x148] sm:$0xff]
        %v4277 = vld [vmem:[#allocation7 + $0x150] sm:$0xff]
        %v4278 = vld [vmem:[#allocation7 + $0x158] sm:$0xff]
        %v4279 = vld [vmem:[#allocation7 + $0x160] sm:$0xff]
        %v4280 = vld [vmem:[#allocation7 + $0x168] sm:$0xff]
        %v4281 = vld [vmem:[#allocation7 + $0x170] sm:$0xff]
        %v4282 = vld [vmem:[#allocation7 + $0x178] sm:$0xff]
        %v4283 = vld [vmem:[#allocation7 + $0x180] sm:$0xff]
        %v4284 = vld [vmem:[#allocation7 + $0x188] sm:$0xff]
        %v4285 = vld [vmem:[#allocation7 + $0x190] sm:$0xff]
        %v4286 = vld [vmem:[#allocation7 + $0x198] sm:$0xff]
        %v4287 = vld [vmem:[#allocation7 + $0x1a0] sm:$0xff]
        %v4288 = vld [vmem:[#allocation7 + $0x1a8] sm:$0xff]
        %v4289 = vld [vmem:[#allocation7 + $0x1b0] sm:$0xff]
        %v4290 = vld [vmem:[#allocation7 + $0x1b8] sm:$0xff]
        %v4291 = vld [vmem:[#allocation7 + $0x1c0] sm:$0xff]
        %v4292 = vld [vmem:[#allocation7 + $0x1c8] sm:$0xff]
        %v4293 = vld [vmem:[#allocation7 + $0x1d0] sm:$0xff]
        %v4294 = vld [vmem:[#allocation7 + $0x1d8] sm:$0xff]
        %v4295 = vld [vmem:[#allocation7 + $0x1e0] sm:$0xff]
        %v4296 = vld [vmem:[#allocation7 + $0x1e8] sm:$0xff]
        %v4297 = vld [vmem:[#allocation7 + $0x1f0] sm:$0xff]
        %v4298 = vld [vmem:[#allocation7 + $0x1f8] sm:$0xff]
        %v4299 = vld [vmem:[#allocation7 + $0x200] sm:$0xff]
        %v4300 = vld [vmem:[#allocation7 + $0x208] sm:$0xff]
        %v4301 = vld [vmem:[#allocation7 + $0x210] sm:$0xff]
        %v4302 = vld [vmem:[#allocation7 + $0x218] sm:$0xff]
        %v4303 = vld [vmem:[#allocation7 + $0x220] sm:$0xff]
        %v4304 = vld [vmem:[#allocation7 + $0x228] sm:$0xff]
        %v4305 = vld [vmem:[#allocation7 + $0x230] sm:$0xff]
        %v4306 = vld [vmem:[#allocation7 + $0x238] sm:$0xff]
        %v4307 = vld [vmem:[#allocation7 + $0x240] sm:$0xff]
        %v4308 = vld [vmem:[#allocation7 + $0x248] sm:$0xff]
        %v4309 = vld [vmem:[#allocation7 + $0x250] sm:$0xff]
        %v4310 = vld [vmem:[#allocation7 + $0x258] sm:$0xff]
        %v4311 = vld [vmem:[#allocation7 + $0x260] sm:$0xff]
        %v4312 = vld [vmem:[#allocation7 + $0x268] sm:$0xff]
        %v4313 = vld [vmem:[#allocation7 + $0x270] sm:$0xff]
        %v4314 = vld [vmem:[#allocation7 + $0x278] sm:$0xff]
        %v4315 = vld [vmem:[#allocation7 + $0x280] sm:$0xff]
        %v4316 = vld [vmem:[#allocation7 + $0x288] sm:$0xff]
        %v4317 = vld [vmem:[#allocation7 + $0x290] sm:$0xff]
        %v4318 = vld [vmem:[#allocation7 + $0x298] sm:$0xff]
        %v4319 = vld [vmem:[#allocation7 + $0x2a0] sm:$0xff]
        %v4320 = vld [vmem:[#allocation7 + $0x2a8] sm:$0xff]
        %v4321 = vld [vmem:[#allocation7 + $0x2b0] sm:$0xff]
        %v4322 = vld [vmem:[#allocation7 + $0x2b8] sm:$0xff]
        %v4323 = vld [vmem:[#allocation7 + $0x2c0] sm:$0xff]
        %v4324 = vld [vmem:[#allocation7 + $0x2c8] sm:$0xff]
        %v4325 = vld [vmem:[#allocation7 + $0x2d0] sm:$0xff]
        %v4326 = vld [vmem:[#allocation7 + $0x2d8] sm:$0xff]
        %v4327 = vld [vmem:[#allocation7 + $0x2e0] sm:$0xff]
        %v4328 = vld [vmem:[#allocation7 + $0x2e8] sm:$0xff]
        %v4329 = vld [vmem:[#allocation7 + $0x2f0] sm:$0xff]
        %v4330 = vld [vmem:[#allocation7 + $0x2f8] sm:$0xff]
        %v4331 = vld [vmem:[#allocation7 + $0x300] sm:$0xff]
        %v4332 = vld [vmem:[#allocation7 + $0x308] sm:$0xff]
        %v4333 = vld [vmem:[#allocation7 + $0x310] sm:$0xff]
        %v4334 = vld [vmem:[#allocation7 + $0x318] sm:$0xff]
        %v4335 = vld [vmem:[#allocation7 + $0x320] sm:$0xff]
        %v4336 = vld [vmem:[#allocation7 + $0x328] sm:$0xff]
        %v4337 = vld [vmem:[#allocation7 + $0x330] sm:$0xff]
        %v4338 = vld [vmem:[#allocation7 + $0x338] sm:$0xff]
        %v4339 = vld [vmem:[#allocation7 + $0x340] sm:$0xff]
        %v4340 = vld [vmem:[#allocation7 + $0x348] sm:$0xff]
        %v4341 = vld [vmem:[#allocation7 + $0x350] sm:$0xff]
        %v4342 = vld [vmem:[#allocation7 + $0x358] sm:$0xff]
        %v4343 = vld [vmem:[#allocation7 + $0x360] sm:$0xff]
        %v4344 = vld [vmem:[#allocation7 + $0x368] sm:$0xff]
        %v4345 = vld [vmem:[#allocation7 + $0x370] sm:$0xff]
        %v4346 = vld [vmem:[#allocation7 + $0x378] sm:$0xff]
        %v4347 = vld [vmem:[#allocation7 + $0x380] sm:$0xff]
        %v4348 = vld [vmem:[#allocation7 + $0x388] sm:$0xff]
        %v4349 = vld [vmem:[#allocation7 + $0x390] sm:$0xff]
        %v4350 = vld [vmem:[#allocation7 + $0x398] sm:$0xff]
        %v4351 = vld [vmem:[#allocation7 + $0x3a0] sm:$0xff]
        %v4352 = vld [vmem:[#allocation7 + $0x3a8] sm:$0xff]
        %v4353 = vld [vmem:[#allocation7 + $0x3b0] sm:$0xff]
        %v4354 = vld [vmem:[#allocation7 + $0x3b8] sm:$0xff]
        %v4355 = vld [vmem:[#allocation7 + $0x3c0] sm:$0xff]
        %v4356 = vld [vmem:[#allocation7 + $0x3c8] sm:$0xff]
        %v4357 = vld [vmem:[#allocation7 + $0x3d0] sm:$0xff]
        %v4358 = vld [vmem:[#allocation7 + $0x3d8] sm:$0xff]
        %v4359 = vld [vmem:[#allocation7 + $0x3e0] sm:$0xff]
        %v4360 = vld [vmem:[#allocation7 + $0x3e8] sm:$0xff]
        %v4361 = vld [vmem:[#allocation7 + $0x3f0] sm:$0xff]
        %v4362 = vld [vmem:[#allocation7 + $0x3f8] sm:$0xff]
        %v4363 = vld [vmem:[#allocation9] sm:$0xf]
        %v4365 = vlaneseq
        %v4366 = vshrl.u32 %v4365, 7
        %v4367 = vsub.s32 0, %v4366
        %v4368 = vrot.slane %v4363, %v4367
        %v4369 = vlaneseq
        %v4370 = vshrl.u32 %v4369, 7
        %v4371 = vsub.s32 1, %v4370
        %v4372 = vrot.slane %v4363, %v4371
        %v4373 = vlaneseq
        %v4374 = vshrl.u32 %v4373, 7
        %v4375 = vsub.s32 2, %v4374
        %v4376 = vrot.slane %v4363, %v4375
        %v4377 = vlaneseq
        %v4378 = vshrl.u32 %v4377, 7
        %v4379 = vsub.s32 3, %v4378
        %v4380 = vrot.slane %v4363, %v4379
        %4385 = vmatprep.subr.mxu0 %v4236
        %4386 = vmatpush1.msra.mxu0 %v4235
        %4387 = vmatprep.subr.mxu0 %v4240
        %4388 = vmatpush1.msra.mxu0 %v4239
        %4389 = vmatprep.subr.mxu0 %v4244
        %4390 = vmatpush1.msra.mxu0 %v4243
        %4391 = vmatprep.subr.mxu0 %v4248
        %4392 = vmatpush1.msra.mxu0 %v4247
        %4393 = vmatprep.subr.mxu0 %v4252
        %4394 = vmatpush1.msra.mxu0 %v4251
        %4395 = vmatprep.subr.mxu0 %v4256
        %4396 = vmatpush1.msra.mxu0 %v4255
        %4397 = vmatprep.subr.mxu0 %v4260
        %4398 = vmatpush1.msra.mxu0 %v4259
        %4399 = vmatprep.subr.mxu0 %v4264
        %4400 = vmatpush1.msra.mxu0 %v4263
        %4401 = vmatprep.subr.mxu0 %v4268
        %4402 = vmatpush1.msra.mxu0 %v4267
        %4403 = vmatprep.subr.mxu0 %v4272
        %4404 = vmatpush1.msra.mxu0 %v4271
        %4405 = vmatprep.subr.mxu0 %v4276
        %4406 = vmatpush1.msra.mxu0 %v4275
        %4407 = vmatprep.subr.mxu0 %v4280
        %4408 = vmatpush1.msra.mxu0 %v4279
        %4409 = vmatprep.subr.mxu0 %v4284
        %4410 = vmatpush1.msra.mxu0 %v4283
        %4411 = vmatprep.subr.mxu0 %v4288
        %4412 = vmatpush1.msra.mxu0 %v4287
        %4413 = vmatprep.subr.mxu0 %v4292
        %4414 = vmatpush1.msra.mxu0 %v4291
        %4415 = vmatprep.subr.mxu0 %v4296
        %4416 = vmatpush1.msra.mxu0 %v4295
        %4417 = vmatprep.subr.mxu0 %v4300
        %4418 = vmatpush1.msra.mxu0 %v4299
        %4419 = vmatprep.subr.mxu0 %v4304
        %4420 = vmatpush1.msra.mxu0 %v4303
        %4421 = vmatprep.subr.mxu0 %v4308
        %4422 = vmatpush1.msra.mxu0 %v4307
        %4423 = vmatprep.subr.mxu0 %v4312
        %4424 = vmatpush1.msra.mxu0 %v4311
        %4425 = vmatprep.subr.mxu0 %v4316
        %4426 = vmatpush1.msra.mxu0 %v4315
        %4427 = vmatprep.subr.mxu0 %v4320
        %4428 = vmatpush1.msra.mxu0 %v4319
        %4429 = vmatprep.subr.mxu0 %v4324
        %4430 = vmatpush1.msra.mxu0 %v4323
        %4431 = vmatprep.subr.mxu0 %v4328
        %4432 = vmatpush1.msra.mxu0 %v4327
        %4433 = vmatprep.subr.mxu0 %v4332
        %4434 = vmatpush1.msra.mxu0 %v4331
        %4435 = vmatprep.subr.mxu0 %v4336
        %4436 = vmatpush1.msra.mxu0 %v4335
        %4437 = vmatprep.subr.mxu0 %v4340
        %4438 = vmatpush1.msra.mxu0 %v4339
        %4439 = vmatprep.subr.mxu0 %v4344
        %4440 = vmatpush1.msra.mxu0 %v4343
        %4441 = vmatprep.subr.mxu0 %v4348
        %4442 = vmatpush1.msra.mxu0 %v4347
        %4443 = vmatprep.subr.mxu0 %v4352
        %4444 = vmatpush1.msra.mxu0 %v4351
        %4445 = vmatprep.subr.mxu0 %v4356
        %4446 = vmatpush1.msra.mxu0 %v4355
        %4447 = vmatprep.subr.mxu0 %v4360
        %4448 = vmatpush1.msra.mxu0 %v4359
        %4449 = vmatprep.mubr.f32.mxu0 %v4233
        %4450 = vmatmul.mubr.f32.gmra.mrb[0].mxu0 %v4232
        %v4451 = vpop.f32.mrb[0].mxu0
        %v4452 = vadd.f32 %v4368, %v4451
        %v4453 = vpop.f32.mrb[0].mxu0
        %v4454 = vadd.f32 %v4372, %v4453
        %4455 = vdwg.mxu0
        %4456 = vmatprep.subr.mxu0 %v4238
        %4457 = vmatpush1.msra.mxu0 %v4237
        %4458 = vmatprep.subr.mxu0 %v4242
        %4459 = vmatpush1.msra.mxu0 %v4241
        %4460 = vmatprep.subr.mxu0 %v4246
        %4461 = vmatpush1.msra.mxu0 %v4245
        %4462 = vmatprep.subr.mxu0 %v4250
        %4463 = vmatpush1.msra.mxu0 %v4249
        %4464 = vmatprep.subr.mxu0 %v4254
        %4465 = vmatpush1.msra.mxu0 %v4253
        %4466 = vmatprep.subr.mxu0 %v4258
        %4467 = vmatpush1.msra.mxu0 %v4257
        %4468 = vmatprep.subr.mxu0 %v4262
        %4469 = vmatpush1.msra.mxu0 %v4261
        %4470 = vmatprep.subr.mxu0 %v4266
        %4471 = vmatpush1.msra.mxu0 %v4265
        %4472 = vmatprep.subr.mxu0 %v4270
        %4473 = vmatpush1.msra.mxu0 %v4269
        %4474 = vmatprep.subr.mxu0 %v4274
        %4475 = vmatpush1.msra.mxu0 %v4273
        %4476 = vmatprep.subr.mxu0 %v4278
        %4477 = vmatpush1.msra.mxu0 %v4277
        %4478 = vmatprep.subr.mxu0 %v4282
        %4479 = vmatpush1.msra.mxu0 %v4281
        %4480 = vmatprep.subr.mxu0 %v4286
        %4481 = vmatpush1.msra.mxu0 %v4285
        %4482 = vmatprep.subr.mxu0 %v4290
        %4483 = vmatpush1.msra.mxu0 %v4289
        %4484 = vmatprep.subr.mxu0 %v4294
        %4485 = vmatpush1.msra.mxu0 %v4293
        %4486 = vmatprep.subr.mxu0 %v4298
        %4487 = vmatpush1.msra.mxu0 %v4297
        %4488 = vmatprep.subr.mxu0 %v4302
        %4489 = vmatpush1.msra.mxu0 %v4301
        %4490 = vmatprep.subr.mxu0 %v4306
        %4491 = vmatpush1.msra.mxu0 %v4305
        %4492 = vmatprep.subr.mxu0 %v4310
        %4493 = vmatpush1.msra.mxu0 %v4309
        %4494 = vmatprep.subr.mxu0 %v4314
        %4495 = vmatpush1.msra.mxu0 %v4313
        %4496 = vmatprep.subr.mxu0 %v4318
        %4497 = vmatpush1.msra.mxu0 %v4317
        %4498 = vmatprep.subr.mxu0 %v4322
        %4499 = vmatpush1.msra.mxu0 %v4321
        %4500 = vmatprep.subr.mxu0 %v4326
        %4501 = vmatpush1.msra.mxu0 %v4325
        %4502 = vmatprep.subr.mxu0 %v4330
        %4503 = vmatpush1.msra.mxu0 %v4329
        %4504 = vmatprep.subr.mxu0 %v4334
        %4505 = vmatpush1.msra.mxu0 %v4333
        %4506 = vmatprep.subr.mxu0 %v4338
        %4507 = vmatpush1.msra.mxu0 %v4337
        %4508 = vmatprep.subr.mxu0 %v4342
        %4509 = vmatpush1.msra.mxu0 %v4341
        %4510 = vmatprep.subr.mxu0 %v4346
        %4511 = vmatpush1.msra.mxu0 %v4345
        %4512 = vmatprep.subr.mxu0 %v4350
        %4513 = vmatpush1.msra.mxu0 %v4349
        %4514 = vmatprep.subr.mxu0 %v4354
        %4515 = vmatpush1.msra.mxu0 %v4353
        %4516 = vmatprep.subr.mxu0 %v4358
        %4517 = vmatpush1.msra.mxu0 %v4357
        %4518 = vmatprep.subr.mxu0 %v4362
        %4519 = vmatpush1.msra.mxu0 %v4361
        %4520 = vmatprep.mubr.f32.mxu0 %v4233
        %4521 = vmatmul.mubr.f32.gmra.mrb[0].mxu0 %v4232
        %v4522 = vpop.f32.mrb[0].mxu0
        %v4523 = vadd.f32 %v4376, %v4522
        %v4524 = vpop.f32.mrb[0].mxu0
        %v4525 = vadd.f32 %v4380, %v4524
        %4526 = vdwg.mxu0
        %v4527 = vxor.u32 %v4452, 2147483648
        %v4528 = vmul.f32 %v4527, 1.442695
        %v4529 = vpow.pop %v4528
        %v4530 = vadd.f32 %v4529, 1.0
        %v4531 = vrcp.pop %v4530
        %v4532 = vmul.f32 1.0, %v4531
        %v4533 = vxor.u32 %v4454, 2147483648
        %v4534 = vmul.f32 %v4533, 1.442695
        %v4535 = vpow.pop %v4534
        %v4536 = vadd.f32 %v4535, 1.0
        %v4537 = vrcp.pop %v4536
        %v4538 = vmul.f32 1.0, %v4537
        %v4539 = vtanh.pop %v4523
        %v4540 = vxor.u32 %v4525, 2147483648
        %v4541 = vmul.f32 %v4540, 1.442695
        %v4542 = vpow.pop %v4541
        %v4543 = vadd.f32 %v4542, 1.0
        %v4544 = vrcp.pop %v4543
        %v4545 = vmul.f32 1.0, %v4544
        %v4546 = vmul.f32 %v4538, %v4234
        %v4547 = vmul.f32 %v4532, %v4539
        %v4548 = vadd.f32 %v4546, %v4547
        %v4549 = vtanh.pop %v4548
        %v4550 = vmul.f32 %v4545, %v4549
        %4551 = vst [vmem:[#allocation2] sm:$0xff] %v4550
        %4552 = vst [vmem:[#allocation3] sm:$0xff] %v4548
        %v4553 = vld [vmem:[%s686] sm:$0xff]
        %v4554 = vld [vmem:[%s688] sm:$0xff]
        %v4555 = vld [vmem:[%s690] sm:$0xff]
        %v4556 = vld [vmem:[%s690 + $0x8] sm:$0xff]
        %v4557 = vld [vmem:[%s690 + $0x10] sm:$0xff]
        %v4558 = vld [vmem:[%s690 + $0x18] sm:$0xff]
        %v4559 = vld [vmem:[%s690 + $0x20] sm:$0xff]
        %v4560 = vld [vmem:[%s690 + $0x28] sm:$0xff]
        %v4561 = vld [vmem:[%s690 + $0x30] sm:$0xff]
        %v4562 = vld [vmem:[%s690 + $0x38] sm:$0xff]
        %v4563 = vld [vmem:[%s690 + $0x40] sm:$0xff]
        %v4564 = vld [vmem:[%s690 + $0x48] sm:$0xff]
        %v4565 = vld [vmem:[%s690 + $0x50] sm:$0xff]
        %v4566 = vld [vmem:[%s690 + $0x58] sm:$0xff]
        %v4567 = vld [vmem:[%s690 + $0x60] sm:$0xff]
        %v4568 = vld [vmem:[%s690 + $0x68] sm:$0xff]
        %v4569 = vld [vmem:[%s690 + $0x70] sm:$0xff]
        %v4570 = vld [vmem:[%s690 + $0x78] sm:$0xff]
        %v4571 = vld [vmem:[%s690 + $0x80] sm:$0xff]
        %v4572 = vld [vmem:[%s690 + $0x88] sm:$0xff]
        %v4573 = vld [vmem:[%s690 + $0x90] sm:$0xff]
        %v4574 = vld [vmem:[%s690 + $0x98] sm:$0xff]
        %v4575 = vld [vmem:[%s690 + $0xa0] sm:$0xff]
        %v4576 = vld [vmem:[%s690 + $0xa8] sm:$0xff]
        %v4577 = vld [vmem:[%s690 + $0xb0] sm:$0xff]
        %v4578 = vld [vmem:[%s690 + $0xb8] sm:$0xff]
        %v4579 = vld [vmem:[%s690 + $0xc0] sm:$0xff]
        %v4580 = vld [vmem:[%s690 + $0xc8] sm:$0xff]
        %v4581 = vld [vmem:[%s690 + $0xd0] sm:$0xff]
        %v4582 = vld [vmem:[%s690 + $0xd8] sm:$0xff]
        %v4583 = vld [vmem:[%s690 + $0xe0] sm:$0xff]
        %v4584 = vld [vmem:[%s690 + $0xe8] sm:$0xff]
        %v4585 = vld [vmem:[%s690 + $0xf0] sm:$0xff]
        %v4586 = vld [vmem:[%s690 + $0xf8] sm:$0xff]
        %v4587 = vld [vmem:[%s690 + $0x100] sm:$0xff]
        %v4588 = vld [vmem:[%s690 + $0x108] sm:$0xff]
        %v4589 = vld [vmem:[%s690 + $0x110] sm:$0xff]
        %v4590 = vld [vmem:[%s690 + $0x118] sm:$0xff]
        %v4591 = vld [vmem:[%s690 + $0x120] sm:$0xff]
        %v4592 = vld [vmem:[%s690 + $0x128] sm:$0xff]
        %v4593 = vld [vmem:[%s690 + $0x130] sm:$0xff]
        %v4594 = vld [vmem:[%s690 + $0x138] sm:$0xff]
        %v4595 = vld [vmem:[%s690 + $0x140] sm:$0xff]
        %v4596 = vld [vmem:[%s690 + $0x148] sm:$0xff]
        %v4597 = vld [vmem:[%s690 + $0x150] sm:$0xff]
        %v4598 = vld [vmem:[%s690 + $0x158] sm:$0xff]
        %v4599 = vld [vmem:[%s690 + $0x160] sm:$0xff]
        %v4600 = vld [vmem:[%s690 + $0x168] sm:$0xff]
        %v4601 = vld [vmem:[%s690 + $0x170] sm:$0xff]
        %v4602 = vld [vmem:[%s690 + $0x178] sm:$0xff]
        %v4603 = vld [vmem:[%s690 + $0x180] sm:$0xff]
        %v4604 = vld [vmem:[%s690 + $0x188] sm:$0xff]
        %v4605 = vld [vmem:[%s690 + $0x190] sm:$0xff]
        %v4606 = vld [vmem:[%s690 + $0x198] sm:$0xff]
        %v4607 = vld [vmem:[%s690 + $0x1a0] sm:$0xff]
        %v4608 = vld [vmem:[%s690 + $0x1a8] sm:$0xff]
        %v4609 = vld [vmem:[%s690 + $0x1b0] sm:$0xff]
        %v4610 = vld [vmem:[%s690 + $0x1b8] sm:$0xff]
        %v4611 = vld [vmem:[%s690 + $0x1c0] sm:$0xff]
        %v4612 = vld [vmem:[%s690 + $0x1c8] sm:$0xff]
        %v4613 = vld [vmem:[%s690 + $0x1d0] sm:$0xff]
        %v4614 = vld [vmem:[%s690 + $0x1d8] sm:$0xff]
        %v4615 = vld [vmem:[%s690 + $0x1e0] sm:$0xff]
        %v4616 = vld [vmem:[%s690 + $0x1e8] sm:$0xff]
        %v4617 = vld [vmem:[%s690 + $0x1f0] sm:$0xff]
        %v4618 = vld [vmem:[%s690 + $0x1f8] sm:$0xff]
        %v4619 = vld [vmem:[%s690 + $0x200] sm:$0xff]
        %v4620 = vld [vmem:[%s690 + $0x208] sm:$0xff]
        %v4621 = vld [vmem:[%s690 + $0x210] sm:$0xff]
        %v4622 = vld [vmem:[%s690 + $0x218] sm:$0xff]
        %v4623 = vld [vmem:[%s690 + $0x220] sm:$0xff]
        %v4624 = vld [vmem:[%s690 + $0x228] sm:$0xff]
        %v4625 = vld [vmem:[%s690 + $0x230] sm:$0xff]
        %v4626 = vld [vmem:[%s690 + $0x238] sm:$0xff]
        %v4627 = vld [vmem:[%s690 + $0x240] sm:$0xff]
        %v4628 = vld [vmem:[%s690 + $0x248] sm:$0xff]
        %v4629 = vld [vmem:[%s690 + $0x250] sm:$0xff]
        %v4630 = vld [vmem:[%s690 + $0x258] sm:$0xff]
        %v4631 = vld [vmem:[%s690 + $0x260] sm:$0xff]
        %v4632 = vld [vmem:[%s690 + $0x268] sm:$0xff]
        %v4633 = vld [vmem:[%s690 + $0x270] sm:$0xff]
        %v4634 = vld [vmem:[%s690 + $0x278] sm:$0xff]
        %v4635 = vld [vmem:[%s690 + $0x280] sm:$0xff]
        %v4636 = vld [vmem:[%s690 + $0x288] sm:$0xff]
        %v4637 = vld [vmem:[%s690 + $0x290] sm:$0xff]
        %v4638 = vld [vmem:[%s690 + $0x298] sm:$0xff]
        %v4639 = vld [vmem:[%s690 + $0x2a0] sm:$0xff]
        %v4640 = vld [vmem:[%s690 + $0x2a8] sm:$0xff]
        %v4641 = vld [vmem:[%s690 + $0x2b0] sm:$0xff]
        %v4642 = vld [vmem:[%s690 + $0x2b8] sm:$0xff]
        %v4643 = vld [vmem:[%s690 + $0x2c0] sm:$0xff]
        %v4644 = vld [vmem:[%s690 + $0x2c8] sm:$0xff]
        %v4645 = vld [vmem:[%s690 + $0x2d0] sm:$0xff]
        %v4646 = vld [vmem:[%s690 + $0x2d8] sm:$0xff]
        %v4647 = vld [vmem:[%s690 + $0x2e0] sm:$0xff]
        %v4648 = vld [vmem:[%s690 + $0x2e8] sm:$0xff]
        %v4649 = vld [vmem:[%s690 + $0x2f0] sm:$0xff]
        %v4650 = vld [vmem:[%s690 + $0x2f8] sm:$0xff]
        %v4651 = vld [vmem:[%s690 + $0x300] sm:$0xff]
        %v4652 = vld [vmem:[%s690 + $0x308] sm:$0xff]
        %v4653 = vld [vmem:[%s690 + $0x310] sm:$0xff]
        %v4654 = vld [vmem:[%s690 + $0x318] sm:$0xff]
        %v4655 = vld [vmem:[%s690 + $0x320] sm:$0xff]
        %v4656 = vld [vmem:[%s690 + $0x328] sm:$0xff]
        %v4657 = vld [vmem:[%s690 + $0x330] sm:$0xff]
        %v4658 = vld [vmem:[%s690 + $0x338] sm:$0xff]
        %v4659 = vld [vmem:[%s690 + $0x340] sm:$0xff]
        %v4660 = vld [vmem:[%s690 + $0x348] sm:$0xff]
        %v4661 = vld [vmem:[%s690 + $0x350] sm:$0xff]
        %v4662 = vld [vmem:[%s690 + $0x358] sm:$0xff]
        %v4663 = vld [vmem:[%s690 + $0x360] sm:$0xff]
        %v4664 = vld [vmem:[%s690 + $0x368] sm:$0xff]
        %v4665 = vld [vmem:[%s690 + $0x370] sm:$0xff]
        %v4666 = vld [vmem:[%s690 + $0x378] sm:$0xff]
        %v4667 = vld [vmem:[%s690 + $0x380] sm:$0xff]
        %v4668 = vld [vmem:[%s690 + $0x388] sm:$0xff]
        %v4669 = vld [vmem:[%s690 + $0x390] sm:$0xff]
        %v4670 = vld [vmem:[%s690 + $0x398] sm:$0xff]
        %v4671 = vld [vmem:[%s690 + $0x3a0] sm:$0xff]
        %v4672 = vld [vmem:[%s690 + $0x3a8] sm:$0xff]
        %v4673 = vld [vmem:[%s690 + $0x3b0] sm:$0xff]
        %v4674 = vld [vmem:[%s690 + $0x3b8] sm:$0xff]
        %v4675 = vld [vmem:[%s690 + $0x3c0] sm:$0xff]
        %v4676 = vld [vmem:[%s690 + $0x3c8] sm:$0xff]
        %v4677 = vld [vmem:[%s690 + $0x3d0] sm:$0xff]
        %v4678 = vld [vmem:[%s690 + $0x3d8] sm:$0xff]
        %v4679 = vld [vmem:[%s690 + $0x3e0] sm:$0xff]
        %v4680 = vld [vmem:[%s690 + $0x3e8] sm:$0xff]
        %v4681 = vld [vmem:[%s690 + $0x3f0] sm:$0xff]
        %v4682 = vld [vmem:[%s690 + $0x3f8] sm:$0xff]
        %v4683 = vld [vmem:[%s819] sm:$0xf]
        %v4685 = vlaneseq
        %v4686 = vshrl.u32 %v4685, 7
        %v4687 = vsub.s32 0, %v4686
        %v4688 = vrot.slane %v4683, %v4687
        %v4689 = vlaneseq
        %v4690 = vshrl.u32 %v4689, 7
        %v4691 = vsub.s32 1, %v4690
        %v4692 = vrot.slane %v4683, %v4691
        %v4693 = vlaneseq
        %v4694 = vshrl.u32 %v4693, 7
        %v4695 = vsub.s32 2, %v4694
        %v4696 = vrot.slane %v4683, %v4695
        %v4697 = vlaneseq
        %v4698 = vshrl.u32 %v4697, 7
        %v4699 = vsub.s32 3, %v4698
        %v4700 = vrot.slane %v4683, %v4699
        %4705 = vmatprep.subr.mxu0 %v4556
        %4706 = vmatpush1.msra.mxu0 %v4555
        %4707 = vmatprep.subr.mxu0 %v4560
        %4708 = vmatpush1.msra.mxu0 %v4559
        %4709 = vmatprep.subr.mxu0 %v4564
        %4710 = vmatpush1.msra.mxu0 %v4563
        %4711 = vmatprep.subr.mxu0 %v4568
        %4712 = vmatpush1.msra.mxu0 %v4567
        %4713 = vmatprep.subr.mxu0 %v4572
        %4714 = vmatpush1.msra.mxu0 %v4571
        %4715 = vmatprep.subr.mxu0 %v4576
        %4716 = vmatpush1.msra.mxu0 %v4575
        %4717 = vmatprep.subr.mxu0 %v4580
        %4718 = vmatpush1.msra.mxu0 %v4579
        %4719 = vmatprep.subr.mxu0 %v4584
        %4720 = vmatpush1.msra.mxu0 %v4583
        %4721 = vmatprep.subr.mxu0 %v4588
        %4722 = vmatpush1.msra.mxu0 %v4587
        %4723 = vmatprep.subr.mxu0 %v4592
        %4724 = vmatpush1.msra.mxu0 %v4591
        %4725 = vmatprep.subr.mxu0 %v4596
        %4726 = vmatpush1.msra.mxu0 %v4595
        %4727 = vmatprep.subr.mxu0 %v4600
        %4728 = vmatpush1.msra.mxu0 %v4599
        %4729 = vmatprep.subr.mxu0 %v4604
        %4730 = vmatpush1.msra.mxu0 %v4603
        %4731 = vmatprep.subr.mxu0 %v4608
        %4732 = vmatpush1.msra.mxu0 %v4607
        %4733 = vmatprep.subr.mxu0 %v4612
        %4734 = vmatpush1.msra.mxu0 %v4611
        %4735 = vmatprep.subr.mxu0 %v4616
        %4736 = vmatpush1.msra.mxu0 %v4615
        %4737 = vmatprep.subr.mxu0 %v4620
        %4738 = vmatpush1.msra.mxu0 %v4619
        %4739 = vmatprep.subr.mxu0 %v4624
        %4740 = vmatpush1.msra.mxu0 %v4623
        %4741 = vmatprep.subr.mxu0 %v4628
        %4742 = vmatpush1.msra.mxu0 %v4627
        %4743 = vmatprep.subr.mxu0 %v4632
        %4744 = vmatpush1.msra.mxu0 %v4631
        %4745 = vmatprep.subr.mxu0 %v4636
        %4746 = vmatpush1.msra.mxu0 %v4635
        %4747 = vmatprep.subr.mxu0 %v4640
        %4748 = vmatpush1.msra.mxu0 %v4639
        %4749 = vmatprep.subr.mxu0 %v4644
        %4750 = vmatpush1.msra.mxu0 %v4643
        %4751 = vmatprep.subr.mxu0 %v4648
        %4752 = vmatpush1.msra.mxu0 %v4647
        %4753 = vmatprep.subr.mxu0 %v4652
        %4754 = vmatpush1.msra.mxu0 %v4651
        %4755 = vmatprep.subr.mxu0 %v4656
        %4756 = vmatpush1.msra.mxu0 %v4655
        %4757 = vmatprep.subr.mxu0 %v4660
        %4758 = vmatpush1.msra.mxu0 %v4659
        %4759 = vmatprep.subr.mxu0 %v4664
        %4760 = vmatpush1.msra.mxu0 %v4663
        %4761 = vmatprep.subr.mxu0 %v4668
        %4762 = vmatpush1.msra.mxu0 %v4667
        %4763 = vmatprep.subr.mxu0 %v4672
        %4764 = vmatpush1.msra.mxu0 %v4671
        %4765 = vmatprep.subr.mxu0 %v4676
        %4766 = vmatpush1.msra.mxu0 %v4675
        %4767 = vmatprep.subr.mxu0 %v4680
        %4768 = vmatpush1.msra.mxu0 %v4679
        %4769 = vmatprep.mubr.f32.mxu0 %v4553
        %4770 = vmatmul.mubr.f32.gmra.mrb[0].mxu0 %v4550
        %v4771 = vpop.f32.mrb[0].mxu0
        %v4772 = vadd.f32 %v4688, %v4771
        %v4773 = vpop.f32.mrb[0].mxu0
        %v4774 = vadd.f32 %v4692, %v4773
        %4775 = vdwg.mxu0
        %4776 = vmatprep.subr.mxu0 %v4558
        %4777 = vmatpush1.msra.mxu0 %v4557
        %4778 = vmatprep.subr.mxu0 %v4562
        %4779 = vmatpush1.msra.mxu0 %v4561
        %4780 = vmatprep.subr.mxu0 %v4566
        %4781 = vmatpush1.msra.mxu0 %v4565
        %4782 = vmatprep.subr.mxu0 %v4570
        %4783 = vmatpush1.msra.mxu0 %v4569
        %4784 = vmatprep.subr.mxu0 %v4574
        %4785 = vmatpush1.msra.mxu0 %v4573
        %4786 = vmatprep.subr.mxu0 %v4578
        %4787 = vmatpush1.msra.mxu0 %v4577
        %4788 = vmatprep.subr.mxu0 %v4582
        %4789 = vmatpush1.msra.mxu0 %v4581
        %4790 = vmatprep.subr.mxu0 %v4586
        %4791 = vmatpush1.msra.mxu0 %v4585
        %4792 = vmatprep.subr.mxu0 %v4590
        %4793 = vmatpush1.msra.mxu0 %v4589
        %4794 = vmatprep.subr.mxu0 %v4594
        %4795 = vmatpush1.msra.mxu0 %v4593
        %4796 = vmatprep.subr.mxu0 %v4598
        %4797 = vmatpush1.msra.mxu0 %v4597
        %4798 = vmatprep.subr.mxu0 %v4602
        %4799 = vmatpush1.msra.mxu0 %v4601
        %4800 = vmatprep.subr.mxu0 %v4606
        %4801 = vmatpush1.msra.mxu0 %v4605
        %4802 = vmatprep.subr.mxu0 %v4610
        %4803 = vmatpush1.msra.mxu0 %v4609
        %4804 = vmatprep.subr.mxu0 %v4614
        %4805 = vmatpush1.msra.mxu0 %v4613
        %4806 = vmatprep.subr.mxu0 %v4618
        %4807 = vmatpush1.msra.mxu0 %v4617
        %4808 = vmatprep.subr.mxu0 %v4622
        %4809 = vmatpush1.msra.mxu0 %v4621
        %4810 = vmatprep.subr.mxu0 %v4626
        %4811 = vmatpush1.msra.mxu0 %v4625
        %4812 = vmatprep.subr.mxu0 %v4630
        %4813 = vmatpush1.msra.mxu0 %v4629
        %4814 = vmatprep.subr.mxu0 %v4634
        %4815 = vmatpush1.msra.mxu0 %v4633
        %4816 = vmatprep.subr.mxu0 %v4638
        %4817 = vmatpush1.msra.mxu0 %v4637
        %4818 = vmatprep.subr.mxu0 %v4642
        %4819 = vmatpush1.msra.mxu0 %v4641
        %4820 = vmatprep.subr.mxu0 %v4646
        %4821 = vmatpush1.msra.mxu0 %v4645
        %4822 = vmatprep.subr.mxu0 %v4650
        %4823 = vmatpush1.msra.mxu0 %v4649
        %4824 = vmatprep.subr.mxu0 %v4654
        %4825 = vmatpush1.msra.mxu0 %v4653
        %4826 = vmatprep.subr.mxu0 %v4658
        %4827 = vmatpush1.msra.mxu0 %v4657
        %4828 = vmatprep.subr.mxu0 %v4662
        %4829 = vmatpush1.msra.mxu0 %v4661
        %4830 = vmatprep.subr.mxu0 %v4666
        %4831 = vmatpush1.msra.mxu0 %v4665
        %4832 = vmatprep.subr.mxu0 %v4670
        %4833 = vmatpush1.msra.mxu0 %v4669
        %4834 = vmatprep.subr.mxu0 %v4674
        %4835 = vmatpush1.msra.mxu0 %v4673
        %4836 = vmatprep.subr.mxu0 %v4678
        %4837 = vmatpush1.msra.mxu0 %v4677
        %4838 = vmatprep.subr.mxu0 %v4682
        %4839 = vmatpush1.msra.mxu0 %v4681
        %4840 = vmatprep.mubr.f32.mxu0 %v4553
        %4841 = vmatmul.mubr.f32.gmra.mrb[0].mxu0 %v4550
        %v4842 = vpop.f32.mrb[0].mxu0
        %v4843 = vadd.f32 %v4696, %v4842
        %v4844 = vpop.f32.mrb[0].mxu0
        %v4845 = vadd.f32 %v4700, %v4844
        %4846 = vdwg.mxu0
        %v4847 = vxor.u32 %v4772, 2147483648
        %v4848 = vmul.f32 %v4847, 1.442695
        %v4849 = vpow.pop %v4848
        %v4850 = vadd.f32 %v4849, 1.0
        %v4851 = vrcp.pop %v4850
        %v4852 = vmul.f32 1.0, %v4851
        %v4853 = vxor.u32 %v4774, 2147483648
        %v4854 = vmul.f32 %v4853, 1.442695
        %v4855 = vpow.pop %v4854
        %v4856 = vadd.f32 %v4855, 1.0
        %v4857 = vrcp.pop %v4856
        %v4858 = vmul.f32 1.0, %v4857
        %v4859 = vtanh.pop %v4843
        %v4860 = vxor.u32 %v4845, 2147483648
        %v4861 = vmul.f32 %v4860, 1.442695
        %v4862 = vpow.pop %v4861
        %v4863 = vadd.f32 %v4862, 1.0
        %v4864 = vrcp.pop %v4863
        %v4865 = vmul.f32 1.0, %v4864
        %v4866 = vmul.f32 %v4858, %v4554
        %v4867 = vmul.f32 %v4852, %v4859
        %v4868 = vadd.f32 %v4866, %v4867
        %v4869 = vtanh.pop %v4868
        %v4870 = vmul.f32 %v4865, %v4869
        %4871 = vst [vmem:[%s686] sm:$0xff] %v4870
        %4872 = vst [vmem:[%s688] sm:$0xff] %v4868
        %s4873 = scalar_lea.vmem %s346, 48 [#allocation13]
        %4874 = vst [vmem:[%s4873] sm:$0xff] %v4870
        %s4875 = scalar_lea.vmem %s304, 56 [#allocation4]
        %v4876 = vld [vmem:[%s4875] sm:$0xff]
        %v4877 = vld [vmem:[#allocation2] sm:$0xff]
        %v4878 = vld [vmem:[#allocation3] sm:$0xff]
        %v4879 = vld [vmem:[#allocation7] sm:$0xff]
        %v4880 = vld [vmem:[#allocation7 + $0x8] sm:$0xff]
        %v4881 = vld [vmem:[#allocation7 + $0x10] sm:$0xff]
        %v4882 = vld [vmem:[#allocation7 + $0x18] sm:$0xff]
        %v4883 = vld [vmem:[#allocation7 + $0x20] sm:$0xff]
        %v4884 = vld [vmem:[#allocation7 + $0x28] sm:$0xff]
        %v4885 = vld [vmem:[#allocation7 + $0x30] sm:$0xff]
        %v4886 = vld [vmem:[#allocation7 + $0x38] sm:$0xff]
        %v4887 = vld [vmem:[#allocation7 + $0x40] sm:$0xff]
        %v4888 = vld [vmem:[#allocation7 + $0x48] sm:$0xff]
        %v4889 = vld [vmem:[#allocation7 + $0x50] sm:$0xff]
        %v4890 = vld [vmem:[#allocation7 + $0x58] sm:$0xff]
        %v4891 = vld [vmem:[#allocation7 + $0x60] sm:$0xff]
        %v4892 = vld [vmem:[#allocation7 + $0x68] sm:$0xff]
        %v4893 = vld [vmem:[#allocation7 + $0x70] sm:$0xff]
        %v4894 = vld [vmem:[#allocation7 + $0x78] sm:$0xff]
        %v4895 = vld [vmem:[#allocation7 + $0x80] sm:$0xff]
        %v4896 = vld [vmem:[#allocation7 + $0x88] sm:$0xff]
        %v4897 = vld [vmem:[#allocation7 + $0x90] sm:$0xff]
        %v4898 = vld [vmem:[#allocation7 + $0x98] sm:$0xff]
        %v4899 = vld [vmem:[#allocation7 + $0xa0] sm:$0xff]
        %v4900 = vld [vmem:[#allocation7 + $0xa8] sm:$0xff]
        %v4901 = vld [vmem:[#allocation7 + $0xb0] sm:$0xff]
        %v4902 = vld [vmem:[#allocation7 + $0xb8] sm:$0xff]
        %v4903 = vld [vmem:[#allocation7 + $0xc0] sm:$0xff]
        %v4904 = vld [vmem:[#allocation7 + $0xc8] sm:$0xff]
        %v4905 = vld [vmem:[#allocation7 + $0xd0] sm:$0xff]
        %v4906 = vld [vmem:[#allocation7 + $0xd8] sm:$0xff]
        %v4907 = vld [vmem:[#allocation7 + $0xe0] sm:$0xff]
        %v4908 = vld [vmem:[#allocation7 + $0xe8] sm:$0xff]
        %v4909 = vld [vmem:[#allocation7 + $0xf0] sm:$0xff]
        %v4910 = vld [vmem:[#allocation7 + $0xf8] sm:$0xff]
        %v4911 = vld [vmem:[#allocation7 + $0x100] sm:$0xff]
        %v4912 = vld [vmem:[#allocation7 + $0x108] sm:$0xff]
        %v4913 = vld [vmem:[#allocation7 + $0x110] sm:$0xff]
        %v4914 = vld [vmem:[#allocation7 + $0x118] sm:$0xff]
        %v4915 = vld [vmem:[#allocation7 + $0x120] sm:$0xff]
        %v4916 = vld [vmem:[#allocation7 + $0x128] sm:$0xff]
        %v4917 = vld [vmem:[#allocation7 + $0x130] sm:$0xff]
        %v4918 = vld [vmem:[#allocation7 + $0x138] sm:$0xff]
        %v4919 = vld [vmem:[#allocation7 + $0x140] sm:$0xff]
        %v4920 = vld [vmem:[#allocation7 + $0x148] sm:$0xff]
        %v4921 = vld [vmem:[#allocation7 + $0x150] sm:$0xff]
        %v4922 = vld [vmem:[#allocation7 + $0x158] sm:$0xff]
        %v4923 = vld [vmem:[#allocation7 + $0x160] sm:$0xff]
        %v4924 = vld [vmem:[#allocation7 + $0x168] sm:$0xff]
        %v4925 = vld [vmem:[#allocation7 + $0x170] sm:$0xff]
        %v4926 = vld [vmem:[#allocation7 + $0x178] sm:$0xff]
        %v4927 = vld [vmem:[#allocation7 + $0x180] sm:$0xff]
        %v4928 = vld [vmem:[#allocation7 + $0x188] sm:$0xff]
        %v4929 = vld [vmem:[#allocation7 + $0x190] sm:$0xff]
        %v4930 = vld [vmem:[#allocation7 + $0x198] sm:$0xff]
        %v4931 = vld [vmem:[#allocation7 + $0x1a0] sm:$0xff]
        %v4932 = vld [vmem:[#allocation7 + $0x1a8] sm:$0xff]
        %v4933 = vld [vmem:[#allocation7 + $0x1b0] sm:$0xff]
        %v4934 = vld [vmem:[#allocation7 + $0x1b8] sm:$0xff]
        %v4935 = vld [vmem:[#allocation7 + $0x1c0] sm:$0xff]
        %v4936 = vld [vmem:[#allocation7 + $0x1c8] sm:$0xff]
        %v4937 = vld [vmem:[#allocation7 + $0x1d0] sm:$0xff]
        %v4938 = vld [vmem:[#allocation7 + $0x1d8] sm:$0xff]
        %v4939 = vld [vmem:[#allocation7 + $0x1e0] sm:$0xff]
        %v4940 = vld [vmem:[#allocation7 + $0x1e8] sm:$0xff]
        %v4941 = vld [vmem:[#allocation7 + $0x1f0] sm:$0xff]
        %v4942 = vld [vmem:[#allocation7 + $0x1f8] sm:$0xff]
        %v4943 = vld [vmem:[#allocation7 + $0x200] sm:$0xff]
        %v4944 = vld [vmem:[#allocation7 + $0x208] sm:$0xff]
        %v4945 = vld [vmem:[#allocation7 + $0x210] sm:$0xff]
        %v4946 = vld [vmem:[#allocation7 + $0x218] sm:$0xff]
        %v4947 = vld [vmem:[#allocation7 + $0x220] sm:$0xff]
        %v4948 = vld [vmem:[#allocation7 + $0x228] sm:$0xff]
        %v4949 = vld [vmem:[#allocation7 + $0x230] sm:$0xff]
        %v4950 = vld [vmem:[#allocation7 + $0x238] sm:$0xff]
        %v4951 = vld [vmem:[#allocation7 + $0x240] sm:$0xff]
        %v4952 = vld [vmem:[#allocation7 + $0x248] sm:$0xff]
        %v4953 = vld [vmem:[#allocation7 + $0x250] sm:$0xff]
        %v4954 = vld [vmem:[#allocation7 + $0x258] sm:$0xff]
        %v4955 = vld [vmem:[#allocation7 + $0x260] sm:$0xff]
        %v4956 = vld [vmem:[#allocation7 + $0x268] sm:$0xff]
        %v4957 = vld [vmem:[#allocation7 + $0x270] sm:$0xff]
        %v4958 = vld [vmem:[#allocation7 + $0x278] sm:$0xff]
        %v4959 = vld [vmem:[#allocation7 + $0x280] sm:$0xff]
        %v4960 = vld [vmem:[#allocation7 + $0x288] sm:$0xff]
        %v4961 = vld [vmem:[#allocation7 + $0x290] sm:$0xff]
        %v4962 = vld [vmem:[#allocation7 + $0x298] sm:$0xff]
        %v4963 = vld [vmem:[#allocation7 + $0x2a0] sm:$0xff]
        %v4964 = vld [vmem:[#allocation7 + $0x2a8] sm:$0xff]
        %v4965 = vld [vmem:[#allocation7 + $0x2b0] sm:$0xff]
        %v4966 = vld [vmem:[#allocation7 + $0x2b8] sm:$0xff]
        %v4967 = vld [vmem:[#allocation7 + $0x2c0] sm:$0xff]
        %v4968 = vld [vmem:[#allocation7 + $0x2c8] sm:$0xff]
        %v4969 = vld [vmem:[#allocation7 + $0x2d0] sm:$0xff]
        %v4970 = vld [vmem:[#allocation7 + $0x2d8] sm:$0xff]
        %v4971 = vld [vmem:[#allocation7 + $0x2e0] sm:$0xff]
        %v4972 = vld [vmem:[#allocation7 + $0x2e8] sm:$0xff]
        %v4973 = vld [vmem:[#allocation7 + $0x2f0] sm:$0xff]
        %v4974 = vld [vmem:[#allocation7 + $0x2f8] sm:$0xff]
        %v4975 = vld [vmem:[#allocation7 + $0x300] sm:$0xff]
        %v4976 = vld [vmem:[#allocation7 + $0x308] sm:$0xff]
        %v4977 = vld [vmem:[#allocation7 + $0x310] sm:$0xff]
        %v4978 = vld [vmem:[#allocation7 + $0x318] sm:$0xff]
        %v4979 = vld [vmem:[#allocation7 + $0x320] sm:$0xff]
        %v4980 = vld [vmem:[#allocation7 + $0x328] sm:$0xff]
        %v4981 = vld [vmem:[#allocation7 + $0x330] sm:$0xff]
        %v4982 = vld [vmem:[#allocation7 + $0x338] sm:$0xff]
        %v4983 = vld [vmem:[#allocation7 + $0x340] sm:$0xff]
        %v4984 = vld [vmem:[#allocation7 + $0x348] sm:$0xff]
        %v4985 = vld [vmem:[#allocation7 + $0x350] sm:$0xff]
        %v4986 = vld [vmem:[#allocation7 + $0x358] sm:$0xff]
        %v4987 = vld [vmem:[#allocation7 + $0x360] sm:$0xff]
        %v4988 = vld [vmem:[#allocation7 + $0x368] sm:$0xff]
        %v4989 = vld [vmem:[#allocation7 + $0x370] sm:$0xff]
        %v4990 = vld [vmem:[#allocation7 + $0x378] sm:$0xff]
        %v4991 = vld [vmem:[#allocation7 + $0x380] sm:$0xff]
        %v4992 = vld [vmem:[#allocation7 + $0x388] sm:$0xff]
        %v4993 = vld [vmem:[#allocation7 + $0x390] sm:$0xff]
        %v4994 = vld [vmem:[#allocation7 + $0x398] sm:$0xff]
        %v4995 = vld [vmem:[#allocation7 + $0x3a0] sm:$0xff]
        %v4996 = vld [vmem:[#allocation7 + $0x3a8] sm:$0xff]
        %v4997 = vld [vmem:[#allocation7 + $0x3b0] sm:$0xff]
        %v4998 = vld [vmem:[#allocation7 + $0x3b8] sm:$0xff]
        %v4999 = vld [vmem:[#allocation7 + $0x3c0] sm:$0xff]
        %v5000 = vld [vmem:[#allocation7 + $0x3c8] sm:$0xff]
        %v5001 = vld [vmem:[#allocation7 + $0x3d0] sm:$0xff]
        %v5002 = vld [vmem:[#allocation7 + $0x3d8] sm:$0xff]
        %v5003 = vld [vmem:[#allocation7 + $0x3e0] sm:$0xff]
        %v5004 = vld [vmem:[#allocation7 + $0x3e8] sm:$0xff]
        %v5005 = vld [vmem:[#allocation7 + $0x3f0] sm:$0xff]
        %v5006 = vld [vmem:[#allocation7 + $0x3f8] sm:$0xff]
        %v5007 = vld [vmem:[#allocation9] sm:$0xf]
        %v5009 = vlaneseq
        %v5010 = vshrl.u32 %v5009, 7
        %v5011 = vsub.s32 0, %v5010
        %v5012 = vrot.slane %v5007, %v5011
        %v5013 = vlaneseq
        %v5014 = vshrl.u32 %v5013, 7
        %v5015 = vsub.s32 1, %v5014
        %v5016 = vrot.slane %v5007, %v5015
        %v5017 = vlaneseq
        %v5018 = vshrl.u32 %v5017, 7
        %v5019 = vsub.s32 2, %v5018
        %v5020 = vrot.slane %v5007, %v5019
        %v5021 = vlaneseq
        %v5022 = vshrl.u32 %v5021, 7
        %v5023 = vsub.s32 3, %v5022
        %v5024 = vrot.slane %v5007, %v5023
        %5029 = vmatprep.subr.mxu0 %v4880
        %5030 = vmatpush1.msra.mxu0 %v4879
        %5031 = vmatprep.subr.mxu0 %v4884
        %5032 = vmatpush1.msra.mxu0 %v4883
        %5033 = vmatprep.subr.mxu0 %v4888
        %5034 = vmatpush1.msra.mxu0 %v4887
        %5035 = vmatprep.subr.mxu0 %v4892
        %5036 = vmatpush1.msra.mxu0 %v4891
        %5037 = vmatprep.subr.mxu0 %v4896
        %5038 = vmatpush1.msra.mxu0 %v4895
        %5039 = vmatprep.subr.mxu0 %v4900
        %5040 = vmatpush1.msra.mxu0 %v4899
        %5041 = vmatprep.subr.mxu0 %v4904
        %5042 = vmatpush1.msra.mxu0 %v4903
        %5043 = vmatprep.subr.mxu0 %v4908
        %5044 = vmatpush1.msra.mxu0 %v4907
        %5045 = vmatprep.subr.mxu0 %v4912
        %5046 = vmatpush1.msra.mxu0 %v4911
        %5047 = vmatprep.subr.mxu0 %v4916
        %5048 = vmatpush1.msra.mxu0 %v4915
        %5049 = vmatprep.subr.mxu0 %v4920
        %5050 = vmatpush1.msra.mxu0 %v4919
        %5051 = vmatprep.subr.mxu0 %v4924
        %5052 = vmatpush1.msra.mxu0 %v4923
        %5053 = vmatprep.subr.mxu0 %v4928
        %5054 = vmatpush1.msra.mxu0 %v4927
        %5055 = vmatprep.subr.mxu0 %v4932
        %5056 = vmatpush1.msra.mxu0 %v4931
        %5057 = vmatprep.subr.mxu0 %v4936
        %5058 = vmatpush1.msra.mxu0 %v4935
        %5059 = vmatprep.subr.mxu0 %v4940
        %5060 = vmatpush1.msra.mxu0 %v4939
        %5061 = vmatprep.subr.mxu0 %v4944
        %5062 = vmatpush1.msra.mxu0 %v4943
        %5063 = vmatprep.subr.mxu0 %v4948
        %5064 = vmatpush1.msra.mxu0 %v4947
        %5065 = vmatprep.subr.mxu0 %v4952
        %5066 = vmatpush1.msra.mxu0 %v4951
        %5067 = vmatprep.subr.mxu0 %v4956
        %5068 = vmatpush1.msra.mxu0 %v4955
        %5069 = vmatprep.subr.mxu0 %v4960
        %5070 = vmatpush1.msra.mxu0 %v4959
        %5071 = vmatprep.subr.mxu0 %v4964
        %5072 = vmatpush1.msra.mxu0 %v4963
        %5073 = vmatprep.subr.mxu0 %v4968
        %5074 = vmatpush1.msra.mxu0 %v4967
        %5075 = vmatprep.subr.mxu0 %v4972
        %5076 = vmatpush1.msra.mxu0 %v4971
        %5077 = vmatprep.subr.mxu0 %v4976
        %5078 = vmatpush1.msra.mxu0 %v4975
        %5079 = vmatprep.subr.mxu0 %v4980
        %5080 = vmatpush1.msra.mxu0 %v4979
        %5081 = vmatprep.subr.mxu0 %v4984
        %5082 = vmatpush1.msra.mxu0 %v4983
        %5083 = vmatprep.subr.mxu0 %v4988
        %5084 = vmatpush1.msra.mxu0 %v4987
        %5085 = vmatprep.subr.mxu0 %v4992
        %5086 = vmatpush1.msra.mxu0 %v4991
        %5087 = vmatprep.subr.mxu0 %v4996
        %5088 = vmatpush1.msra.mxu0 %v4995
        %5089 = vmatprep.subr.mxu0 %v5000
        %5090 = vmatpush1.msra.mxu0 %v4999
        %5091 = vmatprep.subr.mxu0 %v5004
        %5092 = vmatpush1.msra.mxu0 %v5003
        %5093 = vmatprep.mubr.f32.mxu0 %v4877
        %5094 = vmatmul.mubr.f32.gmra.mrb[0].mxu0 %v4876
        %v5095 = vpop.f32.mrb[0].mxu0
        %v5096 = vadd.f32 %v5012, %v5095
        %v5097 = vpop.f32.mrb[0].mxu0
        %v5098 = vadd.f32 %v5016, %v5097
        %5099 = vdwg.mxu0
        %5100 = vmatprep.subr.mxu0 %v4882
        %5101 = vmatpush1.msra.mxu0 %v4881
        %5102 = vmatprep.subr.mxu0 %v4886
        %5103 = vmatpush1.msra.mxu0 %v4885
        %5104 = vmatprep.subr.mxu0 %v4890
        %5105 = vmatpush1.msra.mxu0 %v4889
        %5106 = vmatprep.subr.mxu0 %v4894
        %5107 = vmatpush1.msra.mxu0 %v4893
        %5108 = vmatprep.subr.mxu0 %v4898
        %5109 = vmatpush1.msra.mxu0 %v4897
        %5110 = vmatprep.subr.mxu0 %v4902
        %5111 = vmatpush1.msra.mxu0 %v4901
        %5112 = vmatprep.subr.mxu0 %v4906
        %5113 = vmatpush1.msra.mxu0 %v4905
        %5114 = vmatprep.subr.mxu0 %v4910
        %5115 = vmatpush1.msra.mxu0 %v4909
        %5116 = vmatprep.subr.mxu0 %v4914
        %5117 = vmatpush1.msra.mxu0 %v4913
        %5118 = vmatprep.subr.mxu0 %v4918
        %5119 = vmatpush1.msra.mxu0 %v4917
        %5120 = vmatprep.subr.mxu0 %v4922
        %5121 = vmatpush1.msra.mxu0 %v4921
        %5122 = vmatprep.subr.mxu0 %v4926
        %5123 = vmatpush1.msra.mxu0 %v4925
        %5124 = vmatprep.subr.mxu0 %v4930
        %5125 = vmatpush1.msra.mxu0 %v4929
        %5126 = vmatprep.subr.mxu0 %v4934
        %5127 = vmatpush1.msra.mxu0 %v4933
        %5128 = vmatprep.subr.mxu0 %v4938
        %5129 = vmatpush1.msra.mxu0 %v4937
        %5130 = vmatprep.subr.mxu0 %v4942
        %5131 = vmatpush1.msra.mxu0 %v4941
        %5132 = vmatprep.subr.mxu0 %v4946
        %5133 = vmatpush1.msra.mxu0 %v4945
        %5134 = vmatprep.subr.mxu0 %v4950
        %5135 = vmatpush1.msra.mxu0 %v4949
        %5136 = vmatprep.subr.mxu0 %v4954
        %5137 = vmatpush1.msra.mxu0 %v4953
        %5138 = vmatprep.subr.mxu0 %v4958
        %5139 = vmatpush1.msra.mxu0 %v4957
        %5140 = vmatprep.subr.mxu0 %v4962
        %5141 = vmatpush1.msra.mxu0 %v4961
        %5142 = vmatprep.subr.mxu0 %v4966
        %5143 = vmatpush1.msra.mxu0 %v4965
        %5144 = vmatprep.subr.mxu0 %v4970
        %5145 = vmatpush1.msra.mxu0 %v4969
        %5146 = vmatprep.subr.mxu0 %v4974
        %5147 = vmatpush1.msra.mxu0 %v4973
        %5148 = vmatprep.subr.mxu0 %v4978
        %5149 = vmatpush1.msra.mxu0 %v4977
        %5150 = vmatprep.subr.mxu0 %v4982
        %5151 = vmatpush1.msra.mxu0 %v4981
        %5152 = vmatprep.subr.mxu0 %v4986
        %5153 = vmatpush1.msra.mxu0 %v4985
        %5154 = vmatprep.subr.mxu0 %v4990
        %5155 = vmatpush1.msra.mxu0 %v4989
        %5156 = vmatprep.subr.mxu0 %v4994
        %5157 = vmatpush1.msra.mxu0 %v4993
        %5158 = vmatprep.subr.mxu0 %v4998
        %5159 = vmatpush1.msra.mxu0 %v4997
        %5160 = vmatprep.subr.mxu0 %v5002
        %5161 = vmatpush1.msra.mxu0 %v5001
        %5162 = vmatprep.subr.mxu0 %v5006
        %5163 = vmatpush1.msra.mxu0 %v5005
        %5164 = vmatprep.mubr.f32.mxu0 %v4877
        %5165 = vmatmul.mubr.f32.gmra.mrb[0].mxu0 %v4876
        %v5166 = vpop.f32.mrb[0].mxu0
        %v5167 = vadd.f32 %v5020, %v5166
        %v5168 = vpop.f32.mrb[0].mxu0
        %v5169 = vadd.f32 %v5024, %v5168
        %5170 = vdwg.mxu0
        %v5171 = vxor.u32 %v5096, 2147483648
        %v5172 = vmul.f32 %v5171, 1.442695
        %v5173 = vpow.pop %v5172
        %v5174 = vadd.f32 %v5173, 1.0
        %v5175 = vrcp.pop %v5174
        %v5176 = vmul.f32 1.0, %v5175
        %v5177 = vxor.u32 %v5098, 2147483648
        %v5178 = vmul.f32 %v5177, 1.442695
        %v5179 = vpow.pop %v5178
        %v5180 = vadd.f32 %v5179, 1.0
        %v5181 = vrcp.pop %v5180
        %v5182 = vmul.f32 1.0, %v5181
        %v5183 = vtanh.pop %v5167
        %v5184 = vxor.u32 %v5169, 2147483648
        %v5185 = vmul.f32 %v5184, 1.442695
        %v5186 = vpow.pop %v5185
        %v5187 = vadd.f32 %v5186, 1.0
        %v5188 = vrcp.pop %v5187
        %v5189 = vmul.f32 1.0, %v5188
        %v5190 = vmul.f32 %v5182, %v4878
        %v5191 = vmul.f32 %v5176, %v5183
        %v5192 = vadd.f32 %v5190, %v5191
        %v5193 = vtanh.pop %v5192
        %v5194 = vmul.f32 %v5189, %v5193
        %5195 = vst [vmem:[#allocation2] sm:$0xff] %v5194
        %5196 = vst [vmem:[#allocation3] sm:$0xff] %v5192
        %v5197 = vld [vmem:[%s686] sm:$0xff]
        %v5198 = vld [vmem:[%s688] sm:$0xff]
        %v5199 = vld [vmem:[%s690] sm:$0xff]
        %v5200 = vld [vmem:[%s690 + $0x8] sm:$0xff]
        %v5201 = vld [vmem:[%s690 + $0x10] sm:$0xff]
        %v5202 = vld [vmem:[%s690 + $0x18] sm:$0xff]
        %v5203 = vld [vmem:[%s690 + $0x20] sm:$0xff]
        %v5204 = vld [vmem:[%s690 + $0x28] sm:$0xff]
        %v5205 = vld [vmem:[%s690 + $0x30] sm:$0xff]
        %v5206 = vld [vmem:[%s690 + $0x38] sm:$0xff]
        %v5207 = vld [vmem:[%s690 + $0x40] sm:$0xff]
        %v5208 = vld [vmem:[%s690 + $0x48] sm:$0xff]
        %v5209 = vld [vmem:[%s690 + $0x50] sm:$0xff]
        %v5210 = vld [vmem:[%s690 + $0x58] sm:$0xff]
        %v5211 = vld [vmem:[%s690 + $0x60] sm:$0xff]
        %v5212 = vld [vmem:[%s690 + $0x68] sm:$0xff]
        %v5213 = vld [vmem:[%s690 + $0x70] sm:$0xff]
        %v5214 = vld [vmem:[%s690 + $0x78] sm:$0xff]
        %v5215 = vld [vmem:[%s690 + $0x80] sm:$0xff]
        %v5216 = vld [vmem:[%s690 + $0x88] sm:$0xff]
        %v5217 = vld [vmem:[%s690 + $0x90] sm:$0xff]
        %v5218 = vld [vmem:[%s690 + $0x98] sm:$0xff]
        %v5219 = vld [vmem:[%s690 + $0xa0] sm:$0xff]
        %v5220 = vld [vmem:[%s690 + $0xa8] sm:$0xff]
        %v5221 = vld [vmem:[%s690 + $0xb0] sm:$0xff]
        %v5222 = vld [vmem:[%s690 + $0xb8] sm:$0xff]
        %v5223 = vld [vmem:[%s690 + $0xc0] sm:$0xff]
        %v5224 = vld [vmem:[%s690 + $0xc8] sm:$0xff]
        %v5225 = vld [vmem:[%s690 + $0xd0] sm:$0xff]
        %v5226 = vld [vmem:[%s690 + $0xd8] sm:$0xff]
        %v5227 = vld [vmem:[%s690 + $0xe0] sm:$0xff]
        %v5228 = vld [vmem:[%s690 + $0xe8] sm:$0xff]
        %v5229 = vld [vmem:[%s690 + $0xf0] sm:$0xff]
        %v5230 = vld [vmem:[%s690 + $0xf8] sm:$0xff]
        %v5231 = vld [vmem:[%s690 + $0x100] sm:$0xff]
        %v5232 = vld [vmem:[%s690 + $0x108] sm:$0xff]
        %v5233 = vld [vmem:[%s690 + $0x110] sm:$0xff]
        %v5234 = vld [vmem:[%s690 + $0x118] sm:$0xff]
        %v5235 = vld [vmem:[%s690 + $0x120] sm:$0xff]
        %v5236 = vld [vmem:[%s690 + $0x128] sm:$0xff]
        %v5237 = vld [vmem:[%s690 + $0x130] sm:$0xff]
        %v5238 = vld [vmem:[%s690 + $0x138] sm:$0xff]
        %v5239 = vld [vmem:[%s690 + $0x140] sm:$0xff]
        %v5240 = vld [vmem:[%s690 + $0x148] sm:$0xff]
        %v5241 = vld [vmem:[%s690 + $0x150] sm:$0xff]
        %v5242 = vld [vmem:[%s690 + $0x158] sm:$0xff]
        %v5243 = vld [vmem:[%s690 + $0x160] sm:$0xff]
        %v5244 = vld [vmem:[%s690 + $0x168] sm:$0xff]
        %v5245 = vld [vmem:[%s690 + $0x170] sm:$0xff]
        %v5246 = vld [vmem:[%s690 + $0x178] sm:$0xff]
        %v5247 = vld [vmem:[%s690 + $0x180] sm:$0xff]
        %v5248 = vld [vmem:[%s690 + $0x188] sm:$0xff]
        %v5249 = vld [vmem:[%s690 + $0x190] sm:$0xff]
        %v5250 = vld [vmem:[%s690 + $0x198] sm:$0xff]
        %v5251 = vld [vmem:[%s690 + $0x1a0] sm:$0xff]
        %v5252 = vld [vmem:[%s690 + $0x1a8] sm:$0xff]
        %v5253 = vld [vmem:[%s690 + $0x1b0] sm:$0xff]
        %v5254 = vld [vmem:[%s690 + $0x1b8] sm:$0xff]
        %v5255 = vld [vmem:[%s690 + $0x1c0] sm:$0xff]
        %v5256 = vld [vmem:[%s690 + $0x1c8] sm:$0xff]
        %v5257 = vld [vmem:[%s690 + $0x1d0] sm:$0xff]
        %v5258 = vld [vmem:[%s690 + $0x1d8] sm:$0xff]
        %v5259 = vld [vmem:[%s690 + $0x1e0] sm:$0xff]
        %v5260 = vld [vmem:[%s690 + $0x1e8] sm:$0xff]
        %v5261 = vld [vmem:[%s690 + $0x1f0] sm:$0xff]
        %v5262 = vld [vmem:[%s690 + $0x1f8] sm:$0xff]
        %v5263 = vld [vmem:[%s690 + $0x200] sm:$0xff]
        %v5264 = vld [vmem:[%s690 + $0x208] sm:$0xff]
        %v5265 = vld [vmem:[%s690 + $0x210] sm:$0xff]
        %v5266 = vld [vmem:[%s690 + $0x218] sm:$0xff]
        %v5267 = vld [vmem:[%s690 + $0x220] sm:$0xff]
        %v5268 = vld [vmem:[%s690 + $0x228] sm:$0xff]
        %v5269 = vld [vmem:[%s690 + $0x230] sm:$0xff]
        %v5270 = vld [vmem:[%s690 + $0x238] sm:$0xff]
        %v5271 = vld [vmem:[%s690 + $0x240] sm:$0xff]
        %v5272 = vld [vmem:[%s690 + $0x248] sm:$0xff]
        %v5273 = vld [vmem:[%s690 + $0x250] sm:$0xff]
        %v5274 = vld [vmem:[%s690 + $0x258] sm:$0xff]
        %v5275 = vld [vmem:[%s690 + $0x260] sm:$0xff]
        %v5276 = vld [vmem:[%s690 + $0x268] sm:$0xff]
        %v5277 = vld [vmem:[%s690 + $0x270] sm:$0xff]
        %v5278 = vld [vmem:[%s690 + $0x278] sm:$0xff]
        %v5279 = vld [vmem:[%s690 + $0x280] sm:$0xff]
        %v5280 = vld [vmem:[%s690 + $0x288] sm:$0xff]
        %v5281 = vld [vmem:[%s690 + $0x290] sm:$0xff]
        %v5282 = vld [vmem:[%s690 + $0x298] sm:$0xff]
        %v5283 = vld [vmem:[%s690 + $0x2a0] sm:$0xff]
        %v5284 = vld [vmem:[%s690 + $0x2a8] sm:$0xff]
        %v5285 = vld [vmem:[%s690 + $0x2b0] sm:$0xff]
        %v5286 = vld [vmem:[%s690 + $0x2b8] sm:$0xff]
        %v5287 = vld [vmem:[%s690 + $0x2c0] sm:$0xff]
        %v5288 = vld [vmem:[%s690 + $0x2c8] sm:$0xff]
        %v5289 = vld [vmem:[%s690 + $0x2d0] sm:$0xff]
        %v5290 = vld [vmem:[%s690 + $0x2d8] sm:$0xff]
        %v5291 = vld [vmem:[%s690 + $0x2e0] sm:$0xff]
        %v5292 = vld [vmem:[%s690 + $0x2e8] sm:$0xff]
        %v5293 = vld [vmem:[%s690 + $0x2f0] sm:$0xff]
        %v5294 = vld [vmem:[%s690 + $0x2f8] sm:$0xff]
        %v5295 = vld [vmem:[%s690 + $0x300] sm:$0xff]
        %v5296 = vld [vmem:[%s690 + $0x308] sm:$0xff]
        %v5297 = vld [vmem:[%s690 + $0x310] sm:$0xff]
        %v5298 = vld [vmem:[%s690 + $0x318] sm:$0xff]
        %v5299 = vld [vmem:[%s690 + $0x320] sm:$0xff]
        %v5300 = vld [vmem:[%s690 + $0x328] sm:$0xff]
        %v5301 = vld [vmem:[%s690 + $0x330] sm:$0xff]
        %v5302 = vld [vmem:[%s690 + $0x338] sm:$0xff]
        %v5303 = vld [vmem:[%s690 + $0x340] sm:$0xff]
        %v5304 = vld [vmem:[%s690 + $0x348] sm:$0xff]
        %v5305 = vld [vmem:[%s690 + $0x350] sm:$0xff]
        %v5306 = vld [vmem:[%s690 + $0x358] sm:$0xff]
        %v5307 = vld [vmem:[%s690 + $0x360] sm:$0xff]
        %v5308 = vld [vmem:[%s690 + $0x368] sm:$0xff]
        %v5309 = vld [vmem:[%s690 + $0x370] sm:$0xff]
        %v5310 = vld [vmem:[%s690 + $0x378] sm:$0xff]
        %v5311 = vld [vmem:[%s690 + $0x380] sm:$0xff]
        %v5312 = vld [vmem:[%s690 + $0x388] sm:$0xff]
        %v5313 = vld [vmem:[%s690 + $0x390] sm:$0xff]
        %v5314 = vld [vmem:[%s690 + $0x398] sm:$0xff]
        %v5315 = vld [vmem:[%s690 + $0x3a0] sm:$0xff]
        %v5316 = vld [vmem:[%s690 + $0x3a8] sm:$0xff]
        %v5317 = vld [vmem:[%s690 + $0x3b0] sm:$0xff]
        %v5318 = vld [vmem:[%s690 + $0x3b8] sm:$0xff]
        %v5319 = vld [vmem:[%s690 + $0x3c0] sm:$0xff]
        %v5320 = vld [vmem:[%s690 + $0x3c8] sm:$0xff]
        %v5321 = vld [vmem:[%s690 + $0x3d0] sm:$0xff]
        %v5322 = vld [vmem:[%s690 + $0x3d8] sm:$0xff]
        %v5323 = vld [vmem:[%s690 + $0x3e0] sm:$0xff]
        %v5324 = vld [vmem:[%s690 + $0x3e8] sm:$0xff]
        %v5325 = vld [vmem:[%s690 + $0x3f0] sm:$0xff]
        %v5326 = vld [vmem:[%s690 + $0x3f8] sm:$0xff]
        %v5327 = vld [vmem:[%s819] sm:$0xf]
        %v5329 = vlaneseq
        %v5330 = vshrl.u32 %v5329, 7
        %v5331 = vsub.s32 0, %v5330
        %v5332 = vrot.slane %v5327, %v5331
        %v5333 = vlaneseq
        %v5334 = vshrl.u32 %v5333, 7
        %v5335 = vsub.s32 1, %v5334
        %v5336 = vrot.slane %v5327, %v5335
        %v5337 = vlaneseq
        %v5338 = vshrl.u32 %v5337, 7
        %v5339 = vsub.s32 2, %v5338
        %v5340 = vrot.slane %v5327, %v5339
        %v5341 = vlaneseq
        %v5342 = vshrl.u32 %v5341, 7
        %v5343 = vsub.s32 3, %v5342
        %v5344 = vrot.slane %v5327, %v5343
        %5349 = vmatprep.subr.mxu0 %v5200
        %5350 = vmatpush1.msra.mxu0 %v5199
        %5351 = vmatprep.subr.mxu0 %v5204
        %5352 = vmatpush1.msra.mxu0 %v5203
        %5353 = vmatprep.subr.mxu0 %v5208
        %5354 = vmatpush1.msra.mxu0 %v5207
        %5355 = vmatprep.subr.mxu0 %v5212
        %5356 = vmatpush1.msra.mxu0 %v5211
        %5357 = vmatprep.subr.mxu0 %v5216
        %5358 = vmatpush1.msra.mxu0 %v5215
        %5359 = vmatprep.subr.mxu0 %v5220
        %5360 = vmatpush1.msra.mxu0 %v5219
        %5361 = vmatprep.subr.mxu0 %v5224
        %5362 = vmatpush1.msra.mxu0 %v5223
        %5363 = vmatprep.subr.mxu0 %v5228
        %5364 = vmatpush1.msra.mxu0 %v5227
        %5365 = vmatprep.subr.mxu0 %v5232
        %5366 = vmatpush1.msra.mxu0 %v5231
        %5367 = vmatprep.subr.mxu0 %v5236
        %5368 = vmatpush1.msra.mxu0 %v5235
        %5369 = vmatprep.subr.mxu0 %v5240
        %5370 = vmatpush1.msra.mxu0 %v5239
        %5371 = vmatprep.subr.mxu0 %v5244
        %5372 = vmatpush1.msra.mxu0 %v5243
        %5373 = vmatprep.subr.mxu0 %v5248
        %5374 = vmatpush1.msra.mxu0 %v5247
        %5375 = vmatprep.subr.mxu0 %v5252
        %5376 = vmatpush1.msra.mxu0 %v5251
        %5377 = vmatprep.subr.mxu0 %v5256
        %5378 = vmatpush1.msra.mxu0 %v5255
        %5379 = vmatprep.subr.mxu0 %v5260
        %5380 = vmatpush1.msra.mxu0 %v5259
        %5381 = vmatprep.subr.mxu0 %v5264
        %5382 = vmatpush1.msra.mxu0 %v5263
        %5383 = vmatprep.subr.mxu0 %v5268
        %5384 = vmatpush1.msra.mxu0 %v5267
        %5385 = vmatprep.subr.mxu0 %v5272
        %5386 = vmatpush1.msra.mxu0 %v5271
        %5387 = vmatprep.subr.mxu0 %v5276
        %5388 = vmatpush1.msra.mxu0 %v5275
        %5389 = vmatprep.subr.mxu0 %v5280
        %5390 = vmatpush1.msra.mxu0 %v5279
        %5391 = vmatprep.subr.mxu0 %v5284
        %5392 = vmatpush1.msra.mxu0 %v5283
        %5393 = vmatprep.subr.mxu0 %v5288
        %5394 = vmatpush1.msra.mxu0 %v5287
        %5395 = vmatprep.subr.mxu0 %v5292
        %5396 = vmatpush1.msra.mxu0 %v5291
        %5397 = vmatprep.subr.mxu0 %v5296
        %5398 = vmatpush1.msra.mxu0 %v5295
        %5399 = vmatprep.subr.mxu0 %v5300
        %5400 = vmatpush1.msra.mxu0 %v5299
        %5401 = vmatprep.subr.mxu0 %v5304
        %5402 = vmatpush1.msra.mxu0 %v5303
        %5403 = vmatprep.subr.mxu0 %v5308
        %5404 = vmatpush1.msra.mxu0 %v5307
        %5405 = vmatprep.subr.mxu0 %v5312
        %5406 = vmatpush1.msra.mxu0 %v5311
        %5407 = vmatprep.subr.mxu0 %v5316
        %5408 = vmatpush1.msra.mxu0 %v5315
        %5409 = vmatprep.subr.mxu0 %v5320
        %5410 = vmatpush1.msra.mxu0 %v5319
        %5411 = vmatprep.subr.mxu0 %v5324
        %5412 = vmatpush1.msra.mxu0 %v5323
        %5413 = vmatprep.mubr.f32.mxu0 %v5197
        %5414 = vmatmul.mubr.f32.gmra.mrb[0].mxu0 %v5194
        %v5415 = vpop.f32.mrb[0].mxu0
        %v5416 = vadd.f32 %v5332, %v5415
        %v5417 = vpop.f32.mrb[0].mxu0
        %v5418 = vadd.f32 %v5336, %v5417
        %5419 = vdwg.mxu0
        %5420 = vmatprep.subr.mxu0 %v5202
        %5421 = vmatpush1.msra.mxu0 %v5201
        %5422 = vmatprep.subr.mxu0 %v5206
        %5423 = vmatpush1.msra.mxu0 %v5205
        %5424 = vmatprep.subr.mxu0 %v5210
        %5425 = vmatpush1.msra.mxu0 %v5209
        %5426 = vmatprep.subr.mxu0 %v5214
        %5427 = vmatpush1.msra.mxu0 %v5213
        %5428 = vmatprep.subr.mxu0 %v5218
        %5429 = vmatpush1.msra.mxu0 %v5217
        %5430 = vmatprep.subr.mxu0 %v5222
        %5431 = vmatpush1.msra.mxu0 %v5221
        %5432 = vmatprep.subr.mxu0 %v5226
        %5433 = vmatpush1.msra.mxu0 %v5225
        %5434 = vmatprep.subr.mxu0 %v5230
        %5435 = vmatpush1.msra.mxu0 %v5229
        %5436 = vmatprep.subr.mxu0 %v5234
        %5437 = vmatpush1.msra.mxu0 %v5233
        %5438 = vmatprep.subr.mxu0 %v5238
        %5439 = vmatpush1.msra.mxu0 %v5237
        %5440 = vmatprep.subr.mxu0 %v5242
        %5441 = vmatpush1.msra.mxu0 %v5241
        %5442 = vmatprep.subr.mxu0 %v5246
        %5443 = vmatpush1.msra.mxu0 %v5245
        %5444 = vmatprep.subr.mxu0 %v5250
        %5445 = vmatpush1.msra.mxu0 %v5249
        %5446 = vmatprep.subr.mxu0 %v5254
        %5447 = vmatpush1.msra.mxu0 %v5253
        %5448 = vmatprep.subr.mxu0 %v5258
        %5449 = vmatpush1.msra.mxu0 %v5257
        %5450 = vmatprep.subr.mxu0 %v5262
        %5451 = vmatpush1.msra.mxu0 %v5261
        %5452 = vmatprep.subr.mxu0 %v5266
        %5453 = vmatpush1.msra.mxu0 %v5265
        %5454 = vmatprep.subr.mxu0 %v5270
        %5455 = vmatpush1.msra.mxu0 %v5269
        %5456 = vmatprep.subr.mxu0 %v5274
        %5457 = vmatpush1.msra.mxu0 %v5273
        %5458 = vmatprep.subr.mxu0 %v5278
        %5459 = vmatpush1.msra.mxu0 %v5277
        %5460 = vmatprep.subr.mxu0 %v5282
        %5461 = vmatpush1.msra.mxu0 %v5281
        %5462 = vmatprep.subr.mxu0 %v5286
        %5463 = vmatpush1.msra.mxu0 %v5285
        %5464 = vmatprep.subr.mxu0 %v5290
        %5465 = vmatpush1.msra.mxu0 %v5289
        %5466 = vmatprep.subr.mxu0 %v5294
        %5467 = vmatpush1.msra.mxu0 %v5293
        %5468 = vmatprep.subr.mxu0 %v5298
        %5469 = vmatpush1.msra.mxu0 %v5297
        %5470 = vmatprep.subr.mxu0 %v5302
        %5471 = vmatpush1.msra.mxu0 %v5301
        %5472 = vmatprep.subr.mxu0 %v5306
        %5473 = vmatpush1.msra.mxu0 %v5305
        %5474 = vmatprep.subr.mxu0 %v5310
        %5475 = vmatpush1.msra.mxu0 %v5309
        %5476 = vmatprep.subr.mxu0 %v5314
        %5477 = vmatpush1.msra.mxu0 %v5313
        %5478 = vmatprep.subr.mxu0 %v5318
        %5479 = vmatpush1.msra.mxu0 %v5317
        %5480 = vmatprep.subr.mxu0 %v5322
        %5481 = vmatpush1.msra.mxu0 %v5321
        %5482 = vmatprep.subr.mxu0 %v5326
        %5483 = vmatpush1.msra.mxu0 %v5325
        %5484 = vmatprep.mubr.f32.mxu0 %v5197
        %5485 = vmatmul.mubr.f32.gmra.mrb[0].mxu0 %v5194
        %v5486 = vpop.f32.mrb[0].mxu0
        %v5487 = vadd.f32 %v5340, %v5486
        %v5488 = vpop.f32.mrb[0].mxu0
        %v5489 = vadd.f32 %v5344, %v5488
        %5490 = vdwg.mxu0
        %v5491 = vxor.u32 %v5416, 2147483648
        %v5492 = vmul.f32 %v5491, 1.442695
        %v5493 = vpow.pop %v5492
        %v5494 = vadd.f32 %v5493, 1.0
        %v5495 = vrcp.pop %v5494
        %v5496 = vmul.f32 1.0, %v5495
        %v5497 = vxor.u32 %v5418, 2147483648
        %v5498 = vmul.f32 %v5497, 1.442695
        %v5499 = vpow.pop %v5498
        %v5500 = vadd.f32 %v5499, 1.0
        %v5501 = vrcp.pop %v5500
        %v5502 = vmul.f32 1.0, %v5501
        %v5503 = vtanh.pop %v5487
        %v5504 = vxor.u32 %v5489, 2147483648
        %v5505 = vmul.f32 %v5504, 1.442695
        %v5506 = vpow.pop %v5505
        %v5507 = vadd.f32 %v5506, 1.0
        %v5508 = vrcp.pop %v5507
        %v5509 = vmul.f32 1.0, %v5508
        %v5510 = vmul.f32 %v5502, %v5198
        %v5511 = vmul.f32 %v5496, %v5503
        %v5512 = vadd.f32 %v5510, %v5511
        %v5513 = vtanh.pop %v5512
        %v5514 = vmul.f32 %v5509, %v5513
        %5515 = vst [vmem:[%s686] sm:$0xff] %v5514
        %5516 = vst [vmem:[%s688] sm:$0xff] %v5512
        %s5517 = scalar_lea.vmem %s346, 56 [#allocation13]
        %5518 = vst [vmem:[%s5517] sm:$0xff] %v5514
        %p5519 = scmp.eq.s32.totalorder %s28, 1
        // Predicated region
        $region65: #{tpu_custom_call.1} parent=39 // pred_check
          %p5520 = pneg %p5519
        $region66: #{tpu_custom_call.1} parent=39 // pred_check_branch
          %5522 = sbr.rel (%p5520) target = $region68
        $region67: #{tpu_custom_call.1} parent=39 // pred_region
          %v5523 = vld [vmem:[#allocation2] sm:$0xff]
          %v5524 = vld [vmem:[#allocation2 + $0x8] sm:$0xff]
          %5525 = vst [vmem:[#allocation14] sm:$0xff] %v5523
          %5526 = vst [vmem:[#allocation14 + $0x8] sm:$0xff] %v5524
          %v5527 = vld [vmem:[#allocation3] sm:$0xff]
          %v5528 = vld [vmem:[#allocation3 + $0x8] sm:$0xff]
          %5529 = vst [vmem:[#allocation16] sm:$0xff] %v5527
          %5530 = vst [vmem:[#allocation16 + $0x8] sm:$0xff] %v5528
        $region68: #{tpu_custom_call.1} parent=39 // pred_fallthru
          _
        %s5531 = sand.u32 %s146, 1
        %s5532 = scalar_lea.sflag [#allocation6], %s5531
        %s5533 = sand.u32 %s146, 1
        %s5534 = smul.addr %s5533, 64
        %s5535 = scalar_lea.vmem [#allocation13], %s5534
        // Predicated region
        $region69: #{tpu_custom_call.1} parent=39 // pred_check
          %p5536 = pneg %p156
        $region70: #{tpu_custom_call.1} parent=39 // pred_check_branch
          %5538 = sbr.rel (%p5536) target = $region72
        $region71: #{tpu_custom_call.1} parent=39 // pred_region
          %s5539 = smul.u32 8, %s28
          %s5541 = ssub.s32 1024, 1024
          %5542 = vsyncadd %s5532, %s5541
          %s5543 = smul.addr %s5539, 128
          %s5544 = scalar_lea.hbm %s5, %s5543
          %s5545 = sshll.u32 %s5535, 4
          %s5546 = int_to_ptr.vmem [resolvable:$true] %s5545
          %5551 = dma.vmem_to_hbm [thread:$0]  %s5546, 1024, %s5544, %s5532, 128, 128, 8
        $region72: #{tpu_custom_call.1} parent=39 // pred_fallthru
          _
        // Predicated region
        $region73: #{tpu_custom_call.1} parent=39 // pred_check
          %p5552 = pneg %p177
        $region74: #{tpu_custom_call.1} parent=39 // pred_check_branch
          %5554 = sbr.rel (%p5552) target = $region76
        $region75: #{tpu_custom_call.1} parent=39 // pred_region
          %s5556 = ssub.s32 256, 256
          %5557 = vsyncadd [#allocation15], %s5556
          %s5558 = sshll.u32 [#allocation14], 4
          %s5559 = int_to_ptr.vmem [resolvable:$true] %s5558
          %5564 = dma.vmem_to_hbm [thread:$0]  %s5559, 256, %s6, [#allocation15], 128, 128, 8
        $region76: #{tpu_custom_call.1} parent=39 // pred_fallthru
          _
        // Predicated region
        $region77: #{tpu_custom_call.1} parent=39 // pred_check
          %p5565 = pneg %p198
        $region78: #{tpu_custom_call.1} parent=39 // pred_check_branch
          %5567 = sbr.rel (%p5565) target = $region80
        $region79: #{tpu_custom_call.1} parent=39 // pred_region
          %s5569 = ssub.s32 256, 256
          %5570 = vsyncadd [#allocation15], %s5569
          %s5571 = sshll.u32 [#allocation16], 4
          %s5572 = int_to_ptr.vmem [resolvable:$true] %s5571
          %5577 = dma.vmem_to_hbm [thread:$0]  %s5572, 256, %s7, [#allocation15], 128, 128, 8
        $region80: #{tpu_custom_call.1} parent=39 // pred_fallthru
          _
        // Predicated region
        $region81: #{tpu_custom_call.1} parent=39 // pred_check
          %p5578 = pneg %p177
        $region82: #{tpu_custom_call.1} parent=39 // pred_check_branch
          %5580 = sbr.rel (%p5578) target = $region84
        $region83: #{tpu_custom_call.1} parent=39 // pred_region
          %5581 = dma.done [#allocation15], 256
        $region84: #{tpu_custom_call.1} parent=39 // pred_fallthru
          _
        // Predicated region
        $region85: #{tpu_custom_call.1} parent=39 // pred_check
          %p5582 = pneg %p198
        $region86: #{tpu_custom_call.1} parent=39 // pred_check_branch
          %5584 = sbr.rel (%p5582) target = $region88
        $region87: #{tpu_custom_call.1} parent=39 // pred_region
          %5585 = dma.done [#allocation15], 256
        $region88: #{tpu_custom_call.1} parent=39 // pred_fallthru
          _
      $region40: #{tpu_custom_call.1} parent=5 // pred_fallthru
        _
      %p5586 = scmp.le.s32.totalorder 2, %s23
      // Predicated region
      $region89: #{tpu_custom_call.1} parent=5 // pred_check
        %p5587 = pneg %p5586
      $region90: #{tpu_custom_call.1} parent=5 // pred_check_branch
        %5589 = sbr.rel (%p5587) target = $region92
      $region91: #{tpu_custom_call.1} parent=5 // pred_region
        %s5590 = ssub.s32 %s23, 2
        // Predicated region
        $region93: #{tpu_custom_call.1} parent=91 // pred_check
          %p5591 = pneg %p162
        $region94: #{tpu_custom_call.1} parent=91 // pred_check_branch
          %5593 = sbr.rel (%p5591) target = $region96
        $region95: #{tpu_custom_call.1} parent=91 // pred_region
          %s5594 = sand.u32 %s147, 1
          %s5595 = scalar_lea.sflag [#allocation6], %s5594
          %s5596 = sand.u32 %s147, 1
          %s5597 = smul.addr %s5596, 64
          %s5598 = scalar_lea.vmem [#allocation13], %s5597
          %5599 = dma.done %s5595, 1024
        $region96: #{tpu_custom_call.1} parent=91 // pred_fallthru
          _
      $region92: #{tpu_custom_call.1} parent=5 // pred_fallthru
        _
    $region6: #{tpu_custom_call.1} parent=1 // loop_footer
      %s27 = sadd.s32 1, %s23
    $region7: #{tpu_custom_call.1} parent=1 // loop_footer_branch
      %22 = sbr.rel target = $region3
    $region8: #{tpu_custom_call.1} parent=1 // loop_exit
      _
    %5600 = vsyncpa [#allocation5], 1
    %s5601 = scalar_lea.sflag [#allocation5], 1
    %5602 = vsyncpa %s5601, 1
    %5603 = vsyncpa [#allocation8], 1
    %5604 = vsyncpa [#allocation11], 1
    %5605 = vsyncpa [#allocation6], 1
    %s5606 = scalar_lea.sflag [#allocation6], 1
    %5607 = vsyncpa %s5606, 1
    %5608 = vsyncpa [#allocation15], 1

</llo_original>
